<compile_context>
chip_gen: v5e
topology: v5e:2x2
jax: 0.10.0
libtpu: 0.0.40
codegen_flags: <defaults>
</compile_context>

<pallas_src>
import numpy as np
from numpy import sin, cos, tan, pi, arcsin, arctan

import jax
import jax.numpy as jnp
from jax.experimental import pallas as pl
from jax.experimental.pallas import tpu as pltpu


# ----------------------------------------------------------------------------
# Spherical sampling pattern (pure numpy, faithful port of the PyTorch helpers)
# ----------------------------------------------------------------------------
def get_xy(delta_phi, delta_theta):
    return np.array([
        [(-tan(delta_theta), 1 / cos(delta_theta) * tan(delta_phi)),
         (0, tan(delta_phi)),
         (tan(delta_theta), 1 / cos(delta_theta) * tan(delta_phi))],
        [(-tan(delta_theta), 0), (1, 1), (tan(delta_theta), 0)],
        [(-tan(delta_theta), -1 / cos(delta_theta) * tan(delta_phi)),
         (0, -tan(delta_phi)),
         (tan(delta_theta), -1 / cos(delta_theta) * tan(delta_phi))],
    ])


def cal_index(h, w, img_r, img_c):
    phi = -((img_r + 0.5) / h * pi - pi / 2)
    theta = (img_c + 0.5) / w * 2 * pi - pi
    delta_phi = pi / h
    delta_theta = 2 * pi / w
    xys = get_xy(delta_phi, delta_theta)
    x = xys[..., 0]
    y = xys[..., 1]
    rho = np.sqrt(x ** 2 + y ** 2)
    v = arctan(rho)
    new_phi = arcsin(cos(v) * sin(phi) + y * sin(v) * cos(phi) / rho)
    new_theta = theta + arctan(
        x * sin(v) / (rho * cos(phi) * cos(v) - y * sin(phi) * sin(v)))
    new_r = (-new_phi + pi / 2) * h / pi - 0.5
    new_c = (new_theta + pi) * w / 2 / pi - 0.5
    new_c = (new_c + w) % w
    new_result = np.stack([new_r, new_c], axis=-1)
    new_result[1, 1] = (img_r, img_c)
    return new_result


def gen_filters_coordinates(h, w, stride=1):
    co = np.array([[cal_index(h, w, i, j) for j in range(0, w, stride)]
                   for i in range(0, h, stride)])
    return np.ascontiguousarray(co.transpose([4, 0, 1, 2, 3]))  # (2, H, W, 3, 3)


def build_sampling_matrices(H, W):
    """Dense bilinear sampling operators S: (9, H*W, H*W), float32.

    Row S[k, p, :] holds the grid_sample(mode='bilinear', padding_mode='zeros',
    align_corners=False) weights at the spherical location of tap k for output
    pixel p (align_corners=False => pixel coord = value - 0.5).
    TODO(synk): validate ST directly against torch.nn.functional.grid_sample
    (align_corners flag / horizontal wrap) when torch is available.
    """
    co = gen_filters_coordinates(H, W, 1)            # (2, H, W, 3, 3) -> [r, c]
    S = np.zeros((9, H * W, H * W), np.float32)
    for i in range(H):
        for j in range(W):
            p = i * W + j
            for ki in range(3):
                for kj in range(3):
                    k = ki * 3 + kj
                    iy = co[0, i, j, ki, kj] - 0.5
                    ix = co[1, i, j, ki, kj] - 0.5
                    y0 = int(np.floor(iy))
                    x0 = int(np.floor(ix))
                    wy1 = iy - y0
                    wx1 = ix - x0
                    for yy, wy in ((y0, 1.0 - wy1), (y0 + 1, wy1)):
                        for xx, wx in ((x0, 1.0 - wx1), (x0 + 1, wx1)):
                            if 0 <= yy < H and 0 <= xx < W:
                                S[k, p, yy * W + xx] += wy * wx
    return S


def pack_sampling_operator(S):
    """(9, HW, HW) f32 -> (HW, 9*HW) bf16 with ST[q, k*HW + p] = S[k, p, q]."""
    HW = S.shape[1]
    return jnp.asarray(S.transpose(2, 0, 1).reshape(HW, 9 * HW), jnp.bfloat16)


# ----------------------------------------------------------------------------
# Pallas kernel
# ----------------------------------------------------------------------------
def _elu(v):
    # ELU(alpha=1); clamp exp arg to avoid overflow on the positive branch.
    return jnp.where(v > 0, v, jnp.exp(jnp.minimum(v, 0.0)) - 1.0)


def spherical_block_pallas(x, w0, b0, ST, wsph, bsph, w1, b1, w2=None, b2=None,
                           *, images_per_step=None):
    """x: (N, Cin, H*W) float32 (NCHW flattened). Returns (N, Cout, H*W) f32.

    Weights use the PyTorch conv layout (out_channels first):
      w0 (Cmid, Cin), wsph (9, Cmid, Cmid), w1 (Cout, Cmid), w2 (Cout, Cin);
      biases are (C, 1).  ST is the packed bf16 sampling operator (HW, 9*HW).
    """
    N, Cin, HW = x.shape
    Cmid = w0.shape[0]
    Cout = w1.shape[0]
    has_proj = w2 is not None
    if not has_proj:
        assert Cin == Cout, "identity residual requires inplanes == outplanes"

    # --- batch images per grid step so the sampling matmul has M = B*Cmid ----
    # Target M ~ 256 (v6e/v7x MXU edge; covers v5e's 128 as well).  Note for
    # v7x: when N is large, keep at least 2 grid steps (N >= 2*B) so both
    # TensorCores get work; ST is replicated per-TC (budget against 64 MiB).
    if images_per_step is None:
        images_per_step = max(1, min(N, -(-256 // max(Cmid, 1))))
    B = int(images_per_step)
    n_pad = (-N) % B
    if n_pad:
        x = jnp.concatenate([x, jnp.zeros((n_pad, Cin, HW), x.dtype)], axis=0)
    Ntot = N + n_pad

    # --- fuse conv0 + projection conv2 into one matmul on x (shared K=Cin) ---
    if has_proj:
        wcat = jnp.concatenate([w0, w2], axis=0)          # (Cmid+Cout, Cin)
        bcat = jnp.concatenate([b0, b2], axis=0)          # (Cmid+Cout, 1)
    else:
        wcat, bcat = w0, b0

    def kernel(x_ref, wcat_ref, bcat_ref, st_ref, wsph_ref, bsph_ref,
               w1_ref, b1_ref, o_ref, yacc_ref, *proj_scratch):
        res_ref = proj_scratch[0] if has_proj else None

        # Phase 1: fused 1x1 convs per image; pack ELU(conv0) rows into the
        # (B*Cmid, HW) LHS of the sampling matmul (sublane-tile aligned).
        for b in range(B):
            xb = x_ref[b]                                           # (Cin, HW)
            t = jnp.dot(wcat_ref[...], xb,
                        preferred_element_type=jnp.float32) + bcat_ref[...]
            yacc_ref[b * Cmid:(b + 1) * Cmid, :] = _elu(t[:Cmid])
            if has_proj:
                res_ref[b] = t[Cmid:]                               # (Cout, HW)

        # Phase 2: SphereConv2D grid_sample as ONE lane-dense bf16 MXU matmul
        # with M = B*Cmid, f32 accumulation.
        g = jnp.dot(yacc_ref[...].astype(jnp.bfloat16), st_ref[...],
                    preferred_element_type=jnp.float32)       # (B*Cmid, 9*HW)

        # Phase 3: 3x3 tap channel mixing (tree-summed independent partials),
        # conv1, residual add, final ELU — per image, all lane-dense.
        w_all = wsph_ref[...]                                 # (9, Cmid, Cmid)
        for b in range(B):
            gb = g[b * Cmid:(b + 1) * Cmid]                   # (Cmid, 9*HW)
            parts = [jnp.dot(w_all[k], gb[:, k * HW:(k + 1) * HW],
                             preferred_element_type=jnp.float32)
                     for k in range(9)]
            while len(parts) > 1:                             # tree reduction
                nxt = [parts[i] + parts[i + 1]
                       for i in range(0, len(parts) - 1, 2)]
                if len(parts) % 2:
                    nxt.append(parts[-1])
                parts = nxt
            z = _elu(parts[0] + bsph_ref[...])                # (Cmid, HW)

            out = jnp.dot(w1_ref[...], z,
                          preferred_element_type=jnp.float32) + b1_ref[...]
            res = res_ref[b] if has_proj else x_ref[b]
            o_ref[b] = _elu(out + res).astype(o_ref.dtype)

    # --- VMEM budget sized to the actual footprint (review item) ------------
    def _nbytes(a):
        return int(a.size) * int(np.dtype(a.dtype).itemsize)

    const_bytes = sum(_nbytes(a) for a in (wcat, bcat, ST, wsph, bsph, w1, b1))
    io_bytes = (B * Cin * HW + B * Cout * HW) * 4
    scratch_bytes = B * Cmid * HW * 4 + (B * Cout * HW * 4 if has_proj else 0)
    live_bytes = B * Cmid * 9 * HW * 4 + B * Cmid * HW * 2        # g + bf16 LHS
    needed = 2 * (const_bytes + io_bytes) + scratch_bytes + live_bytes
    vmem_limit = int(min(64 << 20, max(32 << 20, int(needed * 1.5))))

    def _const_spec(shape, pipeline_mode):
        imap = lambda n: (0,) * len(shape)
        if pipeline_mode is None:
            return pl.BlockSpec(shape, imap)
        return pl.BlockSpec(shape, imap, pipeline_mode=pipeline_mode)

    def build(pipeline_mode):
        in_specs = [
            pl.BlockSpec((B, Cin, HW), lambda n: (n, 0, 0)),        # x
            _const_spec(tuple(wcat.shape), pipeline_mode),          # [w0; w2]
            _const_spec(tuple(bcat.shape), pipeline_mode),          # [b0; b2]
            _const_spec((HW, 9 * HW), pipeline_mode),               # ST (bf16)
            _const_spec((9, Cmid, Cmid), pipeline_mode),            # wsph
            _const_spec((Cmid, 1), pipeline_mode),                  # bsph
            _const_spec((Cout, Cmid), pipeline_mode),               # w1
            _const_spec((Cout, 1), pipeline_mode),                  # b1
        ]
        scratch = [pltpu.VMEM((B * Cmid, HW), jnp.float32)]         # packed y
        if has_proj:
            scratch.append(pltpu.VMEM((B, Cout, HW), jnp.float32))  # residual
        return pl.pallas_call(
            kernel,
            out_shape=jax.ShapeDtypeStruct((Ntot, Cout, HW), jnp.float32),
            grid=(Ntot // B,),
            in_specs=in_specs,
            out_specs=pl.BlockSpec((B, Cout, HW), lambda n: (n, 0, 0)),
            scratch_shapes=scratch,
            compiler_params=pltpu.CompilerParams(
                dimension_semantics=("parallel",),
                vmem_limit_bytes=vmem_limit),
        )

    args = (x, wcat, bcat, ST, wsph, bsph, w1, b1)
    out = None
    if hasattr(pl, "Buffered"):
        try:
            # Grid-invariant operands: single-buffer (halves ST's VMEM share).
            out = jax.block_until_ready(build(pl.Buffered(1))(*args))
        except Exception:
            out = None
    if out is None:
        # TODO(synk): pipeline_mode=pl.Buffered(1) unsupported on this JAX
        # build; fall back to default double buffering of constants.
        out = build(None)(*args)

    return out[:N] if n_pad else out


# ----------------------------------------------------------------------------
# Pure-JAX reference (same math & bf16 sampling precision as the kernel)
# ----------------------------------------------------------------------------
def reference_forward(x, w0, b0, ST, wsph, bsph, w1, b1, w2=None, b2=None):
    N, Cin, HW = x.shape
    Cmid = w0.shape[0]
    y = _elu(jnp.einsum('oc,ncp->nop', w0, x) + b0[None])
    g = jnp.einsum('ncq,qm->ncm', y.astype(jnp.bfloat16), ST,
                   preferred_element_type=jnp.float32)        # (N, Cmid, 9*HW)
    g = g.reshape(N, Cmid, 9, HW)
    z = _elu(jnp.einsum('koc,nckp->nop', wsph, g) + bsph[None])
    out = jnp.einsum('oc,ncp->nop', w1, z) + b1[None]
    if w2 is not None:
        res = jnp.einsum('oc,ncp->nop', w2, x) + b2[None]
    else:
        res = x
    return _elu(out + res)


# ----------------------------------------------------------------------------
# Main
# ----------------------------------------------------------------------------
if __name__ == "__main__":
    N, inplanes, outplanes, H, W = 2, 4, 32, 16, 16
    Cmid = outplanes // 4
    HW = H * W

    key = jax.random.PRNGKey(0)
    ks = jax.random.split(key, 8)

    # NCHW input; flattening the spatial dims is already the kernel layout.
    x_nchw = jax.random.normal(ks[0], (N, inplanes, H, W), jnp.float32)
    x_flat = x_nchw.reshape(N, inplanes, HW)

    # Deterministic parameters (Kaiming-like scale; SphereConv2D bias is zero).
    w0 = jax.random.normal(ks[1], (Cmid, inplanes), jnp.float32) / np.sqrt(inplanes)
    b0 = 0.1 * jax.random.normal(ks[2], (Cmid, 1), jnp.float32)
    wsph = jax.random.normal(ks[3], (9, Cmid, Cmid), jnp.float32) / np.sqrt(9 * Cmid)
    bsph = jnp.zeros((Cmid, 1), jnp.float32)
    w1 = jax.random.normal(ks[4], (outplanes, Cmid), jnp.float32) / np.sqrt(Cmid)
    b1 = 0.1 * jax.random.normal(ks[5], (outplanes, 1), jnp.float32)
    # inplanes != outplanes -> projection residual (conv2)
    w2 = jax.random.normal(ks[6], (outplanes, inplanes), jnp.float32) / np.sqrt(inplanes)
    b2 = 0.1 * jax.random.normal(ks[7], (outplanes, 1), jnp.float32)

    # Precomputed spherical grid_sample operator (data-independent), bf16-packed.
    S = build_sampling_matrices(H, W)
    ST = pack_sampling_operator(S)

    out_flat = spherical_block_pallas(x_flat, w0, b0, ST, wsph, bsph,
                                      w1, b1, w2, b2)
    out_flat = jax.block_until_ready(out_flat)

    # (N, Cout, H*W) is NCHW flattened -> reshape back, no transpose needed.
    out_nchw = out_flat.reshape(N, outplanes, H, W)
    assert out_nchw.shape == (N, outplanes, H, W)

    ref = reference_forward(x_flat, w0, b0, ST, wsph, bsph, w1, b1, w2, b2)
    np.testing.assert_allclose(np.asarray(out_flat), np.asarray(ref),
                               atol=2e-2, rtol=2e-2)

    print("KERNEL_OK")
</pallas_src>

<mosaic_0001>
module attributes {stable_mosaic.version = 11 : i64} {
  func.func @kernel(%arg0: i32, %arg1: memref<2x4x256xf32, #tpu.memory_space<vmem>>, %arg2: memref<40x4xf32, #tpu.memory_space<vmem>>, %arg3: memref<40x1xf32, #tpu.memory_space<vmem>>, %arg4: memref<256x2304xbf16, #tpu.memory_space<vmem>>, %arg5: memref<9x8x8xf32, #tpu.memory_space<vmem>>, %arg6: memref<8x1xf32, #tpu.memory_space<vmem>>, %arg7: memref<32x8xf32, #tpu.memory_space<vmem>>, %arg8: memref<32x1xf32, #tpu.memory_space<vmem>>, %arg9: memref<2x32x256xf32, #tpu.memory_space<vmem>>, %arg10: memref<16x256xf32, #tpu.memory_space<vmem>>, %arg11: memref<2x32x256xf32, #tpu.memory_space<vmem>>) attributes {dimension_semantics = [#tpu.dimension_semantics<parallel>], iteration_bounds = array<i64: 1>, scalar_prefetch = 0 : i64, scratch_operands = 2 : i64, tpu.core_type = #tpu.core_type<tc>, window_params = [{transform_indices = @transform_0, window_bounds = array<i64: 2, 4, 256>}, {pipeline_mode = #tpu.pipeline_mode<synchronous>, transform_indices = @transform_1, window_bounds = array<i64: 40, 4>}, {pipeline_mode = #tpu.pipeline_mode<synchronous>, transform_indices = @transform_2, window_bounds = array<i64: 40, 1>}, {pipeline_mode = #tpu.pipeline_mode<synchronous>, transform_indices = @transform_3, window_bounds = array<i64: 256, 2304>}, {pipeline_mode = #tpu.pipeline_mode<synchronous>, transform_indices = @transform_4, window_bounds = array<i64: 9, 8, 8>}, {pipeline_mode = #tpu.pipeline_mode<synchronous>, transform_indices = @transform_5, window_bounds = array<i64: 8, 1>}, {pipeline_mode = #tpu.pipeline_mode<synchronous>, transform_indices = @transform_6, window_bounds = array<i64: 32, 8>}, {pipeline_mode = #tpu.pipeline_mode<synchronous>, transform_indices = @transform_7, window_bounds = array<i64: 32, 1>}, {transform_indices = @transform_8, window_bounds = array<i64: 2, 32, 256>}]} {
    %c0 = arith.constant 0 : index
    %c0_0 = arith.constant 0 : index
    %c0_1 = arith.constant 0 : index
    %0 = vector.load %arg1[%c0, %c0_0, %c0_1] : memref<2x4x256xf32, #tpu.memory_space<vmem>>, vector<1x4x256xf32>
    %1 = vector.shape_cast %0 : vector<1x4x256xf32> to vector<4x256xf32>
    %c0_2 = arith.constant 0 : index
    %c0_3 = arith.constant 0 : index
    %2 = vector.load %arg2[%c0_2, %c0_3] : memref<40x4xf32, #tpu.memory_space<vmem>>, vector<40x4xf32>
    %cst = arith.constant dense<0.000000e+00> : vector<40x256xf32>
    %3 = tpu.matmul %2, %1, %cst {dimension_numbers = #tpu.dot_dimension_numbers<[1], [0], [0], [1], [0, 0, 1, 1], [], []>} : vector<40x4xf32>, vector<4x256xf32>, vector<40x256xf32> -> vector<40x256xf32>
    %c0_4 = arith.constant 0 : index
    %c0_5 = arith.constant 0 : index
    %4 = vector.load %arg3[%c0_4, %c0_5] : memref<40x1xf32, #tpu.memory_space<vmem>>, vector<40x1xf32>
    %5 = vector.broadcast %4 : vector<40x1xf32> to vector<40x256xf32>
    %6 = arith.addf %3, %5 : vector<40x256xf32>
    %7 = vector.extract_strided_slice %6 {offsets = [0, 0], sizes = [8, 256], strides = [1, 1]} : vector<40x256xf32> to vector<8x256xf32>
    %cst_6 = arith.constant 0.000000e+00 : f32
    %8 = vector.broadcast %cst_6 : f32 to vector<8x256xf32>
    %9 = arith.cmpf ogt, %7, %8 : vector<8x256xf32>
    %cst_7 = arith.constant 0.000000e+00 : f32
    %10 = vector.broadcast %cst_7 : f32 to vector<8x256xf32>
    %11 = arith.minimumf %7, %10 : vector<8x256xf32>
    %12 = math.exp %11 : vector<8x256xf32>
    %cst_8 = arith.constant 1.000000e+00 : f32
    %13 = vector.broadcast %cst_8 : f32 to vector<8x256xf32>
    %14 = arith.subf %12, %13 : vector<8x256xf32>
    %15 = arith.select %9, %7, %14 : vector<8x256xi1>, vector<8x256xf32>
    %c0_9 = arith.constant 0 : index
    %c0_10 = arith.constant 0 : index
    %16 = vector.load %arg10[%c0_9, %c0_10] : memref<16x256xf32, #tpu.memory_space<vmem>>, vector<8x256xf32>
    tpu.vector_store %arg10[%c0_9, %c0_10], %15 {strides = array<i32>} : memref<16x256xf32, #tpu.memory_space<vmem>>, vector<8x256xf32>,
    %17 = vector.extract_strided_slice %6 {offsets = [8, 0], sizes = [32, 256], strides = [1, 1]} : vector<40x256xf32> to vector<32x256xf32>
    %c0_11 = arith.constant 0 : index
    %c0_12 = arith.constant 0 : index
    %c0_13 = arith.constant 0 : index
    %18 = vector.load %arg11[%c0_11, %c0_12, %c0_13] : memref<2x32x256xf32, #tpu.memory_space<vmem>>, vector<1x32x256xf32>
    %19 = vector.shape_cast %18 : vector<1x32x256xf32> to vector<32x256xf32>
    %20 = vector.shape_cast %17 : vector<32x256xf32> to vector<1x32x256xf32>
    tpu.vector_store %arg11[%c0_11, %c0_12, %c0_13], %20 {strides = array<i32>} : memref<2x32x256xf32, #tpu.memory_space<vmem>>, vector<1x32x256xf32>,
    %c1 = arith.constant 1 : index
    %c0_14 = arith.constant 0 : index
    %c0_15 = arith.constant 0 : index
    %21 = vector.load %arg1[%c1, %c0_14, %c0_15] : memref<2x4x256xf32, #tpu.memory_space<vmem>>, vector<1x4x256xf32>
    %22 = vector.shape_cast %21 : vector<1x4x256xf32> to vector<4x256xf32>
    %c0_16 = arith.constant 0 : index
    %c0_17 = arith.constant 0 : index
    %23 = vector.load %arg2[%c0_16, %c0_17] : memref<40x4xf32, #tpu.memory_space<vmem>>, vector<40x4xf32>
    %cst_18 = arith.constant dense<0.000000e+00> : vector<40x256xf32>
    %24 = tpu.matmul %23, %22, %cst_18 {dimension_numbers = #tpu.dot_dimension_numbers<[1], [0], [0], [1], [0, 0, 1, 1], [], []>} : vector<40x4xf32>, vector<4x256xf32>, vector<40x256xf32> -> vector<40x256xf32>
    %c0_19 = arith.constant 0 : index
    %c0_20 = arith.constant 0 : index
    %25 = vector.load %arg3[%c0_19, %c0_20] : memref<40x1xf32, #tpu.memory_space<vmem>>, vector<40x1xf32>
    %26 = vector.broadcast %25 : vector<40x1xf32> to vector<40x256xf32>
    %27 = arith.addf %24, %26 : vector<40x256xf32>
    %28 = vector.extract_strided_slice %27 {offsets = [0, 0], sizes = [8, 256], strides = [1, 1]} : vector<40x256xf32> to vector<8x256xf32>
    %cst_21 = arith.constant 0.000000e+00 : f32
    %29 = vector.broadcast %cst_21 : f32 to vector<8x256xf32>
    %30 = arith.cmpf ogt, %28, %29 : vector<8x256xf32>
    %cst_22 = arith.constant 0.000000e+00 : f32
    %31 = vector.broadcast %cst_22 : f32 to vector<8x256xf32>
    %32 = arith.minimumf %28, %31 : vector<8x256xf32>
    %33 = math.exp %32 : vector<8x256xf32>
    %cst_23 = arith.constant 1.000000e+00 : f32
    %34 = vector.broadcast %cst_23 : f32 to vector<8x256xf32>
    %35 = arith.subf %33, %34 : vector<8x256xf32>
    %36 = arith.select %30, %28, %35 : vector<8x256xi1>, vector<8x256xf32>
    %c8 = arith.constant 8 : index
    %c0_24 = arith.constant 0 : index
    %37 = vector.load %arg10[%c8, %c0_24] : memref<16x256xf32, #tpu.memory_space<vmem>>, vector<8x256xf32>
    tpu.vector_store %arg10[%c8, %c0_24], %36 {strides = array<i32>} : memref<16x256xf32, #tpu.memory_space<vmem>>, vector<8x256xf32>,
    %38 = vector.extract_strided_slice %27 {offsets = [8, 0], sizes = [32, 256], strides = [1, 1]} : vector<40x256xf32> to vector<32x256xf32>
    %c1_25 = arith.constant 1 : index
    %c0_26 = arith.constant 0 : index
    %c0_27 = arith.constant 0 : index
    %39 = vector.load %arg11[%c1_25, %c0_26, %c0_27] : memref<2x32x256xf32, #tpu.memory_space<vmem>>, vector<1x32x256xf32>
    %40 = vector.shape_cast %39 : vector<1x32x256xf32> to vector<32x256xf32>
    %41 = vector.shape_cast %38 : vector<32x256xf32> to vector<1x32x256xf32>
    tpu.vector_store %arg11[%c1_25, %c0_26, %c0_27], %41 {strides = array<i32>} : memref<2x32x256xf32, #tpu.memory_space<vmem>>, vector<1x32x256xf32>,
    %c0_28 = arith.constant 0 : index
    %c0_29 = arith.constant 0 : index
    %42 = vector.load %arg10[%c0_28, %c0_29] : memref<16x256xf32, #tpu.memory_space<vmem>>, vector<16x256xf32>
    %43 = arith.truncf %42 : vector<16x256xf32> to vector<16x256xbf16>
    %c0_30 = arith.constant 0 : index
    %c0_31 = arith.constant 0 : index
    %44 = vector.load %arg4[%c0_30, %c0_31] : memref<256x2304xbf16, #tpu.memory_space<vmem>>, vector<256x2304xbf16>
    %cst_32 = arith.constant dense<0.000000e+00> : vector<16x2304xf32>
    %45 = tpu.matmul %43, %44, %cst_32 {dimension_numbers = #tpu.dot_dimension_numbers<[1], [0], [0], [1], [0, 0, 1, 1], [], []>} : vector<16x256xbf16>, vector<256x2304xbf16>, vector<16x2304xf32> -> vector<16x2304xf32>
    %c0_33 = arith.constant 0 : index
    %c0_34 = arith.constant 0 : index
    %c0_35 = arith.constant 0 : index
    %46 = vector.load %arg5[%c0_33, %c0_34, %c0_35] : memref<9x8x8xf32, #tpu.memory_space<vmem>>, vector<9x8x8xf32>
    %47 = vector.extract_strided_slice %45 {offsets = [0, 0], sizes = [8, 2304], strides = [1, 1]} : vector<16x2304xf32> to vector<8x2304xf32>
    %48 = vector.extract_strided_slice %46 {offsets = [0, 0, 0], sizes = [1, 8, 8], strides = [1, 1, 1]} : vector<9x8x8xf32> to vector<1x8x8xf32>
    %49 = vector.shape_cast %48 : vector<1x8x8xf32> to vector<8x8xf32>
    %50 = vector.extract_strided_slice %47 {offsets = [0, 0], sizes = [8, 256], strides = [1, 1]} : vector<8x2304xf32> to vector<8x256xf32>
    %cst_36 = arith.constant dense<0.000000e+00> : vector<8x256xf32>
    %51 = tpu.matmul %49, %50, %cst_36 {dimension_numbers = #tpu.dot_dimension_numbers<[1], [0], [0], [1], [0, 0, 1, 1], [], []>} : vector<8x8xf32>, vector<8x256xf32>, vector<8x256xf32> -> vector<8x256xf32>
    %52 = vector.extract_strided_slice %46 {offsets = [1, 0, 0], sizes = [1, 8, 8], strides = [1, 1, 1]} : vector<9x8x8xf32> to vector<1x8x8xf32>
    %53 = vector.shape_cast %52 : vector<1x8x8xf32> to vector<8x8xf32>
    %54 = vector.extract_strided_slice %47 {offsets = [0, 256], sizes = [8, 256], strides = [1, 1]} : vector<8x2304xf32> to vector<8x256xf32>
    %cst_37 = arith.constant dense<0.000000e+00> : vector<8x256xf32>
    %55 = tpu.matmul %53, %54, %cst_37 {dimension_numbers = #tpu.dot_dimension_numbers<[1], [0], [0], [1], [0, 0, 1, 1], [], []>} : vector<8x8xf32>, vector<8x256xf32>, vector<8x256xf32> -> vector<8x256xf32>
    %56 = vector.extract_strided_slice %46 {offsets = [2, 0, 0], sizes = [1, 8, 8], strides = [1, 1, 1]} : vector<9x8x8xf32> to vector<1x8x8xf32>
    %57 = vector.shape_cast %56 : vector<1x8x8xf32> to vector<8x8xf32>
    %58 = vector.extract_strided_slice %47 {offsets = [0, 512], sizes = [8, 256], strides = [1, 1]} : vector<8x2304xf32> to vector<8x256xf32>
    %cst_38 = arith.constant dense<0.000000e+00> : vector<8x256xf32>
    %59 = tpu.matmul %57, %58, %cst_38 {dimension_numbers = #tpu.dot_dimension_numbers<[1], [0], [0], [1], [0, 0, 1, 1], [], []>} : vector<8x8xf32>, vector<8x256xf32>, vector<8x256xf32> -> vector<8x256xf32>
    %60 = vector.extract_strided_slice %46 {offsets = [3, 0, 0], sizes = [1, 8, 8], strides = [1, 1, 1]} : vector<9x8x8xf32> to vector<1x8x8xf32>
    %61 = vector.shape_cast %60 : vector<1x8x8xf32> to vector<8x8xf32>
    %62 = vector.extract_strided_slice %47 {offsets = [0, 768], sizes = [8, 256], strides = [1, 1]} : vector<8x2304xf32> to vector<8x256xf32>
    %cst_39 = arith.constant dense<0.000000e+00> : vector<8x256xf32>
    %63 = tpu.matmul %61, %62, %cst_39 {dimension_numbers = #tpu.dot_dimension_numbers<[1], [0], [0], [1], [0, 0, 1, 1], [], []>} : vector<8x8xf32>, vector<8x256xf32>, vector<8x256xf32> -> vector<8x256xf32>
    %64 = vector.extract_strided_slice %46 {offsets = [4, 0, 0], sizes = [1, 8, 8], strides = [1, 1, 1]} : vector<9x8x8xf32> to vector<1x8x8xf32>
    %65 = vector.shape_cast %64 : vector<1x8x8xf32> to vector<8x8xf32>
    %66 = vector.extract_strided_slice %47 {offsets = [0, 1024], sizes = [8, 256], strides = [1, 1]} : vector<8x2304xf32> to vector<8x256xf32>
    %cst_40 = arith.constant dense<0.000000e+00> : vector<8x256xf32>
    %67 = tpu.matmul %65, %66, %cst_40 {dimension_numbers = #tpu.dot_dimension_numbers<[1], [0], [0], [1], [0, 0, 1, 1], [], []>} : vector<8x8xf32>, vector<8x256xf32>, vector<8x256xf32> -> vector<8x256xf32>
    %68 = vector.extract_strided_slice %46 {offsets = [5, 0, 0], sizes = [1, 8, 8], strides = [1, 1, 1]} : vector<9x8x8xf32> to vector<1x8x8xf32>
    %69 = vector.shape_cast %68 : vector<1x8x8xf32> to vector<8x8xf32>
    %70 = vector.extract_strided_slice %47 {offsets = [0, 1280], sizes = [8, 256], strides = [1, 1]} : vector<8x2304xf32> to vector<8x256xf32>
    %cst_41 = arith.constant dense<0.000000e+00> : vector<8x256xf32>
    %71 = tpu.matmul %69, %70, %cst_41 {dimension_numbers = #tpu.dot_dimension_numbers<[1], [0], [0], [1], [0, 0, 1, 1], [], []>} : vector<8x8xf32>, vector<8x256xf32>, vector<8x256xf32> -> vector<8x256xf32>
    %72 = vector.extract_strided_slice %46 {offsets = [6, 0, 0], sizes = [1, 8, 8], strides = [1, 1, 1]} : vector<9x8x8xf32> to vector<1x8x8xf32>
    %73 = vector.shape_cast %72 : vector<1x8x8xf32> to vector<8x8xf32>
    %74 = vector.extract_strided_slice %47 {offsets = [0, 1536], sizes = [8, 256], strides = [1, 1]} : vector<8x2304xf32> to vector<8x256xf32>
    %cst_42 = arith.constant dense<0.000000e+00> : vector<8x256xf32>
    %75 = tpu.matmul %73, %74, %cst_42 {dimension_numbers = #tpu.dot_dimension_numbers<[1], [0], [0], [1], [0, 0, 1, 1], [], []>} : vector<8x8xf32>, vector<8x256xf32>, vector<8x256xf32> -> vector<8x256xf32>
    %76 = vector.extract_strided_slice %46 {offsets = [7, 0, 0], sizes = [1, 8, 8], strides = [1, 1, 1]} : vector<9x8x8xf32> to vector<1x8x8xf32>
    %77 = vector.shape_cast %76 : vector<1x8x8xf32> to vector<8x8xf32>
    %78 = vector.extract_strided_slice %47 {offsets = [0, 1792], sizes = [8, 256], strides = [1, 1]} : vector<8x2304xf32> to vector<8x256xf32>
    %cst_43 = arith.constant dense<0.000000e+00> : vector<8x256xf32>
    %79 = tpu.matmul %77, %78, %cst_43 {dimension_numbers = #tpu.dot_dimension_numbers<[1], [0], [0], [1], [0, 0, 1, 1], [], []>} : vector<8x8xf32>, vector<8x256xf32>, vector<8x256xf32> -> vector<8x256xf32>
    %80 = vector.extract_strided_slice %46 {offsets = [8, 0, 0], sizes = [1, 8, 8], strides = [1, 1, 1]} : vector<9x8x8xf32> to vector<1x8x8xf32>
    %81 = vector.shape_cast %80 : vector<1x8x8xf32> to vector<8x8xf32>
    %82 = vector.extract_strided_slice %47 {offsets = [0, 2048], sizes = [8, 256], strides = [1, 1]} : vector<8x2304xf32> to vector<8x256xf32>
    %cst_44 = arith.constant dense<0.000000e+00> : vector<8x256xf32>
    %83 = tpu.matmul %81, %82, %cst_44 {dimension_numbers = #tpu.dot_dimension_numbers<[1], [0], [0], [1], [0, 0, 1, 1], [], []>} : vector<8x8xf32>, vector<8x256xf32>, vector<8x256xf32> -> vector<8x256xf32>
    %84 = arith.addf %51, %55 : vector<8x256xf32>
    %85 = arith.addf %59, %63 : vector<8x256xf32>
    %86 = arith.addf %67, %71 : vector<8x256xf32>
    %87 = arith.addf %75, %79 : vector<8x256xf32>
    %88 = arith.addf %84, %85 : vector<8x256xf32>
    %89 = arith.addf %86, %87 : vector<8x256xf32>
    %90 = arith.addf %88, %89 : vector<8x256xf32>
    %91 = arith.addf %90, %83 : vector<8x256xf32>
    %c0_45 = arith.constant 0 : index
    %c0_46 = arith.constant 0 : index
    %92 = vector.load %arg6[%c0_45, %c0_46] : memref<8x1xf32, #tpu.memory_space<vmem>>, vector<8x1xf32>
    %93 = vector.broadcast %92 : vector<8x1xf32> to vector<8x256xf32>
    %94 = arith.addf %91, %93 : vector<8x256xf32>
    %cst_47 = arith.constant 0.000000e+00 : f32
    %95 = vector.broadcast %cst_47 : f32 to vector<8x256xf32>
    %96 = arith.cmpf ogt, %94, %95 : vector<8x256xf32>
    %cst_48 = arith.constant 0.000000e+00 : f32
    %97 = vector.broadcast %cst_48 : f32 to vector<8x256xf32>
    %98 = arith.minimumf %94, %97 : vector<8x256xf32>
    %99 = math.exp %98 : vector<8x256xf32>
    %cst_49 = arith.constant 1.000000e+00 : f32
    %100 = vector.broadcast %cst_49 : f32 to vector<8x256xf32>
    %101 = arith.subf %99, %100 : vector<8x256xf32>
    %102 = arith.select %96, %94, %101 : vector<8x256xi1>, vector<8x256xf32>
    %c0_50 = arith.constant 0 : index
    %c0_51 = arith.constant 0 : index
    %103 = vector.load %arg7[%c0_50, %c0_51] : memref<32x8xf32, #tpu.memory_space<vmem>>, vector<32x8xf32>
    %cst_52 = arith.constant dense<0.000000e+00> : vector<32x256xf32>
    %104 = tpu.matmul %103, %102, %cst_52 {dimension_numbers = #tpu.dot_dimension_numbers<[1], [0], [0], [1], [0, 0, 1, 1], [], []>} : vector<32x8xf32>, vector<8x256xf32>, vector<32x256xf32> -> vector<32x256xf32>
    %c0_53 = arith.constant 0 : index
    %c0_54 = arith.constant 0 : index
    %105 = vector.load %arg8[%c0_53, %c0_54] : memref<32x1xf32, #tpu.memory_space<vmem>>, vector<32x1xf32>
    %106 = vector.broadcast %105 : vector<32x1xf32> to vector<32x256xf32>
    %107 = arith.addf %104, %106 : vector<32x256xf32>
    %c0_55 = arith.constant 0 : index
    %c0_56 = arith.constant 0 : index
    %c0_57 = arith.constant 0 : index
    %108 = vector.load %arg11[%c0_55, %c0_56, %c0_57] : memref<2x32x256xf32, #tpu.memory_space<vmem>>, vector<1x32x256xf32>
    %109 = vector.shape_cast %108 : vector<1x32x256xf32> to vector<32x256xf32>
    %110 = arith.addf %107, %109 : vector<32x256xf32>
    %cst_58 = arith.constant 0.000000e+00 : f32
    %111 = vector.broadcast %cst_58 : f32 to vector<32x256xf32>
    %112 = arith.cmpf ogt, %110, %111 : vector<32x256xf32>
    %cst_59 = arith.constant 0.000000e+00 : f32
    %113 = vector.broadcast %cst_59 : f32 to vector<32x256xf32>
    %114 = arith.minimumf %110, %113 : vector<32x256xf32>
    %115 = math.exp %114 : vector<32x256xf32>
    %cst_60 = arith.constant 1.000000e+00 : f32
    %116 = vector.broadcast %cst_60 : f32 to vector<32x256xf32>
    %117 = arith.subf %115, %116 : vector<32x256xf32>
    %118 = arith.select %112, %110, %117 : vector<32x256xi1>, vector<32x256xf32>
    %c0_61 = arith.constant 0 : index
    %c0_62 = arith.constant 0 : index
    %c0_63 = arith.constant 0 : index
    %119 = vector.load %arg9[%c0_61, %c0_62, %c0_63] : memref<2x32x256xf32, #tpu.memory_space<vmem>>, vector<1x32x256xf32>
    %120 = vector.shape_cast %119 : vector<1x32x256xf32> to vector<32x256xf32>
    %121 = vector.shape_cast %118 : vector<32x256xf32> to vector<1x32x256xf32>
    tpu.vector_store %arg9[%c0_61, %c0_62, %c0_63], %121 {strides = array<i32>} : memref<2x32x256xf32, #tpu.memory_space<vmem>>, vector<1x32x256xf32>,
    %122 = vector.extract_strided_slice %45 {offsets = [8, 0], sizes = [8, 2304], strides = [1, 1]} : vector<16x2304xf32> to vector<8x2304xf32>
    %123 = vector.extract_strided_slice %46 {offsets = [0, 0, 0], sizes = [1, 8, 8], strides = [1, 1, 1]} : vector<9x8x8xf32> to vector<1x8x8xf32>
    %124 = vector.shape_cast %123 : vector<1x8x8xf32> to vector<8x8xf32>
    %125 = vector.extract_strided_slice %122 {offsets = [0, 0], sizes = [8, 256], strides = [1, 1]} : vector<8x2304xf32> to vector<8x256xf32>
    %cst_64 = arith.constant dense<0.000000e+00> : vector<8x256xf32>
    %126 = tpu.matmul %124, %125, %cst_64 {dimension_numbers = #tpu.dot_dimension_numbers<[1], [0], [0], [1], [0, 0, 1, 1], [], []>} : vector<8x8xf32>, vector<8x256xf32>, vector<8x256xf32> -> vector<8x256xf32>
    %127 = vector.extract_strided_slice %46 {offsets = [1, 0, 0], sizes = [1, 8, 8], strides = [1, 1, 1]} : vector<9x8x8xf32> to vector<1x8x8xf32>
    %128 = vector.shape_cast %127 : vector<1x8x8xf32> to vector<8x8xf32>
    %129 = vector.extract_strided_slice %122 {offsets = [0, 256], sizes = [8, 256], strides = [1, 1]} : vector<8x2304xf32> to vector<8x256xf32>
    %cst_65 = arith.constant dense<0.000000e+00> : vector<8x256xf32>
    %130 = tpu.matmul %128, %129, %cst_65 {dimension_numbers = #tpu.dot_dimension_numbers<[1], [0], [0], [1], [0, 0, 1, 1], [], []>} : vector<8x8xf32>, vector<8x256xf32>, vector<8x256xf32> -> vector<8x256xf32>
    %131 = vector.extract_strided_slice %46 {offsets = [2, 0, 0], sizes = [1, 8, 8], strides = [1, 1, 1]} : vector<9x8x8xf32> to vector<1x8x8xf32>
    %132 = vector.shape_cast %131 : vector<1x8x8xf32> to vector<8x8xf32>
    %133 = vector.extract_strided_slice %122 {offsets = [0, 512], sizes = [8, 256], strides = [1, 1]} : vector<8x2304xf32> to vector<8x256xf32>
    %cst_66 = arith.constant dense<0.000000e+00> : vector<8x256xf32>
    %134 = tpu.matmul %132, %133, %cst_66 {dimension_numbers = #tpu.dot_dimension_numbers<[1], [0], [0], [1], [0, 0, 1, 1], [], []>} : vector<8x8xf32>, vector<8x256xf32>, vector<8x256xf32> -> vector<8x256xf32>
    %135 = vector.extract_strided_slice %46 {offsets = [3, 0, 0], sizes = [1, 8, 8], strides = [1, 1, 1]} : vector<9x8x8xf32> to vector<1x8x8xf32>
    %136 = vector.shape_cast %135 : vector<1x8x8xf32> to vector<8x8xf32>
    %137 = vector.extract_strided_slice %122 {offsets = [0, 768], sizes = [8, 256], strides = [1, 1]} : vector<8x2304xf32> to vector<8x256xf32>
    %cst_67 = arith.constant dense<0.000000e+00> : vector<8x256xf32>
    %138 = tpu.matmul %136, %137, %cst_67 {dimension_numbers = #tpu.dot_dimension_numbers<[1], [0], [0], [1], [0, 0, 1, 1], [], []>} : vector<8x8xf32>, vector<8x256xf32>, vector<8x256xf32> -> vector<8x256xf32>
    %139 = vector.extract_strided_slice %46 {offsets = [4, 0, 0], sizes = [1, 8, 8], strides = [1, 1, 1]} : vector<9x8x8xf32> to vector<1x8x8xf32>
    %140 = vector.shape_cast %139 : vector<1x8x8xf32> to vector<8x8xf32>
    %141 = vector.extract_strided_slice %122 {offsets = [0, 1024], sizes = [8, 256], strides = [1, 1]} : vector<8x2304xf32> to vector<8x256xf32>
    %cst_68 = arith.constant dense<0.000000e+00> : vector<8x256xf32>
    %142 = tpu.matmul %140, %141, %cst_68 {dimension_numbers = #tpu.dot_dimension_numbers<[1], [0], [0], [1], [0, 0, 1, 1], [], []>} : vector<8x8xf32>, vector<8x256xf32>, vector<8x256xf32> -> vector<8x256xf32>
    %143 = vector.extract_strided_slice %46 {offsets = [5, 0, 0], sizes = [1, 8, 8], strides = [1, 1, 1]} : vector<9x8x8xf32> to vector<1x8x8xf32>
    %144 = vector.shape_cast %143 : vector<1x8x8xf32> to vector<8x8xf32>
    %145 = vector.extract_strided_slice %122 {offsets = [0, 1280], sizes = [8, 256], strides = [1, 1]} : vector<8x2304xf32> to vector<8x256xf32>
    %cst_69 = arith.constant dense<0.000000e+00> : vector<8x256xf32>
    %146 = tpu.matmul %144, %145, %cst_69 {dimension_numbers = #tpu.dot_dimension_numbers<[1], [0], [0], [1], [0, 0, 1, 1], [], []>} : vector<8x8xf32>, vector<8x256xf32>, vector<8x256xf32> -> vector<8x256xf32>
    %147 = vector.extract_strided_slice %46 {offsets = [6, 0, 0], sizes = [1, 8, 8], strides = [1, 1, 1]} : vector<9x8x8xf32> to vector<1x8x8xf32>
    %148 = vector.shape_cast %147 : vector<1x8x8xf32> to vector<8x8xf32>
    %149 = vector.extract_strided_slice %122 {offsets = [0, 1536], sizes = [8, 256], strides = [1, 1]} : vector<8x2304xf32> to vector<8x256xf32>
    %cst_70 = arith.constant dense<0.000000e+00> : vector<8x256xf32>
    %150 = tpu.matmul %148, %149, %cst_70 {dimension_numbers = #tpu.dot_dimension_numbers<[1], [0], [0], [1], [0, 0, 1, 1], [], []>} : vector<8x8xf32>, vector<8x256xf32>, vector<8x256xf32> -> vector<8x256xf32>
    %151 = vector.extract_strided_slice %46 {offsets = [7, 0, 0], sizes = [1, 8, 8], strides = [1, 1, 1]} : vector<9x8x8xf32> to vector<1x8x8xf32>
    %152 = vector.shape_cast %151 : vector<1x8x8xf32> to vector<8x8xf32>
    %153 = vector.extract_strided_slice %122 {offsets = [0, 1792], sizes = [8, 256], strides = [1, 1]} : vector<8x2304xf32> to vector<8x256xf32>
    %cst_71 = arith.constant dense<0.000000e+00> : vector<8x256xf32>
    %154 = tpu.matmul %152, %153, %cst_71 {dimension_numbers = #tpu.dot_dimension_numbers<[1], [0], [0], [1], [0, 0, 1, 1], [], []>} : vector<8x8xf32>, vector<8x256xf32>, vector<8x256xf32> -> vector<8x256xf32>
    %155 = vector.extract_strided_slice %46 {offsets = [8, 0, 0], sizes = [1, 8, 8], strides = [1, 1, 1]} : vector<9x8x8xf32> to vector<1x8x8xf32>
    %156 = vector.shape_cast %155 : vector<1x8x8xf32> to vector<8x8xf32>
    %157 = vector.extract_strided_slice %122 {offsets = [0, 2048], sizes = [8, 256], strides = [1, 1]} : vector<8x2304xf32> to vector<8x256xf32>
    %cst_72 = arith.constant dense<0.000000e+00> : vector<8x256xf32>
    %158 = tpu.matmul %156, %157, %cst_72 {dimension_numbers = #tpu.dot_dimension_numbers<[1], [0], [0], [1], [0, 0, 1, 1], [], []>} : vector<8x8xf32>, vector<8x256xf32>, vector<8x256xf32> -> vector<8x256xf32>
    %159 = arith.addf %126, %130 : vector<8x256xf32>
    %160 = arith.addf %134, %138 : vector<8x256xf32>
    %161 = arith.addf %142, %146 : vector<8x256xf32>
    %162 = arith.addf %150, %154 : vector<8x256xf32>
    %163 = arith.addf %159, %160 : vector<8x256xf32>
    %164 = arith.addf %161, %162 : vector<8x256xf32>
    %165 = arith.addf %163, %164 : vector<8x256xf32>
    %166 = arith.addf %165, %158 : vector<8x256xf32>
    %c0_73 = arith.constant 0 : index
    %c0_74 = arith.constant 0 : index
    %167 = vector.load %arg6[%c0_73, %c0_74] : memref<8x1xf32, #tpu.memory_space<vmem>>, vector<8x1xf32>
    %168 = vector.broadcast %167 : vector<8x1xf32> to vector<8x256xf32>
    %169 = arith.addf %166, %168 : vector<8x256xf32>
    %cst_75 = arith.constant 0.000000e+00 : f32
    %170 = vector.broadcast %cst_75 : f32 to vector<8x256xf32>
    %171 = arith.cmpf ogt, %169, %170 : vector<8x256xf32>
    %cst_76 = arith.constant 0.000000e+00 : f32
    %172 = vector.broadcast %cst_76 : f32 to vector<8x256xf32>
    %173 = arith.minimumf %169, %172 : vector<8x256xf32>
    %174 = math.exp %173 : vector<8x256xf32>
    %cst_77 = arith.constant 1.000000e+00 : f32
    %175 = vector.broadcast %cst_77 : f32 to vector<8x256xf32>
    %176 = arith.subf %174, %175 : vector<8x256xf32>
    %177 = arith.select %171, %169, %176 : vector<8x256xi1>, vector<8x256xf32>
    %c0_78 = arith.constant 0 : index
    %c0_79 = arith.constant 0 : index
    %178 = vector.load %arg7[%c0_78, %c0_79] : memref<32x8xf32, #tpu.memory_space<vmem>>, vector<32x8xf32>
    %cst_80 = arith.constant dense<0.000000e+00> : vector<32x256xf32>
    %179 = tpu.matmul %178, %177, %cst_80 {dimension_numbers = #tpu.dot_dimension_numbers<[1], [0], [0], [1], [0, 0, 1, 1], [], []>} : vector<32x8xf32>, vector<8x256xf32>, vector<32x256xf32> -> vector<32x256xf32>
    %c0_81 = arith.constant 0 : index
    %c0_82 = arith.constant 0 : index
    %180 = vector.load %arg8[%c0_81, %c0_82] : memref<32x1xf32, #tpu.memory_space<vmem>>, vector<32x1xf32>
    %181 = vector.broadcast %180 : vector<32x1xf32> to vector<32x256xf32>
    %182 = arith.addf %179, %181 : vector<32x256xf32>
    %c1_83 = arith.constant 1 : index
    %c0_84 = arith.constant 0 : index
    %c0_85 = arith.constant 0 : index
    %183 = vector.load %arg11[%c1_83, %c0_84, %c0_85] : memref<2x32x256xf32, #tpu.memory_space<vmem>>, vector<1x32x256xf32>
    %184 = vector.shape_cast %183 : vector<1x32x256xf32> to vector<32x256xf32>
    %185 = arith.addf %182, %184 : vector<32x256xf32>
    %cst_86 = arith.constant 0.000000e+00 : f32
    %186 = vector.broadcast %cst_86 : f32 to vector<32x256xf32>
    %187 = arith.cmpf ogt, %185, %186 : vector<32x256xf32>
    %cst_87 = arith.constant 0.000000e+00 : f32
    %188 = vector.broadcast %cst_87 : f32 to vector<32x256xf32>
    %189 = arith.minimumf %185, %188 : vector<32x256xf32>
    %190 = math.exp %189 : vector<32x256xf32>
    %cst_88 = arith.constant 1.000000e+00 : f32
    %191 = vector.broadcast %cst_88 : f32 to vector<32x256xf32>
    %192 = arith.subf %190, %191 : vector<32x256xf32>
    %193 = arith.select %187, %185, %192 : vector<32x256xi1>, vector<32x256xf32>
    %c1_89 = arith.constant 1 : index
    %c0_90 = arith.constant 0 : index
    %c0_91 = arith.constant 0 : index
    %194 = vector.load %arg9[%c1_89, %c0_90, %c0_91] : memref<2x32x256xf32, #tpu.memory_space<vmem>>, vector<1x32x256xf32>
    %195 = vector.shape_cast %194 : vector<1x32x256xf32> to vector<32x256xf32>
    %196 = vector.shape_cast %193 : vector<32x256xf32> to vector<1x32x256xf32>
    tpu.vector_store %arg9[%c1_89, %c0_90, %c0_91], %196 {strides = array<i32>} : memref<2x32x256xf32, #tpu.memory_space<vmem>>, vector<1x32x256xf32>,
    return
  }
  func.func @transform_0(%arg0: i32) -> (i32, i32, i32) {
    %c0_i32 = arith.constant 0 : i32
    %c0_i32_0 = arith.constant 0 : i32
    %c0_i32_1 = arith.constant 0 : i32
    return %arg0, %c0_i32, %c0_i32_0 : i32, i32, i32
  }
  func.func @transform_1(%arg0: i32) -> (i32, i32) {
    %c0_i32 = arith.constant 0 : i32
    %c0_i32_0 = arith.constant 0 : i32
    %c0_i32_1 = arith.constant 0 : i32
    return %c0_i32, %c0_i32_0 : i32, i32
  }
  func.func @transform_2(%arg0: i32) -> (i32, i32) {
    %c0_i32 = arith.constant 0 : i32
    %c0_i32_0 = arith.constant 0 : i32
    %c0_i32_1 = arith.constant 0 : i32
    return %c0_i32, %c0_i32_0 : i32, i32
  }
  func.func @transform_3(%arg0: i32) -> (i32, i32) {
    %c0_i32 = arith.constant 0 : i32
    %c0_i32_0 = arith.constant 0 : i32
    %c0_i32_1 = arith.constant 0 : i32
    return %c0_i32, %c0_i32_0 : i32, i32
  }
  func.func @transform_4(%arg0: i32) -> (i32, i32, i32) {
    %c0_i32 = arith.constant 0 : i32
    %c0_i32_0 = arith.constant 0 : i32
    %c0_i32_1 = arith.constant 0 : i32
    %c0_i32_2 = arith.constant 0 : i32
    return %c0_i32, %c0_i32_0, %c0_i32_1 : i32, i32, i32
  }
  func.func @transform_5(%arg0: i32) -> (i32, i32) {
    %c0_i32 = arith.constant 0 : i32
    %c0_i32_0 = arith.constant 0 : i32
    %c0_i32_1 = arith.constant 0 : i32
    return %c0_i32, %c0_i32_0 : i32, i32
  }
  func.func @transform_6(%arg0: i32) -> (i32, i32) {
    %c0_i32 = arith.constant 0 : i32
    %c0_i32_0 = arith.constant 0 : i32
    %c0_i32_1 = arith.constant 0 : i32
    return %c0_i32, %c0_i32_0 : i32, i32
  }
  func.func @transform_7(%arg0: i32) -> (i32, i32) {
    %c0_i32 = arith.constant 0 : i32
    %c0_i32_0 = arith.constant 0 : i32
    %c0_i32_1 = arith.constant 0 : i32
    return %c0_i32, %c0_i32_0 : i32, i32
  }
  func.func @transform_8(%arg0: i32) -> (i32, i32, i32) {
    %c0_i32 = arith.constant 0 : i32
    %c0_i32_0 = arith.constant 0 : i32
    %c0_i32_1 = arith.constant 0 : i32
    return %arg0, %c0_i32, %c0_i32_0 : i32, i32, i32
  }
}

module attributes {stable_mosaic.version = 11 : i64} {
  func.func @kernel(%arg0: i32, %arg1: memref<2x4x256xf32, #tpu.memory_space<vmem>>, %arg2: memref<40x4xf32, #tpu.memory_space<vmem>>, %arg3: memref<40x1xf32, #tpu.memory_space<vmem>>, %arg4: memref<256x2304xbf16, #tpu.memory_space<vmem>>, %arg5: memref<9x8x8xf32, #tpu.memory_space<vmem>>, %arg6: memref<8x1xf32, #tpu.memory_space<vmem>>, %arg7: memref<32x8xf32, #tpu.memory_space<vmem>>, %arg8: memref<32x1xf32, #tpu.memory_space<vmem>>, %arg9: memref<2x32x256xf32, #tpu.memory_space<vmem>>, %arg10: memref<16x256xf32, #tpu.memory_space<vmem>>, %arg11: memref<2x32x256xf32, #tpu.memory_space<vmem>>) attributes {dimension_semantics = [#tpu.dimension_semantics<parallel>], iteration_bounds = array<i64: 1>, scalar_prefetch = 0 : i64, scratch_operands = 2 : i64, tpu.core_type = #tpu.core_type<tc>, window_params = [{transform_indices = @transform_0, window_bounds = array<i64: 2, 4, 256>}, {pipeline_mode = #tpu.pipeline_mode<synchronous>, transform_indices = @transform_1, window_bounds = array<i64: 40, 4>}, {pipeline_mode = #tpu.pipeline_mode<synchronous>, transform_indices = @transform_2, window_bounds = array<i64: 40, 1>}, {pipeline_mode = #tpu.pipeline_mode<synchronous>, transform_indices = @transform_3, window_bounds = array<i64: 256, 2304>}, {pipeline_mode = #tpu.pipeline_mode<synchronous>, transform_indices = @transform_4, window_bounds = array<i64: 9, 8, 8>}, {pipeline_mode = #tpu.pipeline_mode<synchronous>, transform_indices = @transform_5, window_bounds = array<i64: 8, 1>}, {pipeline_mode = #tpu.pipeline_mode<synchronous>, transform_indices = @transform_6, window_bounds = array<i64: 32, 8>}, {pipeline_mode = #tpu.pipeline_mode<synchronous>, transform_indices = @transform_7, window_bounds = array<i64: 32, 1>}, {transform_indices = @transform_8, window_bounds = array<i64: 2, 32, 256>}]} {
    %c0 = arith.constant 0 : index
    %c0_0 = arith.constant 0 : index
    %c0_1 = arith.constant 0 : index
    %0 = vector.load %arg1[%c0, %c0_0, %c0_1] : memref<2x4x256xf32, #tpu.memory_space<vmem>>, vector<1x4x256xf32>
    %1 = vector.shape_cast %0 : vector<1x4x256xf32> to vector<4x256xf32>
    %c0_2 = arith.constant 0 : index
    %c0_3 = arith.constant 0 : index
    %2 = vector.load %arg2[%c0_2, %c0_3] : memref<40x4xf32, #tpu.memory_space<vmem>>, vector<40x4xf32>
    %cst = arith.constant dense<0.000000e+00> : vector<40x256xf32>
    %3 = tpu.matmul %2, %1, %cst {dimension_numbers = #tpu.dot_dimension_numbers<[1], [0], [0], [1], [0, 0, 1, 1], [], []>} : vector<40x4xf32>, vector<4x256xf32>, vector<40x256xf32> -> vector<40x256xf32>
    %c0_4 = arith.constant 0 : index
    %c0_5 = arith.constant 0 : index
    %4 = vector.load %arg3[%c0_4, %c0_5] : memref<40x1xf32, #tpu.memory_space<vmem>>, vector<40x1xf32>
    %5 = vector.broadcast %4 : vector<40x1xf32> to vector<40x256xf32>
    %6 = arith.addf %3, %5 : vector<40x256xf32>
    %7 = vector.extract_strided_slice %6 {offsets = [0, 0], sizes = [8, 256], strides = [1, 1]} : vector<40x256xf32> to vector<8x256xf32>
    %cst_6 = arith.constant 0.000000e+00 : f32
    %8 = vector.broadcast %cst_6 : f32 to vector<8x256xf32>
    %9 = arith.cmpf ogt, %7, %8 : vector<8x256xf32>
    %cst_7 = arith.constant 0.000000e+00 : f32
    %10 = vector.broadcast %cst_7 : f32 to vector<8x256xf32>
    %11 = arith.minimumf %7, %10 : vector<8x256xf32>
    %12 = math.exp %11 : vector<8x256xf32>
    %cst_8 = arith.constant 1.000000e+00 : f32
    %13 = vector.broadcast %cst_8 : f32 to vector<8x256xf32>
    %14 = arith.subf %12, %13 : vector<8x256xf32>
    %15 = arith.select %9, %7, %14 : vector<8x256xi1>, vector<8x256xf32>
    %c0_9 = arith.constant 0 : index
    %c0_10 = arith.constant 0 : index
    %16 = vector.load %arg10[%c0_9, %c0_10] : memref<16x256xf32, #tpu.memory_space<vmem>>, vector<8x256xf32>
    tpu.vector_store %arg10[%c0_9, %c0_10], %15 {strides = array<i32>} : memref<16x256xf32, #tpu.memory_space<vmem>>, vector<8x256xf32>,
    %17 = vector.extract_strided_slice %6 {offsets = [8, 0], sizes = [32, 256], strides = [1, 1]} : vector<40x256xf32> to vector<32x256xf32>
    %c0_11 = arith.constant 0 : index
    %c0_12 = arith.constant 0 : index
    %c0_13 = arith.constant 0 : index
    %18 = vector.load %arg11[%c0_11, %c0_12, %c0_13] : memref<2x32x256xf32, #tpu.memory_space<vmem>>, vector<1x32x256xf32>
    %19 = vector.shape_cast %18 : vector<1x32x256xf32> to vector<32x256xf32>
    %20 = vector.shape_cast %17 : vector<32x256xf32> to vector<1x32x256xf32>
    tpu.vector_store %arg11[%c0_11, %c0_12, %c0_13], %20 {strides = array<i32>} : memref<2x32x256xf32, #tpu.memory_space<vmem>>, vector<1x32x256xf32>,
    %c1 = arith.constant 1 : index
    %c0_14 = arith.constant 0 : index
    %c0_15 = arith.constant 0 : index
    %21 = vector.load %arg1[%c1, %c0_14, %c0_15] : memref<2x4x256xf32, #tpu.memory_space<vmem>>, vector<1x4x256xf32>
    %22 = vector.shape_cast %21 : vector<1x4x256xf32> to vector<4x256xf32>
    %c0_16 = arith.constant 0 : index
    %c0_17 = arith.constant 0 : index
    %23 = vector.load %arg2[%c0_16, %c0_17] : memref<40x4xf32, #tpu.memory_space<vmem>>, vector<40x4xf32>
    %cst_18 = arith.constant dense<0.000000e+00> : vector<40x256xf32>
    %24 = tpu.matmul %23, %22, %cst_18 {dimension_numbers = #tpu.dot_dimension_numbers<[1], [0], [0], [1], [0, 0, 1, 1], [], []>} : vector<40x4xf32>, vector<4x256xf32>, vector<40x256xf32> -> vector<40x256xf32>
    %c0_19 = arith.constant 0 : index
    %c0_20 = arith.constant 0 : index
    %25 = vector.load %arg3[%c0_19, %c0_20] : memref<40x1xf32, #tpu.memory_space<vmem>>, vector<40x1xf32>
    %26 = vector.broadcast %25 : vector<40x1xf32> to vector<40x256xf32>
    %27 = arith.addf %24, %26 : vector<40x256xf32>
    %28 = vector.extract_strided_slice %27 {offsets = [0, 0], sizes = [8, 256], strides = [1, 1]} : vector<40x256xf32> to vector<8x256xf32>
    %cst_21 = arith.constant 0.000000e+00 : f32
    %29 = vector.broadcast %cst_21 : f32 to vector<8x256xf32>
    %30 = arith.cmpf ogt, %28, %29 : vector<8x256xf32>
    %cst_22 = arith.constant 0.000000e+00 : f32
    %31 = vector.broadcast %cst_22 : f32 to vector<8x256xf32>
    %32 = arith.minimumf %28, %31 : vector<8x256xf32>
    %33 = math.exp %32 : vector<8x256xf32>
    %cst_23 = arith.constant 1.000000e+00 : f32
    %34 = vector.broadcast %cst_23 : f32 to vector<8x256xf32>
    %35 = arith.subf %33, %34 : vector<8x256xf32>
    %36 = arith.select %30, %28, %35 : vector<8x256xi1>, vector<8x256xf32>
    %c8 = arith.constant 8 : index
    %c0_24 = arith.constant 0 : index
    %37 = vector.load %arg10[%c8, %c0_24] : memref<16x256xf32, #tpu.memory_space<vmem>>, vector<8x256xf32>
    tpu.vector_store %arg10[%c8, %c0_24], %36 {strides = array<i32>} : memref<16x256xf32, #tpu.memory_space<vmem>>, vector<8x256xf32>,
    %38 = vector.extract_strided_slice %27 {offsets = [8, 0], sizes = [32, 256], strides = [1, 1]} : vector<40x256xf32> to vector<32x256xf32>
    %c1_25 = arith.constant 1 : index
    %c0_26 = arith.constant 0 : index
    %c0_27 = arith.constant 0 : index
    %39 = vector.load %arg11[%c1_25, %c0_26, %c0_27] : memref<2x32x256xf32, #tpu.memory_space<vmem>>, vector<1x32x256xf32>
    %40 = vector.shape_cast %39 : vector<1x32x256xf32> to vector<32x256xf32>
    %41 = vector.shape_cast %38 : vector<32x256xf32> to vector<1x32x256xf32>
    tpu.vector_store %arg11[%c1_25, %c0_26, %c0_27], %41 {strides = array<i32>} : memref<2x32x256xf32, #tpu.memory_space<vmem>>, vector<1x32x256xf32>,
    %c0_28 = arith.constant 0 : index
    %c0_29 = arith.constant 0 : index
    %42 = vector.load %arg10[%c0_28, %c0_29] : memref<16x256xf32, #tpu.memory_space<vmem>>, vector<16x256xf32>
    %43 = arith.truncf %42 : vector<16x256xf32> to vector<16x256xbf16>
    %c0_30 = arith.constant 0 : index
    %c0_31 = arith.constant 0 : index
    %44 = vector.load %arg4[%c0_30, %c0_31] : memref<256x2304xbf16, #tpu.memory_space<vmem>>, vector<256x2304xbf16>
    %cst_32 = arith.constant dense<0.000000e+00> : vector<16x2304xf32>
    %45 = tpu.matmul %43, %44, %cst_32 {dimension_numbers = #tpu.dot_dimension_numbers<[1], [0], [0], [1], [0, 0, 1, 1], [], []>} : vector<16x256xbf16>, vector<256x2304xbf16>, vector<16x2304xf32> -> vector<16x2304xf32>
    %c0_33 = arith.constant 0 : index
    %c0_34 = arith.constant 0 : index
    %c0_35 = arith.constant 0 : index
    %46 = vector.load %arg5[%c0_33, %c0_34, %c0_35] : memref<9x8x8xf32, #tpu.memory_space<vmem>>, vector<9x8x8xf32>
    %47 = vector.extract_strided_slice %45 {offsets = [0, 0], sizes = [8, 2304], strides = [1, 1]} : vector<16x2304xf32> to vector<8x2304xf32>
    %48 = vector.extract_strided_slice %46 {offsets = [0, 0, 0], sizes = [1, 8, 8], strides = [1, 1, 1]} : vector<9x8x8xf32> to vector<1x8x8xf32>
    %49 = vector.shape_cast %48 : vector<1x8x8xf32> to vector<8x8xf32>
    %50 = vector.extract_strided_slice %47 {offsets = [0, 0], sizes = [8, 256], strides = [1, 1]} : vector<8x2304xf32> to vector<8x256xf32>
    %cst_36 = arith.constant dense<0.000000e+00> : vector<8x256xf32>
    %51 = tpu.matmul %49, %50, %cst_36 {dimension_numbers = #tpu.dot_dimension_numbers<[1], [0], [0], [1], [0, 0, 1, 1], [], []>} : vector<8x8xf32>, vector<8x256xf32>, vector<8x256xf32> -> vector<8x256xf32>
    %52 = vector.extract_strided_slice %46 {offsets = [1, 0, 0], sizes = [1, 8, 8], strides = [1, 1, 1]} : vector<9x8x8xf32> to vector<1x8x8xf32>
    %53 = vector.shape_cast %52 : vector<1x8x8xf32> to vector<8x8xf32>
    %54 = vector.extract_strided_slice %47 {offsets = [0, 256], sizes = [8, 256], strides = [1, 1]} : vector<8x2304xf32> to vector<8x256xf32>
    %cst_37 = arith.constant dense<0.000000e+00> : vector<8x256xf32>
    %55 = tpu.matmul %53, %54, %cst_37 {dimension_numbers = #tpu.dot_dimension_numbers<[1], [0], [0], [1], [0, 0, 1, 1], [], []>} : vector<8x8xf32>, vector<8x256xf32>, vector<8x256xf32> -> vector<8x256xf32>
    %56 = vector.extract_strided_slice %46 {offsets = [2, 0, 0], sizes = [1, 8, 8], strides = [1, 1, 1]} : vector<9x8x8xf32> to vector<1x8x8xf32>
    %57 = vector.shape_cast %56 : vector<1x8x8xf32> to vector<8x8xf32>
    %58 = vector.extract_strided_slice %47 {offsets = [0, 512], sizes = [8, 256], strides = [1, 1]} : vector<8x2304xf32> to vector<8x256xf32>
    %cst_38 = arith.constant dense<0.000000e+00> : vector<8x256xf32>
    %59 = tpu.matmul %57, %58, %cst_38 {dimension_numbers = #tpu.dot_dimension_numbers<[1], [0], [0], [1], [0, 0, 1, 1], [], []>} : vector<8x8xf32>, vector<8x256xf32>, vector<8x256xf32> -> vector<8x256xf32>
    %60 = vector.extract_strided_slice %46 {offsets = [3, 0, 0], sizes = [1, 8, 8], strides = [1, 1, 1]} : vector<9x8x8xf32> to vector<1x8x8xf32>
    %61 = vector.shape_cast %60 : vector<1x8x8xf32> to vector<8x8xf32>
    %62 = vector.extract_strided_slice %47 {offsets = [0, 768], sizes = [8, 256], strides = [1, 1]} : vector<8x2304xf32> to vector<8x256xf32>
    %cst_39 = arith.constant dense<0.000000e+00> : vector<8x256xf32>
    %63 = tpu.matmul %61, %62, %cst_39 {dimension_numbers = #tpu.dot_dimension_numbers<[1], [0], [0], [1], [0, 0, 1, 1], [], []>} : vector<8x8xf32>, vector<8x256xf32>, vector<8x256xf32> -> vector<8x256xf32>
    %64 = vector.extract_strided_slice %46 {offsets = [4, 0, 0], sizes = [1, 8, 8], strides = [1, 1, 1]} : vector<9x8x8xf32> to vector<1x8x8xf32>
    %65 = vector.shape_cast %64 : vector<1x8x8xf32> to vector<8x8xf32>
    %66 = vector.extract_strided_slice %47 {offsets = [0, 1024], sizes = [8, 256], strides = [1, 1]} : vector<8x2304xf32> to vector<8x256xf32>
    %cst_40 = arith.constant dense<0.000000e+00> : vector<8x256xf32>
    %67 = tpu.matmul %65, %66, %cst_40 {dimension_numbers = #tpu.dot_dimension_numbers<[1], [0], [0], [1], [0, 0, 1, 1], [], []>} : vector<8x8xf32>, vector<8x256xf32>, vector<8x256xf32> -> vector<8x256xf32>
    %68 = vector.extract_strided_slice %46 {offsets = [5, 0, 0], sizes = [1, 8, 8], strides = [1, 1, 1]} : vector<9x8x8xf32> to vector<1x8x8xf32>
    %69 = vector.shape_cast %68 : vector<1x8x8xf32> to vector<8x8xf32>
    %70 = vector.extract_strided_slice %47 {offsets = [0, 1280], sizes = [8, 256], strides = [1, 1]} : vector<8x2304xf32> to vector<8x256xf32>
    %cst_41 = arith.constant dense<0.000000e+00> : vector<8x256xf32>
    %71 = tpu.matmul %69, %70, %cst_41 {dimension_numbers = #tpu.dot_dimension_numbers<[1], [0], [0], [1], [0, 0, 1, 1], [], []>} : vector<8x8xf32>, vector<8x256xf32>, vector<8x256xf32> -> vector<8x256xf32>
    %72 = vector.extract_strided_slice %46 {offsets = [6, 0, 0], sizes = [1, 8, 8], strides = [1, 1, 1]} : vector<9x8x8xf32> to vector<1x8x8xf32>
    %73 = vector.shape_cast %72 : vector<1x8x8xf32> to vector<8x8xf32>
    %74 = vector.extract_strided_slice %47 {offsets = [0, 1536], sizes = [8, 256], strides = [1, 1]} : vector<8x2304xf32> to vector<8x256xf32>
    %cst_42 = arith.constant dense<0.000000e+00> : vector<8x256xf32>
    %75 = tpu.matmul %73, %74, %cst_42 {dimension_numbers = #tpu.dot_dimension_numbers<[1], [0], [0], [1], [0, 0, 1, 1], [], []>} : vector<8x8xf32>, vector<8x256xf32>, vector<8x256xf32> -> vector<8x256xf32>
    %76 = vector.extract_strided_slice %46 {offsets = [7, 0, 0], sizes = [1, 8, 8], strides = [1, 1, 1]} : vector<9x8x8xf32> to vector<1x8x8xf32>
    %77 = vector.shape_cast %76 : vector<1x8x8xf32> to vector<8x8xf32>
    %78 = vector.extract_strided_slice %47 {offsets = [0, 1792], sizes = [8, 256], strides = [1, 1]} : vector<8x2304xf32> to vector<8x256xf32>
    %cst_43 = arith.constant dense<0.000000e+00> : vector<8x256xf32>
    %79 = tpu.matmul %77, %78, %cst_43 {dimension_numbers = #tpu.dot_dimension_numbers<[1], [0], [0], [1], [0, 0, 1, 1], [], []>} : vector<8x8xf32>, vector<8x256xf32>, vector<8x256xf32> -> vector<8x256xf32>
    %80 = vector.extract_strided_slice %46 {offsets = [8, 0, 0], sizes = [1, 8, 8], strides = [1, 1, 1]} : vector<9x8x8xf32> to vector<1x8x8xf32>
    %81 = vector.shape_cast %80 : vector<1x8x8xf32> to vector<8x8xf32>
    %82 = vector.extract_strided_slice %47 {offsets = [0, 2048], sizes = [8, 256], strides = [1, 1]} : vector<8x2304xf32> to vector<8x256xf32>
    %cst_44 = arith.constant dense<0.000000e+00> : vector<8x256xf32>
    %83 = tpu.matmul %81, %82, %cst_44 {dimension_numbers = #tpu.dot_dimension_numbers<[1], [0], [0], [1], [0, 0, 1, 1], [], []>} : vector<8x8xf32>, vector<8x256xf32>, vector<8x256xf32> -> vector<8x256xf32>
    %84 = arith.addf %51, %55 : vector<8x256xf32>
    %85 = arith.addf %59, %63 : vector<8x256xf32>
    %86 = arith.addf %67, %71 : vector<8x256xf32>
    %87 = arith.addf %75, %79 : vector<8x256xf32>
    %88 = arith.addf %84, %85 : vector<8x256xf32>
    %89 = arith.addf %86, %87 : vector<8x256xf32>
    %90 = arith.addf %88, %89 : vector<8x256xf32>
    %91 = arith.addf %90, %83 : vector<8x256xf32>
    %c0_45 = arith.constant 0 : index
    %c0_46 = arith.constant 0 : index
    %92 = vector.load %arg6[%c0_45, %c0_46] : memref<8x1xf32, #tpu.memory_space<vmem>>, vector<8x1xf32>
    %93 = vector.broadcast %92 : vector<8x1xf32> to vector<8x256xf32>
    %94 = arith.addf %91, %93 : vector<8x256xf32>
    %cst_47 = arith.constant 0.000000e+00 : f32
    %95 = vector.broadcast %cst_47 : f32 to vector<8x256xf32>
    %96 = arith.cmpf ogt, %94, %95 : vector<8x256xf32>
    %cst_48 = arith.constant 0.000000e+00 : f32
    %97 = vector.broadcast %cst_48 : f32 to vector<8x256xf32>
    %98 = arith.minimumf %94, %97 : vector<8x256xf32>
    %99 = math.exp %98 : vector<8x256xf32>
    %cst_49 = arith.constant 1.000000e+00 : f32
    %100 = vector.broadcast %cst_49 : f32 to vector<8x256xf32>
    %101 = arith.subf %99, %100 : vector<8x256xf32>
    %102 = arith.select %96, %94, %101 : vector<8x256xi1>, vector<8x256xf32>
    %c0_50 = arith.constant 0 : index
    %c0_51 = arith.constant 0 : index
    %103 = vector.load %arg7[%c0_50, %c0_51] : memref<32x8xf32, #tpu.memory_space<vmem>>, vector<32x8xf32>
    %cst_52 = arith.constant dense<0.000000e+00> : vector<32x256xf32>
    %104 = tpu.matmul %103, %102, %cst_52 {dimension_numbers = #tpu.dot_dimension_numbers<[1], [0], [0], [1], [0, 0, 1, 1], [], []>} : vector<32x8xf32>, vector<8x256xf32>, vector<32x256xf32> -> vector<32x256xf32>
    %c0_53 = arith.constant 0 : index
    %c0_54 = arith.constant 0 : index
    %105 = vector.load %arg8[%c0_53, %c0_54] : memref<32x1xf32, #tpu.memory_space<vmem>>, vector<32x1xf32>
    %106 = vector.broadcast %105 : vector<32x1xf32> to vector<32x256xf32>
    %107 = arith.addf %104, %106 : vector<32x256xf32>
    %c0_55 = arith.constant 0 : index
    %c0_56 = arith.constant 0 : index
    %c0_57 = arith.constant 0 : index
    %108 = vector.load %arg11[%c0_55, %c0_56, %c0_57] : memref<2x32x256xf32, #tpu.memory_space<vmem>>, vector<1x32x256xf32>
    %109 = vector.shape_cast %108 : vector<1x32x256xf32> to vector<32x256xf32>
    %110 = arith.addf %107, %109 : vector<32x256xf32>
    %cst_58 = arith.constant 0.000000e+00 : f32
    %111 = vector.broadcast %cst_58 : f32 to vector<32x256xf32>
    %112 = arith.cmpf ogt, %110, %111 : vector<32x256xf32>
    %cst_59 = arith.constant 0.000000e+00 : f32
    %113 = vector.broadcast %cst_59 : f32 to vector<32x256xf32>
    %114 = arith.minimumf %110, %113 : vector<32x256xf32>
    %115 = math.exp %114 : vector<32x256xf32>
    %cst_60 = arith.constant 1.000000e+00 : f32
    %116 = vector.broadcast %cst_60 : f32 to vector<32x256xf32>
    %117 = arith.subf %115, %116 : vector<32x256xf32>
    %118 = arith.select %112, %110, %117 : vector<32x256xi1>, vector<32x256xf32>
    %c0_61 = arith.constant 0 : index
    %c0_62 = arith.constant 0 : index
    %c0_63 = arith.constant 0 : index
    %119 = vector.load %arg9[%c0_61, %c0_62, %c0_63] : memref<2x32x256xf32, #tpu.memory_space<vmem>>, vector<1x32x256xf32>
    %120 = vector.shape_cast %119 : vector<1x32x256xf32> to vector<32x256xf32>
    %121 = vector.shape_cast %118 : vector<32x256xf32> to vector<1x32x256xf32>
    tpu.vector_store %arg9[%c0_61, %c0_62, %c0_63], %121 {strides = array<i32>} : memref<2x32x256xf32, #tpu.memory_space<vmem>>, vector<1x32x256xf32>,
    %122 = vector.extract_strided_slice %45 {offsets = [8, 0], sizes = [8, 2304], strides = [1, 1]} : vector<16x2304xf32> to vector<8x2304xf32>
    %123 = vector.extract_strided_slice %46 {offsets = [0, 0, 0], sizes = [1, 8, 8], strides = [1, 1, 1]} : vector<9x8x8xf32> to vector<1x8x8xf32>
    %124 = vector.shape_cast %123 : vector<1x8x8xf32> to vector<8x8xf32>
    %125 = vector.extract_strided_slice %122 {offsets = [0, 0], sizes = [8, 256], strides = [1, 1]} : vector<8x2304xf32> to vector<8x256xf32>
    %cst_64 = arith.constant dense<0.000000e+00> : vector<8x256xf32>
    %126 = tpu.matmul %124, %125, %cst_64 {dimension_numbers = #tpu.dot_dimension_numbers<[1], [0], [0], [1], [0, 0, 1, 1], [], []>} : vector<8x8xf32>, vector<8x256xf32>, vector<8x256xf32> -> vector<8x256xf32>
    %127 = vector.extract_strided_slice %46 {offsets = [1, 0, 0], sizes = [1, 8, 8], strides = [1, 1, 1]} : vector<9x8x8xf32> to vector<1x8x8xf32>
    %128 = vector.shape_cast %127 : vector<1x8x8xf32> to vector<8x8xf32>
    %129 = vector.extract_strided_slice %122 {offsets = [0, 256], sizes = [8, 256], strides = [1, 1]} : vector<8x2304xf32> to vector<8x256xf32>
    %cst_65 = arith.constant dense<0.000000e+00> : vector<8x256xf32>
    %130 = tpu.matmul %128, %129, %cst_65 {dimension_numbers = #tpu.dot_dimension_numbers<[1], [0], [0], [1], [0, 0, 1, 1], [], []>} : vector<8x8xf32>, vector<8x256xf32>, vector<8x256xf32> -> vector<8x256xf32>
    %131 = vector.extract_strided_slice %46 {offsets = [2, 0, 0], sizes = [1, 8, 8], strides = [1, 1, 1]} : vector<9x8x8xf32> to vector<1x8x8xf32>
    %132 = vector.shape_cast %131 : vector<1x8x8xf32> to vector<8x8xf32>
    %133 = vector.extract_strided_slice %122 {offsets = [0, 512], sizes = [8, 256], strides = [1, 1]} : vector<8x2304xf32> to vector<8x256xf32>
    %cst_66 = arith.constant dense<0.000000e+00> : vector<8x256xf32>
    %134 = tpu.matmul %132, %133, %cst_66 {dimension_numbers = #tpu.dot_dimension_numbers<[1], [0], [0], [1], [0, 0, 1, 1], [], []>} : vector<8x8xf32>, vector<8x256xf32>, vector<8x256xf32> -> vector<8x256xf32>
    %135 = vector.extract_strided_slice %46 {offsets = [3, 0, 0], sizes = [1, 8, 8], strides = [1, 1, 1]} : vector<9x8x8xf32> to vector<1x8x8xf32>
    %136 = vector.shape_cast %135 : vector<1x8x8xf32> to vector<8x8xf32>
    %137 = vector.extract_strided_slice %122 {offsets = [0, 768], sizes = [8, 256], strides = [1, 1]} : vector<8x2304xf32> to vector<8x256xf32>
    %cst_67 = arith.constant dense<0.000000e+00> : vector<8x256xf32>
    %138 = tpu.matmul %136, %137, %cst_67 {dimension_numbers = #tpu.dot_dimension_numbers<[1], [0], [0], [1], [0, 0, 1, 1], [], []>} : vector<8x8xf32>, vector<8x256xf32>, vector<8x256xf32> -> vector<8x256xf32>
    %139 = vector.extract_strided_slice %46 {offsets = [4, 0, 0], sizes = [1, 8, 8], strides = [1, 1, 1]} : vector<9x8x8xf32> to vector<1x8x8xf32>
    %140 = vector.shape_cast %139 : vector<1x8x8xf32> to vector<8x8xf32>
    %141 = vector.extract_strided_slice %122 {offsets = [0, 1024], sizes = [8, 256], strides = [1, 1]} : vector<8x2304xf32> to vector<8x256xf32>
    %cst_68 = arith.constant dense<0.000000e+00> : vector<8x256xf32>
    %142 = tpu.matmul %140, %141, %cst_68 {dimension_numbers = #tpu.dot_dimension_numbers<[1], [0], [0], [1], [0, 0, 1, 1], [], []>} : vector<8x8xf32>, vector<8x256xf32>, vector<8x256xf32> -> vector<8x256xf32>
    %143 = vector.extract_strided_slice %46 {offsets = [5, 0, 0], sizes = [1, 8, 8], strides = [1, 1, 1]} : vector<9x8x8xf32> to vector<1x8x8xf32>
    %144 = vector.shape_cast %143 : vector<1x8x8xf32> to vector<8x8xf32>
    %145 = vector.extract_strided_slice %122 {offsets = [0, 1280], sizes = [8, 256], strides = [1, 1]} : vector<8x2304xf32> to vector<8x256xf32>
    %cst_69 = arith.constant dense<0.000000e+00> : vector<8x256xf32>
    %146 = tpu.matmul %144, %145, %cst_69 {dimension_numbers = #tpu.dot_dimension_numbers<[1], [0], [0], [1], [0, 0, 1, 1], [], []>} : vector<8x8xf32>, vector<8x256xf32>, vector<8x256xf32> -> vector<8x256xf32>
    %147 = vector.extract_strided_slice %46 {offsets = [6, 0, 0], sizes = [1, 8, 8], strides = [1, 1, 1]} : vector<9x8x8xf32> to vector<1x8x8xf32>
    %148 = vector.shape_cast %147 : vector<1x8x8xf32> to vector<8x8xf32>
    %149 = vector.extract_strided_slice %122 {offsets = [0, 1536], sizes = [8, 256], strides = [1, 1]} : vector<8x2304xf32> to vector<8x256xf32>
    %cst_70 = arith.constant dense<0.000000e+00> : vector<8x256xf32>
    %150 = tpu.matmul %148, %149, %cst_70 {dimension_numbers = #tpu.dot_dimension_numbers<[1], [0], [0], [1], [0, 0, 1, 1], [], []>} : vector<8x8xf32>, vector<8x256xf32>, vector<8x256xf32> -> vector<8x256xf32>
    %151 = vector.extract_strided_slice %46 {offsets = [7, 0, 0], sizes = [1, 8, 8], strides = [1, 1, 1]} : vector<9x8x8xf32> to vector<1x8x8xf32>
    %152 = vector.shape_cast %151 : vector<1x8x8xf32> to vector<8x8xf32>
    %153 = vector.extract_strided_slice %122 {offsets = [0, 1792], sizes = [8, 256], strides = [1, 1]} : vector<8x2304xf32> to vector<8x256xf32>
    %cst_71 = arith.constant dense<0.000000e+00> : vector<8x256xf32>
    %154 = tpu.matmul %152, %153, %cst_71 {dimension_numbers = #tpu.dot_dimension_numbers<[1], [0], [0], [1], [0, 0, 1, 1], [], []>} : vector<8x8xf32>, vector<8x256xf32>, vector<8x256xf32> -> vector<8x256xf32>
    %155 = vector.extract_strided_slice %46 {offsets = [8, 0, 0], sizes = [1, 8, 8], strides = [1, 1, 1]} : vector<9x8x8xf32> to vector<1x8x8xf32>
    %156 = vector.shape_cast %155 : vector<1x8x8xf32> to vector<8x8xf32>
    %157 = vector.extract_strided_slice %122 {offsets = [0, 2048], sizes = [8, 256], strides = [1, 1]} : vector<8x2304xf32> to vector<8x256xf32>
    %cst_72 = arith.constant dense<0.000000e+00> : vector<8x256xf32>
    %158 = tpu.matmul %156, %157, %cst_72 {dimension_numbers = #tpu.dot_dimension_numbers<[1], [0], [0], [1], [0, 0, 1, 1], [], []>} : vector<8x8xf32>, vector<8x256xf32>, vector<8x256xf32> -> vector<8x256xf32>
    %159 = arith.addf %126, %130 : vector<8x256xf32>
    %160 = arith.addf %134, %138 : vector<8x256xf32>
    %161 = arith.addf %142, %146 : vector<8x256xf32>
    %162 = arith.addf %150, %154 : vector<8x256xf32>
    %163 = arith.addf %159, %160 : vector<8x256xf32>
    %164 = arith.addf %161, %162 : vector<8x256xf32>
    %165 = arith.addf %163, %164 : vector<8x256xf32>
    %166 = arith.addf %165, %158 : vector<8x256xf32>
    %c0_73 = arith.constant 0 : index
    %c0_74 = arith.constant 0 : index
    %167 = vector.load %arg6[%c0_73, %c0_74] : memref<8x1xf32, #tpu.memory_space<vmem>>, vector<8x1xf32>
    %168 = vector.broadcast %167 : vector<8x1xf32> to vector<8x256xf32>
    %169 = arith.addf %166, %168 : vector<8x256xf32>
    %cst_75 = arith.constant 0.000000e+00 : f32
    %170 = vector.broadcast %cst_75 : f32 to vector<8x256xf32>
    %171 = arith.cmpf ogt, %169, %170 : vector<8x256xf32>
    %cst_76 = arith.constant 0.000000e+00 : f32
    %172 = vector.broadcast %cst_76 : f32 to vector<8x256xf32>
    %173 = arith.minimumf %169, %172 : vector<8x256xf32>
    %174 = math.exp %173 : vector<8x256xf32>
    %cst_77 = arith.constant 1.000000e+00 : f32
    %175 = vector.broadcast %cst_77 : f32 to vector<8x256xf32>
    %176 = arith.subf %174, %175 : vector<8x256xf32>
    %177 = arith.select %171, %169, %176 : vector<8x256xi1>, vector<8x256xf32>
    %c0_78 = arith.constant 0 : index
    %c0_79 = arith.constant 0 : index
    %178 = vector.load %arg7[%c0_78, %c0_79] : memref<32x8xf32, #tpu.memory_space<vmem>>, vector<32x8xf32>
    %cst_80 = arith.constant dense<0.000000e+00> : vector<32x256xf32>
    %179 = tpu.matmul %178, %177, %cst_80 {dimension_numbers = #tpu.dot_dimension_numbers<[1], [0], [0], [1], [0, 0, 1, 1], [], []>} : vector<32x8xf32>, vector<8x256xf32>, vector<32x256xf32> -> vector<32x256xf32>
    %c0_81 = arith.constant 0 : index
    %c0_82 = arith.constant 0 : index
    %180 = vector.load %arg8[%c0_81, %c0_82] : memref<32x1xf32, #tpu.memory_space<vmem>>, vector<32x1xf32>
    %181 = vector.broadcast %180 : vector<32x1xf32> to vector<32x256xf32>
    %182 = arith.addf %179, %181 : vector<32x256xf32>
    %c1_83 = arith.constant 1 : index
    %c0_84 = arith.constant 0 : index
    %c0_85 = arith.constant 0 : index
    %183 = vector.load %arg11[%c1_83, %c0_84, %c0_85] : memref<2x32x256xf32, #tpu.memory_space<vmem>>, vector<1x32x256xf32>
    %184 = vector.shape_cast %183 : vector<1x32x256xf32> to vector<32x256xf32>
    %185 = arith.addf %182, %184 : vector<32x256xf32>
    %cst_86 = arith.constant 0.000000e+00 : f32
    %186 = vector.broadcast %cst_86 : f32 to vector<32x256xf32>
    %187 = arith.cmpf ogt, %185, %186 : vector<32x256xf32>
    %cst_87 = arith.constant 0.000000e+00 : f32
    %188 = vector.broadcast %cst_87 : f32 to vector<32x256xf32>
    %189 = arith.minimumf %185, %188 : vector<32x256xf32>
    %190 = math.exp %189 : vector<32x256xf32>
    %cst_88 = arith.constant 1.000000e+00 : f32
    %191 = vector.broadcast %cst_88 : f32 to vector<32x256xf32>
    %192 = arith.subf %190, %191 : vector<32x256xf32>
    %193 = arith.select %187, %185, %192 : vector<32x256xi1>, vector<32x256xf32>
    %c1_89 = arith.constant 1 : index
    %c0_90 = arith.constant 0 : index
    %c0_91 = arith.constant 0 : index
    %194 = vector.load %arg9[%c1_89, %c0_90, %c0_91] : memref<2x32x256xf32, #tpu.memory_space<vmem>>, vector<1x32x256xf32>
    %195 = vector.shape_cast %194 : vector<1x32x256xf32> to vector<32x256xf32>
    %196 = vector.shape_cast %193 : vector<32x256xf32> to vector<1x32x256xf32>
    tpu.vector_store %arg9[%c1_89, %c0_90, %c0_91], %196 {strides = array<i32>} : memref<2x32x256xf32, #tpu.memory_space<vmem>>, vector<1x32x256xf32>,
    return
  }
  func.func @transform_0(%arg0: i32) -> (i32, i32, i32) {
    %c0_i32 = arith.constant 0 : i32
    %c0_i32_0 = arith.constant 0 : i32
    %c0_i32_1 = arith.constant 0 : i32
    return %arg0, %c0_i32, %c0_i32_0 : i32, i32, i32
  }
  func.func @transform_1(%arg0: i32) -> (i32, i32) {
    %c0_i32 = arith.constant 0 : i32
    %c0_i32_0 = arith.constant 0 : i32
    %c0_i32_1 = arith.constant 0 : i32
    return %c0_i32, %c0_i32_0 : i32, i32
  }
  func.func @transform_2(%arg0: i32) -> (i32, i32) {
    %c0_i32 = arith.constant 0 : i32
    %c0_i32_0 = arith.constant 0 : i32
    %c0_i32_1 = arith.constant 0 : i32
    return %c0_i32, %c0_i32_0 : i32, i32
  }
  func.func @transform_3(%arg0: i32) -> (i32, i32) {
    %c0_i32 = arith.constant 0 : i32
    %c0_i32_0 = arith.constant 0 : i32
    %c0_i32_1 = arith.constant 0 : i32
    return %c0_i32, %c0_i32_0 : i32, i32
  }
  func.func @transform_4(%arg0: i32) -> (i32, i32, i32) {
    %c0_i32 = arith.constant 0 : i32
    %c0_i32_0 = arith.constant 0 : i32
    %c0_i32_1 = arith.constant 0 : i32
    %c0_i32_2 = arith.constant 0 : i32
    return %c0_i32, %c0_i32_0, %c0_i32_1 : i32, i32, i32
  }
  func.func @transform_5(%arg0: i32) -> (i32, i32) {
    %c0_i32 = arith.constant 0 : i32
    %c0_i32_0 = arith.constant 0 : i32
    %c0_i32_1 = arith.constant 0 : i32
    return %c0_i32, %c0_i32_0 : i32, i32
  }
  func.func @transform_6(%arg0: i32) -> (i32, i32) {
    %c0_i32 = arith.constant 0 : i32
    %c0_i32_0 = arith.constant 0 : i32
    %c0_i32_1 = arith.constant 0 : i32
    return %c0_i32, %c0_i32_0 : i32, i32
  }
  func.func @transform_7(%arg0: i32) -> (i32, i32) {
    %c0_i32 = arith.constant 0 : i32
    %c0_i32_0 = arith.constant 0 : i32
    %c0_i32_1 = arith.constant 0 : i32
    return %c0_i32, %c0_i32_0 : i32, i32
  }
  func.func @transform_8(%arg0: i32) -> (i32, i32, i32) {
    %c0_i32 = arith.constant 0 : i32
    %c0_i32_0 = arith.constant 0 : i32
    %c0_i32_1 = arith.constant 0 : i32
    return %arg0, %c0_i32, %c0_i32_0 : i32, i32, i32
  }
}

</mosaic_0001>

<llo_original>
// kernel: tpu_custom_call.1
$region0: #{tpu_custom_call.1}
  #allocation0 [shape = 'u32[]', space=smem, size = 0x4, offset = 0x4, fixed_abs, tag = 'smem constant byte address 0x4 - core index']
  #allocation1 [shape = 'u32[72,128]{1,0:T(1,128)}', space=vmem, size = 0x9000, scoped, tag = 'internal scratch']
  #allocation2 [shape = 'f32[16,256]{1,0:T(8,128)}', space=vmem, size = 0x4000, scoped, tag = 'scratch operand']
  #allocation3 [shape = 'f32[2,32,256]{2,1,0:T(8,128)}', space=vmem, size = 0x10000, scoped, tag = 'scratch operand']
  %s0 = inlined_call_operand.hbm [shape: f32[2,4,256], index: 0, kind: input, shape index: {}]
  %s1 = inlined_call_operand.vmem [shape: f32[40,4], index: 1, kind: input, shape index: {}]
  %s2 = inlined_call_operand.vmem [shape: f32[40,1], index: 2, kind: input, shape index: {}]
  %s3 = inlined_call_operand.hbm [shape: bf16[256,2304], index: 3, kind: input, shape index: {}]
  %s4 = inlined_call_operand.vmem [shape: f32[9,8,8], index: 4, kind: input, shape index: {}]
  %s5 = inlined_call_operand.vmem [shape: f32[8,1], index: 5, kind: input, shape index: {}]
  %s6 = inlined_call_operand.vmem [shape: f32[32,8], index: 6, kind: input, shape index: {}]
  %s7 = inlined_call_operand.vmem [shape: f32[32,1], index: 7, kind: input, shape index: {}]
  %s8 = inlined_call_operand.hbm [shape: f32[2,32,256], index: 8, kind: output, shape index: {}]
  %s9 = sld [smem:[#allocation0]]
  $region50: #{tpu_custom_call.1} parent=0
    _
  %s11 = ssub.s32 1, %s9
  %s12 = scalar_select 0, %s11, %s9
  $region1: #{tpu_custom_call.1} parent=0
    #allocation4 [shape = 'u8[8192]{0}', space=vmem, size = 0x2000, scoped, tag = 'input window, operand 0, single buffered']
    #allocation5 [shape = 's32[1]{0}', space=sflag, size = 0x4, scoped, tag = 'scoped memory for tpu_custom_call.1']
    #allocation6 [shape = 's32[1]{0}', space=sflag, size = 0x4, scoped, tag = 'scoped memory for tpu_custom_call.1']
    #allocation7 [shape = 'u8[1179648]{0}', space=vmem, size = 0x120000, scoped, tag = 'input window, operand 3, single buffered']
    #allocation8 [shape = 's32[1]{0}', space=sflag, size = 0x4, scoped, tag = 'scoped memory for tpu_custom_call.1']
    #allocation9 [shape = 'u8[65536]{0}', space=vmem, size = 0x10000, scoped, tag = 'output window, operand 0, single buffered']
    %13 = vsyncpa [#allocation5], 0
    %14 = vsyncpa [#allocation8], 0
    %15 = vsyncpa [#allocation6], 0
    // Predicated region
    $region2: #{tpu_custom_call.1} parent=1 // pred_check
      _
    $region3: #{tpu_custom_call.1} parent=1 // pred_check_branch
      %17 = sbr.rel (0) target = $region5
    $region4: #{tpu_custom_call.1} parent=1 // pred_region
      %19 = vsyncadd [#allocation5], 0
      %s20 = sshll.u32 %s0, 4
      %s21 = int_to_ptr.hbm [resolvable:$true] %s20
      %s22 = sshll.u32 [#allocation4], 4
      %s23 = int_to_ptr.vmem [resolvable:$true] %s22
      %28 = dma.hbm_to_vmem [thread:$0]  %s21, 256, %s23, [#allocation5], 128, 128, 8
    $region5: #{tpu_custom_call.1} parent=1 // pred_fallthru
      _
    // Predicated region
    $region6: #{tpu_custom_call.1} parent=1 // pred_check
      _
    $region7: #{tpu_custom_call.1} parent=1 // pred_check_branch
      %30 = sbr.rel (0) target = $region9
    $region8: #{tpu_custom_call.1} parent=1 // pred_region
      _
    $region9: #{tpu_custom_call.1} parent=1 // pred_fallthru
      _
    // Predicated region
    $region10: #{tpu_custom_call.1} parent=1 // pred_check
      _
    $region11: #{tpu_custom_call.1} parent=1 // pred_check_branch
      %32 = sbr.rel (0) target = $region13
    $region12: #{tpu_custom_call.1} parent=1 // pred_region
      _
    $region13: #{tpu_custom_call.1} parent=1 // pred_fallthru
      _
    // Predicated region
    $region14: #{tpu_custom_call.1} parent=1 // pred_check
      _
    $region15: #{tpu_custom_call.1} parent=1 // pred_check_branch
      %34 = sbr.rel (0) target = $region17
    $region16: #{tpu_custom_call.1} parent=1 // pred_region
      %36 = vsyncadd [#allocation8], 0
      %s37 = sshll.u32 %s3, 4
      %s38 = int_to_ptr.hbm [resolvable:$true] %s37
      %s39 = sshll.u32 [#allocation7], 4
      %s40 = int_to_ptr.vmem [resolvable:$true] %s39
      %45 = dma.hbm_to_vmem [thread:$0]  %s38, 36864, %s40, [#allocation8], 1152, 1152, 72
    $region17: #{tpu_custom_call.1} parent=1 // pred_fallthru
      _
    // Predicated region
    $region18: #{tpu_custom_call.1} parent=1 // pred_check
      _
    $region19: #{tpu_custom_call.1} parent=1 // pred_check_branch
      %47 = sbr.rel (0) target = $region21
    $region20: #{tpu_custom_call.1} parent=1 // pred_region
      _
    $region21: #{tpu_custom_call.1} parent=1 // pred_fallthru
      _
    // Predicated region
    $region22: #{tpu_custom_call.1} parent=1 // pred_check
      _
    $region23: #{tpu_custom_call.1} parent=1 // pred_check_branch
      %49 = sbr.rel (0) target = $region25
    $region24: #{tpu_custom_call.1} parent=1 // pred_region
      _
    $region25: #{tpu_custom_call.1} parent=1 // pred_fallthru
      _
    // Predicated region
    $region26: #{tpu_custom_call.1} parent=1 // pred_check
      _
    $region27: #{tpu_custom_call.1} parent=1 // pred_check_branch
      %51 = sbr.rel (0) target = $region29
    $region28: #{tpu_custom_call.1} parent=1 // pred_region
      _
    $region29: #{tpu_custom_call.1} parent=1 // pred_fallthru
      _
    // Predicated region
    $region30: #{tpu_custom_call.1} parent=1 // pred_check
      _
    $region31: #{tpu_custom_call.1} parent=1 // pred_check_branch
      %53 = sbr.rel (0) target = $region33
    $region32: #{tpu_custom_call.1} parent=1 // pred_region
      _
    $region33: #{tpu_custom_call.1} parent=1 // pred_fallthru
      _
    // Predicated region
    $region34: #{tpu_custom_call.1} parent=1 // pred_check
      _
    $region35: #{tpu_custom_call.1} parent=1 // pred_check_branch
      %55 = sbr.rel (0) target = $region37
    $region36: #{tpu_custom_call.1} parent=1 // pred_region
      %57 = dma.done [#allocation5], 256
    $region37: #{tpu_custom_call.1} parent=1 // pred_fallthru
      _
    // Predicated region
    $region38: #{tpu_custom_call.1} parent=1 // pred_check
      _
    $region39: #{tpu_custom_call.1} parent=1 // pred_check_branch
      %59 = sbr.rel (0) target = $region41
    $region40: #{tpu_custom_call.1} parent=1 // pred_region
      %61 = dma.done [#allocation8], 36864
    $region41: #{tpu_custom_call.1} parent=1 // pred_fallthru
      _
    %v62 = vld [vmem:[#allocation4] sm:$0xff]
    %v63 = vld [vmem:[%s1] sm:$0xff]
    %v64 = vld [vmem:[%s1 + $0x8] sm:$0xff]
    %v65 = vld [vmem:[%s1 + $0x10] sm:$0xff]
    %v66 = vld [vmem:[%s1 + $0x18] sm:$0xff]
    %v67 = vld [vmem:[%s1 + $0x20] sm:$0xff]
    %v68 = vld [vmem:[%s2] sm:$0xff]
    %v69 = vld [vmem:[%s2 + $0x8] sm:$0xff]
    %v70 = vld [vmem:[%s2 + $0x10] sm:$0xff]
    %v71 = vld [vmem:[%s2 + $0x18] sm:$0xff]
    %v72 = vld [vmem:[%s2 + $0x20] sm:$0xff]
    %74 = vset.pattern.permute.xlu0 0
    %75 = vperm.xlu0 %74, %v68
    %v76 = vpop.permute.xlu0 %75
    %79 = vset.pattern.permute.xlu0 0
    %80 = vperm.xlu0 %79, %v69
    %v81 = vpop.permute.xlu0 %80
    %84 = vset.pattern.permute.xlu0 0
    %85 = vperm.xlu0 %84, %v70
    %v86 = vpop.permute.xlu0 %85
    %89 = vset.pattern.permute.xlu0 0
    %90 = vperm.xlu0 %89, %v71
    %v91 = vpop.permute.xlu0 %90
    %94 = vset.pattern.permute.xlu0 0
    %95 = vperm.xlu0 %94, %v72
    %v96 = vpop.permute.xlu0 %95
    %99 = vst [vmem:[#allocation1] ss:$2 sm:$0xff] %v62
    %v100 = vld.sshfl [vmem:[#allocation1] sm:$0xff pattern:$0x75316420]
    %v101 = vld.sshfl [vmem:[#allocation1 + $0x8] sm:$0xff pattern:$0x75316420]
    %vm102 = vcmask 31744
    %v104 = vsel %vm102, %v63, 0
    %v107 = vsel %vm102, %v64, 0
    %v110 = vsel %vm102, %v65, 0
    %v113 = vsel %vm102, %v66, 0
    %v116 = vsel %vm102, %v67, 0
    %vm118 = vcmask 1043456
    %v119 = vsel %vm118, %v100, 0
    %v121 = vsel %vm118, %v101, 0
    %123 = vmatpush.msra.mxu0 0.0
    %124 = vmatpush.msra.mxu0 0.0
    %125 = vmatpush.msra.mxu0 0.0
    %126 = vmatpush.msra.mxu0 0.0
    %127 = vmatpush.msra.mxu0 0.0
    %128 = vmatpush.msra.mxu0 0.0
    %129 = vmatpush.msra.mxu0 0.0
    %130 = vmatpush.msra.mxu0 0.0
    %131 = vmatpush.msra.mxu0 0.0
    %132 = vmatpush.msra.mxu0 0.0
    %133 = vmatpush.msra.mxu0 0.0
    %134 = vmatpush.msra.mxu0 0.0
    %135 = vmatpush.msra.mxu0 0.0
    %136 = vmatpush.msra.mxu0 0.0
    %137 = vmatpush.msra.mxu0 0.0
    %138 = vmatpush.msra.mxu0 %v119
    %139 = vmatmul.f32.gmra.mxu0 %v104
    %v140 = vpop.f32.mrf.mxu0
    %v141 = vadd.f32 %v76, %v140
    %142 = vmatmul.f32.gmra.mxu0 %v107
    %v143 = vpop.f32.mrf.mxu0
    %v144 = vadd.f32 %v81, %v143
    %145 = vmatmul.f32.gmra.mxu0 %v110
    %v146 = vpop.f32.mrf.mxu0
    %v147 = vadd.f32 %v86, %v146
    %148 = vmatmul.f32.gmra.mxu0 %v113
    %v149 = vpop.f32.mrf.mxu0
    %v150 = vadd.f32 %v91, %v149
    %151 = vmatmul.f32.gmra.mxu0 %v116
    %v152 = vpop.f32.mrf.mxu0
    %v153 = vadd.f32 %v96, %v152
    %154 = vdwg.mxu0
    %155 = vmatpush.msra.mxu0 0.0
    %156 = vmatpush.msra.mxu0 0.0
    %157 = vmatpush.msra.mxu0 0.0
    %158 = vmatpush.msra.mxu0 0.0
    %159 = vmatpush.msra.mxu0 0.0
    %160 = vmatpush.msra.mxu0 0.0
    %161 = vmatpush.msra.mxu0 0.0
    %162 = vmatpush.msra.mxu0 0.0
    %163 = vmatpush.msra.mxu0 0.0
    %164 = vmatpush.msra.mxu0 0.0
    %165 = vmatpush.msra.mxu0 0.0
    %166 = vmatpush.msra.mxu0 0.0
    %167 = vmatpush.msra.mxu0 0.0
    %168 = vmatpush.msra.mxu0 0.0
    %169 = vmatpush.msra.mxu0 0.0
    %170 = vmatpush.msra.mxu0 %v121
    %171 = vmatmul.f32.gmra.mxu0 %v104
    %v172 = vpop.f32.mrf.mxu0
    %v173 = vadd.f32 %v76, %v172
    %174 = vmatmul.f32.gmra.mxu0 %v107
    %v175 = vpop.f32.mrf.mxu0
    %v176 = vadd.f32 %v81, %v175
    %177 = vmatmul.f32.gmra.mxu0 %v110
    %v178 = vpop.f32.mrf.mxu0
    %v179 = vadd.f32 %v86, %v178
    %180 = vmatmul.f32.gmra.mxu0 %v113
    %v181 = vpop.f32.mrf.mxu0
    %v182 = vadd.f32 %v91, %v181
    %183 = vmatmul.f32.gmra.mxu0 %v116
    %v184 = vpop.f32.mrf.mxu0
    %v185 = vadd.f32 %v96, %v184
    %186 = vdwg.mxu0
    %vm187 = vcmp.gt.f32.partialorder %v141, 0.0
    %vm188 = vcmp.gt.f32.partialorder %v173, 0.0
    %v189 = vmin.f32 %v141, 0.0
    %v190 = vmin.f32 %v173, 0.0
    %v191 = vmul.f32 %v189, 1.442695
    %v192 = vpow.pop %v191
    %v193 = vmul.f32 %v190, 1.442695
    %v194 = vpow.pop %v193
    %v195 = vsub.f32 %v192, 1.0
    %v196 = vsub.f32 %v194, 1.0
    %v197 = vsel %vm187, %v141, %v195
    %v198 = vsel %vm188, %v173, %v196
    %199 = vst [vmem:[#allocation2] sm:$0xff] %v197
    %200 = vst [vmem:[#allocation2 + $0x8] sm:$0xff] %v198
    %201 = vst [vmem:[#allocation3] sm:$0xff] %v144
    %202 = vst [vmem:[#allocation3 + $0x8] sm:$0xff] %v176
    %203 = vst [vmem:[#allocation3 + $0x10] sm:$0xff] %v147
    %204 = vst [vmem:[#allocation3 + $0x18] sm:$0xff] %v179
    %205 = vst [vmem:[#allocation3 + $0x20] sm:$0xff] %v150
    %206 = vst [vmem:[#allocation3 + $0x28] sm:$0xff] %v182
    %207 = vst [vmem:[#allocation3 + $0x30] sm:$0xff] %v153
    %208 = vst [vmem:[#allocation3 + $0x38] sm:$0xff] %v185
    %s209 = scalar_lea.vmem [#allocation4], 8
    %v210 = vld [vmem:[%s209] sm:$0xff]
    %v211 = vld [vmem:[%s1] sm:$0xff]
    %v212 = vld [vmem:[%s1 + $0x8] sm:$0xff]
    %v213 = vld [vmem:[%s1 + $0x10] sm:$0xff]
    %v214 = vld [vmem:[%s1 + $0x18] sm:$0xff]
    %v215 = vld [vmem:[%s1 + $0x20] sm:$0xff]
    %v216 = vld [vmem:[%s2] sm:$0xff]
    %v217 = vld [vmem:[%s2 + $0x8] sm:$0xff]
    %v218 = vld [vmem:[%s2 + $0x10] sm:$0xff]
    %v219 = vld [vmem:[%s2 + $0x18] sm:$0xff]
    %v220 = vld [vmem:[%s2 + $0x20] sm:$0xff]
    %222 = vset.pattern.permute.xlu0 0
    %223 = vperm.xlu0 %222, %v216
    %v224 = vpop.permute.xlu0 %223
    %227 = vset.pattern.permute.xlu0 0
    %228 = vperm.xlu0 %227, %v217
    %v229 = vpop.permute.xlu0 %228
    %232 = vset.pattern.permute.xlu0 0
    %233 = vperm.xlu0 %232, %v218
    %v234 = vpop.permute.xlu0 %233
    %237 = vset.pattern.permute.xlu0 0
    %238 = vperm.xlu0 %237, %v219
    %v239 = vpop.permute.xlu0 %238
    %242 = vset.pattern.permute.xlu0 0
    %243 = vperm.xlu0 %242, %v220
    %v244 = vpop.permute.xlu0 %243
    %247 = vst [vmem:[#allocation1] ss:$2 sm:$0xff] %v210
    %v248 = vld.sshfl [vmem:[#allocation1] sm:$0xff pattern:$0x75316420]
    %v249 = vld.sshfl [vmem:[#allocation1 + $0x8] sm:$0xff pattern:$0x75316420]
    %v251 = vsel %vm102, %v211, 0
    %v254 = vsel %vm102, %v212, 0
    %v257 = vsel %vm102, %v213, 0
    %v260 = vsel %vm102, %v214, 0
    %v263 = vsel %vm102, %v215, 0
    %v265 = vsel %vm118, %v248, 0
    %v267 = vsel %vm118, %v249, 0
    %269 = vmatpush.msra.mxu0 0.0
    %270 = vmatpush.msra.mxu0 0.0
    %271 = vmatpush.msra.mxu0 0.0
    %272 = vmatpush.msra.mxu0 0.0
    %273 = vmatpush.msra.mxu0 0.0
    %274 = vmatpush.msra.mxu0 0.0
    %275 = vmatpush.msra.mxu0 0.0
    %276 = vmatpush.msra.mxu0 0.0
    %277 = vmatpush.msra.mxu0 0.0
    %278 = vmatpush.msra.mxu0 0.0
    %279 = vmatpush.msra.mxu0 0.0
    %280 = vmatpush.msra.mxu0 0.0
    %281 = vmatpush.msra.mxu0 0.0
    %282 = vmatpush.msra.mxu0 0.0
    %283 = vmatpush.msra.mxu0 0.0
    %284 = vmatpush.msra.mxu0 %v265
    %285 = vmatmul.f32.gmra.mxu0 %v251
    %v286 = vpop.f32.mrf.mxu0
    %v287 = vadd.f32 %v224, %v286
    %288 = vmatmul.f32.gmra.mxu0 %v254
    %v289 = vpop.f32.mrf.mxu0
    %v290 = vadd.f32 %v229, %v289
    %291 = vmatmul.f32.gmra.mxu0 %v257
    %v292 = vpop.f32.mrf.mxu0
    %v293 = vadd.f32 %v234, %v292
    %294 = vmatmul.f32.gmra.mxu0 %v260
    %v295 = vpop.f32.mrf.mxu0
    %v296 = vadd.f32 %v239, %v295
    %297 = vmatmul.f32.gmra.mxu0 %v263
    %v298 = vpop.f32.mrf.mxu0
    %v299 = vadd.f32 %v244, %v298
    %300 = vdwg.mxu0
    %301 = vmatpush.msra.mxu0 0.0
    %302 = vmatpush.msra.mxu0 0.0
    %303 = vmatpush.msra.mxu0 0.0
    %304 = vmatpush.msra.mxu0 0.0
    %305 = vmatpush.msra.mxu0 0.0
    %306 = vmatpush.msra.mxu0 0.0
    %307 = vmatpush.msra.mxu0 0.0
    %308 = vmatpush.msra.mxu0 0.0
    %309 = vmatpush.msra.mxu0 0.0
    %310 = vmatpush.msra.mxu0 0.0
    %311 = vmatpush.msra.mxu0 0.0
    %312 = vmatpush.msra.mxu0 0.0
    %313 = vmatpush.msra.mxu0 0.0
    %314 = vmatpush.msra.mxu0 0.0
    %315 = vmatpush.msra.mxu0 0.0
    %316 = vmatpush.msra.mxu0 %v267
    %317 = vmatmul.f32.gmra.mxu0 %v251
    %v318 = vpop.f32.mrf.mxu0
    %v319 = vadd.f32 %v224, %v318
    %320 = vmatmul.f32.gmra.mxu0 %v254
    %v321 = vpop.f32.mrf.mxu0
    %v322 = vadd.f32 %v229, %v321
    %323 = vmatmul.f32.gmra.mxu0 %v257
    %v324 = vpop.f32.mrf.mxu0
    %v325 = vadd.f32 %v234, %v324
    %326 = vmatmul.f32.gmra.mxu0 %v260
    %v327 = vpop.f32.mrf.mxu0
    %v328 = vadd.f32 %v239, %v327
    %329 = vmatmul.f32.gmra.mxu0 %v263
    %v330 = vpop.f32.mrf.mxu0
    %v331 = vadd.f32 %v244, %v330
    %332 = vdwg.mxu0
    %vm333 = vcmp.gt.f32.partialorder %v287, 0.0
    %vm334 = vcmp.gt.f32.partialorder %v319, 0.0
    %v335 = vmin.f32 %v287, 0.0
    %v336 = vmin.f32 %v319, 0.0
    %v337 = vmul.f32 %v335, 1.442695
    %v338 = vpow.pop %v337
    %v339 = vmul.f32 %v336, 1.442695
    %v340 = vpow.pop %v339
    %v341 = vsub.f32 %v338, 1.0
    %v342 = vsub.f32 %v340, 1.0
    %v343 = vsel %vm333, %v287, %v341
    %v344 = vsel %vm334, %v319, %v342
    %345 = vst [vmem:[#allocation2 + $0x10] sm:$0xff] %v343
    %346 = vst [vmem:[#allocation2 + $0x18] sm:$0xff] %v344
    %s347 = scalar_lea.vmem [#allocation3], 64
    %348 = vst [vmem:[%s347] sm:$0xff] %v290
    %349 = vst [vmem:[%s347 + $0x8] sm:$0xff] %v322
    %350 = vst [vmem:[%s347 + $0x10] sm:$0xff] %v293
    %351 = vst [vmem:[%s347 + $0x18] sm:$0xff] %v325
    %352 = vst [vmem:[%s347 + $0x20] sm:$0xff] %v296
    %353 = vst [vmem:[%s347 + $0x28] sm:$0xff] %v328
    %354 = vst [vmem:[%s347 + $0x30] sm:$0xff] %v299
    %355 = vst [vmem:[%s347 + $0x38] sm:$0xff] %v331
    %v356 = vld [vmem:[#allocation2] sm:$0xff]
    %v357 = vld [vmem:[#allocation2 + $0x8] sm:$0xff]
    %v358 = vld [vmem:[#allocation2 + $0x10] sm:$0xff]
    %v359 = vld [vmem:[#allocation2 + $0x18] sm:$0xff]
    %v360 = vpack.c.bf16 %v358, %v356
    %v361 = vpack.c.bf16 %v359, %v357
    %v362 = vld [vmem:[#allocation7] sm:$0xff]
    %v363 = vld [vmem:[#allocation7 + $0x8] sm:$0xff]
    %v364 = vld [vmem:[#allocation7 + $0x10] sm:$0xff]
    %v365 = vld [vmem:[#allocation7 + $0x18] sm:$0xff]
    %v366 = vld [vmem:[#allocation7 + $0x20] sm:$0xff]
    %v367 = vld [vmem:[#allocation7 + $0x28] sm:$0xff]
    %v368 = vld [vmem:[#allocation7 + $0x30] sm:$0xff]
    %v369 = vld [vmem:[#allocation7 + $0x38] sm:$0xff]
    %v370 = vld [vmem:[#allocation7 + $0x40] sm:$0xff]
    %v371 = vld [vmem:[#allocation7 + $0x48] sm:$0xff]
    %v372 = vld [vmem:[#allocation7 + $0x50] sm:$0xff]
    %v373 = vld [vmem:[#allocation7 + $0x58] sm:$0xff]
    %v374 = vld [vmem:[#allocation7 + $0x60] sm:$0xff]
    %v375 = vld [vmem:[#allocation7 + $0x68] sm:$0xff]
    %v376 = vld [vmem:[#allocation7 + $0x70] sm:$0xff]
    %v377 = vld [vmem:[#allocation7 + $0x78] sm:$0xff]
    %v378 = vld [vmem:[#allocation7 + $0x80] sm:$0xff]
    %v379 = vld [vmem:[#allocation7 + $0x88] sm:$0xff]
    %v380 = vld [vmem:[#allocation7 + $0x90] sm:$0xff]
    %v381 = vld [vmem:[#allocation7 + $0x98] sm:$0xff]
    %v382 = vld [vmem:[#allocation7 + $0xa0] sm:$0xff]
    %v383 = vld [vmem:[#allocation7 + $0xa8] sm:$0xff]
    %v384 = vld [vmem:[#allocation7 + $0xb0] sm:$0xff]
    %v385 = vld [vmem:[#allocation7 + $0xb8] sm:$0xff]
    %v386 = vld [vmem:[#allocation7 + $0xc0] sm:$0xff]
    %v387 = vld [vmem:[#allocation7 + $0xc8] sm:$0xff]
    %v388 = vld [vmem:[#allocation7 + $0xd0] sm:$0xff]
    %v389 = vld [vmem:[#allocation7 + $0xd8] sm:$0xff]
    %v390 = vld [vmem:[#allocation7 + $0xe0] sm:$0xff]
    %v391 = vld [vmem:[#allocation7 + $0xe8] sm:$0xff]
    %v392 = vld [vmem:[#allocation7 + $0xf0] sm:$0xff]
    %v393 = vld [vmem:[#allocation7 + $0xf8] sm:$0xff]
    %v394 = vld [vmem:[#allocation7 + $0x100] sm:$0xff]
    %v395 = vld [vmem:[#allocation7 + $0x108] sm:$0xff]
    %v396 = vld [vmem:[#allocation7 + $0x110] sm:$0xff]
    %v397 = vld [vmem:[#allocation7 + $0x118] sm:$0xff]
    %v398 = vld [vmem:[#allocation7 + $0x120] sm:$0xff]
    %v399 = vld [vmem:[#allocation7 + $0x128] sm:$0xff]
    %v400 = vld [vmem:[#allocation7 + $0x130] sm:$0xff]
    %v401 = vld [vmem:[#allocation7 + $0x138] sm:$0xff]
    %v402 = vld [vmem:[#allocation7 + $0x140] sm:$0xff]
    %v403 = vld [vmem:[#allocation7 + $0x148] sm:$0xff]
    %v404 = vld [vmem:[#allocation7 + $0x150] sm:$0xff]
    %v405 = vld [vmem:[#allocation7 + $0x158] sm:$0xff]
    %v406 = vld [vmem:[#allocation7 + $0x160] sm:$0xff]
    %v407 = vld [vmem:[#allocation7 + $0x168] sm:$0xff]
    %v408 = vld [vmem:[#allocation7 + $0x170] sm:$0xff]
    %v409 = vld [vmem:[#allocation7 + $0x178] sm:$0xff]
    %v410 = vld [vmem:[#allocation7 + $0x180] sm:$0xff]
    %v411 = vld [vmem:[#allocation7 + $0x188] sm:$0xff]
    %v412 = vld [vmem:[#allocation7 + $0x190] sm:$0xff]
    %v413 = vld [vmem:[#allocation7 + $0x198] sm:$0xff]
    %v414 = vld [vmem:[#allocation7 + $0x1a0] sm:$0xff]
    %v415 = vld [vmem:[#allocation7 + $0x1a8] sm:$0xff]
    %v416 = vld [vmem:[#allocation7 + $0x1b0] sm:$0xff]
    %v417 = vld [vmem:[#allocation7 + $0x1b8] sm:$0xff]
    %v418 = vld [vmem:[#allocation7 + $0x1c0] sm:$0xff]
    %v419 = vld [vmem:[#allocation7 + $0x1c8] sm:$0xff]
    %v420 = vld [vmem:[#allocation7 + $0x1d0] sm:$0xff]
    %v421 = vld [vmem:[#allocation7 + $0x1d8] sm:$0xff]
    %v422 = vld [vmem:[#allocation7 + $0x1e0] sm:$0xff]
    %v423 = vld [vmem:[#allocation7 + $0x1e8] sm:$0xff]
    %v424 = vld [vmem:[#allocation7 + $0x1f0] sm:$0xff]
    %v425 = vld [vmem:[#allocation7 + $0x1f8] sm:$0xff]
    %v426 = vld [vmem:[#allocation7 + $0x200] sm:$0xff]
    %v427 = vld [vmem:[#allocation7 + $0x208] sm:$0xff]
    %v428 = vld [vmem:[#allocation7 + $0x210] sm:$0xff]
    %v429 = vld [vmem:[#allocation7 + $0x218] sm:$0xff]
    %v430 = vld [vmem:[#allocation7 + $0x220] sm:$0xff]
    %v431 = vld [vmem:[#allocation7 + $0x228] sm:$0xff]
    %v432 = vld [vmem:[#allocation7 + $0x230] sm:$0xff]
    %v433 = vld [vmem:[#allocation7 + $0x238] sm:$0xff]
    %v434 = vld [vmem:[#allocation7 + $0x240] sm:$0xff]
    %v435 = vld [vmem:[#allocation7 + $0x248] sm:$0xff]
    %v436 = vld [vmem:[#allocation7 + $0x250] sm:$0xff]
    %v437 = vld [vmem:[#allocation7 + $0x258] sm:$0xff]
    %v438 = vld [vmem:[#allocation7 + $0x260] sm:$0xff]
    %v439 = vld [vmem:[#allocation7 + $0x268] sm:$0xff]
    %v440 = vld [vmem:[#allocation7 + $0x270] sm:$0xff]
    %v441 = vld [vmem:[#allocation7 + $0x278] sm:$0xff]
    %v442 = vld [vmem:[#allocation7 + $0x280] sm:$0xff]
    %v443 = vld [vmem:[#allocation7 + $0x288] sm:$0xff]
    %v444 = vld [vmem:[#allocation7 + $0x290] sm:$0xff]
    %v445 = vld [vmem:[#allocation7 + $0x298] sm:$0xff]
    %v446 = vld [vmem:[#allocation7 + $0x2a0] sm:$0xff]
    %v447 = vld [vmem:[#allocation7 + $0x2a8] sm:$0xff]
    %v448 = vld [vmem:[#allocation7 + $0x2b0] sm:$0xff]
    %v449 = vld [vmem:[#allocation7 + $0x2b8] sm:$0xff]
    %v450 = vld [vmem:[#allocation7 + $0x2c0] sm:$0xff]
    %v451 = vld [vmem:[#allocation7 + $0x2c8] sm:$0xff]
    %v452 = vld [vmem:[#allocation7 + $0x2d0] sm:$0xff]
    %v453 = vld [vmem:[#allocation7 + $0x2d8] sm:$0xff]
    %v454 = vld [vmem:[#allocation7 + $0x2e0] sm:$0xff]
    %v455 = vld [vmem:[#allocation7 + $0x2e8] sm:$0xff]
    %v456 = vld [vmem:[#allocation7 + $0x2f0] sm:$0xff]
    %v457 = vld [vmem:[#allocation7 + $0x2f8] sm:$0xff]
    %v458 = vld [vmem:[#allocation7 + $0x300] sm:$0xff]
    %v459 = vld [vmem:[#allocation7 + $0x308] sm:$0xff]
    %v460 = vld [vmem:[#allocation7 + $0x310] sm:$0xff]
    %v461 = vld [vmem:[#allocation7 + $0x318] sm:$0xff]
    %v462 = vld [vmem:[#allocation7 + $0x320] sm:$0xff]
    %v463 = vld [vmem:[#allocation7 + $0x328] sm:$0xff]
    %v464 = vld [vmem:[#allocation7 + $0x330] sm:$0xff]
    %v465 = vld [vmem:[#allocation7 + $0x338] sm:$0xff]
    %v466 = vld [vmem:[#allocation7 + $0x340] sm:$0xff]
    %v467 = vld [vmem:[#allocation7 + $0x348] sm:$0xff]
    %v468 = vld [vmem:[#allocation7 + $0x350] sm:$0xff]
    %v469 = vld [vmem:[#allocation7 + $0x358] sm:$0xff]
    %v470 = vld [vmem:[#allocation7 + $0x360] sm:$0xff]
    %v471 = vld [vmem:[#allocation7 + $0x368] sm:$0xff]
    %v472 = vld [vmem:[#allocation7 + $0x370] sm:$0xff]
    %v473 = vld [vmem:[#allocation7 + $0x378] sm:$0xff]
    %v474 = vld [vmem:[#allocation7 + $0x380] sm:$0xff]
    %v475 = vld [vmem:[#allocation7 + $0x388] sm:$0xff]
    %v476 = vld [vmem:[#allocation7 + $0x390] sm:$0xff]
    %v477 = vld [vmem:[#allocation7 + $0x398] sm:$0xff]
    %v478 = vld [vmem:[#allocation7 + $0x3a0] sm:$0xff]
    %v479 = vld [vmem:[#allocation7 + $0x3a8] sm:$0xff]
    %v480 = vld [vmem:[#allocation7 + $0x3b0] sm:$0xff]
    %v481 = vld [vmem:[#allocation7 + $0x3b8] sm:$0xff]
    %v482 = vld [vmem:[#allocation7 + $0x3c0] sm:$0xff]
    %v483 = vld [vmem:[#allocation7 + $0x3c8] sm:$0xff]
    %v484 = vld [vmem:[#allocation7 + $0x3d0] sm:$0xff]
    %v485 = vld [vmem:[#allocation7 + $0x3d8] sm:$0xff]
    %v486 = vld [vmem:[#allocation7 + $0x3e0] sm:$0xff]
    %v487 = vld [vmem:[#allocation7 + $0x3e8] sm:$0xff]
    %v488 = vld [vmem:[#allocation7 + $0x3f0] sm:$0xff]
    %v489 = vld [vmem:[#allocation7 + $0x3f8] sm:$0xff]
    %v490 = vld [vmem:[#allocation7 + $0x400] sm:$0xff]
    %v491 = vld [vmem:[#allocation7 + $0x408] sm:$0xff]
    %v492 = vld [vmem:[#allocation7 + $0x410] sm:$0xff]
    %v493 = vld [vmem:[#allocation7 + $0x418] sm:$0xff]
    %v494 = vld [vmem:[#allocation7 + $0x420] sm:$0xff]
    %v495 = vld [vmem:[#allocation7 + $0x428] sm:$0xff]
    %v496 = vld [vmem:[#allocation7 + $0x430] sm:$0xff]
    %v497 = vld [vmem:[#allocation7 + $0x438] sm:$0xff]
    %v498 = vld [vmem:[#allocation7 + $0x440] sm:$0xff]
    %v499 = vld [vmem:[#allocation7 + $0x448] sm:$0xff]
    %v500 = vld [vmem:[#allocation7 + $0x450] sm:$0xff]
    %v501 = vld [vmem:[#allocation7 + $0x458] sm:$0xff]
    %v502 = vld [vmem:[#allocation7 + $0x460] sm:$0xff]
    %v503 = vld [vmem:[#allocation7 + $0x468] sm:$0xff]
    %v504 = vld [vmem:[#allocation7 + $0x470] sm:$0xff]
    %v505 = vld [vmem:[#allocation7 + $0x478] sm:$0xff]
    %v506 = vld [vmem:[#allocation7 + $0x480] sm:$0xff]
    %v507 = vld [vmem:[#allocation7 + $0x488] sm:$0xff]
    %v508 = vld [vmem:[#allocation7 + $0x490] sm:$0xff]
    %v509 = vld [vmem:[#allocation7 + $0x498] sm:$0xff]
    %v510 = vld [vmem:[#allocation7 + $0x4a0] sm:$0xff]
    %v511 = vld [vmem:[#allocation7 + $0x4a8] sm:$0xff]
    %v512 = vld [vmem:[#allocation7 + $0x4b0] sm:$0xff]
    %v513 = vld [vmem:[#allocation7 + $0x4b8] sm:$0xff]
    %v514 = vld [vmem:[#allocation7 + $0x4c0] sm:$0xff]
    %v515 = vld [vmem:[#allocation7 + $0x4c8] sm:$0xff]
    %v516 = vld [vmem:[#allocation7 + $0x4d0] sm:$0xff]
    %v517 = vld [vmem:[#allocation7 + $0x4d8] sm:$0xff]
    %v518 = vld [vmem:[#allocation7 + $0x4e0] sm:$0xff]
    %v519 = vld [vmem:[#allocation7 + $0x4e8] sm:$0xff]
    %v520 = vld [vmem:[#allocation7 + $0x4f0] sm:$0xff]
    %v521 = vld [vmem:[#allocation7 + $0x4f8] sm:$0xff]
    %v522 = vld [vmem:[#allocation7 + $0x500] sm:$0xff]
    %v523 = vld [vmem:[#allocation7 + $0x508] sm:$0xff]
    %v524 = vld [vmem:[#allocation7 + $0x510] sm:$0xff]
    %v525 = vld [vmem:[#allocation7 + $0x518] sm:$0xff]
    %v526 = vld [vmem:[#allocation7 + $0x520] sm:$0xff]
    %v527 = vld [vmem:[#allocation7 + $0x528] sm:$0xff]
    %v528 = vld [vmem:[#allocation7 + $0x530] sm:$0xff]
    %v529 = vld [vmem:[#allocation7 + $0x538] sm:$0xff]
    %v530 = vld [vmem:[#allocation7 + $0x540] sm:$0xff]
    %v531 = vld [vmem:[#allocation7 + $0x548] sm:$0xff]
    %v532 = vld [vmem:[#allocation7 + $0x550] sm:$0xff]
    %v533 = vld [vmem:[#allocation7 + $0x558] sm:$0xff]
    %v534 = vld [vmem:[#allocation7 + $0x560] sm:$0xff]
    %v535 = vld [vmem:[#allocation7 + $0x568] sm:$0xff]
    %v536 = vld [vmem:[#allocation7 + $0x570] sm:$0xff]
    %v537 = vld [vmem:[#allocation7 + $0x578] sm:$0xff]
    %v538 = vld [vmem:[#allocation7 + $0x580] sm:$0xff]
    %v539 = vld [vmem:[#allocation7 + $0x588] sm:$0xff]
    %v540 = vld [vmem:[#allocation7 + $0x590] sm:$0xff]
    %v541 = vld [vmem:[#allocation7 + $0x598] sm:$0xff]
    %v542 = vld [vmem:[#allocation7 + $0x5a0] sm:$0xff]
    %v543 = vld [vmem:[#allocation7 + $0x5a8] sm:$0xff]
    %v544 = vld [vmem:[#allocation7 + $0x5b0] sm:$0xff]
    %v545 = vld [vmem:[#allocation7 + $0x5b8] sm:$0xff]
    %v546 = vld [vmem:[#allocation7 + $0x5c0] sm:$0xff]
    %v547 = vld [vmem:[#allocation7 + $0x5c8] sm:$0xff]
    %v548 = vld [vmem:[#allocation7 + $0x5d0] sm:$0xff]
    %v549 = vld [vmem:[#allocation7 + $0x5d8] sm:$0xff]
    %v550 = vld [vmem:[#allocation7 + $0x5e0] sm:$0xff]
    %v551 = vld [vmem:[#allocation7 + $0x5e8] sm:$0xff]
    %v552 = vld [vmem:[#allocation7 + $0x5f0] sm:$0xff]
    %v553 = vld [vmem:[#allocation7 + $0x5f8] sm:$0xff]
    %v554 = vld [vmem:[#allocation7 + $0x600] sm:$0xff]
    %v555 = vld [vmem:[#allocation7 + $0x608] sm:$0xff]
    %v556 = vld [vmem:[#allocation7 + $0x610] sm:$0xff]
    %v557 = vld [vmem:[#allocation7 + $0x618] sm:$0xff]
    %v558 = vld [vmem:[#allocation7 + $0x620] sm:$0xff]
    %v559 = vld [vmem:[#allocation7 + $0x628] sm:$0xff]
    %v560 = vld [vmem:[#allocation7 + $0x630] sm:$0xff]
    %v561 = vld [vmem:[#allocation7 + $0x638] sm:$0xff]
    %v562 = vld [vmem:[#allocation7 + $0x640] sm:$0xff]
    %v563 = vld [vmem:[#allocation7 + $0x648] sm:$0xff]
    %v564 = vld [vmem:[#allocation7 + $0x650] sm:$0xff]
    %v565 = vld [vmem:[#allocation7 + $0x658] sm:$0xff]
    %v566 = vld [vmem:[#allocation7 + $0x660] sm:$0xff]
    %v567 = vld [vmem:[#allocation7 + $0x668] sm:$0xff]
    %v568 = vld [vmem:[#allocation7 + $0x670] sm:$0xff]
    %v569 = vld [vmem:[#allocation7 + $0x678] sm:$0xff]
    %v570 = vld [vmem:[#allocation7 + $0x680] sm:$0xff]
    %v571 = vld [vmem:[#allocation7 + $0x688] sm:$0xff]
    %v572 = vld [vmem:[#allocation7 + $0x690] sm:$0xff]
    %v573 = vld [vmem:[#allocation7 + $0x698] sm:$0xff]
    %v574 = vld [vmem:[#allocation7 + $0x6a0] sm:$0xff]
    %v575 = vld [vmem:[#allocation7 + $0x6a8] sm:$0xff]
    %v576 = vld [vmem:[#allocation7 + $0x6b0] sm:$0xff]
    %v577 = vld [vmem:[#allocation7 + $0x6b8] sm:$0xff]
    %v578 = vld [vmem:[#allocation7 + $0x6c0] sm:$0xff]
    %v579 = vld [vmem:[#allocation7 + $0x6c8] sm:$0xff]
    %v580 = vld [vmem:[#allocation7 + $0x6d0] sm:$0xff]
    %v581 = vld [vmem:[#allocation7 + $0x6d8] sm:$0xff]
    %v582 = vld [vmem:[#allocation7 + $0x6e0] sm:$0xff]
    %v583 = vld [vmem:[#allocation7 + $0x6e8] sm:$0xff]
    %v584 = vld [vmem:[#allocation7 + $0x6f0] sm:$0xff]
    %v585 = vld [vmem:[#allocation7 + $0x6f8] sm:$0xff]
    %v586 = vld [vmem:[#allocation7 + $0x700] sm:$0xff]
    %v587 = vld [vmem:[#allocation7 + $0x708] sm:$0xff]
    %v588 = vld [vmem:[#allocation7 + $0x710] sm:$0xff]
    %v589 = vld [vmem:[#allocation7 + $0x718] sm:$0xff]
    %v590 = vld [vmem:[#allocation7 + $0x720] sm:$0xff]
    %v591 = vld [vmem:[#allocation7 + $0x728] sm:$0xff]
    %v592 = vld [vmem:[#allocation7 + $0x730] sm:$0xff]
    %v593 = vld [vmem:[#allocation7 + $0x738] sm:$0xff]
    %v594 = vld [vmem:[#allocation7 + $0x740] sm:$0xff]
    %v595 = vld [vmem:[#allocation7 + $0x748] sm:$0xff]
    %v596 = vld [vmem:[#allocation7 + $0x750] sm:$0xff]
    %v597 = vld [vmem:[#allocation7 + $0x758] sm:$0xff]
    %v598 = vld [vmem:[#allocation7 + $0x760] sm:$0xff]
    %v599 = vld [vmem:[#allocation7 + $0x768] sm:$0xff]
    %v600 = vld [vmem:[#allocation7 + $0x770] sm:$0xff]
    %v601 = vld [vmem:[#allocation7 + $0x778] sm:$0xff]
    %v602 = vld [vmem:[#allocation7 + $0x780] sm:$0xff]
    %v603 = vld [vmem:[#allocation7 + $0x788] sm:$0xff]
    %v604 = vld [vmem:[#allocation7 + $0x790] sm:$0xff]
    %v605 = vld [vmem:[#allocation7 + $0x798] sm:$0xff]
    %v606 = vld [vmem:[#allocation7 + $0x7a0] sm:$0xff]
    %v607 = vld [vmem:[#allocation7 + $0x7a8] sm:$0xff]
    %v608 = vld [vmem:[#allocation7 + $0x7b0] sm:$0xff]
    %v609 = vld [vmem:[#allocation7 + $0x7b8] sm:$0xff]
    %v610 = vld [vmem:[#allocation7 + $0x7c0] sm:$0xff]
    %v611 = vld [vmem:[#allocation7 + $0x7c8] sm:$0xff]
    %v612 = vld [vmem:[#allocation7 + $0x7d0] sm:$0xff]
    %v613 = vld [vmem:[#allocation7 + $0x7d8] sm:$0xff]
    %v614 = vld [vmem:[#allocation7 + $0x7e0] sm:$0xff]
    %v615 = vld [vmem:[#allocation7 + $0x7e8] sm:$0xff]
    %v616 = vld [vmem:[#allocation7 + $0x7f0] sm:$0xff]
    %v617 = vld [vmem:[#allocation7 + $0x7f8] sm:$0xff]
    %v618 = vld [vmem:[#allocation7 + $0x800] sm:$0xff]
    %v619 = vld [vmem:[#allocation7 + $0x808] sm:$0xff]
    %v620 = vld [vmem:[#allocation7 + $0x810] sm:$0xff]
    %v621 = vld [vmem:[#allocation7 + $0x818] sm:$0xff]
    %v622 = vld [vmem:[#allocation7 + $0x820] sm:$0xff]
    %v623 = vld [vmem:[#allocation7 + $0x828] sm:$0xff]
    %v624 = vld [vmem:[#allocation7 + $0x830] sm:$0xff]
    %v625 = vld [vmem:[#allocation7 + $0x838] sm:$0xff]
    %v626 = vld [vmem:[#allocation7 + $0x840] sm:$0xff]
    %v627 = vld [vmem:[#allocation7 + $0x848] sm:$0xff]
    %v628 = vld [vmem:[#allocation7 + $0x850] sm:$0xff]
    %v629 = vld [vmem:[#allocation7 + $0x858] sm:$0xff]
    %v630 = vld [vmem:[#allocation7 + $0x860] sm:$0xff]
    %v631 = vld [vmem:[#allocation7 + $0x868] sm:$0xff]
    %v632 = vld [vmem:[#allocation7 + $0x870] sm:$0xff]
    %v633 = vld [vmem:[#allocation7 + $0x878] sm:$0xff]
    %v634 = vld [vmem:[#allocation7 + $0x880] sm:$0xff]
    %v635 = vld [vmem:[#allocation7 + $0x888] sm:$0xff]
    %v636 = vld [vmem:[#allocation7 + $0x890] sm:$0xff]
    %v637 = vld [vmem:[#allocation7 + $0x898] sm:$0xff]
    %v638 = vld [vmem:[#allocation7 + $0x8a0] sm:$0xff]
    %v639 = vld [vmem:[#allocation7 + $0x8a8] sm:$0xff]
    %v640 = vld [vmem:[#allocation7 + $0x8b0] sm:$0xff]
    %v641 = vld [vmem:[#allocation7 + $0x8b8] sm:$0xff]
    %v642 = vld [vmem:[#allocation7 + $0x8c0] sm:$0xff]
    %v643 = vld [vmem:[#allocation7 + $0x8c8] sm:$0xff]
    %v644 = vld [vmem:[#allocation7 + $0x8d0] sm:$0xff]
    %v645 = vld [vmem:[#allocation7 + $0x8d8] sm:$0xff]
    %v646 = vld [vmem:[#allocation7 + $0x8e0] sm:$0xff]
    %v647 = vld [vmem:[#allocation7 + $0x8e8] sm:$0xff]
    %v648 = vld [vmem:[#allocation7 + $0x8f0] sm:$0xff]
    %v649 = vld [vmem:[#allocation7 + $0x8f8] sm:$0xff]
    %v938 = vunpack.c.l.b16 %v362
    %v939 = vunpack.c.h.b16 %v362
    %v940 = vunpack.c.l.b16 %v363
    %v941 = vunpack.c.h.b16 %v363
    %v942 = vunpack.c.l.b16 %v364
    %v943 = vunpack.c.h.b16 %v364
    %v944 = vunpack.c.l.b16 %v365
    %v945 = vunpack.c.h.b16 %v365
    %v946 = vunpack.c.l.b16 %v366
    %v947 = vunpack.c.h.b16 %v366
    %v948 = vunpack.c.l.b16 %v367
    %v949 = vunpack.c.h.b16 %v367
    %v950 = vunpack.c.l.b16 %v368
    %v951 = vunpack.c.h.b16 %v368
    %v952 = vunpack.c.l.b16 %v369
    %v953 = vunpack.c.h.b16 %v369
    %v954 = vunpack.c.l.b16 %v370
    %v955 = vunpack.c.h.b16 %v370
    %v956 = vunpack.c.l.b16 %v371
    %v957 = vunpack.c.h.b16 %v371
    %v958 = vunpack.c.l.b16 %v372
    %v959 = vunpack.c.h.b16 %v372
    %v960 = vunpack.c.l.b16 %v373
    %v961 = vunpack.c.h.b16 %v373
    %v962 = vunpack.c.l.b16 %v374
    %v963 = vunpack.c.h.b16 %v374
    %v964 = vunpack.c.l.b16 %v375
    %v965 = vunpack.c.h.b16 %v375
    %v966 = vunpack.c.l.b16 %v376
    %v967 = vunpack.c.h.b16 %v376
    %v968 = vunpack.c.l.b16 %v377
    %v969 = vunpack.c.h.b16 %v377
    %v970 = vunpack.c.l.b16 %v378
    %v971 = vunpack.c.h.b16 %v378
    %v972 = vunpack.c.l.b16 %v379
    %v973 = vunpack.c.h.b16 %v379
    %v974 = vunpack.c.l.b16 %v380
    %v975 = vunpack.c.h.b16 %v380
    %v976 = vunpack.c.l.b16 %v381
    %v977 = vunpack.c.h.b16 %v381
    %v978 = vunpack.c.l.b16 %v382
    %v979 = vunpack.c.h.b16 %v382
    %v980 = vunpack.c.l.b16 %v383
    %v981 = vunpack.c.h.b16 %v383
    %v982 = vunpack.c.l.b16 %v384
    %v983 = vunpack.c.h.b16 %v384
    %v984 = vunpack.c.l.b16 %v385
    %v985 = vunpack.c.h.b16 %v385
    %v986 = vunpack.c.l.b16 %v386
    %v987 = vunpack.c.h.b16 %v386
    %v988 = vunpack.c.l.b16 %v387
    %v989 = vunpack.c.h.b16 %v387
    %v990 = vunpack.c.l.b16 %v388
    %v991 = vunpack.c.h.b16 %v388
    %v992 = vunpack.c.l.b16 %v389
    %v993 = vunpack.c.h.b16 %v389
    %v994 = vunpack.c.l.b16 %v390
    %v995 = vunpack.c.h.b16 %v390
    %v996 = vunpack.c.l.b16 %v391
    %v997 = vunpack.c.h.b16 %v391
    %v998 = vunpack.c.l.b16 %v392
    %v999 = vunpack.c.h.b16 %v392
    %v1000 = vunpack.c.l.b16 %v393
    %v1001 = vunpack.c.h.b16 %v393
    %v1002 = vunpack.c.l.b16 %v394
    %v1003 = vunpack.c.h.b16 %v394
    %v1004 = vunpack.c.l.b16 %v395
    %v1005 = vunpack.c.h.b16 %v395
    %v1006 = vunpack.c.l.b16 %v396
    %v1007 = vunpack.c.h.b16 %v396
    %v1008 = vunpack.c.l.b16 %v397
    %v1009 = vunpack.c.h.b16 %v397
    %v1010 = vunpack.c.l.b16 %v398
    %v1011 = vunpack.c.h.b16 %v398
    %v1012 = vunpack.c.l.b16 %v399
    %v1013 = vunpack.c.h.b16 %v399
    %v1014 = vunpack.c.l.b16 %v400
    %v1015 = vunpack.c.h.b16 %v400
    %v1016 = vunpack.c.l.b16 %v401
    %v1017 = vunpack.c.h.b16 %v401
    %v1018 = vunpack.c.l.b16 %v402
    %v1019 = vunpack.c.h.b16 %v402
    %v1020 = vunpack.c.l.b16 %v403
    %v1021 = vunpack.c.h.b16 %v403
    %v1022 = vunpack.c.l.b16 %v404
    %v1023 = vunpack.c.h.b16 %v404
    %v1024 = vunpack.c.l.b16 %v405
    %v1025 = vunpack.c.h.b16 %v405
    %v1026 = vunpack.c.l.b16 %v406
    %v1027 = vunpack.c.h.b16 %v406
    %v1028 = vunpack.c.l.b16 %v407
    %v1029 = vunpack.c.h.b16 %v407
    %v1030 = vunpack.c.l.b16 %v408
    %v1031 = vunpack.c.h.b16 %v408
    %v1032 = vunpack.c.l.b16 %v409
    %v1033 = vunpack.c.h.b16 %v409
    %v1034 = vunpack.c.l.b16 %v410
    %v1035 = vunpack.c.h.b16 %v410
    %v1036 = vunpack.c.l.b16 %v411
    %v1037 = vunpack.c.h.b16 %v411
    %v1038 = vunpack.c.l.b16 %v412
    %v1039 = vunpack.c.h.b16 %v412
    %v1040 = vunpack.c.l.b16 %v413
    %v1041 = vunpack.c.h.b16 %v413
    %v1042 = vunpack.c.l.b16 %v414
    %v1043 = vunpack.c.h.b16 %v414
    %v1044 = vunpack.c.l.b16 %v415
    %v1045 = vunpack.c.h.b16 %v415
    %v1046 = vunpack.c.l.b16 %v416
    %v1047 = vunpack.c.h.b16 %v416
    %v1048 = vunpack.c.l.b16 %v417
    %v1049 = vunpack.c.h.b16 %v417
    %v1050 = vunpack.c.l.b16 %v418
    %v1051 = vunpack.c.h.b16 %v418
    %v1052 = vunpack.c.l.b16 %v419
    %v1053 = vunpack.c.h.b16 %v419
    %v1054 = vunpack.c.l.b16 %v420
    %v1055 = vunpack.c.h.b16 %v420
    %v1056 = vunpack.c.l.b16 %v421
    %v1057 = vunpack.c.h.b16 %v421
    %v1058 = vunpack.c.l.b16 %v422
    %v1059 = vunpack.c.h.b16 %v422
    %v1060 = vunpack.c.l.b16 %v423
    %v1061 = vunpack.c.h.b16 %v423
    %v1062 = vunpack.c.l.b16 %v424
    %v1063 = vunpack.c.h.b16 %v424
    %v1064 = vunpack.c.l.b16 %v425
    %v1065 = vunpack.c.h.b16 %v425
    %v1066 = vunpack.c.l.b16 %v426
    %v1067 = vunpack.c.h.b16 %v426
    %v1068 = vunpack.c.l.b16 %v427
    %v1069 = vunpack.c.h.b16 %v427
    %v1070 = vunpack.c.l.b16 %v428
    %v1071 = vunpack.c.h.b16 %v428
    %v1072 = vunpack.c.l.b16 %v429
    %v1073 = vunpack.c.h.b16 %v429
    %v1074 = vunpack.c.l.b16 %v430
    %v1075 = vunpack.c.h.b16 %v430
    %v1076 = vunpack.c.l.b16 %v431
    %v1077 = vunpack.c.h.b16 %v431
    %v1078 = vunpack.c.l.b16 %v432
    %v1079 = vunpack.c.h.b16 %v432
    %v1080 = vunpack.c.l.b16 %v433
    %v1081 = vunpack.c.h.b16 %v433
    %v1082 = vunpack.c.l.b16 %v434
    %v1083 = vunpack.c.h.b16 %v434
    %v1084 = vunpack.c.l.b16 %v435
    %v1085 = vunpack.c.h.b16 %v435
    %v1086 = vunpack.c.l.b16 %v436
    %v1087 = vunpack.c.h.b16 %v436
    %v1088 = vunpack.c.l.b16 %v437
    %v1089 = vunpack.c.h.b16 %v437
    %v1090 = vunpack.c.l.b16 %v438
    %v1091 = vunpack.c.h.b16 %v438
    %v1092 = vunpack.c.l.b16 %v439
    %v1093 = vunpack.c.h.b16 %v439
    %v1094 = vunpack.c.l.b16 %v440
    %v1095 = vunpack.c.h.b16 %v440
    %v1096 = vunpack.c.l.b16 %v441
    %v1097 = vunpack.c.h.b16 %v441
    %v1098 = vunpack.c.l.b16 %v442
    %v1099 = vunpack.c.h.b16 %v442
    %v1100 = vunpack.c.l.b16 %v443
    %v1101 = vunpack.c.h.b16 %v443
    %v1102 = vunpack.c.l.b16 %v444
    %v1103 = vunpack.c.h.b16 %v444
    %v1104 = vunpack.c.l.b16 %v445
    %v1105 = vunpack.c.h.b16 %v445
    %v1106 = vunpack.c.l.b16 %v446
    %v1107 = vunpack.c.h.b16 %v446
    %v1108 = vunpack.c.l.b16 %v447
    %v1109 = vunpack.c.h.b16 %v447
    %v1110 = vunpack.c.l.b16 %v448
    %v1111 = vunpack.c.h.b16 %v448
    %v1112 = vunpack.c.l.b16 %v449
    %v1113 = vunpack.c.h.b16 %v449
    %v1114 = vunpack.c.l.b16 %v450
    %v1115 = vunpack.c.h.b16 %v450
    %v1116 = vunpack.c.l.b16 %v451
    %v1117 = vunpack.c.h.b16 %v451
    %v1118 = vunpack.c.l.b16 %v452
    %v1119 = vunpack.c.h.b16 %v452
    %v1120 = vunpack.c.l.b16 %v453
    %v1121 = vunpack.c.h.b16 %v453
    %v1122 = vunpack.c.l.b16 %v454
    %v1123 = vunpack.c.h.b16 %v454
    %v1124 = vunpack.c.l.b16 %v455
    %v1125 = vunpack.c.h.b16 %v455
    %v1126 = vunpack.c.l.b16 %v456
    %v1127 = vunpack.c.h.b16 %v456
    %v1128 = vunpack.c.l.b16 %v457
    %v1129 = vunpack.c.h.b16 %v457
    %v1130 = vunpack.c.l.b16 %v458
    %v1131 = vunpack.c.h.b16 %v458
    %v1132 = vunpack.c.l.b16 %v459
    %v1133 = vunpack.c.h.b16 %v459
    %v1134 = vunpack.c.l.b16 %v460
    %v1135 = vunpack.c.h.b16 %v460
    %v1136 = vunpack.c.l.b16 %v461
    %v1137 = vunpack.c.h.b16 %v461
    %v1138 = vunpack.c.l.b16 %v462
    %v1139 = vunpack.c.h.b16 %v462
    %v1140 = vunpack.c.l.b16 %v463
    %v1141 = vunpack.c.h.b16 %v463
    %v1142 = vunpack.c.l.b16 %v464
    %v1143 = vunpack.c.h.b16 %v464
    %v1144 = vunpack.c.l.b16 %v465
    %v1145 = vunpack.c.h.b16 %v465
    %v1146 = vunpack.c.l.b16 %v466
    %v1147 = vunpack.c.h.b16 %v466
    %v1148 = vunpack.c.l.b16 %v467
    %v1149 = vunpack.c.h.b16 %v467
    %v1150 = vunpack.c.l.b16 %v468
    %v1151 = vunpack.c.h.b16 %v468
    %v1152 = vunpack.c.l.b16 %v469
    %v1153 = vunpack.c.h.b16 %v469
    %v1154 = vunpack.c.l.b16 %v470
    %v1155 = vunpack.c.h.b16 %v470
    %v1156 = vunpack.c.l.b16 %v471
    %v1157 = vunpack.c.h.b16 %v471
    %v1158 = vunpack.c.l.b16 %v472
    %v1159 = vunpack.c.h.b16 %v472
    %v1160 = vunpack.c.l.b16 %v473
    %v1161 = vunpack.c.h.b16 %v473
    %v1162 = vunpack.c.l.b16 %v474
    %v1163 = vunpack.c.h.b16 %v474
    %v1164 = vunpack.c.l.b16 %v475
    %v1165 = vunpack.c.h.b16 %v475
    %v1166 = vunpack.c.l.b16 %v476
    %v1167 = vunpack.c.h.b16 %v476
    %v1168 = vunpack.c.l.b16 %v477
    %v1169 = vunpack.c.h.b16 %v477
    %v1170 = vunpack.c.l.b16 %v478
    %v1171 = vunpack.c.h.b16 %v478
    %v1172 = vunpack.c.l.b16 %v479
    %v1173 = vunpack.c.h.b16 %v479
    %v1174 = vunpack.c.l.b16 %v480
    %v1175 = vunpack.c.h.b16 %v480
    %v1176 = vunpack.c.l.b16 %v481
    %v1177 = vunpack.c.h.b16 %v481
    %v1178 = vunpack.c.l.b16 %v482
    %v1179 = vunpack.c.h.b16 %v482
    %v1180 = vunpack.c.l.b16 %v483
    %v1181 = vunpack.c.h.b16 %v483
    %v1182 = vunpack.c.l.b16 %v484
    %v1183 = vunpack.c.h.b16 %v484
    %v1184 = vunpack.c.l.b16 %v485
    %v1185 = vunpack.c.h.b16 %v485
    %v1186 = vunpack.c.l.b16 %v486
    %v1187 = vunpack.c.h.b16 %v486
    %v1188 = vunpack.c.l.b16 %v487
    %v1189 = vunpack.c.h.b16 %v487
    %v1190 = vunpack.c.l.b16 %v488
    %v1191 = vunpack.c.h.b16 %v488
    %v1192 = vunpack.c.l.b16 %v489
    %v1193 = vunpack.c.h.b16 %v489
    %v1194 = vunpack.c.l.b16 %v490
    %v1195 = vunpack.c.h.b16 %v490
    %v1196 = vunpack.c.l.b16 %v491
    %v1197 = vunpack.c.h.b16 %v491
    %v1198 = vunpack.c.l.b16 %v492
    %v1199 = vunpack.c.h.b16 %v492
    %v1200 = vunpack.c.l.b16 %v493
    %v1201 = vunpack.c.h.b16 %v493
    %v1202 = vunpack.c.l.b16 %v494
    %v1203 = vunpack.c.h.b16 %v494
    %v1204 = vunpack.c.l.b16 %v495
    %v1205 = vunpack.c.h.b16 %v495
    %v1206 = vunpack.c.l.b16 %v496
    %v1207 = vunpack.c.h.b16 %v496
    %v1208 = vunpack.c.l.b16 %v497
    %v1209 = vunpack.c.h.b16 %v497
    %v1210 = vunpack.c.l.b16 %v498
    %v1211 = vunpack.c.h.b16 %v498
    %v1212 = vunpack.c.l.b16 %v499
    %v1213 = vunpack.c.h.b16 %v499
    %v1214 = vunpack.c.l.b16 %v500
    %v1215 = vunpack.c.h.b16 %v500
    %v1216 = vunpack.c.l.b16 %v501
    %v1217 = vunpack.c.h.b16 %v501
    %v1218 = vunpack.c.l.b16 %v502
    %v1219 = vunpack.c.h.b16 %v502
    %v1220 = vunpack.c.l.b16 %v503
    %v1221 = vunpack.c.h.b16 %v503
    %v1222 = vunpack.c.l.b16 %v504
    %v1223 = vunpack.c.h.b16 %v504
    %v1224 = vunpack.c.l.b16 %v505
    %v1225 = vunpack.c.h.b16 %v505
    %v1226 = vunpack.c.l.b16 %v506
    %v1227 = vunpack.c.h.b16 %v506
    %v1228 = vunpack.c.l.b16 %v507
    %v1229 = vunpack.c.h.b16 %v507
    %v1230 = vunpack.c.l.b16 %v508
    %v1231 = vunpack.c.h.b16 %v508
    %v1232 = vunpack.c.l.b16 %v509
    %v1233 = vunpack.c.h.b16 %v509
    %v1234 = vunpack.c.l.b16 %v510
    %v1235 = vunpack.c.h.b16 %v510
    %v1236 = vunpack.c.l.b16 %v511
    %v1237 = vunpack.c.h.b16 %v511
    %v1238 = vunpack.c.l.b16 %v512
    %v1239 = vunpack.c.h.b16 %v512
    %v1240 = vunpack.c.l.b16 %v513
    %v1241 = vunpack.c.h.b16 %v513
    %v1242 = vunpack.c.l.b16 %v514
    %v1243 = vunpack.c.h.b16 %v514
    %v1244 = vunpack.c.l.b16 %v515
    %v1245 = vunpack.c.h.b16 %v515
    %v1246 = vunpack.c.l.b16 %v516
    %v1247 = vunpack.c.h.b16 %v516
    %v1248 = vunpack.c.l.b16 %v517
    %v1249 = vunpack.c.h.b16 %v517
    %v1250 = vunpack.c.l.b16 %v518
    %v1251 = vunpack.c.h.b16 %v518
    %v1252 = vunpack.c.l.b16 %v519
    %v1253 = vunpack.c.h.b16 %v519
    %v1254 = vunpack.c.l.b16 %v520
    %v1255 = vunpack.c.h.b16 %v520
    %v1256 = vunpack.c.l.b16 %v521
    %v1257 = vunpack.c.h.b16 %v521
    %v1258 = vunpack.c.l.b16 %v522
    %v1259 = vunpack.c.h.b16 %v522
    %v1260 = vunpack.c.l.b16 %v523
    %v1261 = vunpack.c.h.b16 %v523
    %v1262 = vunpack.c.l.b16 %v524
    %v1263 = vunpack.c.h.b16 %v524
    %v1264 = vunpack.c.l.b16 %v525
    %v1265 = vunpack.c.h.b16 %v525
    %v1266 = vunpack.c.l.b16 %v526
    %v1267 = vunpack.c.h.b16 %v526
    %v1268 = vunpack.c.l.b16 %v527
    %v1269 = vunpack.c.h.b16 %v527
    %v1270 = vunpack.c.l.b16 %v528
    %v1271 = vunpack.c.h.b16 %v528
    %v1272 = vunpack.c.l.b16 %v529
    %v1273 = vunpack.c.h.b16 %v529
    %v1274 = vunpack.c.l.b16 %v530
    %v1275 = vunpack.c.h.b16 %v530
    %v1276 = vunpack.c.l.b16 %v531
    %v1277 = vunpack.c.h.b16 %v531
    %v1278 = vunpack.c.l.b16 %v532
    %v1279 = vunpack.c.h.b16 %v532
    %v1280 = vunpack.c.l.b16 %v533
    %v1281 = vunpack.c.h.b16 %v533
    %v1282 = vunpack.c.l.b16 %v534
    %v1283 = vunpack.c.h.b16 %v534
    %v1284 = vunpack.c.l.b16 %v535
    %v1285 = vunpack.c.h.b16 %v535
    %v1286 = vunpack.c.l.b16 %v536
    %v1287 = vunpack.c.h.b16 %v536
    %v1288 = vunpack.c.l.b16 %v537
    %v1289 = vunpack.c.h.b16 %v537
    %v1290 = vunpack.c.l.b16 %v538
    %v1291 = vunpack.c.h.b16 %v538
    %v1292 = vunpack.c.l.b16 %v539
    %v1293 = vunpack.c.h.b16 %v539
    %v1294 = vunpack.c.l.b16 %v540
    %v1295 = vunpack.c.h.b16 %v540
    %v1296 = vunpack.c.l.b16 %v541
    %v1297 = vunpack.c.h.b16 %v541
    %v1298 = vunpack.c.l.b16 %v542
    %v1299 = vunpack.c.h.b16 %v542
    %v1300 = vunpack.c.l.b16 %v543
    %v1301 = vunpack.c.h.b16 %v543
    %v1302 = vunpack.c.l.b16 %v544
    %v1303 = vunpack.c.h.b16 %v544
    %v1304 = vunpack.c.l.b16 %v545
    %v1305 = vunpack.c.h.b16 %v545
    %v1306 = vunpack.c.l.b16 %v546
    %v1307 = vunpack.c.h.b16 %v546
    %v1308 = vunpack.c.l.b16 %v547
    %v1309 = vunpack.c.h.b16 %v547
    %v1310 = vunpack.c.l.b16 %v548
    %v1311 = vunpack.c.h.b16 %v548
    %v1312 = vunpack.c.l.b16 %v549
    %v1313 = vunpack.c.h.b16 %v549
    %v1314 = vunpack.c.l.b16 %v550
    %v1315 = vunpack.c.h.b16 %v550
    %v1316 = vunpack.c.l.b16 %v551
    %v1317 = vunpack.c.h.b16 %v551
    %v1318 = vunpack.c.l.b16 %v552
    %v1319 = vunpack.c.h.b16 %v552
    %v1320 = vunpack.c.l.b16 %v553
    %v1321 = vunpack.c.h.b16 %v553
    %v1322 = vunpack.c.l.b16 %v554
    %v1323 = vunpack.c.h.b16 %v554
    %v1324 = vunpack.c.l.b16 %v555
    %v1325 = vunpack.c.h.b16 %v555
    %v1326 = vunpack.c.l.b16 %v556
    %v1327 = vunpack.c.h.b16 %v556
    %v1328 = vunpack.c.l.b16 %v557
    %v1329 = vunpack.c.h.b16 %v557
    %v1330 = vunpack.c.l.b16 %v558
    %v1331 = vunpack.c.h.b16 %v558
    %v1332 = vunpack.c.l.b16 %v559
    %v1333 = vunpack.c.h.b16 %v559
    %v1334 = vunpack.c.l.b16 %v560
    %v1335 = vunpack.c.h.b16 %v560
    %v1336 = vunpack.c.l.b16 %v561
    %v1337 = vunpack.c.h.b16 %v561
    %v1338 = vunpack.c.l.b16 %v562
    %v1339 = vunpack.c.h.b16 %v562
    %v1340 = vunpack.c.l.b16 %v563
    %v1341 = vunpack.c.h.b16 %v563
    %v1342 = vunpack.c.l.b16 %v564
    %v1343 = vunpack.c.h.b16 %v564
    %v1344 = vunpack.c.l.b16 %v565
    %v1345 = vunpack.c.h.b16 %v565
    %v1346 = vunpack.c.l.b16 %v566
    %v1347 = vunpack.c.h.b16 %v566
    %v1348 = vunpack.c.l.b16 %v567
    %v1349 = vunpack.c.h.b16 %v567
    %v1350 = vunpack.c.l.b16 %v568
    %v1351 = vunpack.c.h.b16 %v568
    %v1352 = vunpack.c.l.b16 %v569
    %v1353 = vunpack.c.h.b16 %v569
    %v1354 = vunpack.c.l.b16 %v570
    %v1355 = vunpack.c.h.b16 %v570
    %v1356 = vunpack.c.l.b16 %v571
    %v1357 = vunpack.c.h.b16 %v571
    %v1358 = vunpack.c.l.b16 %v572
    %v1359 = vunpack.c.h.b16 %v572
    %v1360 = vunpack.c.l.b16 %v573
    %v1361 = vunpack.c.h.b16 %v573
    %v1362 = vunpack.c.l.b16 %v574
    %v1363 = vunpack.c.h.b16 %v574
    %v1364 = vunpack.c.l.b16 %v575
    %v1365 = vunpack.c.h.b16 %v575
    %v1366 = vunpack.c.l.b16 %v576
    %v1367 = vunpack.c.h.b16 %v576
    %v1368 = vunpack.c.l.b16 %v577
    %v1369 = vunpack.c.h.b16 %v577
    %v1370 = vunpack.c.l.b16 %v578
    %v1371 = vunpack.c.h.b16 %v578
    %v1372 = vunpack.c.l.b16 %v579
    %v1373 = vunpack.c.h.b16 %v579
    %v1374 = vunpack.c.l.b16 %v580
    %v1375 = vunpack.c.h.b16 %v580
    %v1376 = vunpack.c.l.b16 %v581
    %v1377 = vunpack.c.h.b16 %v581
    %v1378 = vunpack.c.l.b16 %v582
    %v1379 = vunpack.c.h.b16 %v582
    %v1380 = vunpack.c.l.b16 %v583
    %v1381 = vunpack.c.h.b16 %v583
    %v1382 = vunpack.c.l.b16 %v584
    %v1383 = vunpack.c.h.b16 %v584
    %v1384 = vunpack.c.l.b16 %v585
    %v1385 = vunpack.c.h.b16 %v585
    %v1386 = vunpack.c.l.b16 %v586
    %v1387 = vunpack.c.h.b16 %v586
    %v1388 = vunpack.c.l.b16 %v587
    %v1389 = vunpack.c.h.b16 %v587
    %v1390 = vunpack.c.l.b16 %v588
    %v1391 = vunpack.c.h.b16 %v588
    %v1392 = vunpack.c.l.b16 %v589
    %v1393 = vunpack.c.h.b16 %v589
    %v1394 = vunpack.c.l.b16 %v590
    %v1395 = vunpack.c.h.b16 %v590
    %v1396 = vunpack.c.l.b16 %v591
    %v1397 = vunpack.c.h.b16 %v591
    %v1398 = vunpack.c.l.b16 %v592
    %v1399 = vunpack.c.h.b16 %v592
    %v1400 = vunpack.c.l.b16 %v593
    %v1401 = vunpack.c.h.b16 %v593
    %v1402 = vunpack.c.l.b16 %v594
    %v1403 = vunpack.c.h.b16 %v594
    %v1404 = vunpack.c.l.b16 %v595
    %v1405 = vunpack.c.h.b16 %v595
    %v1406 = vunpack.c.l.b16 %v596
    %v1407 = vunpack.c.h.b16 %v596
    %v1408 = vunpack.c.l.b16 %v597
    %v1409 = vunpack.c.h.b16 %v597
    %v1410 = vunpack.c.l.b16 %v598
    %v1411 = vunpack.c.h.b16 %v598
    %v1412 = vunpack.c.l.b16 %v599
    %v1413 = vunpack.c.h.b16 %v599
    %v1414 = vunpack.c.l.b16 %v600
    %v1415 = vunpack.c.h.b16 %v600
    %v1416 = vunpack.c.l.b16 %v601
    %v1417 = vunpack.c.h.b16 %v601
    %v1418 = vunpack.c.l.b16 %v602
    %v1419 = vunpack.c.h.b16 %v602
    %v1420 = vunpack.c.l.b16 %v603
    %v1421 = vunpack.c.h.b16 %v603
    %v1422 = vunpack.c.l.b16 %v604
    %v1423 = vunpack.c.h.b16 %v604
    %v1424 = vunpack.c.l.b16 %v605
    %v1425 = vunpack.c.h.b16 %v605
    %v1426 = vunpack.c.l.b16 %v606
    %v1427 = vunpack.c.h.b16 %v606
    %v1428 = vunpack.c.l.b16 %v607
    %v1429 = vunpack.c.h.b16 %v607
    %v1430 = vunpack.c.l.b16 %v608
    %v1431 = vunpack.c.h.b16 %v608
    %v1432 = vunpack.c.l.b16 %v609
    %v1433 = vunpack.c.h.b16 %v609
    %v1434 = vunpack.c.l.b16 %v610
    %v1435 = vunpack.c.h.b16 %v610
    %v1436 = vunpack.c.l.b16 %v611
    %v1437 = vunpack.c.h.b16 %v611
    %v1438 = vunpack.c.l.b16 %v612
    %v1439 = vunpack.c.h.b16 %v612
    %v1440 = vunpack.c.l.b16 %v613
    %v1441 = vunpack.c.h.b16 %v613
    %v1442 = vunpack.c.l.b16 %v614
    %v1443 = vunpack.c.h.b16 %v614
    %v1444 = vunpack.c.l.b16 %v615
    %v1445 = vunpack.c.h.b16 %v615
    %v1446 = vunpack.c.l.b16 %v616
    %v1447 = vunpack.c.h.b16 %v616
    %v1448 = vunpack.c.l.b16 %v617
    %v1449 = vunpack.c.h.b16 %v617
    %v1450 = vunpack.c.l.b16 %v618
    %v1451 = vunpack.c.h.b16 %v618
    %v1452 = vunpack.c.l.b16 %v619
    %v1453 = vunpack.c.h.b16 %v619
    %v1454 = vunpack.c.l.b16 %v620
    %v1455 = vunpack.c.h.b16 %v620
    %v1456 = vunpack.c.l.b16 %v621
    %v1457 = vunpack.c.h.b16 %v621
    %v1458 = vunpack.c.l.b16 %v622
    %v1459 = vunpack.c.h.b16 %v622
    %v1460 = vunpack.c.l.b16 %v623
    %v1461 = vunpack.c.h.b16 %v623
    %v1462 = vunpack.c.l.b16 %v624
    %v1463 = vunpack.c.h.b16 %v624
    %v1464 = vunpack.c.l.b16 %v625
    %v1465 = vunpack.c.h.b16 %v625
    %v1466 = vunpack.c.l.b16 %v626
    %v1467 = vunpack.c.h.b16 %v626
    %v1468 = vunpack.c.l.b16 %v627
    %v1469 = vunpack.c.h.b16 %v627
    %v1470 = vunpack.c.l.b16 %v628
    %v1471 = vunpack.c.h.b16 %v628
    %v1472 = vunpack.c.l.b16 %v629
    %v1473 = vunpack.c.h.b16 %v629
    %v1474 = vunpack.c.l.b16 %v630
    %v1475 = vunpack.c.h.b16 %v630
    %v1476 = vunpack.c.l.b16 %v631
    %v1477 = vunpack.c.h.b16 %v631
    %v1478 = vunpack.c.l.b16 %v632
    %v1479 = vunpack.c.h.b16 %v632
    %v1480 = vunpack.c.l.b16 %v633
    %v1481 = vunpack.c.h.b16 %v633
    %v1482 = vunpack.c.l.b16 %v634
    %v1483 = vunpack.c.h.b16 %v634
    %v1484 = vunpack.c.l.b16 %v635
    %v1485 = vunpack.c.h.b16 %v635
    %v1486 = vunpack.c.l.b16 %v636
    %v1487 = vunpack.c.h.b16 %v636
    %v1488 = vunpack.c.l.b16 %v637
    %v1489 = vunpack.c.h.b16 %v637
    %v1490 = vunpack.c.l.b16 %v638
    %v1491 = vunpack.c.h.b16 %v638
    %v1492 = vunpack.c.l.b16 %v639
    %v1493 = vunpack.c.h.b16 %v639
    %v1494 = vunpack.c.l.b16 %v640
    %v1495 = vunpack.c.h.b16 %v640
    %v1496 = vunpack.c.l.b16 %v641
    %v1497 = vunpack.c.h.b16 %v641
    %v1498 = vunpack.c.l.b16 %v642
    %v1499 = vunpack.c.h.b16 %v642
    %v1500 = vunpack.c.l.b16 %v643
    %v1501 = vunpack.c.h.b16 %v643
    %v1502 = vunpack.c.l.b16 %v644
    %v1503 = vunpack.c.h.b16 %v644
    %v1504 = vunpack.c.l.b16 %v645
    %v1505 = vunpack.c.h.b16 %v645
    %v1506 = vunpack.c.l.b16 %v646
    %v1507 = vunpack.c.h.b16 %v646
    %v1508 = vunpack.c.l.b16 %v647
    %v1509 = vunpack.c.h.b16 %v647
    %v1510 = vunpack.c.l.b16 %v648
    %v1511 = vunpack.c.h.b16 %v648
    %v1512 = vunpack.c.l.b16 %v649
    %v1513 = vunpack.c.h.b16 %v649
    %v1514 = vpack.c.b16 %v956, %v938
    %v1515 = vpack.c.b16 %v957, %v939
    %v1516 = vpack.c.b16 %v958, %v940
    %v1517 = vpack.c.b16 %v959, %v941
    %v1518 = vpack.c.b16 %v960, %v942
    %v1519 = vpack.c.b16 %v961, %v943
    %v1520 = vpack.c.b16 %v962, %v944
    %v1521 = vpack.c.b16 %v963, %v945
    %v1522 = vpack.c.b16 %v964, %v946
    %v1523 = vpack.c.b16 %v965, %v947
    %v1524 = vpack.c.b16 %v966, %v948
    %v1525 = vpack.c.b16 %v967, %v949
    %v1526 = vpack.c.b16 %v968, %v950
    %v1527 = vpack.c.b16 %v969, %v951
    %v1528 = vpack.c.b16 %v970, %v952
    %v1529 = vpack.c.b16 %v971, %v953
    %v1530 = vpack.c.b16 %v972, %v954
    %v1531 = vpack.c.b16 %v973, %v955
    %v1532 = vpack.c.b16 %v992, %v974
    %v1533 = vpack.c.b16 %v993, %v975
    %v1534 = vpack.c.b16 %v994, %v976
    %v1535 = vpack.c.b16 %v995, %v977
    %v1536 = vpack.c.b16 %v996, %v978
    %v1537 = vpack.c.b16 %v997, %v979
    %v1538 = vpack.c.b16 %v998, %v980
    %v1539 = vpack.c.b16 %v999, %v981
    %v1540 = vpack.c.b16 %v1000, %v982
    %v1541 = vpack.c.b16 %v1001, %v983
    %v1542 = vpack.c.b16 %v1002, %v984
    %v1543 = vpack.c.b16 %v1003, %v985
    %v1544 = vpack.c.b16 %v1004, %v986
    %v1545 = vpack.c.b16 %v1005, %v987
    %v1546 = vpack.c.b16 %v1006, %v988
    %v1547 = vpack.c.b16 %v1007, %v989
    %v1548 = vpack.c.b16 %v1008, %v990
    %v1549 = vpack.c.b16 %v1009, %v991
    %v1550 = vpack.c.b16 %v1028, %v1010
    %v1551 = vpack.c.b16 %v1029, %v1011
    %v1552 = vpack.c.b16 %v1030, %v1012
    %v1553 = vpack.c.b16 %v1031, %v1013
    %v1554 = vpack.c.b16 %v1032, %v1014
    %v1555 = vpack.c.b16 %v1033, %v1015
    %v1556 = vpack.c.b16 %v1034, %v1016
    %v1557 = vpack.c.b16 %v1035, %v1017
    %v1558 = vpack.c.b16 %v1036, %v1018
    %v1559 = vpack.c.b16 %v1037, %v1019
    %v1560 = vpack.c.b16 %v1038, %v1020
    %v1561 = vpack.c.b16 %v1039, %v1021
    %v1562 = vpack.c.b16 %v1040, %v1022
    %v1563 = vpack.c.b16 %v1041, %v1023
    %v1564 = vpack.c.b16 %v1042, %v1024
    %v1565 = vpack.c.b16 %v1043, %v1025
    %v1566 = vpack.c.b16 %v1044, %v1026
    %v1567 = vpack.c.b16 %v1045, %v1027
    %v1568 = vpack.c.b16 %v1064, %v1046
    %v1569 = vpack.c.b16 %v1065, %v1047
    %v1570 = vpack.c.b16 %v1066, %v1048
    %v1571 = vpack.c.b16 %v1067, %v1049
    %v1572 = vpack.c.b16 %v1068, %v1050
    %v1573 = vpack.c.b16 %v1069, %v1051
    %v1574 = vpack.c.b16 %v1070, %v1052
    %v1575 = vpack.c.b16 %v1071, %v1053
    %v1576 = vpack.c.b16 %v1072, %v1054
    %v1577 = vpack.c.b16 %v1073, %v1055
    %v1578 = vpack.c.b16 %v1074, %v1056
    %v1579 = vpack.c.b16 %v1075, %v1057
    %v1580 = vpack.c.b16 %v1076, %v1058
    %v1581 = vpack.c.b16 %v1077, %v1059
    %v1582 = vpack.c.b16 %v1078, %v1060
    %v1583 = vpack.c.b16 %v1079, %v1061
    %v1584 = vpack.c.b16 %v1080, %v1062
    %v1585 = vpack.c.b16 %v1081, %v1063
    %v1586 = vpack.c.b16 %v1100, %v1082
    %v1587 = vpack.c.b16 %v1101, %v1083
    %v1588 = vpack.c.b16 %v1102, %v1084
    %v1589 = vpack.c.b16 %v1103, %v1085
    %v1590 = vpack.c.b16 %v1104, %v1086
    %v1591 = vpack.c.b16 %v1105, %v1087
    %v1592 = vpack.c.b16 %v1106, %v1088
    %v1593 = vpack.c.b16 %v1107, %v1089
    %v1594 = vpack.c.b16 %v1108, %v1090
    %v1595 = vpack.c.b16 %v1109, %v1091
    %v1596 = vpack.c.b16 %v1110, %v1092
    %v1597 = vpack.c.b16 %v1111, %v1093
    %v1598 = vpack.c.b16 %v1112, %v1094
    %v1599 = vpack.c.b16 %v1113, %v1095
    %v1600 = vpack.c.b16 %v1114, %v1096
    %v1601 = vpack.c.b16 %v1115, %v1097
    %v1602 = vpack.c.b16 %v1116, %v1098
    %v1603 = vpack.c.b16 %v1117, %v1099
    %v1604 = vpack.c.b16 %v1136, %v1118
    %v1605 = vpack.c.b16 %v1137, %v1119
    %v1606 = vpack.c.b16 %v1138, %v1120
    %v1607 = vpack.c.b16 %v1139, %v1121
    %v1608 = vpack.c.b16 %v1140, %v1122
    %v1609 = vpack.c.b16 %v1141, %v1123
    %v1610 = vpack.c.b16 %v1142, %v1124
    %v1611 = vpack.c.b16 %v1143, %v1125
    %v1612 = vpack.c.b16 %v1144, %v1126
    %v1613 = vpack.c.b16 %v1145, %v1127
    %v1614 = vpack.c.b16 %v1146, %v1128
    %v1615 = vpack.c.b16 %v1147, %v1129
    %v1616 = vpack.c.b16 %v1148, %v1130
    %v1617 = vpack.c.b16 %v1149, %v1131
    %v1618 = vpack.c.b16 %v1150, %v1132
    %v1619 = vpack.c.b16 %v1151, %v1133
    %v1620 = vpack.c.b16 %v1152, %v1134
    %v1621 = vpack.c.b16 %v1153, %v1135
    %v1622 = vpack.c.b16 %v1172, %v1154
    %v1623 = vpack.c.b16 %v1173, %v1155
    %v1624 = vpack.c.b16 %v1174, %v1156
    %v1625 = vpack.c.b16 %v1175, %v1157
    %v1626 = vpack.c.b16 %v1176, %v1158
    %v1627 = vpack.c.b16 %v1177, %v1159
    %v1628 = vpack.c.b16 %v1178, %v1160
    %v1629 = vpack.c.b16 %v1179, %v1161
    %v1630 = vpack.c.b16 %v1180, %v1162
    %v1631 = vpack.c.b16 %v1181, %v1163
    %v1632 = vpack.c.b16 %v1182, %v1164
    %v1633 = vpack.c.b16 %v1183, %v1165
    %v1634 = vpack.c.b16 %v1184, %v1166
    %v1635 = vpack.c.b16 %v1185, %v1167
    %v1636 = vpack.c.b16 %v1186, %v1168
    %v1637 = vpack.c.b16 %v1187, %v1169
    %v1638 = vpack.c.b16 %v1188, %v1170
    %v1639 = vpack.c.b16 %v1189, %v1171
    %v1640 = vpack.c.b16 %v1208, %v1190
    %v1641 = vpack.c.b16 %v1209, %v1191
    %v1642 = vpack.c.b16 %v1210, %v1192
    %v1643 = vpack.c.b16 %v1211, %v1193
    %v1644 = vpack.c.b16 %v1212, %v1194
    %v1645 = vpack.c.b16 %v1213, %v1195
    %v1646 = vpack.c.b16 %v1214, %v1196
    %v1647 = vpack.c.b16 %v1215, %v1197
    %v1648 = vpack.c.b16 %v1216, %v1198
    %v1649 = vpack.c.b16 %v1217, %v1199
    %v1650 = vpack.c.b16 %v1218, %v1200
    %v1651 = vpack.c.b16 %v1219, %v1201
    %v1652 = vpack.c.b16 %v1220, %v1202
    %v1653 = vpack.c.b16 %v1221, %v1203
    %v1654 = vpack.c.b16 %v1222, %v1204
    %v1655 = vpack.c.b16 %v1223, %v1205
    %v1656 = vpack.c.b16 %v1224, %v1206
    %v1657 = vpack.c.b16 %v1225, %v1207
    %v1658 = vpack.c.b16 %v1244, %v1226
    %v1659 = vpack.c.b16 %v1245, %v1227
    %v1660 = vpack.c.b16 %v1246, %v1228
    %v1661 = vpack.c.b16 %v1247, %v1229
    %v1662 = vpack.c.b16 %v1248, %v1230
    %v1663 = vpack.c.b16 %v1249, %v1231
    %v1664 = vpack.c.b16 %v1250, %v1232
    %v1665 = vpack.c.b16 %v1251, %v1233
    %v1666 = vpack.c.b16 %v1252, %v1234
    %v1667 = vpack.c.b16 %v1253, %v1235
    %v1668 = vpack.c.b16 %v1254, %v1236
    %v1669 = vpack.c.b16 %v1255, %v1237
    %v1670 = vpack.c.b16 %v1256, %v1238
    %v1671 = vpack.c.b16 %v1257, %v1239
    %v1672 = vpack.c.b16 %v1258, %v1240
    %v1673 = vpack.c.b16 %v1259, %v1241
    %v1674 = vpack.c.b16 %v1260, %v1242
    %v1675 = vpack.c.b16 %v1261, %v1243
    %v1676 = vpack.c.b16 %v1280, %v1262
    %v1677 = vpack.c.b16 %v1281, %v1263
    %v1678 = vpack.c.b16 %v1282, %v1264
    %v1679 = vpack.c.b16 %v1283, %v1265
    %v1680 = vpack.c.b16 %v1284, %v1266
    %v1681 = vpack.c.b16 %v1285, %v1267
    %v1682 = vpack.c.b16 %v1286, %v1268
    %v1683 = vpack.c.b16 %v1287, %v1269
    %v1684 = vpack.c.b16 %v1288, %v1270
    %v1685 = vpack.c.b16 %v1289, %v1271
    %v1686 = vpack.c.b16 %v1290, %v1272
    %v1687 = vpack.c.b16 %v1291, %v1273
    %v1688 = vpack.c.b16 %v1292, %v1274
    %v1689 = vpack.c.b16 %v1293, %v1275
    %v1690 = vpack.c.b16 %v1294, %v1276
    %v1691 = vpack.c.b16 %v1295, %v1277
    %v1692 = vpack.c.b16 %v1296, %v1278
    %v1693 = vpack.c.b16 %v1297, %v1279
    %v1694 = vpack.c.b16 %v1316, %v1298
    %v1695 = vpack.c.b16 %v1317, %v1299
    %v1696 = vpack.c.b16 %v1318, %v1300
    %v1697 = vpack.c.b16 %v1319, %v1301
    %v1698 = vpack.c.b16 %v1320, %v1302
    %v1699 = vpack.c.b16 %v1321, %v1303
    %v1700 = vpack.c.b16 %v1322, %v1304
    %v1701 = vpack.c.b16 %v1323, %v1305
    %v1702 = vpack.c.b16 %v1324, %v1306
    %v1703 = vpack.c.b16 %v1325, %v1307
    %v1704 = vpack.c.b16 %v1326, %v1308
    %v1705 = vpack.c.b16 %v1327, %v1309
    %v1706 = vpack.c.b16 %v1328, %v1310
    %v1707 = vpack.c.b16 %v1329, %v1311
    %v1708 = vpack.c.b16 %v1330, %v1312
    %v1709 = vpack.c.b16 %v1331, %v1313
    %v1710 = vpack.c.b16 %v1332, %v1314
    %v1711 = vpack.c.b16 %v1333, %v1315
    %v1712 = vpack.c.b16 %v1352, %v1334
    %v1713 = vpack.c.b16 %v1353, %v1335
    %v1714 = vpack.c.b16 %v1354, %v1336
    %v1715 = vpack.c.b16 %v1355, %v1337
    %v1716 = vpack.c.b16 %v1356, %v1338
    %v1717 = vpack.c.b16 %v1357, %v1339
    %v1718 = vpack.c.b16 %v1358, %v1340
    %v1719 = vpack.c.b16 %v1359, %v1341
    %v1720 = vpack.c.b16 %v1360, %v1342
    %v1721 = vpack.c.b16 %v1361, %v1343
    %v1722 = vpack.c.b16 %v1362, %v1344
    %v1723 = vpack.c.b16 %v1363, %v1345
    %v1724 = vpack.c.b16 %v1364, %v1346
    %v1725 = vpack.c.b16 %v1365, %v1347
    %v1726 = vpack.c.b16 %v1366, %v1348
    %v1727 = vpack.c.b16 %v1367, %v1349
    %v1728 = vpack.c.b16 %v1368, %v1350
    %v1729 = vpack.c.b16 %v1369, %v1351
    %v1730 = vpack.c.b16 %v1388, %v1370
    %v1731 = vpack.c.b16 %v1389, %v1371
    %v1732 = vpack.c.b16 %v1390, %v1372
    %v1733 = vpack.c.b16 %v1391, %v1373
    %v1734 = vpack.c.b16 %v1392, %v1374
    %v1735 = vpack.c.b16 %v1393, %v1375
    %v1736 = vpack.c.b16 %v1394, %v1376
    %v1737 = vpack.c.b16 %v1395, %v1377
    %v1738 = vpack.c.b16 %v1396, %v1378
    %v1739 = vpack.c.b16 %v1397, %v1379
    %v1740 = vpack.c.b16 %v1398, %v1380
    %v1741 = vpack.c.b16 %v1399, %v1381
    %v1742 = vpack.c.b16 %v1400, %v1382
    %v1743 = vpack.c.b16 %v1401, %v1383
    %v1744 = vpack.c.b16 %v1402, %v1384
    %v1745 = vpack.c.b16 %v1403, %v1385
    %v1746 = vpack.c.b16 %v1404, %v1386
    %v1747 = vpack.c.b16 %v1405, %v1387
    %v1748 = vpack.c.b16 %v1424, %v1406
    %v1749 = vpack.c.b16 %v1425, %v1407
    %v1750 = vpack.c.b16 %v1426, %v1408
    %v1751 = vpack.c.b16 %v1427, %v1409
    %v1752 = vpack.c.b16 %v1428, %v1410
    %v1753 = vpack.c.b16 %v1429, %v1411
    %v1754 = vpack.c.b16 %v1430, %v1412
    %v1755 = vpack.c.b16 %v1431, %v1413
    %v1756 = vpack.c.b16 %v1432, %v1414
    %v1757 = vpack.c.b16 %v1433, %v1415
    %v1758 = vpack.c.b16 %v1434, %v1416
    %v1759 = vpack.c.b16 %v1435, %v1417
    %v1760 = vpack.c.b16 %v1436, %v1418
    %v1761 = vpack.c.b16 %v1437, %v1419
    %v1762 = vpack.c.b16 %v1438, %v1420
    %v1763 = vpack.c.b16 %v1439, %v1421
    %v1764 = vpack.c.b16 %v1440, %v1422
    %v1765 = vpack.c.b16 %v1441, %v1423
    %v1766 = vpack.c.b16 %v1460, %v1442
    %v1767 = vpack.c.b16 %v1461, %v1443
    %v1768 = vpack.c.b16 %v1462, %v1444
    %v1769 = vpack.c.b16 %v1463, %v1445
    %v1770 = vpack.c.b16 %v1464, %v1446
    %v1771 = vpack.c.b16 %v1465, %v1447
    %v1772 = vpack.c.b16 %v1466, %v1448
    %v1773 = vpack.c.b16 %v1467, %v1449
    %v1774 = vpack.c.b16 %v1468, %v1450
    %v1775 = vpack.c.b16 %v1469, %v1451
    %v1776 = vpack.c.b16 %v1470, %v1452
    %v1777 = vpack.c.b16 %v1471, %v1453
    %v1778 = vpack.c.b16 %v1472, %v1454
    %v1779 = vpack.c.b16 %v1473, %v1455
    %v1780 = vpack.c.b16 %v1474, %v1456
    %v1781 = vpack.c.b16 %v1475, %v1457
    %v1782 = vpack.c.b16 %v1476, %v1458
    %v1783 = vpack.c.b16 %v1477, %v1459
    %v1784 = vpack.c.b16 %v1496, %v1478
    %v1785 = vpack.c.b16 %v1497, %v1479
    %v1786 = vpack.c.b16 %v1498, %v1480
    %v1787 = vpack.c.b16 %v1499, %v1481
    %v1788 = vpack.c.b16 %v1500, %v1482
    %v1789 = vpack.c.b16 %v1501, %v1483
    %v1790 = vpack.c.b16 %v1502, %v1484
    %v1791 = vpack.c.b16 %v1503, %v1485
    %v1792 = vpack.c.b16 %v1504, %v1486
    %v1793 = vpack.c.b16 %v1505, %v1487
    %v1794 = vpack.c.b16 %v1506, %v1488
    %v1795 = vpack.c.b16 %v1507, %v1489
    %v1796 = vpack.c.b16 %v1508, %v1490
    %v1797 = vpack.c.b16 %v1509, %v1491
    %v1798 = vpack.c.b16 %v1510, %v1492
    %v1799 = vpack.c.b16 %v1511, %v1493
    %v1800 = vpack.c.b16 %v1512, %v1494
    %v1801 = vpack.c.b16 %v1513, %v1495
    %2090 = vmatpush.bf16.msra.mxu0 %v1640
    %2091 = vmatpush.bf16.msra.mxu0 %v1622
    %2092 = vmatpush.bf16.msra.mxu0 %v1604
    %2093 = vmatpush.bf16.msra.mxu0 %v1586
    %2094 = vmatpush.bf16.msra.mxu0 %v1568
    %2095 = vmatpush.bf16.msra.mxu0 %v1550
    %2096 = vmatpush.bf16.msra.mxu0 %v1532
    %2097 = vmatpush.bf16.msra.mxu0 %v1514
    %2098 = vmatmul.bf16.gmra.mxu0 %v360
    %v2099 = vpop.f32.mrf.mxu0
    %v2100 = vadd.f32 0.0, %v2099
    %v2101 = vpop.f32.mrf.mxu0
    %v2102 = vadd.f32 0.0, %v2101
    %2103 = vdwg.mxu0
    %2104 = vmatpush.bf16.msra.mxu0 %v1784
    %2105 = vmatpush.bf16.msra.mxu0 %v1766
    %2106 = vmatpush.bf16.msra.mxu0 %v1748
    %2107 = vmatpush.bf16.msra.mxu0 %v1730
    %2108 = vmatpush.bf16.msra.mxu0 %v1712
    %2109 = vmatpush.bf16.msra.mxu0 %v1694
    %2110 = vmatpush.bf16.msra.mxu0 %v1676
    %2111 = vmatpush.bf16.msra.mxu0 %v1658
    %2112 = vmatmul.bf16.gmra.mxu0 %v361
    %v2113 = vpop.f32.mrf.mxu0
    %v2114 = vadd.f32 %v2100, %v2113
    %v2115 = vpop.f32.mrf.mxu0
    %v2116 = vadd.f32 %v2102, %v2115
    %2117 = vdwg.mxu0
    %2118 = vmatpush.bf16.msra.mxu0 %v1641
    %2119 = vmatpush.bf16.msra.mxu0 %v1623
    %2120 = vmatpush.bf16.msra.mxu0 %v1605
    %2121 = vmatpush.bf16.msra.mxu0 %v1587
    %2122 = vmatpush.bf16.msra.mxu0 %v1569
    %2123 = vmatpush.bf16.msra.mxu0 %v1551
    %2124 = vmatpush.bf16.msra.mxu0 %v1533
    %2125 = vmatpush.bf16.msra.mxu0 %v1515
    %2126 = vmatmul.bf16.gmra.mxu0 %v360
    %v2127 = vpop.f32.mrf.mxu0
    %v2128 = vadd.f32 0.0, %v2127
    %v2129 = vpop.f32.mrf.mxu0
    %v2130 = vadd.f32 0.0, %v2129
    %2131 = vdwg.mxu0
    %2132 = vmatpush.bf16.msra.mxu0 %v1785
    %2133 = vmatpush.bf16.msra.mxu0 %v1767
    %2134 = vmatpush.bf16.msra.mxu0 %v1749
    %2135 = vmatpush.bf16.msra.mxu0 %v1731
    %2136 = vmatpush.bf16.msra.mxu0 %v1713
    %2137 = vmatpush.bf16.msra.mxu0 %v1695
    %2138 = vmatpush.bf16.msra.mxu0 %v1677
    %2139 = vmatpush.bf16.msra.mxu0 %v1659
    %2140 = vmatmul.bf16.gmra.mxu0 %v361
    %v2141 = vpop.f32.mrf.mxu0
    %v2142 = vadd.f32 %v2128, %v2141
    %v2143 = vpop.f32.mrf.mxu0
    %v2144 = vadd.f32 %v2130, %v2143
    %2145 = vdwg.mxu0
    %2146 = vmatpush.bf16.msra.mxu0 %v1642
    %2147 = vmatpush.bf16.msra.mxu0 %v1624
    %2148 = vmatpush.bf16.msra.mxu0 %v1606
    %2149 = vmatpush.bf16.msra.mxu0 %v1588
    %2150 = vmatpush.bf16.msra.mxu0 %v1570
    %2151 = vmatpush.bf16.msra.mxu0 %v1552
    %2152 = vmatpush.bf16.msra.mxu0 %v1534
    %2153 = vmatpush.bf16.msra.mxu0 %v1516
    %2154 = vmatmul.bf16.gmra.mxu0 %v360
    %v2155 = vpop.f32.mrf.mxu0
    %v2156 = vadd.f32 0.0, %v2155
    %v2157 = vpop.f32.mrf.mxu0
    %v2158 = vadd.f32 0.0, %v2157
    %2159 = vdwg.mxu0
    %2160 = vmatpush.bf16.msra.mxu0 %v1786
    %2161 = vmatpush.bf16.msra.mxu0 %v1768
    %2162 = vmatpush.bf16.msra.mxu0 %v1750
    %2163 = vmatpush.bf16.msra.mxu0 %v1732
    %2164 = vmatpush.bf16.msra.mxu0 %v1714
    %2165 = vmatpush.bf16.msra.mxu0 %v1696
    %2166 = vmatpush.bf16.msra.mxu0 %v1678
    %2167 = vmatpush.bf16.msra.mxu0 %v1660
    %2168 = vmatmul.bf16.gmra.mxu0 %v361
    %v2169 = vpop.f32.mrf.mxu0
    %v2170 = vadd.f32 %v2156, %v2169
    %v2171 = vpop.f32.mrf.mxu0
    %v2172 = vadd.f32 %v2158, %v2171
    %2173 = vdwg.mxu0
    %2174 = vmatpush.bf16.msra.mxu0 %v1643
    %2175 = vmatpush.bf16.msra.mxu0 %v1625
    %2176 = vmatpush.bf16.msra.mxu0 %v1607
    %2177 = vmatpush.bf16.msra.mxu0 %v1589
    %2178 = vmatpush.bf16.msra.mxu0 %v1571
    %2179 = vmatpush.bf16.msra.mxu0 %v1553
    %2180 = vmatpush.bf16.msra.mxu0 %v1535
    %2181 = vmatpush.bf16.msra.mxu0 %v1517
    %2182 = vmatmul.bf16.gmra.mxu0 %v360
    %v2183 = vpop.f32.mrf.mxu0
    %v2184 = vadd.f32 0.0, %v2183
    %v2185 = vpop.f32.mrf.mxu0
    %v2186 = vadd.f32 0.0, %v2185
    %2187 = vdwg.mxu0
    %2188 = vmatpush.bf16.msra.mxu0 %v1787
    %2189 = vmatpush.bf16.msra.mxu0 %v1769
    %2190 = vmatpush.bf16.msra.mxu0 %v1751
    %2191 = vmatpush.bf16.msra.mxu0 %v1733
    %2192 = vmatpush.bf16.msra.mxu0 %v1715
    %2193 = vmatpush.bf16.msra.mxu0 %v1697
    %2194 = vmatpush.bf16.msra.mxu0 %v1679
    %2195 = vmatpush.bf16.msra.mxu0 %v1661
    %2196 = vmatmul.bf16.gmra.mxu0 %v361
    %v2197 = vpop.f32.mrf.mxu0
    %v2198 = vadd.f32 %v2184, %v2197
    %v2199 = vpop.f32.mrf.mxu0
    %v2200 = vadd.f32 %v2186, %v2199
    %2201 = vdwg.mxu0
    %2202 = vmatpush.bf16.msra.mxu0 %v1644
    %2203 = vmatpush.bf16.msra.mxu0 %v1626
    %2204 = vmatpush.bf16.msra.mxu0 %v1608
    %2205 = vmatpush.bf16.msra.mxu0 %v1590
    %2206 = vmatpush.bf16.msra.mxu0 %v1572
    %2207 = vmatpush.bf16.msra.mxu0 %v1554
    %2208 = vmatpush.bf16.msra.mxu0 %v1536
    %2209 = vmatpush.bf16.msra.mxu0 %v1518
    %2210 = vmatmul.bf16.gmra.mxu0 %v360
    %v2211 = vpop.f32.mrf.mxu0
    %v2212 = vadd.f32 0.0, %v2211
    %v2213 = vpop.f32.mrf.mxu0
    %v2214 = vadd.f32 0.0, %v2213
    %2215 = vdwg.mxu0
    %2216 = vmatpush.bf16.msra.mxu0 %v1788
    %2217 = vmatpush.bf16.msra.mxu0 %v1770
    %2218 = vmatpush.bf16.msra.mxu0 %v1752
    %2219 = vmatpush.bf16.msra.mxu0 %v1734
    %2220 = vmatpush.bf16.msra.mxu0 %v1716
    %2221 = vmatpush.bf16.msra.mxu0 %v1698
    %2222 = vmatpush.bf16.msra.mxu0 %v1680
    %2223 = vmatpush.bf16.msra.mxu0 %v1662
    %2224 = vmatmul.bf16.gmra.mxu0 %v361
    %v2225 = vpop.f32.mrf.mxu0
    %v2226 = vadd.f32 %v2212, %v2225
    %v2227 = vpop.f32.mrf.mxu0
    %v2228 = vadd.f32 %v2214, %v2227
    %2229 = vdwg.mxu0
    %2230 = vmatpush.bf16.msra.mxu0 %v1645
    %2231 = vmatpush.bf16.msra.mxu0 %v1627
    %2232 = vmatpush.bf16.msra.mxu0 %v1609
    %2233 = vmatpush.bf16.msra.mxu0 %v1591
    %2234 = vmatpush.bf16.msra.mxu0 %v1573
    %2235 = vmatpush.bf16.msra.mxu0 %v1555
    %2236 = vmatpush.bf16.msra.mxu0 %v1537
    %2237 = vmatpush.bf16.msra.mxu0 %v1519
    %2238 = vmatmul.bf16.gmra.mxu0 %v360
    %v2239 = vpop.f32.mrf.mxu0
    %v2240 = vadd.f32 0.0, %v2239
    %v2241 = vpop.f32.mrf.mxu0
    %v2242 = vadd.f32 0.0, %v2241
    %2243 = vdwg.mxu0
    %2244 = vmatpush.bf16.msra.mxu0 %v1789
    %2245 = vmatpush.bf16.msra.mxu0 %v1771
    %2246 = vmatpush.bf16.msra.mxu0 %v1753
    %2247 = vmatpush.bf16.msra.mxu0 %v1735
    %2248 = vmatpush.bf16.msra.mxu0 %v1717
    %2249 = vmatpush.bf16.msra.mxu0 %v1699
    %2250 = vmatpush.bf16.msra.mxu0 %v1681
    %2251 = vmatpush.bf16.msra.mxu0 %v1663
    %2252 = vmatmul.bf16.gmra.mxu0 %v361
    %v2253 = vpop.f32.mrf.mxu0
    %v2254 = vadd.f32 %v2240, %v2253
    %v2255 = vpop.f32.mrf.mxu0
    %v2256 = vadd.f32 %v2242, %v2255
    %2257 = vdwg.mxu0
    %2258 = vmatpush.bf16.msra.mxu0 %v1646
    %2259 = vmatpush.bf16.msra.mxu0 %v1628
    %2260 = vmatpush.bf16.msra.mxu0 %v1610
    %2261 = vmatpush.bf16.msra.mxu0 %v1592
    %2262 = vmatpush.bf16.msra.mxu0 %v1574
    %2263 = vmatpush.bf16.msra.mxu0 %v1556
    %2264 = vmatpush.bf16.msra.mxu0 %v1538
    %2265 = vmatpush.bf16.msra.mxu0 %v1520
    %2266 = vmatmul.bf16.gmra.mxu0 %v360
    %v2267 = vpop.f32.mrf.mxu0
    %v2268 = vadd.f32 0.0, %v2267
    %v2269 = vpop.f32.mrf.mxu0
    %v2270 = vadd.f32 0.0, %v2269
    %2271 = vdwg.mxu0
    %2272 = vmatpush.bf16.msra.mxu0 %v1790
    %2273 = vmatpush.bf16.msra.mxu0 %v1772
    %2274 = vmatpush.bf16.msra.mxu0 %v1754
    %2275 = vmatpush.bf16.msra.mxu0 %v1736
    %2276 = vmatpush.bf16.msra.mxu0 %v1718
    %2277 = vmatpush.bf16.msra.mxu0 %v1700
    %2278 = vmatpush.bf16.msra.mxu0 %v1682
    %2279 = vmatpush.bf16.msra.mxu0 %v1664
    %2280 = vmatmul.bf16.gmra.mxu0 %v361
    %v2281 = vpop.f32.mrf.mxu0
    %v2282 = vadd.f32 %v2268, %v2281
    %v2283 = vpop.f32.mrf.mxu0
    %v2284 = vadd.f32 %v2270, %v2283
    %2285 = vdwg.mxu0
    %2286 = vmatpush.bf16.msra.mxu0 %v1647
    %2287 = vmatpush.bf16.msra.mxu0 %v1629
    %2288 = vmatpush.bf16.msra.mxu0 %v1611
    %2289 = vmatpush.bf16.msra.mxu0 %v1593
    %2290 = vmatpush.bf16.msra.mxu0 %v1575
    %2291 = vmatpush.bf16.msra.mxu0 %v1557
    %2292 = vmatpush.bf16.msra.mxu0 %v1539
    %2293 = vmatpush.bf16.msra.mxu0 %v1521
    %2294 = vmatmul.bf16.gmra.mxu0 %v360
    %v2295 = vpop.f32.mrf.mxu0
    %v2296 = vadd.f32 0.0, %v2295
    %v2297 = vpop.f32.mrf.mxu0
    %v2298 = vadd.f32 0.0, %v2297
    %2299 = vdwg.mxu0
    %2300 = vmatpush.bf16.msra.mxu0 %v1791
    %2301 = vmatpush.bf16.msra.mxu0 %v1773
    %2302 = vmatpush.bf16.msra.mxu0 %v1755
    %2303 = vmatpush.bf16.msra.mxu0 %v1737
    %2304 = vmatpush.bf16.msra.mxu0 %v1719
    %2305 = vmatpush.bf16.msra.mxu0 %v1701
    %2306 = vmatpush.bf16.msra.mxu0 %v1683
    %2307 = vmatpush.bf16.msra.mxu0 %v1665
    %2308 = vmatmul.bf16.gmra.mxu0 %v361
    %v2309 = vpop.f32.mrf.mxu0
    %v2310 = vadd.f32 %v2296, %v2309
    %v2311 = vpop.f32.mrf.mxu0
    %v2312 = vadd.f32 %v2298, %v2311
    %2313 = vdwg.mxu0
    %2314 = vmatpush.bf16.msra.mxu0 %v1648
    %2315 = vmatpush.bf16.msra.mxu0 %v1630
    %2316 = vmatpush.bf16.msra.mxu0 %v1612
    %2317 = vmatpush.bf16.msra.mxu0 %v1594
    %2318 = vmatpush.bf16.msra.mxu0 %v1576
    %2319 = vmatpush.bf16.msra.mxu0 %v1558
    %2320 = vmatpush.bf16.msra.mxu0 %v1540
    %2321 = vmatpush.bf16.msra.mxu0 %v1522
    %2322 = vmatmul.bf16.gmra.mxu0 %v360
    %v2323 = vpop.f32.mrf.mxu0
    %v2324 = vadd.f32 0.0, %v2323
    %v2325 = vpop.f32.mrf.mxu0
    %v2326 = vadd.f32 0.0, %v2325
    %2327 = vdwg.mxu0
    %2328 = vmatpush.bf16.msra.mxu0 %v1792
    %2329 = vmatpush.bf16.msra.mxu0 %v1774
    %2330 = vmatpush.bf16.msra.mxu0 %v1756
    %2331 = vmatpush.bf16.msra.mxu0 %v1738
    %2332 = vmatpush.bf16.msra.mxu0 %v1720
    %2333 = vmatpush.bf16.msra.mxu0 %v1702
    %2334 = vmatpush.bf16.msra.mxu0 %v1684
    %2335 = vmatpush.bf16.msra.mxu0 %v1666
    %2336 = vmatmul.bf16.gmra.mxu0 %v361
    %v2337 = vpop.f32.mrf.mxu0
    %v2338 = vadd.f32 %v2324, %v2337
    %v2339 = vpop.f32.mrf.mxu0
    %v2340 = vadd.f32 %v2326, %v2339
    %2341 = vdwg.mxu0
    %2342 = vmatpush.bf16.msra.mxu0 %v1649
    %2343 = vmatpush.bf16.msra.mxu0 %v1631
    %2344 = vmatpush.bf16.msra.mxu0 %v1613
    %2345 = vmatpush.bf16.msra.mxu0 %v1595
    %2346 = vmatpush.bf16.msra.mxu0 %v1577
    %2347 = vmatpush.bf16.msra.mxu0 %v1559
    %2348 = vmatpush.bf16.msra.mxu0 %v1541
    %2349 = vmatpush.bf16.msra.mxu0 %v1523
    %2350 = vmatmul.bf16.gmra.mxu0 %v360
    %v2351 = vpop.f32.mrf.mxu0
    %v2352 = vadd.f32 0.0, %v2351
    %v2353 = vpop.f32.mrf.mxu0
    %v2354 = vadd.f32 0.0, %v2353
    %2355 = vdwg.mxu0
    %2356 = vmatpush.bf16.msra.mxu0 %v1793
    %2357 = vmatpush.bf16.msra.mxu0 %v1775
    %2358 = vmatpush.bf16.msra.mxu0 %v1757
    %2359 = vmatpush.bf16.msra.mxu0 %v1739
    %2360 = vmatpush.bf16.msra.mxu0 %v1721
    %2361 = vmatpush.bf16.msra.mxu0 %v1703
    %2362 = vmatpush.bf16.msra.mxu0 %v1685
    %2363 = vmatpush.bf16.msra.mxu0 %v1667
    %2364 = vmatmul.bf16.gmra.mxu0 %v361
    %v2365 = vpop.f32.mrf.mxu0
    %v2366 = vadd.f32 %v2352, %v2365
    %v2367 = vpop.f32.mrf.mxu0
    %v2368 = vadd.f32 %v2354, %v2367
    %2369 = vdwg.mxu0
    %2370 = vmatpush.bf16.msra.mxu0 %v1650
    %2371 = vmatpush.bf16.msra.mxu0 %v1632
    %2372 = vmatpush.bf16.msra.mxu0 %v1614
    %2373 = vmatpush.bf16.msra.mxu0 %v1596
    %2374 = vmatpush.bf16.msra.mxu0 %v1578
    %2375 = vmatpush.bf16.msra.mxu0 %v1560
    %2376 = vmatpush.bf16.msra.mxu0 %v1542
    %2377 = vmatpush.bf16.msra.mxu0 %v1524
    %2378 = vmatmul.bf16.gmra.mxu0 %v360
    %v2379 = vpop.f32.mrf.mxu0
    %v2380 = vadd.f32 0.0, %v2379
    %v2381 = vpop.f32.mrf.mxu0
    %v2382 = vadd.f32 0.0, %v2381
    %2383 = vdwg.mxu0
    %2384 = vmatpush.bf16.msra.mxu0 %v1794
    %2385 = vmatpush.bf16.msra.mxu0 %v1776
    %2386 = vmatpush.bf16.msra.mxu0 %v1758
    %2387 = vmatpush.bf16.msra.mxu0 %v1740
    %2388 = vmatpush.bf16.msra.mxu0 %v1722
    %2389 = vmatpush.bf16.msra.mxu0 %v1704
    %2390 = vmatpush.bf16.msra.mxu0 %v1686
    %2391 = vmatpush.bf16.msra.mxu0 %v1668
    %2392 = vmatmul.bf16.gmra.mxu0 %v361
    %v2393 = vpop.f32.mrf.mxu0
    %v2394 = vadd.f32 %v2380, %v2393
    %v2395 = vpop.f32.mrf.mxu0
    %v2396 = vadd.f32 %v2382, %v2395
    %2397 = vdwg.mxu0
    %2398 = vmatpush.bf16.msra.mxu0 %v1651
    %2399 = vmatpush.bf16.msra.mxu0 %v1633
    %2400 = vmatpush.bf16.msra.mxu0 %v1615
    %2401 = vmatpush.bf16.msra.mxu0 %v1597
    %2402 = vmatpush.bf16.msra.mxu0 %v1579
    %2403 = vmatpush.bf16.msra.mxu0 %v1561
    %2404 = vmatpush.bf16.msra.mxu0 %v1543
    %2405 = vmatpush.bf16.msra.mxu0 %v1525
    %2406 = vmatmul.bf16.gmra.mxu0 %v360
    %v2407 = vpop.f32.mrf.mxu0
    %v2408 = vadd.f32 0.0, %v2407
    %v2409 = vpop.f32.mrf.mxu0
    %v2410 = vadd.f32 0.0, %v2409
    %2411 = vdwg.mxu0
    %2412 = vmatpush.bf16.msra.mxu0 %v1795
    %2413 = vmatpush.bf16.msra.mxu0 %v1777
    %2414 = vmatpush.bf16.msra.mxu0 %v1759
    %2415 = vmatpush.bf16.msra.mxu0 %v1741
    %2416 = vmatpush.bf16.msra.mxu0 %v1723
    %2417 = vmatpush.bf16.msra.mxu0 %v1705
    %2418 = vmatpush.bf16.msra.mxu0 %v1687
    %2419 = vmatpush.bf16.msra.mxu0 %v1669
    %2420 = vmatmul.bf16.gmra.mxu0 %v361
    %v2421 = vpop.f32.mrf.mxu0
    %v2422 = vadd.f32 %v2408, %v2421
    %v2423 = vpop.f32.mrf.mxu0
    %v2424 = vadd.f32 %v2410, %v2423
    %2425 = vdwg.mxu0
    %2426 = vmatpush.bf16.msra.mxu0 %v1652
    %2427 = vmatpush.bf16.msra.mxu0 %v1634
    %2428 = vmatpush.bf16.msra.mxu0 %v1616
    %2429 = vmatpush.bf16.msra.mxu0 %v1598
    %2430 = vmatpush.bf16.msra.mxu0 %v1580
    %2431 = vmatpush.bf16.msra.mxu0 %v1562
    %2432 = vmatpush.bf16.msra.mxu0 %v1544
    %2433 = vmatpush.bf16.msra.mxu0 %v1526
    %2434 = vmatmul.bf16.gmra.mxu0 %v360
    %v2435 = vpop.f32.mrf.mxu0
    %v2436 = vadd.f32 0.0, %v2435
    %v2437 = vpop.f32.mrf.mxu0
    %v2438 = vadd.f32 0.0, %v2437
    %2439 = vdwg.mxu0
    %2440 = vmatpush.bf16.msra.mxu0 %v1796
    %2441 = vmatpush.bf16.msra.mxu0 %v1778
    %2442 = vmatpush.bf16.msra.mxu0 %v1760
    %2443 = vmatpush.bf16.msra.mxu0 %v1742
    %2444 = vmatpush.bf16.msra.mxu0 %v1724
    %2445 = vmatpush.bf16.msra.mxu0 %v1706
    %2446 = vmatpush.bf16.msra.mxu0 %v1688
    %2447 = vmatpush.bf16.msra.mxu0 %v1670
    %2448 = vmatmul.bf16.gmra.mxu0 %v361
    %v2449 = vpop.f32.mrf.mxu0
    %v2450 = vadd.f32 %v2436, %v2449
    %v2451 = vpop.f32.mrf.mxu0
    %v2452 = vadd.f32 %v2438, %v2451
    %2453 = vdwg.mxu0
    %2454 = vmatpush.bf16.msra.mxu0 %v1653
    %2455 = vmatpush.bf16.msra.mxu0 %v1635
    %2456 = vmatpush.bf16.msra.mxu0 %v1617
    %2457 = vmatpush.bf16.msra.mxu0 %v1599
    %2458 = vmatpush.bf16.msra.mxu0 %v1581
    %2459 = vmatpush.bf16.msra.mxu0 %v1563
    %2460 = vmatpush.bf16.msra.mxu0 %v1545
    %2461 = vmatpush.bf16.msra.mxu0 %v1527
    %2462 = vmatmul.bf16.gmra.mxu0 %v360
    %v2463 = vpop.f32.mrf.mxu0
    %v2464 = vadd.f32 0.0, %v2463
    %v2465 = vpop.f32.mrf.mxu0
    %v2466 = vadd.f32 0.0, %v2465
    %2467 = vdwg.mxu0
    %2468 = vmatpush.bf16.msra.mxu0 %v1797
    %2469 = vmatpush.bf16.msra.mxu0 %v1779
    %2470 = vmatpush.bf16.msra.mxu0 %v1761
    %2471 = vmatpush.bf16.msra.mxu0 %v1743
    %2472 = vmatpush.bf16.msra.mxu0 %v1725
    %2473 = vmatpush.bf16.msra.mxu0 %v1707
    %2474 = vmatpush.bf16.msra.mxu0 %v1689
    %2475 = vmatpush.bf16.msra.mxu0 %v1671
    %2476 = vmatmul.bf16.gmra.mxu0 %v361
    %v2477 = vpop.f32.mrf.mxu0
    %v2478 = vadd.f32 %v2464, %v2477
    %v2479 = vpop.f32.mrf.mxu0
    %v2480 = vadd.f32 %v2466, %v2479
    %2481 = vdwg.mxu0
    %2482 = vmatpush.bf16.msra.mxu0 %v1654
    %2483 = vmatpush.bf16.msra.mxu0 %v1636
    %2484 = vmatpush.bf16.msra.mxu0 %v1618
    %2485 = vmatpush.bf16.msra.mxu0 %v1600
    %2486 = vmatpush.bf16.msra.mxu0 %v1582
    %2487 = vmatpush.bf16.msra.mxu0 %v1564
    %2488 = vmatpush.bf16.msra.mxu0 %v1546
    %2489 = vmatpush.bf16.msra.mxu0 %v1528
    %2490 = vmatmul.bf16.gmra.mxu0 %v360
    %v2491 = vpop.f32.mrf.mxu0
    %v2492 = vadd.f32 0.0, %v2491
    %v2493 = vpop.f32.mrf.mxu0
    %v2494 = vadd.f32 0.0, %v2493
    %2495 = vdwg.mxu0
    %2496 = vmatpush.bf16.msra.mxu0 %v1798
    %2497 = vmatpush.bf16.msra.mxu0 %v1780
    %2498 = vmatpush.bf16.msra.mxu0 %v1762
    %2499 = vmatpush.bf16.msra.mxu0 %v1744
    %2500 = vmatpush.bf16.msra.mxu0 %v1726
    %2501 = vmatpush.bf16.msra.mxu0 %v1708
    %2502 = vmatpush.bf16.msra.mxu0 %v1690
    %2503 = vmatpush.bf16.msra.mxu0 %v1672
    %2504 = vmatmul.bf16.gmra.mxu0 %v361
    %v2505 = vpop.f32.mrf.mxu0
    %v2506 = vadd.f32 %v2492, %v2505
    %v2507 = vpop.f32.mrf.mxu0
    %v2508 = vadd.f32 %v2494, %v2507
    %2509 = vdwg.mxu0
    %2510 = vmatpush.bf16.msra.mxu0 %v1655
    %2511 = vmatpush.bf16.msra.mxu0 %v1637
    %2512 = vmatpush.bf16.msra.mxu0 %v1619
    %2513 = vmatpush.bf16.msra.mxu0 %v1601
    %2514 = vmatpush.bf16.msra.mxu0 %v1583
    %2515 = vmatpush.bf16.msra.mxu0 %v1565
    %2516 = vmatpush.bf16.msra.mxu0 %v1547
    %2517 = vmatpush.bf16.msra.mxu0 %v1529
    %2518 = vmatmul.bf16.gmra.mxu0 %v360
    %v2519 = vpop.f32.mrf.mxu0
    %v2520 = vadd.f32 0.0, %v2519
    %v2521 = vpop.f32.mrf.mxu0
    %v2522 = vadd.f32 0.0, %v2521
    %2523 = vdwg.mxu0
    %2524 = vmatpush.bf16.msra.mxu0 %v1799
    %2525 = vmatpush.bf16.msra.mxu0 %v1781
    %2526 = vmatpush.bf16.msra.mxu0 %v1763
    %2527 = vmatpush.bf16.msra.mxu0 %v1745
    %2528 = vmatpush.bf16.msra.mxu0 %v1727
    %2529 = vmatpush.bf16.msra.mxu0 %v1709
    %2530 = vmatpush.bf16.msra.mxu0 %v1691
    %2531 = vmatpush.bf16.msra.mxu0 %v1673
    %2532 = vmatmul.bf16.gmra.mxu0 %v361
    %v2533 = vpop.f32.mrf.mxu0
    %v2534 = vadd.f32 %v2520, %v2533
    %v2535 = vpop.f32.mrf.mxu0
    %v2536 = vadd.f32 %v2522, %v2535
    %2537 = vdwg.mxu0
    %2538 = vmatpush.bf16.msra.mxu0 %v1656
    %2539 = vmatpush.bf16.msra.mxu0 %v1638
    %2540 = vmatpush.bf16.msra.mxu0 %v1620
    %2541 = vmatpush.bf16.msra.mxu0 %v1602
    %2542 = vmatpush.bf16.msra.mxu0 %v1584
    %2543 = vmatpush.bf16.msra.mxu0 %v1566
    %2544 = vmatpush.bf16.msra.mxu0 %v1548
    %2545 = vmatpush.bf16.msra.mxu0 %v1530
    %2546 = vmatmul.bf16.gmra.mxu0 %v360
    %v2547 = vpop.f32.mrf.mxu0
    %v2548 = vadd.f32 0.0, %v2547
    %v2549 = vpop.f32.mrf.mxu0
    %v2550 = vadd.f32 0.0, %v2549
    %2551 = vdwg.mxu0
    %2552 = vmatpush.bf16.msra.mxu0 %v1800
    %2553 = vmatpush.bf16.msra.mxu0 %v1782
    %2554 = vmatpush.bf16.msra.mxu0 %v1764
    %2555 = vmatpush.bf16.msra.mxu0 %v1746
    %2556 = vmatpush.bf16.msra.mxu0 %v1728
    %2557 = vmatpush.bf16.msra.mxu0 %v1710
    %2558 = vmatpush.bf16.msra.mxu0 %v1692
    %2559 = vmatpush.bf16.msra.mxu0 %v1674
    %2560 = vmatmul.bf16.gmra.mxu0 %v361
    %v2561 = vpop.f32.mrf.mxu0
    %v2562 = vadd.f32 %v2548, %v2561
    %v2563 = vpop.f32.mrf.mxu0
    %v2564 = vadd.f32 %v2550, %v2563
    %2565 = vdwg.mxu0
    %2566 = vmatpush.bf16.msra.mxu0 %v1657
    %2567 = vmatpush.bf16.msra.mxu0 %v1639
    %2568 = vmatpush.bf16.msra.mxu0 %v1621
    %2569 = vmatpush.bf16.msra.mxu0 %v1603
    %2570 = vmatpush.bf16.msra.mxu0 %v1585
    %2571 = vmatpush.bf16.msra.mxu0 %v1567
    %2572 = vmatpush.bf16.msra.mxu0 %v1549
    %2573 = vmatpush.bf16.msra.mxu0 %v1531
    %2574 = vmatmul.bf16.gmra.mxu0 %v360
    %v2575 = vpop.f32.mrf.mxu0
    %v2576 = vadd.f32 0.0, %v2575
    %v2577 = vpop.f32.mrf.mxu0
    %v2578 = vadd.f32 0.0, %v2577
    %2579 = vdwg.mxu0
    %2580 = vmatpush.bf16.msra.mxu0 %v1801
    %2581 = vmatpush.bf16.msra.mxu0 %v1783
    %2582 = vmatpush.bf16.msra.mxu0 %v1765
    %2583 = vmatpush.bf16.msra.mxu0 %v1747
    %2584 = vmatpush.bf16.msra.mxu0 %v1729
    %2585 = vmatpush.bf16.msra.mxu0 %v1711
    %2586 = vmatpush.bf16.msra.mxu0 %v1693
    %2587 = vmatpush.bf16.msra.mxu0 %v1675
    %2588 = vmatmul.bf16.gmra.mxu0 %v361
    %v2589 = vpop.f32.mrf.mxu0
    %v2590 = vadd.f32 %v2576, %v2589
    %v2591 = vpop.f32.mrf.mxu0
    %v2592 = vadd.f32 %v2578, %v2591
    %2593 = vdwg.mxu0
    %v2594 = vld [vmem:[%s4] sm:$0xff]
    %v2595 = vld [vmem:[%s4 + $0x8] sm:$0xff]
    %v2596 = vld [vmem:[%s4 + $0x10] sm:$0xff]
    %v2597 = vld [vmem:[%s4 + $0x18] sm:$0xff]
    %v2598 = vld [vmem:[%s4 + $0x20] sm:$0xff]
    %v2599 = vld [vmem:[%s4 + $0x28] sm:$0xff]
    %v2600 = vld [vmem:[%s4 + $0x30] sm:$0xff]
    %v2601 = vld [vmem:[%s4 + $0x38] sm:$0xff]
    %v2602 = vld [vmem:[%s4 + $0x40] sm:$0xff]
    %vm2603 = vcmask 64512
    %v2605 = vsel %vm2603, %v2595, 0
    %2607 = vmatpush.msra.mxu0 0.0
    %2608 = vmatpush.msra.mxu0 0.0
    %2609 = vmatpush.msra.mxu0 0.0
    %2610 = vmatpush.msra.mxu0 0.0
    %2611 = vmatpush.msra.mxu0 0.0
    %2612 = vmatpush.msra.mxu0 0.0
    %2613 = vmatpush.msra.mxu0 0.0
    %2614 = vmatpush.msra.mxu0 0.0
    %2615 = vmatpush.msra.mxu0 0.0
    %2616 = vmatpush.msra.mxu0 0.0
    %2617 = vmatpush.msra.mxu0 0.0
    %2618 = vmatpush.msra.mxu0 0.0
    %2619 = vmatpush.msra.mxu0 0.0
    %2620 = vmatpush.msra.mxu0 0.0
    %2621 = vmatpush.msra.mxu0 0.0
    %2622 = vmatpush.msra.mxu0 %v2170
    %2623 = vmatmul.f32.gmra.mxu0 %v2605
    %v2624 = vpop.f32.mrf.mxu0
    %v2625 = vadd.f32 0.0, %v2624
    %2626 = vdwg.mxu0
    %2627 = vmatpush.msra.mxu0 0.0
    %2628 = vmatpush.msra.mxu0 0.0
    %2629 = vmatpush.msra.mxu0 0.0
    %2630 = vmatpush.msra.mxu0 0.0
    %2631 = vmatpush.msra.mxu0 0.0
    %2632 = vmatpush.msra.mxu0 0.0
    %2633 = vmatpush.msra.mxu0 0.0
    %2634 = vmatpush.msra.mxu0 0.0
    %2635 = vmatpush.msra.mxu0 0.0
    %2636 = vmatpush.msra.mxu0 0.0
    %2637 = vmatpush.msra.mxu0 0.0
    %2638 = vmatpush.msra.mxu0 0.0
    %2639 = vmatpush.msra.mxu0 0.0
    %2640 = vmatpush.msra.mxu0 0.0
    %2641 = vmatpush.msra.mxu0 0.0
    %2642 = vmatpush.msra.mxu0 %v2198
    %2643 = vmatmul.f32.gmra.mxu0 %v2605
    %v2644 = vpop.f32.mrf.mxu0
    %v2645 = vadd.f32 0.0, %v2644
    %2646 = vdwg.mxu0
    %v2648 = vsel %vm2603, %v2597, 0
    %2650 = vmatpush.msra.mxu0 0.0
    %2651 = vmatpush.msra.mxu0 0.0
    %2652 = vmatpush.msra.mxu0 0.0
    %2653 = vmatpush.msra.mxu0 0.0
    %2654 = vmatpush.msra.mxu0 0.0
    %2655 = vmatpush.msra.mxu0 0.0
    %2656 = vmatpush.msra.mxu0 0.0
    %2657 = vmatpush.msra.mxu0 0.0
    %2658 = vmatpush.msra.mxu0 0.0
    %2659 = vmatpush.msra.mxu0 0.0
    %2660 = vmatpush.msra.mxu0 0.0
    %2661 = vmatpush.msra.mxu0 0.0
    %2662 = vmatpush.msra.mxu0 0.0
    %2663 = vmatpush.msra.mxu0 0.0
    %2664 = vmatpush.msra.mxu0 0.0
    %2665 = vmatpush.msra.mxu0 %v2282
    %2666 = vmatmul.f32.gmra.mxu0 %v2648
    %v2667 = vpop.f32.mrf.mxu0
    %v2668 = vadd.f32 0.0, %v2667
    %2669 = vdwg.mxu0
    %2670 = vmatpush.msra.mxu0 0.0
    %2671 = vmatpush.msra.mxu0 0.0
    %2672 = vmatpush.msra.mxu0 0.0
    %2673 = vmatpush.msra.mxu0 0.0
    %2674 = vmatpush.msra.mxu0 0.0
    %2675 = vmatpush.msra.mxu0 0.0
    %2676 = vmatpush.msra.mxu0 0.0
    %2677 = vmatpush.msra.mxu0 0.0
    %2678 = vmatpush.msra.mxu0 0.0
    %2679 = vmatpush.msra.mxu0 0.0
    %2680 = vmatpush.msra.mxu0 0.0
    %2681 = vmatpush.msra.mxu0 0.0
    %2682 = vmatpush.msra.mxu0 0.0
    %2683 = vmatpush.msra.mxu0 0.0
    %2684 = vmatpush.msra.mxu0 0.0
    %2685 = vmatpush.msra.mxu0 %v2310
    %2686 = vmatmul.f32.gmra.mxu0 %v2648
    %v2687 = vpop.f32.mrf.mxu0
    %v2688 = vadd.f32 0.0, %v2687
    %2689 = vdwg.mxu0
    %v2691 = vsel %vm2603, %v2599, 0
    %2693 = vmatpush.msra.mxu0 0.0
    %2694 = vmatpush.msra.mxu0 0.0
    %2695 = vmatpush.msra.mxu0 0.0
    %2696 = vmatpush.msra.mxu0 0.0
    %2697 = vmatpush.msra.mxu0 0.0
    %2698 = vmatpush.msra.mxu0 0.0
    %2699 = vmatpush.msra.mxu0 0.0
    %2700 = vmatpush.msra.mxu0 0.0
    %2701 = vmatpush.msra.mxu0 0.0
    %2702 = vmatpush.msra.mxu0 0.0
    %2703 = vmatpush.msra.mxu0 0.0
    %2704 = vmatpush.msra.mxu0 0.0
    %2705 = vmatpush.msra.mxu0 0.0
    %2706 = vmatpush.msra.mxu0 0.0
    %2707 = vmatpush.msra.mxu0 0.0
    %2708 = vmatpush.msra.mxu0 %v2394
    %2709 = vmatmul.f32.gmra.mxu0 %v2691
    %v2710 = vpop.f32.mrf.mxu0
    %v2711 = vadd.f32 0.0, %v2710
    %2712 = vdwg.mxu0
    %2713 = vmatpush.msra.mxu0 0.0
    %2714 = vmatpush.msra.mxu0 0.0
    %2715 = vmatpush.msra.mxu0 0.0
    %2716 = vmatpush.msra.mxu0 0.0
    %2717 = vmatpush.msra.mxu0 0.0
    %2718 = vmatpush.msra.mxu0 0.0
    %2719 = vmatpush.msra.mxu0 0.0
    %2720 = vmatpush.msra.mxu0 0.0
    %2721 = vmatpush.msra.mxu0 0.0
    %2722 = vmatpush.msra.mxu0 0.0
    %2723 = vmatpush.msra.mxu0 0.0
    %2724 = vmatpush.msra.mxu0 0.0
    %2725 = vmatpush.msra.mxu0 0.0
    %2726 = vmatpush.msra.mxu0 0.0
    %2727 = vmatpush.msra.mxu0 0.0
    %2728 = vmatpush.msra.mxu0 %v2422
    %2729 = vmatmul.f32.gmra.mxu0 %v2691
    %v2730 = vpop.f32.mrf.mxu0
    %v2731 = vadd.f32 0.0, %v2730
    %2732 = vdwg.mxu0
    %v2734 = vsel %vm2603, %v2601, 0
    %2736 = vmatpush.msra.mxu0 0.0
    %2737 = vmatpush.msra.mxu0 0.0
    %2738 = vmatpush.msra.mxu0 0.0
    %2739 = vmatpush.msra.mxu0 0.0
    %2740 = vmatpush.msra.mxu0 0.0
    %2741 = vmatpush.msra.mxu0 0.0
    %2742 = vmatpush.msra.mxu0 0.0
    %2743 = vmatpush.msra.mxu0 0.0
    %2744 = vmatpush.msra.mxu0 0.0
    %2745 = vmatpush.msra.mxu0 0.0
    %2746 = vmatpush.msra.mxu0 0.0
    %2747 = vmatpush.msra.mxu0 0.0
    %2748 = vmatpush.msra.mxu0 0.0
    %2749 = vmatpush.msra.mxu0 0.0
    %2750 = vmatpush.msra.mxu0 0.0
    %2751 = vmatpush.msra.mxu0 %v2506
    %2752 = vmatmul.f32.gmra.mxu0 %v2734
    %v2753 = vpop.f32.mrf.mxu0
    %v2754 = vadd.f32 0.0, %v2753
    %2755 = vdwg.mxu0
    %2756 = vmatpush.msra.mxu0 0.0
    %2757 = vmatpush.msra.mxu0 0.0
    %2758 = vmatpush.msra.mxu0 0.0
    %2759 = vmatpush.msra.mxu0 0.0
    %2760 = vmatpush.msra.mxu0 0.0
    %2761 = vmatpush.msra.mxu0 0.0
    %2762 = vmatpush.msra.mxu0 0.0
    %2763 = vmatpush.msra.mxu0 0.0
    %2764 = vmatpush.msra.mxu0 0.0
    %2765 = vmatpush.msra.mxu0 0.0
    %2766 = vmatpush.msra.mxu0 0.0
    %2767 = vmatpush.msra.mxu0 0.0
    %2768 = vmatpush.msra.mxu0 0.0
    %2769 = vmatpush.msra.mxu0 0.0
    %2770 = vmatpush.msra.mxu0 0.0
    %2771 = vmatpush.msra.mxu0 %v2534
    %2772 = vmatmul.f32.gmra.mxu0 %v2734
    %v2773 = vpop.f32.mrf.mxu0
    %v2774 = vadd.f32 0.0, %v2773
    %2775 = vdwg.mxu0
    %v2777 = vsel %vm2603, %v2602, 0
    %2779 = vmatpush.msra.mxu0 0.0
    %2780 = vmatpush.msra.mxu0 0.0
    %2781 = vmatpush.msra.mxu0 0.0
    %2782 = vmatpush.msra.mxu0 0.0
    %2783 = vmatpush.msra.mxu0 0.0
    %2784 = vmatpush.msra.mxu0 0.0
    %2785 = vmatpush.msra.mxu0 0.0
    %2786 = vmatpush.msra.mxu0 0.0
    %2787 = vmatpush.msra.mxu0 0.0
    %2788 = vmatpush.msra.mxu0 0.0
    %2789 = vmatpush.msra.mxu0 0.0
    %2790 = vmatpush.msra.mxu0 0.0
    %2791 = vmatpush.msra.mxu0 0.0
    %2792 = vmatpush.msra.mxu0 0.0
    %2793 = vmatpush.msra.mxu0 0.0
    %2794 = vmatpush.msra.mxu0 %v2562
    %2795 = vmatmul.f32.gmra.mxu0 %v2777
    %v2796 = vpop.f32.mrf.mxu0
    %v2797 = vadd.f32 0.0, %v2796
    %2798 = vdwg.mxu0
    %2799 = vmatpush.msra.mxu0 0.0
    %2800 = vmatpush.msra.mxu0 0.0
    %2801 = vmatpush.msra.mxu0 0.0
    %2802 = vmatpush.msra.mxu0 0.0
    %2803 = vmatpush.msra.mxu0 0.0
    %2804 = vmatpush.msra.mxu0 0.0
    %2805 = vmatpush.msra.mxu0 0.0
    %2806 = vmatpush.msra.mxu0 0.0
    %2807 = vmatpush.msra.mxu0 0.0
    %2808 = vmatpush.msra.mxu0 0.0
    %2809 = vmatpush.msra.mxu0 0.0
    %2810 = vmatpush.msra.mxu0 0.0
    %2811 = vmatpush.msra.mxu0 0.0
    %2812 = vmatpush.msra.mxu0 0.0
    %2813 = vmatpush.msra.mxu0 0.0
    %2814 = vmatpush.msra.mxu0 %v2590
    %2815 = vmatmul.f32.gmra.mxu0 %v2777
    %v2816 = vpop.f32.mrf.mxu0
    %v2817 = vadd.f32 0.0, %v2816
    %2818 = vdwg.mxu0
    %v2820 = vsel %vm2603, %v2594, 0
    %2822 = vmatpush.msra.mxu0 0.0
    %2823 = vmatpush.msra.mxu0 0.0
    %2824 = vmatpush.msra.mxu0 0.0
    %2825 = vmatpush.msra.mxu0 0.0
    %2826 = vmatpush.msra.mxu0 0.0
    %2827 = vmatpush.msra.mxu0 0.0
    %2828 = vmatpush.msra.mxu0 0.0
    %2829 = vmatpush.msra.mxu0 0.0
    %2830 = vmatpush.msra.mxu0 0.0
    %2831 = vmatpush.msra.mxu0 0.0
    %2832 = vmatpush.msra.mxu0 0.0
    %2833 = vmatpush.msra.mxu0 0.0
    %2834 = vmatpush.msra.mxu0 0.0
    %2835 = vmatpush.msra.mxu0 0.0
    %2836 = vmatpush.msra.mxu0 0.0
    %2837 = vmatpush.msra.mxu0 %v2114
    %2838 = vmatmul.f32.gmra.mxu0 %v2820
    %v2839 = vpop.f32.mrf.mxu0
    %v2840 = vadd.f32 %v2625, %v2839
    %2841 = vdwg.mxu0
    %2842 = vmatpush.msra.mxu0 0.0
    %2843 = vmatpush.msra.mxu0 0.0
    %2844 = vmatpush.msra.mxu0 0.0
    %2845 = vmatpush.msra.mxu0 0.0
    %2846 = vmatpush.msra.mxu0 0.0
    %2847 = vmatpush.msra.mxu0 0.0
    %2848 = vmatpush.msra.mxu0 0.0
    %2849 = vmatpush.msra.mxu0 0.0
    %2850 = vmatpush.msra.mxu0 0.0
    %2851 = vmatpush.msra.mxu0 0.0
    %2852 = vmatpush.msra.mxu0 0.0
    %2853 = vmatpush.msra.mxu0 0.0
    %2854 = vmatpush.msra.mxu0 0.0
    %2855 = vmatpush.msra.mxu0 0.0
    %2856 = vmatpush.msra.mxu0 0.0
    %2857 = vmatpush.msra.mxu0 %v2142
    %2858 = vmatmul.f32.gmra.mxu0 %v2820
    %v2859 = vpop.f32.mrf.mxu0
    %v2860 = vadd.f32 %v2645, %v2859
    %2861 = vdwg.mxu0
    %v2863 = vsel %vm2603, %v2596, 0
    %2865 = vmatpush.msra.mxu0 0.0
    %2866 = vmatpush.msra.mxu0 0.0
    %2867 = vmatpush.msra.mxu0 0.0
    %2868 = vmatpush.msra.mxu0 0.0
    %2869 = vmatpush.msra.mxu0 0.0
    %2870 = vmatpush.msra.mxu0 0.0
    %2871 = vmatpush.msra.mxu0 0.0
    %2872 = vmatpush.msra.mxu0 0.0
    %2873 = vmatpush.msra.mxu0 0.0
    %2874 = vmatpush.msra.mxu0 0.0
    %2875 = vmatpush.msra.mxu0 0.0
    %2876 = vmatpush.msra.mxu0 0.0
    %2877 = vmatpush.msra.mxu0 0.0
    %2878 = vmatpush.msra.mxu0 0.0
    %2879 = vmatpush.msra.mxu0 0.0
    %2880 = vmatpush.msra.mxu0 %v2226
    %2881 = vmatmul.f32.gmra.mxu0 %v2863
    %v2882 = vpop.f32.mrf.mxu0
    %v2883 = vadd.f32 %v2668, %v2882
    %2884 = vdwg.mxu0
    %2885 = vmatpush.msra.mxu0 0.0
    %2886 = vmatpush.msra.mxu0 0.0
    %2887 = vmatpush.msra.mxu0 0.0
    %2888 = vmatpush.msra.mxu0 0.0
    %2889 = vmatpush.msra.mxu0 0.0
    %2890 = vmatpush.msra.mxu0 0.0
    %2891 = vmatpush.msra.mxu0 0.0
    %2892 = vmatpush.msra.mxu0 0.0
    %2893 = vmatpush.msra.mxu0 0.0
    %2894 = vmatpush.msra.mxu0 0.0
    %2895 = vmatpush.msra.mxu0 0.0
    %2896 = vmatpush.msra.mxu0 0.0
    %2897 = vmatpush.msra.mxu0 0.0
    %2898 = vmatpush.msra.mxu0 0.0
    %2899 = vmatpush.msra.mxu0 0.0
    %2900 = vmatpush.msra.mxu0 %v2254
    %2901 = vmatmul.f32.gmra.mxu0 %v2863
    %v2902 = vpop.f32.mrf.mxu0
    %v2903 = vadd.f32 %v2688, %v2902
    %2904 = vdwg.mxu0
    %v2906 = vsel %vm2603, %v2598, 0
    %2908 = vmatpush.msra.mxu0 0.0
    %2909 = vmatpush.msra.mxu0 0.0
    %2910 = vmatpush.msra.mxu0 0.0
    %2911 = vmatpush.msra.mxu0 0.0
    %2912 = vmatpush.msra.mxu0 0.0
    %2913 = vmatpush.msra.mxu0 0.0
    %2914 = vmatpush.msra.mxu0 0.0
    %2915 = vmatpush.msra.mxu0 0.0
    %2916 = vmatpush.msra.mxu0 0.0
    %2917 = vmatpush.msra.mxu0 0.0
    %2918 = vmatpush.msra.mxu0 0.0
    %2919 = vmatpush.msra.mxu0 0.0
    %2920 = vmatpush.msra.mxu0 0.0
    %2921 = vmatpush.msra.mxu0 0.0
    %2922 = vmatpush.msra.mxu0 0.0
    %2923 = vmatpush.msra.mxu0 %v2338
    %2924 = vmatmul.f32.gmra.mxu0 %v2906
    %v2925 = vpop.f32.mrf.mxu0
    %v2926 = vadd.f32 %v2711, %v2925
    %2927 = vdwg.mxu0
    %2928 = vmatpush.msra.mxu0 0.0
    %2929 = vmatpush.msra.mxu0 0.0
    %2930 = vmatpush.msra.mxu0 0.0
    %2931 = vmatpush.msra.mxu0 0.0
    %2932 = vmatpush.msra.mxu0 0.0
    %2933 = vmatpush.msra.mxu0 0.0
    %2934 = vmatpush.msra.mxu0 0.0
    %2935 = vmatpush.msra.mxu0 0.0
    %2936 = vmatpush.msra.mxu0 0.0
    %2937 = vmatpush.msra.mxu0 0.0
    %2938 = vmatpush.msra.mxu0 0.0
    %2939 = vmatpush.msra.mxu0 0.0
    %2940 = vmatpush.msra.mxu0 0.0
    %2941 = vmatpush.msra.mxu0 0.0
    %2942 = vmatpush.msra.mxu0 0.0
    %2943 = vmatpush.msra.mxu0 %v2366
    %2944 = vmatmul.f32.gmra.mxu0 %v2906
    %v2945 = vpop.f32.mrf.mxu0
    %v2946 = vadd.f32 %v2731, %v2945
    %2947 = vdwg.mxu0
    %v2949 = vsel %vm2603, %v2600, 0
    %2951 = vmatpush.msra.mxu0 0.0
    %2952 = vmatpush.msra.mxu0 0.0
    %2953 = vmatpush.msra.mxu0 0.0
    %2954 = vmatpush.msra.mxu0 0.0
    %2955 = vmatpush.msra.mxu0 0.0
    %2956 = vmatpush.msra.mxu0 0.0
    %2957 = vmatpush.msra.mxu0 0.0
    %2958 = vmatpush.msra.mxu0 0.0
    %2959 = vmatpush.msra.mxu0 0.0
    %2960 = vmatpush.msra.mxu0 0.0
    %2961 = vmatpush.msra.mxu0 0.0
    %2962 = vmatpush.msra.mxu0 0.0
    %2963 = vmatpush.msra.mxu0 0.0
    %2964 = vmatpush.msra.mxu0 0.0
    %2965 = vmatpush.msra.mxu0 0.0
    %2966 = vmatpush.msra.mxu0 %v2450
    %2967 = vmatmul.f32.gmra.mxu0 %v2949
    %v2968 = vpop.f32.mrf.mxu0
    %v2969 = vadd.f32 %v2754, %v2968
    %2970 = vdwg.mxu0
    %2971 = vmatpush.msra.mxu0 0.0
    %2972 = vmatpush.msra.mxu0 0.0
    %2973 = vmatpush.msra.mxu0 0.0
    %2974 = vmatpush.msra.mxu0 0.0
    %2975 = vmatpush.msra.mxu0 0.0
    %2976 = vmatpush.msra.mxu0 0.0
    %2977 = vmatpush.msra.mxu0 0.0
    %2978 = vmatpush.msra.mxu0 0.0
    %2979 = vmatpush.msra.mxu0 0.0
    %2980 = vmatpush.msra.mxu0 0.0
    %2981 = vmatpush.msra.mxu0 0.0
    %2982 = vmatpush.msra.mxu0 0.0
    %2983 = vmatpush.msra.mxu0 0.0
    %2984 = vmatpush.msra.mxu0 0.0
    %2985 = vmatpush.msra.mxu0 0.0
    %2986 = vmatpush.msra.mxu0 %v2478
    %2987 = vmatmul.f32.gmra.mxu0 %v2949
    %v2988 = vpop.f32.mrf.mxu0
    %v2989 = vadd.f32 %v2774, %v2988
    %2990 = vdwg.mxu0
    %v2991 = vadd.f32 %v2840, %v2883
    %v2992 = vadd.f32 %v2860, %v2903
    %v2993 = vadd.f32 %v2926, %v2969
    %v2994 = vadd.f32 %v2946, %v2989
    %v2995 = vadd.f32 %v2991, %v2993
    %v2996 = vadd.f32 %v2992, %v2994
    %v2997 = vadd.f32 %v2995, %v2797
    %v2998 = vadd.f32 %v2996, %v2817
    %v2999 = vld [vmem:[%s5] sm:$0xff]
    %3001 = vset.pattern.permute.xlu0 0
    %3002 = vperm.xlu0 %3001, %v2999
    %v3003 = vpop.permute.xlu0 %3002
    %v3005 = vadd.f32 %v2997, %v3003
    %v3006 = vadd.f32 %v2998, %v3003
    %vm3007 = vcmp.gt.f32.partialorder %v3005, 0.0
    %vm3008 = vcmp.gt.f32.partialorder %v3006, 0.0
    %v3009 = vmin.f32 %v3005, 0.0
    %v3010 = vmin.f32 %v3006, 0.0
    %v3011 = vmul.f32 %v3009, 1.442695
    %v3012 = vpow.pop %v3011
    %v3013 = vmul.f32 %v3010, 1.442695
    %v3014 = vpow.pop %v3013
    %v3015 = vsub.f32 %v3012, 1.0
    %v3016 = vsub.f32 %v3014, 1.0
    %v3017 = vsel %vm3007, %v3005, %v3015
    %v3018 = vsel %vm3008, %v3006, %v3016
    %v3019 = vld [vmem:[%s6] sm:$0xff]
    %v3020 = vld [vmem:[%s6 + $0x8] sm:$0xff]
    %v3021 = vld [vmem:[%s6 + $0x10] sm:$0xff]
    %v3022 = vld [vmem:[%s6 + $0x18] sm:$0xff]
    %v3023 = vld [vmem:[%s7] sm:$0xff]
    %v3024 = vld [vmem:[%s7 + $0x8] sm:$0xff]
    %v3025 = vld [vmem:[%s7 + $0x10] sm:$0xff]
    %v3026 = vld [vmem:[%s7 + $0x18] sm:$0xff]
    %3028 = vset.pattern.permute.xlu0 0
    %3029 = vperm.xlu0 %3028, %v3023
    %v3030 = vpop.permute.xlu0 %3029
    %3033 = vset.pattern.permute.xlu0 0
    %3034 = vperm.xlu0 %3033, %v3024
    %v3035 = vpop.permute.xlu0 %3034
    %3038 = vset.pattern.permute.xlu0 0
    %3039 = vperm.xlu0 %3038, %v3025
    %v3040 = vpop.permute.xlu0 %3039
    %3043 = vset.pattern.permute.xlu0 0
    %3044 = vperm.xlu0 %3043, %v3026
    %v3045 = vpop.permute.xlu0 %3044
    %v3048 = vsel %vm2603, %v3019, 0
    %v3051 = vsel %vm2603, %v3020, 0
    %v3054 = vsel %vm2603, %v3021, 0
    %v3057 = vsel %vm2603, %v3022, 0
    %3059 = vmatpush.msra.mxu0 0.0
    %3060 = vmatpush.msra.mxu0 0.0
    %3061 = vmatpush.msra.mxu0 0.0
    %3062 = vmatpush.msra.mxu0 0.0
    %3063 = vmatpush.msra.mxu0 0.0
    %3064 = vmatpush.msra.mxu0 0.0
    %3065 = vmatpush.msra.mxu0 0.0
    %3066 = vmatpush.msra.mxu0 0.0
    %3067 = vmatpush.msra.mxu0 0.0
    %3068 = vmatpush.msra.mxu0 0.0
    %3069 = vmatpush.msra.mxu0 0.0
    %3070 = vmatpush.msra.mxu0 0.0
    %3071 = vmatpush.msra.mxu0 0.0
    %3072 = vmatpush.msra.mxu0 0.0
    %3073 = vmatpush.msra.mxu0 0.0
    %3074 = vmatpush.msra.mxu0 %v3017
    %3075 = vmatmul.f32.gmra.mxu0 %v3048
    %v3076 = vpop.f32.mrf.mxu0
    %v3077 = vadd.f32 %v3030, %v3076
    %3078 = vmatmul.f32.gmra.mxu0 %v3051
    %v3079 = vpop.f32.mrf.mxu0
    %v3080 = vadd.f32 %v3035, %v3079
    %3081 = vmatmul.f32.gmra.mxu0 %v3054
    %v3082 = vpop.f32.mrf.mxu0
    %v3083 = vadd.f32 %v3040, %v3082
    %3084 = vmatmul.f32.gmra.mxu0 %v3057
    %v3085 = vpop.f32.mrf.mxu0
    %v3086 = vadd.f32 %v3045, %v3085
    %3087 = vdwg.mxu0
    %3088 = vmatpush.msra.mxu0 0.0
    %3089 = vmatpush.msra.mxu0 0.0
    %3090 = vmatpush.msra.mxu0 0.0
    %3091 = vmatpush.msra.mxu0 0.0
    %3092 = vmatpush.msra.mxu0 0.0
    %3093 = vmatpush.msra.mxu0 0.0
    %3094 = vmatpush.msra.mxu0 0.0
    %3095 = vmatpush.msra.mxu0 0.0
    %3096 = vmatpush.msra.mxu0 0.0
    %3097 = vmatpush.msra.mxu0 0.0
    %3098 = vmatpush.msra.mxu0 0.0
    %3099 = vmatpush.msra.mxu0 0.0
    %3100 = vmatpush.msra.mxu0 0.0
    %3101 = vmatpush.msra.mxu0 0.0
    %3102 = vmatpush.msra.mxu0 0.0
    %3103 = vmatpush.msra.mxu0 %v3018
    %3104 = vmatmul.f32.gmra.mxu0 %v3048
    %v3105 = vpop.f32.mrf.mxu0
    %v3106 = vadd.f32 %v3030, %v3105
    %3107 = vmatmul.f32.gmra.mxu0 %v3051
    %v3108 = vpop.f32.mrf.mxu0
    %v3109 = vadd.f32 %v3035, %v3108
    %3110 = vmatmul.f32.gmra.mxu0 %v3054
    %v3111 = vpop.f32.mrf.mxu0
    %v3112 = vadd.f32 %v3040, %v3111
    %3113 = vmatmul.f32.gmra.mxu0 %v3057
    %v3114 = vpop.f32.mrf.mxu0
    %v3115 = vadd.f32 %v3045, %v3114
    %3116 = vdwg.mxu0
    %v3117 = vld [vmem:[#allocation3] sm:$0xff]
    %v3118 = vld [vmem:[#allocation3 + $0x8] sm:$0xff]
    %v3119 = vld [vmem:[#allocation3 + $0x10] sm:$0xff]
    %v3120 = vld [vmem:[#allocation3 + $0x18] sm:$0xff]
    %v3121 = vld [vmem:[#allocation3 + $0x20] sm:$0xff]
    %v3122 = vld [vmem:[#allocation3 + $0x28] sm:$0xff]
    %v3123 = vld [vmem:[#allocation3 + $0x30] sm:$0xff]
    %v3124 = vld [vmem:[#allocation3 + $0x38] sm:$0xff]
    %v3125 = vadd.f32 %v3077, %v3117
    %v3126 = vadd.f32 %v3106, %v3118
    %v3127 = vadd.f32 %v3080, %v3119
    %v3128 = vadd.f32 %v3109, %v3120
    %v3129 = vadd.f32 %v3083, %v3121
    %v3130 = vadd.f32 %v3112, %v3122
    %v3131 = vadd.f32 %v3086, %v3123
    %v3132 = vadd.f32 %v3115, %v3124
    %vm3133 = vcmp.gt.f32.partialorder %v3125, 0.0
    %vm3134 = vcmp.gt.f32.partialorder %v3126, 0.0
    %vm3135 = vcmp.gt.f32.partialorder %v3127, 0.0
    %vm3136 = vcmp.gt.f32.partialorder %v3128, 0.0
    %vm3137 = vcmp.gt.f32.partialorder %v3129, 0.0
    %vm3138 = vcmp.gt.f32.partialorder %v3130, 0.0
    %vm3139 = vcmp.gt.f32.partialorder %v3131, 0.0
    %vm3140 = vcmp.gt.f32.partialorder %v3132, 0.0
    %v3141 = vmin.f32 %v3125, 0.0
    %v3142 = vmin.f32 %v3126, 0.0
    %v3143 = vmin.f32 %v3127, 0.0
    %v3144 = vmin.f32 %v3128, 0.0
    %v3145 = vmin.f32 %v3129, 0.0
    %v3146 = vmin.f32 %v3130, 0.0
    %v3147 = vmin.f32 %v3131, 0.0
    %v3148 = vmin.f32 %v3132, 0.0
    %v3149 = vmul.f32 %v3141, 1.442695
    %v3150 = vpow.pop %v3149
    %v3151 = vmul.f32 %v3142, 1.442695
    %v3152 = vpow.pop %v3151
    %v3153 = vmul.f32 %v3143, 1.442695
    %v3154 = vpow.pop %v3153
    %v3155 = vmul.f32 %v3144, 1.442695
    %v3156 = vpow.pop %v3155
    %v3157 = vmul.f32 %v3145, 1.442695
    %v3158 = vpow.pop %v3157
    %v3159 = vmul.f32 %v3146, 1.442695
    %v3160 = vpow.pop %v3159
    %v3161 = vmul.f32 %v3147, 1.442695
    %v3162 = vpow.pop %v3161
    %v3163 = vmul.f32 %v3148, 1.442695
    %v3164 = vpow.pop %v3163
    %v3165 = vsub.f32 %v3150, 1.0
    %v3166 = vsub.f32 %v3152, 1.0
    %v3167 = vsub.f32 %v3154, 1.0
    %v3168 = vsub.f32 %v3156, 1.0
    %v3169 = vsub.f32 %v3158, 1.0
    %v3170 = vsub.f32 %v3160, 1.0
    %v3171 = vsub.f32 %v3162, 1.0
    %v3172 = vsub.f32 %v3164, 1.0
    %v3173 = vsel %vm3133, %v3125, %v3165
    %v3174 = vsel %vm3134, %v3126, %v3166
    %v3175 = vsel %vm3135, %v3127, %v3167
    %v3176 = vsel %vm3136, %v3128, %v3168
    %v3177 = vsel %vm3137, %v3129, %v3169
    %v3178 = vsel %vm3138, %v3130, %v3170
    %v3179 = vsel %vm3139, %v3131, %v3171
    %v3180 = vsel %vm3140, %v3132, %v3172
    %3181 = vst [vmem:[#allocation9] sm:$0xff] %v3173
    %3182 = vst [vmem:[#allocation9 + $0x8] sm:$0xff] %v3174
    %3183 = vst [vmem:[#allocation9 + $0x10] sm:$0xff] %v3175
    %3184 = vst [vmem:[#allocation9 + $0x18] sm:$0xff] %v3176
    %3185 = vst [vmem:[#allocation9 + $0x20] sm:$0xff] %v3177
    %3186 = vst [vmem:[#allocation9 + $0x28] sm:$0xff] %v3178
    %3187 = vst [vmem:[#allocation9 + $0x30] sm:$0xff] %v3179
    %3188 = vst [vmem:[#allocation9 + $0x38] sm:$0xff] %v3180
    %3189 = vmatpush.msra.mxu0 0.0
    %3190 = vmatpush.msra.mxu0 0.0
    %3191 = vmatpush.msra.mxu0 0.0
    %3192 = vmatpush.msra.mxu0 0.0
    %3193 = vmatpush.msra.mxu0 0.0
    %3194 = vmatpush.msra.mxu0 0.0
    %3195 = vmatpush.msra.mxu0 0.0
    %3196 = vmatpush.msra.mxu0 0.0
    %3197 = vmatpush.msra.mxu0 0.0
    %3198 = vmatpush.msra.mxu0 0.0
    %3199 = vmatpush.msra.mxu0 0.0
    %3200 = vmatpush.msra.mxu0 0.0
    %3201 = vmatpush.msra.mxu0 0.0
    %3202 = vmatpush.msra.mxu0 0.0
    %3203 = vmatpush.msra.mxu0 0.0
    %3204 = vmatpush.msra.mxu0 %v2172
    %3205 = vmatmul.f32.gmra.mxu0 %v2605
    %v3206 = vpop.f32.mrf.mxu0
    %v3207 = vadd.f32 0.0, %v3206
    %3208 = vdwg.mxu0
    %3209 = vmatpush.msra.mxu0 0.0
    %3210 = vmatpush.msra.mxu0 0.0
    %3211 = vmatpush.msra.mxu0 0.0
    %3212 = vmatpush.msra.mxu0 0.0
    %3213 = vmatpush.msra.mxu0 0.0
    %3214 = vmatpush.msra.mxu0 0.0
    %3215 = vmatpush.msra.mxu0 0.0
    %3216 = vmatpush.msra.mxu0 0.0
    %3217 = vmatpush.msra.mxu0 0.0
    %3218 = vmatpush.msra.mxu0 0.0
    %3219 = vmatpush.msra.mxu0 0.0
    %3220 = vmatpush.msra.mxu0 0.0
    %3221 = vmatpush.msra.mxu0 0.0
    %3222 = vmatpush.msra.mxu0 0.0
    %3223 = vmatpush.msra.mxu0 0.0
    %3224 = vmatpush.msra.mxu0 %v2200
    %3225 = vmatmul.f32.gmra.mxu0 %v2605
    %v3226 = vpop.f32.mrf.mxu0
    %v3227 = vadd.f32 0.0, %v3226
    %3228 = vdwg.mxu0
    %3229 = vmatpush.msra.mxu0 0.0
    %3230 = vmatpush.msra.mxu0 0.0
    %3231 = vmatpush.msra.mxu0 0.0
    %3232 = vmatpush.msra.mxu0 0.0
    %3233 = vmatpush.msra.mxu0 0.0
    %3234 = vmatpush.msra.mxu0 0.0
    %3235 = vmatpush.msra.mxu0 0.0
    %3236 = vmatpush.msra.mxu0 0.0
    %3237 = vmatpush.msra.mxu0 0.0
    %3238 = vmatpush.msra.mxu0 0.0
    %3239 = vmatpush.msra.mxu0 0.0
    %3240 = vmatpush.msra.mxu0 0.0
    %3241 = vmatpush.msra.mxu0 0.0
    %3242 = vmatpush.msra.mxu0 0.0
    %3243 = vmatpush.msra.mxu0 0.0
    %3244 = vmatpush.msra.mxu0 %v2284
    %3245 = vmatmul.f32.gmra.mxu0 %v2648
    %v3246 = vpop.f32.mrf.mxu0
    %v3247 = vadd.f32 0.0, %v3246
    %3248 = vdwg.mxu0
    %3249 = vmatpush.msra.mxu0 0.0
    %3250 = vmatpush.msra.mxu0 0.0
    %3251 = vmatpush.msra.mxu0 0.0
    %3252 = vmatpush.msra.mxu0 0.0
    %3253 = vmatpush.msra.mxu0 0.0
    %3254 = vmatpush.msra.mxu0 0.0
    %3255 = vmatpush.msra.mxu0 0.0
    %3256 = vmatpush.msra.mxu0 0.0
    %3257 = vmatpush.msra.mxu0 0.0
    %3258 = vmatpush.msra.mxu0 0.0
    %3259 = vmatpush.msra.mxu0 0.0
    %3260 = vmatpush.msra.mxu0 0.0
    %3261 = vmatpush.msra.mxu0 0.0
    %3262 = vmatpush.msra.mxu0 0.0
    %3263 = vmatpush.msra.mxu0 0.0
    %3264 = vmatpush.msra.mxu0 %v2312
    %3265 = vmatmul.f32.gmra.mxu0 %v2648
    %v3266 = vpop.f32.mrf.mxu0
    %v3267 = vadd.f32 0.0, %v3266
    %3268 = vdwg.mxu0
    %3269 = vmatpush.msra.mxu0 0.0
    %3270 = vmatpush.msra.mxu0 0.0
    %3271 = vmatpush.msra.mxu0 0.0
    %3272 = vmatpush.msra.mxu0 0.0
    %3273 = vmatpush.msra.mxu0 0.0
    %3274 = vmatpush.msra.mxu0 0.0
    %3275 = vmatpush.msra.mxu0 0.0
    %3276 = vmatpush.msra.mxu0 0.0
    %3277 = vmatpush.msra.mxu0 0.0
    %3278 = vmatpush.msra.mxu0 0.0
    %3279 = vmatpush.msra.mxu0 0.0
    %3280 = vmatpush.msra.mxu0 0.0
    %3281 = vmatpush.msra.mxu0 0.0
    %3282 = vmatpush.msra.mxu0 0.0
    %3283 = vmatpush.msra.mxu0 0.0
    %3284 = vmatpush.msra.mxu0 %v2396
    %3285 = vmatmul.f32.gmra.mxu0 %v2691
    %v3286 = vpop.f32.mrf.mxu0
    %v3287 = vadd.f32 0.0, %v3286
    %3288 = vdwg.mxu0
    %3289 = vmatpush.msra.mxu0 0.0
    %3290 = vmatpush.msra.mxu0 0.0
    %3291 = vmatpush.msra.mxu0 0.0
    %3292 = vmatpush.msra.mxu0 0.0
    %3293 = vmatpush.msra.mxu0 0.0
    %3294 = vmatpush.msra.mxu0 0.0
    %3295 = vmatpush.msra.mxu0 0.0
    %3296 = vmatpush.msra.mxu0 0.0
    %3297 = vmatpush.msra.mxu0 0.0
    %3298 = vmatpush.msra.mxu0 0.0
    %3299 = vmatpush.msra.mxu0 0.0
    %3300 = vmatpush.msra.mxu0 0.0
    %3301 = vmatpush.msra.mxu0 0.0
    %3302 = vmatpush.msra.mxu0 0.0
    %3303 = vmatpush.msra.mxu0 0.0
    %3304 = vmatpush.msra.mxu0 %v2424
    %3305 = vmatmul.f32.gmra.mxu0 %v2691
    %v3306 = vpop.f32.mrf.mxu0
    %v3307 = vadd.f32 0.0, %v3306
    %3308 = vdwg.mxu0
    %3309 = vmatpush.msra.mxu0 0.0
    %3310 = vmatpush.msra.mxu0 0.0
    %3311 = vmatpush.msra.mxu0 0.0
    %3312 = vmatpush.msra.mxu0 0.0
    %3313 = vmatpush.msra.mxu0 0.0
    %3314 = vmatpush.msra.mxu0 0.0
    %3315 = vmatpush.msra.mxu0 0.0
    %3316 = vmatpush.msra.mxu0 0.0
    %3317 = vmatpush.msra.mxu0 0.0
    %3318 = vmatpush.msra.mxu0 0.0
    %3319 = vmatpush.msra.mxu0 0.0
    %3320 = vmatpush.msra.mxu0 0.0
    %3321 = vmatpush.msra.mxu0 0.0
    %3322 = vmatpush.msra.mxu0 0.0
    %3323 = vmatpush.msra.mxu0 0.0
    %3324 = vmatpush.msra.mxu0 %v2508
    %3325 = vmatmul.f32.gmra.mxu0 %v2734
    %v3326 = vpop.f32.mrf.mxu0
    %v3327 = vadd.f32 0.0, %v3326
    %3328 = vdwg.mxu0
    %3329 = vmatpush.msra.mxu0 0.0
    %3330 = vmatpush.msra.mxu0 0.0
    %3331 = vmatpush.msra.mxu0 0.0
    %3332 = vmatpush.msra.mxu0 0.0
    %3333 = vmatpush.msra.mxu0 0.0
    %3334 = vmatpush.msra.mxu0 0.0
    %3335 = vmatpush.msra.mxu0 0.0
    %3336 = vmatpush.msra.mxu0 0.0
    %3337 = vmatpush.msra.mxu0 0.0
    %3338 = vmatpush.msra.mxu0 0.0
    %3339 = vmatpush.msra.mxu0 0.0
    %3340 = vmatpush.msra.mxu0 0.0
    %3341 = vmatpush.msra.mxu0 0.0
    %3342 = vmatpush.msra.mxu0 0.0
    %3343 = vmatpush.msra.mxu0 0.0
    %3344 = vmatpush.msra.mxu0 %v2536
    %3345 = vmatmul.f32.gmra.mxu0 %v2734
    %v3346 = vpop.f32.mrf.mxu0
    %v3347 = vadd.f32 0.0, %v3346
    %3348 = vdwg.mxu0
    %3349 = vmatpush.msra.mxu0 0.0
    %3350 = vmatpush.msra.mxu0 0.0
    %3351 = vmatpush.msra.mxu0 0.0
    %3352 = vmatpush.msra.mxu0 0.0
    %3353 = vmatpush.msra.mxu0 0.0
    %3354 = vmatpush.msra.mxu0 0.0
    %3355 = vmatpush.msra.mxu0 0.0
    %3356 = vmatpush.msra.mxu0 0.0
    %3357 = vmatpush.msra.mxu0 0.0
    %3358 = vmatpush.msra.mxu0 0.0
    %3359 = vmatpush.msra.mxu0 0.0
    %3360 = vmatpush.msra.mxu0 0.0
    %3361 = vmatpush.msra.mxu0 0.0
    %3362 = vmatpush.msra.mxu0 0.0
    %3363 = vmatpush.msra.mxu0 0.0
    %3364 = vmatpush.msra.mxu0 %v2564
    %3365 = vmatmul.f32.gmra.mxu0 %v2777
    %v3366 = vpop.f32.mrf.mxu0
    %v3367 = vadd.f32 0.0, %v3366
    %3368 = vdwg.mxu0
    %3369 = vmatpush.msra.mxu0 0.0
    %3370 = vmatpush.msra.mxu0 0.0
    %3371 = vmatpush.msra.mxu0 0.0
    %3372 = vmatpush.msra.mxu0 0.0
    %3373 = vmatpush.msra.mxu0 0.0
    %3374 = vmatpush.msra.mxu0 0.0
    %3375 = vmatpush.msra.mxu0 0.0
    %3376 = vmatpush.msra.mxu0 0.0
    %3377 = vmatpush.msra.mxu0 0.0
    %3378 = vmatpush.msra.mxu0 0.0
    %3379 = vmatpush.msra.mxu0 0.0
    %3380 = vmatpush.msra.mxu0 0.0
    %3381 = vmatpush.msra.mxu0 0.0
    %3382 = vmatpush.msra.mxu0 0.0
    %3383 = vmatpush.msra.mxu0 0.0
    %3384 = vmatpush.msra.mxu0 %v2592
    %3385 = vmatmul.f32.gmra.mxu0 %v2777
    %v3386 = vpop.f32.mrf.mxu0
    %v3387 = vadd.f32 0.0, %v3386
    %3388 = vdwg.mxu0
    %3389 = vmatpush.msra.mxu0 0.0
    %3390 = vmatpush.msra.mxu0 0.0
    %3391 = vmatpush.msra.mxu0 0.0
    %3392 = vmatpush.msra.mxu0 0.0
    %3393 = vmatpush.msra.mxu0 0.0
    %3394 = vmatpush.msra.mxu0 0.0
    %3395 = vmatpush.msra.mxu0 0.0
    %3396 = vmatpush.msra.mxu0 0.0
    %3397 = vmatpush.msra.mxu0 0.0
    %3398 = vmatpush.msra.mxu0 0.0
    %3399 = vmatpush.msra.mxu0 0.0
    %3400 = vmatpush.msra.mxu0 0.0
    %3401 = vmatpush.msra.mxu0 0.0
    %3402 = vmatpush.msra.mxu0 0.0
    %3403 = vmatpush.msra.mxu0 0.0
    %3404 = vmatpush.msra.mxu0 %v2116
    %3405 = vmatmul.f32.gmra.mxu0 %v2820
    %v3406 = vpop.f32.mrf.mxu0
    %v3407 = vadd.f32 %v3207, %v3406
    %3408 = vdwg.mxu0
    %3409 = vmatpush.msra.mxu0 0.0
    %3410 = vmatpush.msra.mxu0 0.0
    %3411 = vmatpush.msra.mxu0 0.0
    %3412 = vmatpush.msra.mxu0 0.0
    %3413 = vmatpush.msra.mxu0 0.0
    %3414 = vmatpush.msra.mxu0 0.0
    %3415 = vmatpush.msra.mxu0 0.0
    %3416 = vmatpush.msra.mxu0 0.0
    %3417 = vmatpush.msra.mxu0 0.0
    %3418 = vmatpush.msra.mxu0 0.0
    %3419 = vmatpush.msra.mxu0 0.0
    %3420 = vmatpush.msra.mxu0 0.0
    %3421 = vmatpush.msra.mxu0 0.0
    %3422 = vmatpush.msra.mxu0 0.0
    %3423 = vmatpush.msra.mxu0 0.0
    %3424 = vmatpush.msra.mxu0 %v2144
    %3425 = vmatmul.f32.gmra.mxu0 %v2820
    %v3426 = vpop.f32.mrf.mxu0
    %v3427 = vadd.f32 %v3227, %v3426
    %3428 = vdwg.mxu0
    %3429 = vmatpush.msra.mxu0 0.0
    %3430 = vmatpush.msra.mxu0 0.0
    %3431 = vmatpush.msra.mxu0 0.0
    %3432 = vmatpush.msra.mxu0 0.0
    %3433 = vmatpush.msra.mxu0 0.0
    %3434 = vmatpush.msra.mxu0 0.0
    %3435 = vmatpush.msra.mxu0 0.0
    %3436 = vmatpush.msra.mxu0 0.0
    %3437 = vmatpush.msra.mxu0 0.0
    %3438 = vmatpush.msra.mxu0 0.0
    %3439 = vmatpush.msra.mxu0 0.0
    %3440 = vmatpush.msra.mxu0 0.0
    %3441 = vmatpush.msra.mxu0 0.0
    %3442 = vmatpush.msra.mxu0 0.0
    %3443 = vmatpush.msra.mxu0 0.0
    %3444 = vmatpush.msra.mxu0 %v2228
    %3445 = vmatmul.f32.gmra.mxu0 %v2863
    %v3446 = vpop.f32.mrf.mxu0
    %v3447 = vadd.f32 %v3247, %v3446
    %3448 = vdwg.mxu0
    %3449 = vmatpush.msra.mxu0 0.0
    %3450 = vmatpush.msra.mxu0 0.0
    %3451 = vmatpush.msra.mxu0 0.0
    %3452 = vmatpush.msra.mxu0 0.0
    %3453 = vmatpush.msra.mxu0 0.0
    %3454 = vmatpush.msra.mxu0 0.0
    %3455 = vmatpush.msra.mxu0 0.0
    %3456 = vmatpush.msra.mxu0 0.0
    %3457 = vmatpush.msra.mxu0 0.0
    %3458 = vmatpush.msra.mxu0 0.0
    %3459 = vmatpush.msra.mxu0 0.0
    %3460 = vmatpush.msra.mxu0 0.0
    %3461 = vmatpush.msra.mxu0 0.0
    %3462 = vmatpush.msra.mxu0 0.0
    %3463 = vmatpush.msra.mxu0 0.0
    %3464 = vmatpush.msra.mxu0 %v2256
    %3465 = vmatmul.f32.gmra.mxu0 %v2863
    %v3466 = vpop.f32.mrf.mxu0
    %v3467 = vadd.f32 %v3267, %v3466
    %3468 = vdwg.mxu0
    %3469 = vmatpush.msra.mxu0 0.0
    %3470 = vmatpush.msra.mxu0 0.0
    %3471 = vmatpush.msra.mxu0 0.0
    %3472 = vmatpush.msra.mxu0 0.0
    %3473 = vmatpush.msra.mxu0 0.0
    %3474 = vmatpush.msra.mxu0 0.0
    %3475 = vmatpush.msra.mxu0 0.0
    %3476 = vmatpush.msra.mxu0 0.0
    %3477 = vmatpush.msra.mxu0 0.0
    %3478 = vmatpush.msra.mxu0 0.0
    %3479 = vmatpush.msra.mxu0 0.0
    %3480 = vmatpush.msra.mxu0 0.0
    %3481 = vmatpush.msra.mxu0 0.0
    %3482 = vmatpush.msra.mxu0 0.0
    %3483 = vmatpush.msra.mxu0 0.0
    %3484 = vmatpush.msra.mxu0 %v2340
    %3485 = vmatmul.f32.gmra.mxu0 %v2906
    %v3486 = vpop.f32.mrf.mxu0
    %v3487 = vadd.f32 %v3287, %v3486
    %3488 = vdwg.mxu0
    %3489 = vmatpush.msra.mxu0 0.0
    %3490 = vmatpush.msra.mxu0 0.0
    %3491 = vmatpush.msra.mxu0 0.0
    %3492 = vmatpush.msra.mxu0 0.0
    %3493 = vmatpush.msra.mxu0 0.0
    %3494 = vmatpush.msra.mxu0 0.0
    %3495 = vmatpush.msra.mxu0 0.0
    %3496 = vmatpush.msra.mxu0 0.0
    %3497 = vmatpush.msra.mxu0 0.0
    %3498 = vmatpush.msra.mxu0 0.0
    %3499 = vmatpush.msra.mxu0 0.0
    %3500 = vmatpush.msra.mxu0 0.0
    %3501 = vmatpush.msra.mxu0 0.0
    %3502 = vmatpush.msra.mxu0 0.0
    %3503 = vmatpush.msra.mxu0 0.0
    %3504 = vmatpush.msra.mxu0 %v2368
    %3505 = vmatmul.f32.gmra.mxu0 %v2906
    %v3506 = vpop.f32.mrf.mxu0
    %v3507 = vadd.f32 %v3307, %v3506
    %3508 = vdwg.mxu0
    %3509 = vmatpush.msra.mxu0 0.0
    %3510 = vmatpush.msra.mxu0 0.0
    %3511 = vmatpush.msra.mxu0 0.0
    %3512 = vmatpush.msra.mxu0 0.0
    %3513 = vmatpush.msra.mxu0 0.0
    %3514 = vmatpush.msra.mxu0 0.0
    %3515 = vmatpush.msra.mxu0 0.0
    %3516 = vmatpush.msra.mxu0 0.0
    %3517 = vmatpush.msra.mxu0 0.0
    %3518 = vmatpush.msra.mxu0 0.0
    %3519 = vmatpush.msra.mxu0 0.0
    %3520 = vmatpush.msra.mxu0 0.0
    %3521 = vmatpush.msra.mxu0 0.0
    %3522 = vmatpush.msra.mxu0 0.0
    %3523 = vmatpush.msra.mxu0 0.0
    %3524 = vmatpush.msra.mxu0 %v2452
    %3525 = vmatmul.f32.gmra.mxu0 %v2949
    %v3526 = vpop.f32.mrf.mxu0
    %v3527 = vadd.f32 %v3327, %v3526
    %3528 = vdwg.mxu0
    %3529 = vmatpush.msra.mxu0 0.0
    %3530 = vmatpush.msra.mxu0 0.0
    %3531 = vmatpush.msra.mxu0 0.0
    %3532 = vmatpush.msra.mxu0 0.0
    %3533 = vmatpush.msra.mxu0 0.0
    %3534 = vmatpush.msra.mxu0 0.0
    %3535 = vmatpush.msra.mxu0 0.0
    %3536 = vmatpush.msra.mxu0 0.0
    %3537 = vmatpush.msra.mxu0 0.0
    %3538 = vmatpush.msra.mxu0 0.0
    %3539 = vmatpush.msra.mxu0 0.0
    %3540 = vmatpush.msra.mxu0 0.0
    %3541 = vmatpush.msra.mxu0 0.0
    %3542 = vmatpush.msra.mxu0 0.0
    %3543 = vmatpush.msra.mxu0 0.0
    %3544 = vmatpush.msra.mxu0 %v2480
    %3545 = vmatmul.f32.gmra.mxu0 %v2949
    %v3546 = vpop.f32.mrf.mxu0
    %v3547 = vadd.f32 %v3347, %v3546
    %3548 = vdwg.mxu0
    %v3549 = vadd.f32 %v3407, %v3447
    %v3550 = vadd.f32 %v3427, %v3467
    %v3551 = vadd.f32 %v3487, %v3527
    %v3552 = vadd.f32 %v3507, %v3547
    %v3553 = vadd.f32 %v3549, %v3551
    %v3554 = vadd.f32 %v3550, %v3552
    %v3555 = vadd.f32 %v3553, %v3367
    %v3556 = vadd.f32 %v3554, %v3387
    %v3557 = vld [vmem:[%s5] sm:$0xff]
    %3559 = vset.pattern.permute.xlu0 0
    %3560 = vperm.xlu0 %3559, %v3557
    %v3561 = vpop.permute.xlu0 %3560
    %v3563 = vadd.f32 %v3555, %v3561
    %v3564 = vadd.f32 %v3556, %v3561
    %vm3565 = vcmp.gt.f32.partialorder %v3563, 0.0
    %vm3566 = vcmp.gt.f32.partialorder %v3564, 0.0
    %v3567 = vmin.f32 %v3563, 0.0
    %v3568 = vmin.f32 %v3564, 0.0
    %v3569 = vmul.f32 %v3567, 1.442695
    %v3570 = vpow.pop %v3569
    %v3571 = vmul.f32 %v3568, 1.442695
    %v3572 = vpow.pop %v3571
    %v3573 = vsub.f32 %v3570, 1.0
    %v3574 = vsub.f32 %v3572, 1.0
    %v3575 = vsel %vm3565, %v3563, %v3573
    %v3576 = vsel %vm3566, %v3564, %v3574
    %v3577 = vld [vmem:[%s6] sm:$0xff]
    %v3578 = vld [vmem:[%s6 + $0x8] sm:$0xff]
    %v3579 = vld [vmem:[%s6 + $0x10] sm:$0xff]
    %v3580 = vld [vmem:[%s6 + $0x18] sm:$0xff]
    %v3581 = vld [vmem:[%s7] sm:$0xff]
    %v3582 = vld [vmem:[%s7 + $0x8] sm:$0xff]
    %v3583 = vld [vmem:[%s7 + $0x10] sm:$0xff]
    %v3584 = vld [vmem:[%s7 + $0x18] sm:$0xff]
    %3586 = vset.pattern.permute.xlu0 0
    %3587 = vperm.xlu0 %3586, %v3581
    %v3588 = vpop.permute.xlu0 %3587
    %3591 = vset.pattern.permute.xlu0 0
    %3592 = vperm.xlu0 %3591, %v3582
    %v3593 = vpop.permute.xlu0 %3592
    %3596 = vset.pattern.permute.xlu0 0
    %3597 = vperm.xlu0 %3596, %v3583
    %v3598 = vpop.permute.xlu0 %3597
    %3601 = vset.pattern.permute.xlu0 0
    %3602 = vperm.xlu0 %3601, %v3584
    %v3603 = vpop.permute.xlu0 %3602
    %v3606 = vsel %vm2603, %v3577, 0
    %v3609 = vsel %vm2603, %v3578, 0
    %v3612 = vsel %vm2603, %v3579, 0
    %v3615 = vsel %vm2603, %v3580, 0
    %3617 = vmatpush.msra.mxu0 0.0
    %3618 = vmatpush.msra.mxu0 0.0
    %3619 = vmatpush.msra.mxu0 0.0
    %3620 = vmatpush.msra.mxu0 0.0
    %3621 = vmatpush.msra.mxu0 0.0
    %3622 = vmatpush.msra.mxu0 0.0
    %3623 = vmatpush.msra.mxu0 0.0
    %3624 = vmatpush.msra.mxu0 0.0
    %3625 = vmatpush.msra.mxu0 0.0
    %3626 = vmatpush.msra.mxu0 0.0
    %3627 = vmatpush.msra.mxu0 0.0
    %3628 = vmatpush.msra.mxu0 0.0
    %3629 = vmatpush.msra.mxu0 0.0
    %3630 = vmatpush.msra.mxu0 0.0
    %3631 = vmatpush.msra.mxu0 0.0
    %3632 = vmatpush.msra.mxu0 %v3575
    %3633 = vmatmul.f32.gmra.mxu0 %v3606
    %v3634 = vpop.f32.mrf.mxu0
    %v3635 = vadd.f32 %v3588, %v3634
    %3636 = vmatmul.f32.gmra.mxu0 %v3609
    %v3637 = vpop.f32.mrf.mxu0
    %v3638 = vadd.f32 %v3593, %v3637
    %3639 = vmatmul.f32.gmra.mxu0 %v3612
    %v3640 = vpop.f32.mrf.mxu0
    %v3641 = vadd.f32 %v3598, %v3640
    %3642 = vmatmul.f32.gmra.mxu0 %v3615
    %v3643 = vpop.f32.mrf.mxu0
    %v3644 = vadd.f32 %v3603, %v3643
    %3645 = vdwg.mxu0
    %3646 = vmatpush.msra.mxu0 0.0
    %3647 = vmatpush.msra.mxu0 0.0
    %3648 = vmatpush.msra.mxu0 0.0
    %3649 = vmatpush.msra.mxu0 0.0
    %3650 = vmatpush.msra.mxu0 0.0
    %3651 = vmatpush.msra.mxu0 0.0
    %3652 = vmatpush.msra.mxu0 0.0
    %3653 = vmatpush.msra.mxu0 0.0
    %3654 = vmatpush.msra.mxu0 0.0
    %3655 = vmatpush.msra.mxu0 0.0
    %3656 = vmatpush.msra.mxu0 0.0
    %3657 = vmatpush.msra.mxu0 0.0
    %3658 = vmatpush.msra.mxu0 0.0
    %3659 = vmatpush.msra.mxu0 0.0
    %3660 = vmatpush.msra.mxu0 0.0
    %3661 = vmatpush.msra.mxu0 %v3576
    %3662 = vmatmul.f32.gmra.mxu0 %v3606
    %v3663 = vpop.f32.mrf.mxu0
    %v3664 = vadd.f32 %v3588, %v3663
    %3665 = vmatmul.f32.gmra.mxu0 %v3609
    %v3666 = vpop.f32.mrf.mxu0
    %v3667 = vadd.f32 %v3593, %v3666
    %3668 = vmatmul.f32.gmra.mxu0 %v3612
    %v3669 = vpop.f32.mrf.mxu0
    %v3670 = vadd.f32 %v3598, %v3669
    %3671 = vmatmul.f32.gmra.mxu0 %v3615
    %v3672 = vpop.f32.mrf.mxu0
    %v3673 = vadd.f32 %v3603, %v3672
    %3674 = vdwg.mxu0
    %v3675 = vld [vmem:[%s347] sm:$0xff]
    %v3676 = vld [vmem:[%s347 + $0x8] sm:$0xff]
    %v3677 = vld [vmem:[%s347 + $0x10] sm:$0xff]
    %v3678 = vld [vmem:[%s347 + $0x18] sm:$0xff]
    %v3679 = vld [vmem:[%s347 + $0x20] sm:$0xff]
    %v3680 = vld [vmem:[%s347 + $0x28] sm:$0xff]
    %v3681 = vld [vmem:[%s347 + $0x30] sm:$0xff]
    %v3682 = vld [vmem:[%s347 + $0x38] sm:$0xff]
    %v3683 = vadd.f32 %v3635, %v3675
    %v3684 = vadd.f32 %v3664, %v3676
    %v3685 = vadd.f32 %v3638, %v3677
    %v3686 = vadd.f32 %v3667, %v3678
    %v3687 = vadd.f32 %v3641, %v3679
    %v3688 = vadd.f32 %v3670, %v3680
    %v3689 = vadd.f32 %v3644, %v3681
    %v3690 = vadd.f32 %v3673, %v3682
    %vm3691 = vcmp.gt.f32.partialorder %v3683, 0.0
    %vm3692 = vcmp.gt.f32.partialorder %v3684, 0.0
    %vm3693 = vcmp.gt.f32.partialorder %v3685, 0.0
    %vm3694 = vcmp.gt.f32.partialorder %v3686, 0.0
    %vm3695 = vcmp.gt.f32.partialorder %v3687, 0.0
    %vm3696 = vcmp.gt.f32.partialorder %v3688, 0.0
    %vm3697 = vcmp.gt.f32.partialorder %v3689, 0.0
    %vm3698 = vcmp.gt.f32.partialorder %v3690, 0.0
    %v3699 = vmin.f32 %v3683, 0.0
    %v3700 = vmin.f32 %v3684, 0.0
    %v3701 = vmin.f32 %v3685, 0.0
    %v3702 = vmin.f32 %v3686, 0.0
    %v3703 = vmin.f32 %v3687, 0.0
    %v3704 = vmin.f32 %v3688, 0.0
    %v3705 = vmin.f32 %v3689, 0.0
    %v3706 = vmin.f32 %v3690, 0.0
    %v3707 = vmul.f32 %v3699, 1.442695
    %v3708 = vpow.pop %v3707
    %v3709 = vmul.f32 %v3700, 1.442695
    %v3710 = vpow.pop %v3709
    %v3711 = vmul.f32 %v3701, 1.442695
    %v3712 = vpow.pop %v3711
    %v3713 = vmul.f32 %v3702, 1.442695
    %v3714 = vpow.pop %v3713
    %v3715 = vmul.f32 %v3703, 1.442695
    %v3716 = vpow.pop %v3715
    %v3717 = vmul.f32 %v3704, 1.442695
    %v3718 = vpow.pop %v3717
    %v3719 = vmul.f32 %v3705, 1.442695
    %v3720 = vpow.pop %v3719
    %v3721 = vmul.f32 %v3706, 1.442695
    %v3722 = vpow.pop %v3721
    %v3723 = vsub.f32 %v3708, 1.0
    %v3724 = vsub.f32 %v3710, 1.0
    %v3725 = vsub.f32 %v3712, 1.0
    %v3726 = vsub.f32 %v3714, 1.0
    %v3727 = vsub.f32 %v3716, 1.0
    %v3728 = vsub.f32 %v3718, 1.0
    %v3729 = vsub.f32 %v3720, 1.0
    %v3730 = vsub.f32 %v3722, 1.0
    %v3731 = vsel %vm3691, %v3683, %v3723
    %v3732 = vsel %vm3692, %v3684, %v3724
    %v3733 = vsel %vm3693, %v3685, %v3725
    %v3734 = vsel %vm3694, %v3686, %v3726
    %v3735 = vsel %vm3695, %v3687, %v3727
    %v3736 = vsel %vm3696, %v3688, %v3728
    %v3737 = vsel %vm3697, %v3689, %v3729
    %v3738 = vsel %vm3698, %v3690, %v3730
    %s3739 = scalar_lea.vmem [#allocation9], 64
    %3740 = vst [vmem:[%s3739] sm:$0xff] %v3731
    %3741 = vst [vmem:[%s3739 + $0x8] sm:$0xff] %v3732
    %3742 = vst [vmem:[%s3739 + $0x10] sm:$0xff] %v3733
    %3743 = vst [vmem:[%s3739 + $0x18] sm:$0xff] %v3734
    %3744 = vst [vmem:[%s3739 + $0x20] sm:$0xff] %v3735
    %3745 = vst [vmem:[%s3739 + $0x28] sm:$0xff] %v3736
    %3746 = vst [vmem:[%s3739 + $0x30] sm:$0xff] %v3737
    %3747 = vst [vmem:[%s3739 + $0x38] sm:$0xff] %v3738
    // Predicated region
    $region42: #{tpu_custom_call.1} parent=1 // pred_check
      _
    $region43: #{tpu_custom_call.1} parent=1 // pred_check_branch
      %3749 = sbr.rel (0) target = $region45
    $region44: #{tpu_custom_call.1} parent=1 // pred_region
      %3751 = vsyncadd [#allocation6], 0
      %s3752 = sshll.u32 [#allocation9], 4
      %s3753 = int_to_ptr.vmem [resolvable:$true] %s3752
      %s3754 = sshll.u32 %s8, 4
      %s3755 = int_to_ptr.hbm [resolvable:$true] %s3754
      %3760 = dma.vmem_to_hbm [thread:$0]  %s3753, 2048, %s3755, [#allocation6], 256, 256, 16
    $region45: #{tpu_custom_call.1} parent=1 // pred_fallthru
      _
    // Predicated region
    $region46: #{tpu_custom_call.1} parent=1 // pred_check
      _
    $region47: #{tpu_custom_call.1} parent=1 // pred_check_branch
      %3762 = sbr.rel (0) target = $region49
    $region48: #{tpu_custom_call.1} parent=1 // pred_region
      %3764 = dma.done [#allocation6], 2048
    $region49: #{tpu_custom_call.1} parent=1 // pred_fallthru
      _
    %3765 = vsyncpa [#allocation5], 1
    %3766 = vsyncpa [#allocation8], 1
    %3767 = vsyncpa [#allocation6], 1

// kernel: tpu_custom_call.1
$region0: #{tpu_custom_call.1}
  #allocation0 [shape = 'u32[]', space=smem, size = 0x4, offset = 0x4, fixed_abs, tag = 'smem constant byte address 0x4 - core index']
  #allocation1 [shape = 'u32[72,128]{1,0:T(1,128)}', space=vmem, size = 0x9000, scoped, tag = 'internal scratch']
  #allocation2 [shape = 'f32[16,256]{1,0:T(8,128)}', space=vmem, size = 0x4000, scoped, tag = 'scratch operand']
  #allocation3 [shape = 'f32[2,32,256]{2,1,0:T(8,128)}', space=vmem, size = 0x10000, scoped, tag = 'scratch operand']
  %s0 = inlined_call_operand.hbm [shape: f32[2,4,256], index: 0, kind: input, shape index: {}]
  %s1 = inlined_call_operand.vmem [shape: f32[40,4], index: 1, kind: input, shape index: {}]
  %s2 = inlined_call_operand.vmem [shape: f32[40,1], index: 2, kind: input, shape index: {}]
  %s3 = inlined_call_operand.hbm [shape: bf16[256,2304], index: 3, kind: input, shape index: {}]
  %s4 = inlined_call_operand.vmem [shape: f32[9,8,8], index: 4, kind: input, shape index: {}]
  %s5 = inlined_call_operand.vmem [shape: f32[8,1], index: 5, kind: input, shape index: {}]
  %s6 = inlined_call_operand.vmem [shape: f32[32,8], index: 6, kind: input, shape index: {}]
  %s7 = inlined_call_operand.vmem [shape: f32[32,1], index: 7, kind: input, shape index: {}]
  %s8 = inlined_call_operand.hbm [shape: f32[2,32,256], index: 8, kind: output, shape index: {}]
  %s9 = sld [smem:[#allocation0]]
  $region50: #{tpu_custom_call.1} parent=0
    _
  %s11 = ssub.s32 1, %s9
  %s12 = scalar_select 0, %s11, %s9
  $region1: #{tpu_custom_call.1} parent=0
    #allocation4 [shape = 'u8[8192]{0}', space=vmem, size = 0x2000, scoped, tag = 'input window, operand 0, single buffered']
    #allocation5 [shape = 's32[1]{0}', space=sflag, size = 0x4, scoped, tag = 'scoped memory for tpu_custom_call.1']
    #allocation6 [shape = 's32[1]{0}', space=sflag, size = 0x4, scoped, tag = 'scoped memory for tpu_custom_call.1']
    #allocation7 [shape = 'u8[1179648]{0}', space=vmem, size = 0x120000, scoped, tag = 'input window, operand 3, single buffered']
    #allocation8 [shape = 's32[1]{0}', space=sflag, size = 0x4, scoped, tag = 'scoped memory for tpu_custom_call.1']
    #allocation9 [shape = 'u8[65536]{0}', space=vmem, size = 0x10000, scoped, tag = 'output window, operand 0, single buffered']
    %13 = vsyncpa [#allocation5], 0
    %14 = vsyncpa [#allocation8], 0
    %15 = vsyncpa [#allocation6], 0
    // Predicated region
    $region2: #{tpu_custom_call.1} parent=1 // pred_check
      _
    $region3: #{tpu_custom_call.1} parent=1 // pred_check_branch
      %17 = sbr.rel (0) target = $region5
    $region4: #{tpu_custom_call.1} parent=1 // pred_region
      %19 = vsyncadd [#allocation5], 0
      %s20 = sshll.u32 %s0, 4
      %s21 = int_to_ptr.hbm [resolvable:$true] %s20
      %s22 = sshll.u32 [#allocation4], 4
      %s23 = int_to_ptr.vmem [resolvable:$true] %s22
      %28 = dma.hbm_to_vmem [thread:$0]  %s21, 256, %s23, [#allocation5], 128, 128, 8
    $region5: #{tpu_custom_call.1} parent=1 // pred_fallthru
      _
    // Predicated region
    $region6: #{tpu_custom_call.1} parent=1 // pred_check
      _
    $region7: #{tpu_custom_call.1} parent=1 // pred_check_branch
      %30 = sbr.rel (0) target = $region9
    $region8: #{tpu_custom_call.1} parent=1 // pred_region
      _
    $region9: #{tpu_custom_call.1} parent=1 // pred_fallthru
      _
    // Predicated region
    $region10: #{tpu_custom_call.1} parent=1 // pred_check
      _
    $region11: #{tpu_custom_call.1} parent=1 // pred_check_branch
      %32 = sbr.rel (0) target = $region13
    $region12: #{tpu_custom_call.1} parent=1 // pred_region
      _
    $region13: #{tpu_custom_call.1} parent=1 // pred_fallthru
      _
    // Predicated region
    $region14: #{tpu_custom_call.1} parent=1 // pred_check
      _
    $region15: #{tpu_custom_call.1} parent=1 // pred_check_branch
      %34 = sbr.rel (0) target = $region17
    $region16: #{tpu_custom_call.1} parent=1 // pred_region
      %36 = vsyncadd [#allocation8], 0
      %s37 = sshll.u32 %s3, 4
      %s38 = int_to_ptr.hbm [resolvable:$true] %s37
      %s39 = sshll.u32 [#allocation7], 4
      %s40 = int_to_ptr.vmem [resolvable:$true] %s39
      %45 = dma.hbm_to_vmem [thread:$0]  %s38, 36864, %s40, [#allocation8], 1152, 1152, 72
    $region17: #{tpu_custom_call.1} parent=1 // pred_fallthru
      _
    // Predicated region
    $region18: #{tpu_custom_call.1} parent=1 // pred_check
      _
    $region19: #{tpu_custom_call.1} parent=1 // pred_check_branch
      %47 = sbr.rel (0) target = $region21
    $region20: #{tpu_custom_call.1} parent=1 // pred_region
      _
    $region21: #{tpu_custom_call.1} parent=1 // pred_fallthru
      _
    // Predicated region
    $region22: #{tpu_custom_call.1} parent=1 // pred_check
      _
    $region23: #{tpu_custom_call.1} parent=1 // pred_check_branch
      %49 = sbr.rel (0) target = $region25
    $region24: #{tpu_custom_call.1} parent=1 // pred_region
      _
    $region25: #{tpu_custom_call.1} parent=1 // pred_fallthru
      _
    // Predicated region
    $region26: #{tpu_custom_call.1} parent=1 // pred_check
      _
    $region27: #{tpu_custom_call.1} parent=1 // pred_check_branch
      %51 = sbr.rel (0) target = $region29
    $region28: #{tpu_custom_call.1} parent=1 // pred_region
      _
    $region29: #{tpu_custom_call.1} parent=1 // pred_fallthru
      _
    // Predicated region
    $region30: #{tpu_custom_call.1} parent=1 // pred_check
      _
    $region31: #{tpu_custom_call.1} parent=1 // pred_check_branch
      %53 = sbr.rel (0) target = $region33
    $region32: #{tpu_custom_call.1} parent=1 // pred_region
      _
    $region33: #{tpu_custom_call.1} parent=1 // pred_fallthru
      _
    // Predicated region
    $region34: #{tpu_custom_call.1} parent=1 // pred_check
      _
    $region35: #{tpu_custom_call.1} parent=1 // pred_check_branch
      %55 = sbr.rel (0) target = $region37
    $region36: #{tpu_custom_call.1} parent=1 // pred_region
      %57 = dma.done [#allocation5], 256
    $region37: #{tpu_custom_call.1} parent=1 // pred_fallthru
      _
    // Predicated region
    $region38: #{tpu_custom_call.1} parent=1 // pred_check
      _
    $region39: #{tpu_custom_call.1} parent=1 // pred_check_branch
      %59 = sbr.rel (0) target = $region41
    $region40: #{tpu_custom_call.1} parent=1 // pred_region
      %61 = dma.done [#allocation8], 36864
    $region41: #{tpu_custom_call.1} parent=1 // pred_fallthru
      _
    %v62 = vld [vmem:[#allocation4] sm:$0xff]
    %v63 = vld [vmem:[%s1] sm:$0xff]
    %v64 = vld [vmem:[%s1 + $0x8] sm:$0xff]
    %v65 = vld [vmem:[%s1 + $0x10] sm:$0xff]
    %v66 = vld [vmem:[%s1 + $0x18] sm:$0xff]
    %v67 = vld [vmem:[%s1 + $0x20] sm:$0xff]
    %v68 = vld [vmem:[%s2] sm:$0xff]
    %v69 = vld [vmem:[%s2 + $0x8] sm:$0xff]
    %v70 = vld [vmem:[%s2 + $0x10] sm:$0xff]
    %v71 = vld [vmem:[%s2 + $0x18] sm:$0xff]
    %v72 = vld [vmem:[%s2 + $0x20] sm:$0xff]
    %74 = vset.pattern.permute.xlu0 0
    %75 = vperm.xlu0 %74, %v68
    %v76 = vpop.permute.xlu0 %75
    %79 = vset.pattern.permute.xlu0 0
    %80 = vperm.xlu0 %79, %v69
    %v81 = vpop.permute.xlu0 %80
    %84 = vset.pattern.permute.xlu0 0
    %85 = vperm.xlu0 %84, %v70
    %v86 = vpop.permute.xlu0 %85
    %89 = vset.pattern.permute.xlu0 0
    %90 = vperm.xlu0 %89, %v71
    %v91 = vpop.permute.xlu0 %90
    %94 = vset.pattern.permute.xlu0 0
    %95 = vperm.xlu0 %94, %v72
    %v96 = vpop.permute.xlu0 %95
    %99 = vst [vmem:[#allocation1] ss:$2 sm:$0xff] %v62
    %v100 = vld.sshfl [vmem:[#allocation1] sm:$0xff pattern:$0x75316420]
    %v101 = vld.sshfl [vmem:[#allocation1 + $0x8] sm:$0xff pattern:$0x75316420]
    %vm102 = vcmask 31744
    %v104 = vsel %vm102, %v63, 0
    %v107 = vsel %vm102, %v64, 0
    %v110 = vsel %vm102, %v65, 0
    %v113 = vsel %vm102, %v66, 0
    %v116 = vsel %vm102, %v67, 0
    %vm118 = vcmask 1043456
    %v119 = vsel %vm118, %v100, 0
    %v121 = vsel %vm118, %v101, 0
    %123 = vmatpush.msra.mxu0 0.0
    %124 = vmatpush.msra.mxu0 0.0
    %125 = vmatpush.msra.mxu0 0.0
    %126 = vmatpush.msra.mxu0 0.0
    %127 = vmatpush.msra.mxu0 0.0
    %128 = vmatpush.msra.mxu0 0.0
    %129 = vmatpush.msra.mxu0 0.0
    %130 = vmatpush.msra.mxu0 0.0
    %131 = vmatpush.msra.mxu0 0.0
    %132 = vmatpush.msra.mxu0 0.0
    %133 = vmatpush.msra.mxu0 0.0
    %134 = vmatpush.msra.mxu0 0.0
    %135 = vmatpush.msra.mxu0 0.0
    %136 = vmatpush.msra.mxu0 0.0
    %137 = vmatpush.msra.mxu0 0.0
    %138 = vmatpush.msra.mxu0 %v119
    %139 = vmatmul.f32.gmra.mxu0 %v104
    %v140 = vpop.f32.mrf.mxu0
    %v141 = vadd.f32 %v76, %v140
    %142 = vmatmul.f32.gmra.mxu0 %v107
    %v143 = vpop.f32.mrf.mxu0
    %v144 = vadd.f32 %v81, %v143
    %145 = vmatmul.f32.gmra.mxu0 %v110
    %v146 = vpop.f32.mrf.mxu0
    %v147 = vadd.f32 %v86, %v146
    %148 = vmatmul.f32.gmra.mxu0 %v113
    %v149 = vpop.f32.mrf.mxu0
    %v150 = vadd.f32 %v91, %v149
    %151 = vmatmul.f32.gmra.mxu0 %v116
    %v152 = vpop.f32.mrf.mxu0
    %v153 = vadd.f32 %v96, %v152
    %154 = vdwg.mxu0
    %155 = vmatpush.msra.mxu0 0.0
    %156 = vmatpush.msra.mxu0 0.0
    %157 = vmatpush.msra.mxu0 0.0
    %158 = vmatpush.msra.mxu0 0.0
    %159 = vmatpush.msra.mxu0 0.0
    %160 = vmatpush.msra.mxu0 0.0
    %161 = vmatpush.msra.mxu0 0.0
    %162 = vmatpush.msra.mxu0 0.0
    %163 = vmatpush.msra.mxu0 0.0
    %164 = vmatpush.msra.mxu0 0.0
    %165 = vmatpush.msra.mxu0 0.0
    %166 = vmatpush.msra.mxu0 0.0
    %167 = vmatpush.msra.mxu0 0.0
    %168 = vmatpush.msra.mxu0 0.0
    %169 = vmatpush.msra.mxu0 0.0
    %170 = vmatpush.msra.mxu0 %v121
    %171 = vmatmul.f32.gmra.mxu0 %v104
    %v172 = vpop.f32.mrf.mxu0
    %v173 = vadd.f32 %v76, %v172
    %174 = vmatmul.f32.gmra.mxu0 %v107
    %v175 = vpop.f32.mrf.mxu0
    %v176 = vadd.f32 %v81, %v175
    %177 = vmatmul.f32.gmra.mxu0 %v110
    %v178 = vpop.f32.mrf.mxu0
    %v179 = vadd.f32 %v86, %v178
    %180 = vmatmul.f32.gmra.mxu0 %v113
    %v181 = vpop.f32.mrf.mxu0
    %v182 = vadd.f32 %v91, %v181
    %183 = vmatmul.f32.gmra.mxu0 %v116
    %v184 = vpop.f32.mrf.mxu0
    %v185 = vadd.f32 %v96, %v184
    %186 = vdwg.mxu0
    %vm187 = vcmp.gt.f32.partialorder %v141, 0.0
    %vm188 = vcmp.gt.f32.partialorder %v173, 0.0
    %v189 = vmin.f32 %v141, 0.0
    %v190 = vmin.f32 %v173, 0.0
    %v191 = vmul.f32 %v189, 1.442695
    %v192 = vpow.pop %v191
    %v193 = vmul.f32 %v190, 1.442695
    %v194 = vpow.pop %v193
    %v195 = vsub.f32 %v192, 1.0
    %v196 = vsub.f32 %v194, 1.0
    %v197 = vsel %vm187, %v141, %v195
    %v198 = vsel %vm188, %v173, %v196
    %199 = vst [vmem:[#allocation2] sm:$0xff] %v197
    %200 = vst [vmem:[#allocation2 + $0x8] sm:$0xff] %v198
    %201 = vst [vmem:[#allocation3] sm:$0xff] %v144
    %202 = vst [vmem:[#allocation3 + $0x8] sm:$0xff] %v176
    %203 = vst [vmem:[#allocation3 + $0x10] sm:$0xff] %v147
    %204 = vst [vmem:[#allocation3 + $0x18] sm:$0xff] %v179
    %205 = vst [vmem:[#allocation3 + $0x20] sm:$0xff] %v150
    %206 = vst [vmem:[#allocation3 + $0x28] sm:$0xff] %v182
    %207 = vst [vmem:[#allocation3 + $0x30] sm:$0xff] %v153
    %208 = vst [vmem:[#allocation3 + $0x38] sm:$0xff] %v185
    %s209 = scalar_lea.vmem [#allocation4], 8
    %v210 = vld [vmem:[%s209] sm:$0xff]
    %v211 = vld [vmem:[%s1] sm:$0xff]
    %v212 = vld [vmem:[%s1 + $0x8] sm:$0xff]
    %v213 = vld [vmem:[%s1 + $0x10] sm:$0xff]
    %v214 = vld [vmem:[%s1 + $0x18] sm:$0xff]
    %v215 = vld [vmem:[%s1 + $0x20] sm:$0xff]
    %v216 = vld [vmem:[%s2] sm:$0xff]
    %v217 = vld [vmem:[%s2 + $0x8] sm:$0xff]
    %v218 = vld [vmem:[%s2 + $0x10] sm:$0xff]
    %v219 = vld [vmem:[%s2 + $0x18] sm:$0xff]
    %v220 = vld [vmem:[%s2 + $0x20] sm:$0xff]
    %222 = vset.pattern.permute.xlu0 0
    %223 = vperm.xlu0 %222, %v216
    %v224 = vpop.permute.xlu0 %223
    %227 = vset.pattern.permute.xlu0 0
    %228 = vperm.xlu0 %227, %v217
    %v229 = vpop.permute.xlu0 %228
    %232 = vset.pattern.permute.xlu0 0
    %233 = vperm.xlu0 %232, %v218
    %v234 = vpop.permute.xlu0 %233
    %237 = vset.pattern.permute.xlu0 0
    %238 = vperm.xlu0 %237, %v219
    %v239 = vpop.permute.xlu0 %238
    %242 = vset.pattern.permute.xlu0 0
    %243 = vperm.xlu0 %242, %v220
    %v244 = vpop.permute.xlu0 %243
    %247 = vst [vmem:[#allocation1] ss:$2 sm:$0xff] %v210
    %v248 = vld.sshfl [vmem:[#allocation1] sm:$0xff pattern:$0x75316420]
    %v249 = vld.sshfl [vmem:[#allocation1 + $0x8] sm:$0xff pattern:$0x75316420]
    %v251 = vsel %vm102, %v211, 0
    %v254 = vsel %vm102, %v212, 0
    %v257 = vsel %vm102, %v213, 0
    %v260 = vsel %vm102, %v214, 0
    %v263 = vsel %vm102, %v215, 0
    %v265 = vsel %vm118, %v248, 0
    %v267 = vsel %vm118, %v249, 0
    %269 = vmatpush.msra.mxu0 0.0
    %270 = vmatpush.msra.mxu0 0.0
    %271 = vmatpush.msra.mxu0 0.0
    %272 = vmatpush.msra.mxu0 0.0
    %273 = vmatpush.msra.mxu0 0.0
    %274 = vmatpush.msra.mxu0 0.0
    %275 = vmatpush.msra.mxu0 0.0
    %276 = vmatpush.msra.mxu0 0.0
    %277 = vmatpush.msra.mxu0 0.0
    %278 = vmatpush.msra.mxu0 0.0
    %279 = vmatpush.msra.mxu0 0.0
    %280 = vmatpush.msra.mxu0 0.0
    %281 = vmatpush.msra.mxu0 0.0
    %282 = vmatpush.msra.mxu0 0.0
    %283 = vmatpush.msra.mxu0 0.0
    %284 = vmatpush.msra.mxu0 %v265
    %285 = vmatmul.f32.gmra.mxu0 %v251
    %v286 = vpop.f32.mrf.mxu0
    %v287 = vadd.f32 %v224, %v286
    %288 = vmatmul.f32.gmra.mxu0 %v254
    %v289 = vpop.f32.mrf.mxu0
    %v290 = vadd.f32 %v229, %v289
    %291 = vmatmul.f32.gmra.mxu0 %v257
    %v292 = vpop.f32.mrf.mxu0
    %v293 = vadd.f32 %v234, %v292
    %294 = vmatmul.f32.gmra.mxu0 %v260
    %v295 = vpop.f32.mrf.mxu0
    %v296 = vadd.f32 %v239, %v295
    %297 = vmatmul.f32.gmra.mxu0 %v263
    %v298 = vpop.f32.mrf.mxu0
    %v299 = vadd.f32 %v244, %v298
    %300 = vdwg.mxu0
    %301 = vmatpush.msra.mxu0 0.0
    %302 = vmatpush.msra.mxu0 0.0
    %303 = vmatpush.msra.mxu0 0.0
    %304 = vmatpush.msra.mxu0 0.0
    %305 = vmatpush.msra.mxu0 0.0
    %306 = vmatpush.msra.mxu0 0.0
    %307 = vmatpush.msra.mxu0 0.0
    %308 = vmatpush.msra.mxu0 0.0
    %309 = vmatpush.msra.mxu0 0.0
    %310 = vmatpush.msra.mxu0 0.0
    %311 = vmatpush.msra.mxu0 0.0
    %312 = vmatpush.msra.mxu0 0.0
    %313 = vmatpush.msra.mxu0 0.0
    %314 = vmatpush.msra.mxu0 0.0
    %315 = vmatpush.msra.mxu0 0.0
    %316 = vmatpush.msra.mxu0 %v267
    %317 = vmatmul.f32.gmra.mxu0 %v251
    %v318 = vpop.f32.mrf.mxu0
    %v319 = vadd.f32 %v224, %v318
    %320 = vmatmul.f32.gmra.mxu0 %v254
    %v321 = vpop.f32.mrf.mxu0
    %v322 = vadd.f32 %v229, %v321
    %323 = vmatmul.f32.gmra.mxu0 %v257
    %v324 = vpop.f32.mrf.mxu0
    %v325 = vadd.f32 %v234, %v324
    %326 = vmatmul.f32.gmra.mxu0 %v260
    %v327 = vpop.f32.mrf.mxu0
    %v328 = vadd.f32 %v239, %v327
    %329 = vmatmul.f32.gmra.mxu0 %v263
    %v330 = vpop.f32.mrf.mxu0
    %v331 = vadd.f32 %v244, %v330
    %332 = vdwg.mxu0
    %vm333 = vcmp.gt.f32.partialorder %v287, 0.0
    %vm334 = vcmp.gt.f32.partialorder %v319, 0.0
    %v335 = vmin.f32 %v287, 0.0
    %v336 = vmin.f32 %v319, 0.0
    %v337 = vmul.f32 %v335, 1.442695
    %v338 = vpow.pop %v337
    %v339 = vmul.f32 %v336, 1.442695
    %v340 = vpow.pop %v339
    %v341 = vsub.f32 %v338, 1.0
    %v342 = vsub.f32 %v340, 1.0
    %v343 = vsel %vm333, %v287, %v341
    %v344 = vsel %vm334, %v319, %v342
    %345 = vst [vmem:[#allocation2 + $0x10] sm:$0xff] %v343
    %346 = vst [vmem:[#allocation2 + $0x18] sm:$0xff] %v344
    %s347 = scalar_lea.vmem [#allocation3], 64
    %348 = vst [vmem:[%s347] sm:$0xff] %v290
    %349 = vst [vmem:[%s347 + $0x8] sm:$0xff] %v322
    %350 = vst [vmem:[%s347 + $0x10] sm:$0xff] %v293
    %351 = vst [vmem:[%s347 + $0x18] sm:$0xff] %v325
    %352 = vst [vmem:[%s347 + $0x20] sm:$0xff] %v296
    %353 = vst [vmem:[%s347 + $0x28] sm:$0xff] %v328
    %354 = vst [vmem:[%s347 + $0x30] sm:$0xff] %v299
    %355 = vst [vmem:[%s347 + $0x38] sm:$0xff] %v331
    %v356 = vld [vmem:[#allocation2] sm:$0xff]
    %v357 = vld [vmem:[#allocation2 + $0x8] sm:$0xff]
    %v358 = vld [vmem:[#allocation2 + $0x10] sm:$0xff]
    %v359 = vld [vmem:[#allocation2 + $0x18] sm:$0xff]
    %v360 = vpack.c.bf16 %v358, %v356
    %v361 = vpack.c.bf16 %v359, %v357
    %v362 = vld [vmem:[#allocation7] sm:$0xff]
    %v363 = vld [vmem:[#allocation7 + $0x8] sm:$0xff]
    %v364 = vld [vmem:[#allocation7 + $0x10] sm:$0xff]
    %v365 = vld [vmem:[#allocation7 + $0x18] sm:$0xff]
    %v366 = vld [vmem:[#allocation7 + $0x20] sm:$0xff]
    %v367 = vld [vmem:[#allocation7 + $0x28] sm:$0xff]
    %v368 = vld [vmem:[#allocation7 + $0x30] sm:$0xff]
    %v369 = vld [vmem:[#allocation7 + $0x38] sm:$0xff]
    %v370 = vld [vmem:[#allocation7 + $0x40] sm:$0xff]
    %v371 = vld [vmem:[#allocation7 + $0x48] sm:$0xff]
    %v372 = vld [vmem:[#allocation7 + $0x50] sm:$0xff]
    %v373 = vld [vmem:[#allocation7 + $0x58] sm:$0xff]
    %v374 = vld [vmem:[#allocation7 + $0x60] sm:$0xff]
    %v375 = vld [vmem:[#allocation7 + $0x68] sm:$0xff]
    %v376 = vld [vmem:[#allocation7 + $0x70] sm:$0xff]
    %v377 = vld [vmem:[#allocation7 + $0x78] sm:$0xff]
    %v378 = vld [vmem:[#allocation7 + $0x80] sm:$0xff]
    %v379 = vld [vmem:[#allocation7 + $0x88] sm:$0xff]
    %v380 = vld [vmem:[#allocation7 + $0x90] sm:$0xff]
    %v381 = vld [vmem:[#allocation7 + $0x98] sm:$0xff]
    %v382 = vld [vmem:[#allocation7 + $0xa0] sm:$0xff]
    %v383 = vld [vmem:[#allocation7 + $0xa8] sm:$0xff]
    %v384 = vld [vmem:[#allocation7 + $0xb0] sm:$0xff]
    %v385 = vld [vmem:[#allocation7 + $0xb8] sm:$0xff]
    %v386 = vld [vmem:[#allocation7 + $0xc0] sm:$0xff]
    %v387 = vld [vmem:[#allocation7 + $0xc8] sm:$0xff]
    %v388 = vld [vmem:[#allocation7 + $0xd0] sm:$0xff]
    %v389 = vld [vmem:[#allocation7 + $0xd8] sm:$0xff]
    %v390 = vld [vmem:[#allocation7 + $0xe0] sm:$0xff]
    %v391 = vld [vmem:[#allocation7 + $0xe8] sm:$0xff]
    %v392 = vld [vmem:[#allocation7 + $0xf0] sm:$0xff]
    %v393 = vld [vmem:[#allocation7 + $0xf8] sm:$0xff]
    %v394 = vld [vmem:[#allocation7 + $0x100] sm:$0xff]
    %v395 = vld [vmem:[#allocation7 + $0x108] sm:$0xff]
    %v396 = vld [vmem:[#allocation7 + $0x110] sm:$0xff]
    %v397 = vld [vmem:[#allocation7 + $0x118] sm:$0xff]
    %v398 = vld [vmem:[#allocation7 + $0x120] sm:$0xff]
    %v399 = vld [vmem:[#allocation7 + $0x128] sm:$0xff]
    %v400 = vld [vmem:[#allocation7 + $0x130] sm:$0xff]
    %v401 = vld [vmem:[#allocation7 + $0x138] sm:$0xff]
    %v402 = vld [vmem:[#allocation7 + $0x140] sm:$0xff]
    %v403 = vld [vmem:[#allocation7 + $0x148] sm:$0xff]
    %v404 = vld [vmem:[#allocation7 + $0x150] sm:$0xff]
    %v405 = vld [vmem:[#allocation7 + $0x158] sm:$0xff]
    %v406 = vld [vmem:[#allocation7 + $0x160] sm:$0xff]
    %v407 = vld [vmem:[#allocation7 + $0x168] sm:$0xff]
    %v408 = vld [vmem:[#allocation7 + $0x170] sm:$0xff]
    %v409 = vld [vmem:[#allocation7 + $0x178] sm:$0xff]
    %v410 = vld [vmem:[#allocation7 + $0x180] sm:$0xff]
    %v411 = vld [vmem:[#allocation7 + $0x188] sm:$0xff]
    %v412 = vld [vmem:[#allocation7 + $0x190] sm:$0xff]
    %v413 = vld [vmem:[#allocation7 + $0x198] sm:$0xff]
    %v414 = vld [vmem:[#allocation7 + $0x1a0] sm:$0xff]
    %v415 = vld [vmem:[#allocation7 + $0x1a8] sm:$0xff]
    %v416 = vld [vmem:[#allocation7 + $0x1b0] sm:$0xff]
    %v417 = vld [vmem:[#allocation7 + $0x1b8] sm:$0xff]
    %v418 = vld [vmem:[#allocation7 + $0x1c0] sm:$0xff]
    %v419 = vld [vmem:[#allocation7 + $0x1c8] sm:$0xff]
    %v420 = vld [vmem:[#allocation7 + $0x1d0] sm:$0xff]
    %v421 = vld [vmem:[#allocation7 + $0x1d8] sm:$0xff]
    %v422 = vld [vmem:[#allocation7 + $0x1e0] sm:$0xff]
    %v423 = vld [vmem:[#allocation7 + $0x1e8] sm:$0xff]
    %v424 = vld [vmem:[#allocation7 + $0x1f0] sm:$0xff]
    %v425 = vld [vmem:[#allocation7 + $0x1f8] sm:$0xff]
    %v426 = vld [vmem:[#allocation7 + $0x200] sm:$0xff]
    %v427 = vld [vmem:[#allocation7 + $0x208] sm:$0xff]
    %v428 = vld [vmem:[#allocation7 + $0x210] sm:$0xff]
    %v429 = vld [vmem:[#allocation7 + $0x218] sm:$0xff]
    %v430 = vld [vmem:[#allocation7 + $0x220] sm:$0xff]
    %v431 = vld [vmem:[#allocation7 + $0x228] sm:$0xff]
    %v432 = vld [vmem:[#allocation7 + $0x230] sm:$0xff]
    %v433 = vld [vmem:[#allocation7 + $0x238] sm:$0xff]
    %v434 = vld [vmem:[#allocation7 + $0x240] sm:$0xff]
    %v435 = vld [vmem:[#allocation7 + $0x248] sm:$0xff]
    %v436 = vld [vmem:[#allocation7 + $0x250] sm:$0xff]
    %v437 = vld [vmem:[#allocation7 + $0x258] sm:$0xff]
    %v438 = vld [vmem:[#allocation7 + $0x260] sm:$0xff]
    %v439 = vld [vmem:[#allocation7 + $0x268] sm:$0xff]
    %v440 = vld [vmem:[#allocation7 + $0x270] sm:$0xff]
    %v441 = vld [vmem:[#allocation7 + $0x278] sm:$0xff]
    %v442 = vld [vmem:[#allocation7 + $0x280] sm:$0xff]
    %v443 = vld [vmem:[#allocation7 + $0x288] sm:$0xff]
    %v444 = vld [vmem:[#allocation7 + $0x290] sm:$0xff]
    %v445 = vld [vmem:[#allocation7 + $0x298] sm:$0xff]
    %v446 = vld [vmem:[#allocation7 + $0x2a0] sm:$0xff]
    %v447 = vld [vmem:[#allocation7 + $0x2a8] sm:$0xff]
    %v448 = vld [vmem:[#allocation7 + $0x2b0] sm:$0xff]
    %v449 = vld [vmem:[#allocation7 + $0x2b8] sm:$0xff]
    %v450 = vld [vmem:[#allocation7 + $0x2c0] sm:$0xff]
    %v451 = vld [vmem:[#allocation7 + $0x2c8] sm:$0xff]
    %v452 = vld [vmem:[#allocation7 + $0x2d0] sm:$0xff]
    %v453 = vld [vmem:[#allocation7 + $0x2d8] sm:$0xff]
    %v454 = vld [vmem:[#allocation7 + $0x2e0] sm:$0xff]
    %v455 = vld [vmem:[#allocation7 + $0x2e8] sm:$0xff]
    %v456 = vld [vmem:[#allocation7 + $0x2f0] sm:$0xff]
    %v457 = vld [vmem:[#allocation7 + $0x2f8] sm:$0xff]
    %v458 = vld [vmem:[#allocation7 + $0x300] sm:$0xff]
    %v459 = vld [vmem:[#allocation7 + $0x308] sm:$0xff]
    %v460 = vld [vmem:[#allocation7 + $0x310] sm:$0xff]
    %v461 = vld [vmem:[#allocation7 + $0x318] sm:$0xff]
    %v462 = vld [vmem:[#allocation7 + $0x320] sm:$0xff]
    %v463 = vld [vmem:[#allocation7 + $0x328] sm:$0xff]
    %v464 = vld [vmem:[#allocation7 + $0x330] sm:$0xff]
    %v465 = vld [vmem:[#allocation7 + $0x338] sm:$0xff]
    %v466 = vld [vmem:[#allocation7 + $0x340] sm:$0xff]
    %v467 = vld [vmem:[#allocation7 + $0x348] sm:$0xff]
    %v468 = vld [vmem:[#allocation7 + $0x350] sm:$0xff]
    %v469 = vld [vmem:[#allocation7 + $0x358] sm:$0xff]
    %v470 = vld [vmem:[#allocation7 + $0x360] sm:$0xff]
    %v471 = vld [vmem:[#allocation7 + $0x368] sm:$0xff]
    %v472 = vld [vmem:[#allocation7 + $0x370] sm:$0xff]
    %v473 = vld [vmem:[#allocation7 + $0x378] sm:$0xff]
    %v474 = vld [vmem:[#allocation7 + $0x380] sm:$0xff]
    %v475 = vld [vmem:[#allocation7 + $0x388] sm:$0xff]
    %v476 = vld [vmem:[#allocation7 + $0x390] sm:$0xff]
    %v477 = vld [vmem:[#allocation7 + $0x398] sm:$0xff]
    %v478 = vld [vmem:[#allocation7 + $0x3a0] sm:$0xff]
    %v479 = vld [vmem:[#allocation7 + $0x3a8] sm:$0xff]
    %v480 = vld [vmem:[#allocation7 + $0x3b0] sm:$0xff]
    %v481 = vld [vmem:[#allocation7 + $0x3b8] sm:$0xff]
    %v482 = vld [vmem:[#allocation7 + $0x3c0] sm:$0xff]
    %v483 = vld [vmem:[#allocation7 + $0x3c8] sm:$0xff]
    %v484 = vld [vmem:[#allocation7 + $0x3d0] sm:$0xff]
    %v485 = vld [vmem:[#allocation7 + $0x3d8] sm:$0xff]
    %v486 = vld [vmem:[#allocation7 + $0x3e0] sm:$0xff]
    %v487 = vld [vmem:[#allocation7 + $0x3e8] sm:$0xff]
    %v488 = vld [vmem:[#allocation7 + $0x3f0] sm:$0xff]
    %v489 = vld [vmem:[#allocation7 + $0x3f8] sm:$0xff]
    %v490 = vld [vmem:[#allocation7 + $0x400] sm:$0xff]
    %v491 = vld [vmem:[#allocation7 + $0x408] sm:$0xff]
    %v492 = vld [vmem:[#allocation7 + $0x410] sm:$0xff]
    %v493 = vld [vmem:[#allocation7 + $0x418] sm:$0xff]
    %v494 = vld [vmem:[#allocation7 + $0x420] sm:$0xff]
    %v495 = vld [vmem:[#allocation7 + $0x428] sm:$0xff]
    %v496 = vld [vmem:[#allocation7 + $0x430] sm:$0xff]
    %v497 = vld [vmem:[#allocation7 + $0x438] sm:$0xff]
    %v498 = vld [vmem:[#allocation7 + $0x440] sm:$0xff]
    %v499 = vld [vmem:[#allocation7 + $0x448] sm:$0xff]
    %v500 = vld [vmem:[#allocation7 + $0x450] sm:$0xff]
    %v501 = vld [vmem:[#allocation7 + $0x458] sm:$0xff]
    %v502 = vld [vmem:[#allocation7 + $0x460] sm:$0xff]
    %v503 = vld [vmem:[#allocation7 + $0x468] sm:$0xff]
    %v504 = vld [vmem:[#allocation7 + $0x470] sm:$0xff]
    %v505 = vld [vmem:[#allocation7 + $0x478] sm:$0xff]
    %v506 = vld [vmem:[#allocation7 + $0x480] sm:$0xff]
    %v507 = vld [vmem:[#allocation7 + $0x488] sm:$0xff]
    %v508 = vld [vmem:[#allocation7 + $0x490] sm:$0xff]
    %v509 = vld [vmem:[#allocation7 + $0x498] sm:$0xff]
    %v510 = vld [vmem:[#allocation7 + $0x4a0] sm:$0xff]
    %v511 = vld [vmem:[#allocation7 + $0x4a8] sm:$0xff]
    %v512 = vld [vmem:[#allocation7 + $0x4b0] sm:$0xff]
    %v513 = vld [vmem:[#allocation7 + $0x4b8] sm:$0xff]
    %v514 = vld [vmem:[#allocation7 + $0x4c0] sm:$0xff]
    %v515 = vld [vmem:[#allocation7 + $0x4c8] sm:$0xff]
    %v516 = vld [vmem:[#allocation7 + $0x4d0] sm:$0xff]
    %v517 = vld [vmem:[#allocation7 + $0x4d8] sm:$0xff]
    %v518 = vld [vmem:[#allocation7 + $0x4e0] sm:$0xff]
    %v519 = vld [vmem:[#allocation7 + $0x4e8] sm:$0xff]
    %v520 = vld [vmem:[#allocation7 + $0x4f0] sm:$0xff]
    %v521 = vld [vmem:[#allocation7 + $0x4f8] sm:$0xff]
    %v522 = vld [vmem:[#allocation7 + $0x500] sm:$0xff]
    %v523 = vld [vmem:[#allocation7 + $0x508] sm:$0xff]
    %v524 = vld [vmem:[#allocation7 + $0x510] sm:$0xff]
    %v525 = vld [vmem:[#allocation7 + $0x518] sm:$0xff]
    %v526 = vld [vmem:[#allocation7 + $0x520] sm:$0xff]
    %v527 = vld [vmem:[#allocation7 + $0x528] sm:$0xff]
    %v528 = vld [vmem:[#allocation7 + $0x530] sm:$0xff]
    %v529 = vld [vmem:[#allocation7 + $0x538] sm:$0xff]
    %v530 = vld [vmem:[#allocation7 + $0x540] sm:$0xff]
    %v531 = vld [vmem:[#allocation7 + $0x548] sm:$0xff]
    %v532 = vld [vmem:[#allocation7 + $0x550] sm:$0xff]
    %v533 = vld [vmem:[#allocation7 + $0x558] sm:$0xff]
    %v534 = vld [vmem:[#allocation7 + $0x560] sm:$0xff]
    %v535 = vld [vmem:[#allocation7 + $0x568] sm:$0xff]
    %v536 = vld [vmem:[#allocation7 + $0x570] sm:$0xff]
    %v537 = vld [vmem:[#allocation7 + $0x578] sm:$0xff]
    %v538 = vld [vmem:[#allocation7 + $0x580] sm:$0xff]
    %v539 = vld [vmem:[#allocation7 + $0x588] sm:$0xff]
    %v540 = vld [vmem:[#allocation7 + $0x590] sm:$0xff]
    %v541 = vld [vmem:[#allocation7 + $0x598] sm:$0xff]
    %v542 = vld [vmem:[#allocation7 + $0x5a0] sm:$0xff]
    %v543 = vld [vmem:[#allocation7 + $0x5a8] sm:$0xff]
    %v544 = vld [vmem:[#allocation7 + $0x5b0] sm:$0xff]
    %v545 = vld [vmem:[#allocation7 + $0x5b8] sm:$0xff]
    %v546 = vld [vmem:[#allocation7 + $0x5c0] sm:$0xff]
    %v547 = vld [vmem:[#allocation7 + $0x5c8] sm:$0xff]
    %v548 = vld [vmem:[#allocation7 + $0x5d0] sm:$0xff]
    %v549 = vld [vmem:[#allocation7 + $0x5d8] sm:$0xff]
    %v550 = vld [vmem:[#allocation7 + $0x5e0] sm:$0xff]
    %v551 = vld [vmem:[#allocation7 + $0x5e8] sm:$0xff]
    %v552 = vld [vmem:[#allocation7 + $0x5f0] sm:$0xff]
    %v553 = vld [vmem:[#allocation7 + $0x5f8] sm:$0xff]
    %v554 = vld [vmem:[#allocation7 + $0x600] sm:$0xff]
    %v555 = vld [vmem:[#allocation7 + $0x608] sm:$0xff]
    %v556 = vld [vmem:[#allocation7 + $0x610] sm:$0xff]
    %v557 = vld [vmem:[#allocation7 + $0x618] sm:$0xff]
    %v558 = vld [vmem:[#allocation7 + $0x620] sm:$0xff]
    %v559 = vld [vmem:[#allocation7 + $0x628] sm:$0xff]
    %v560 = vld [vmem:[#allocation7 + $0x630] sm:$0xff]
    %v561 = vld [vmem:[#allocation7 + $0x638] sm:$0xff]
    %v562 = vld [vmem:[#allocation7 + $0x640] sm:$0xff]
    %v563 = vld [vmem:[#allocation7 + $0x648] sm:$0xff]
    %v564 = vld [vmem:[#allocation7 + $0x650] sm:$0xff]
    %v565 = vld [vmem:[#allocation7 + $0x658] sm:$0xff]
    %v566 = vld [vmem:[#allocation7 + $0x660] sm:$0xff]
    %v567 = vld [vmem:[#allocation7 + $0x668] sm:$0xff]
    %v568 = vld [vmem:[#allocation7 + $0x670] sm:$0xff]
    %v569 = vld [vmem:[#allocation7 + $0x678] sm:$0xff]
    %v570 = vld [vmem:[#allocation7 + $0x680] sm:$0xff]
    %v571 = vld [vmem:[#allocation7 + $0x688] sm:$0xff]
    %v572 = vld [vmem:[#allocation7 + $0x690] sm:$0xff]
    %v573 = vld [vmem:[#allocation7 + $0x698] sm:$0xff]
    %v574 = vld [vmem:[#allocation7 + $0x6a0] sm:$0xff]
    %v575 = vld [vmem:[#allocation7 + $0x6a8] sm:$0xff]
    %v576 = vld [vmem:[#allocation7 + $0x6b0] sm:$0xff]
    %v577 = vld [vmem:[#allocation7 + $0x6b8] sm:$0xff]
    %v578 = vld [vmem:[#allocation7 + $0x6c0] sm:$0xff]
    %v579 = vld [vmem:[#allocation7 + $0x6c8] sm:$0xff]
    %v580 = vld [vmem:[#allocation7 + $0x6d0] sm:$0xff]
    %v581 = vld [vmem:[#allocation7 + $0x6d8] sm:$0xff]
    %v582 = vld [vmem:[#allocation7 + $0x6e0] sm:$0xff]
    %v583 = vld [vmem:[#allocation7 + $0x6e8] sm:$0xff]
    %v584 = vld [vmem:[#allocation7 + $0x6f0] sm:$0xff]
    %v585 = vld [vmem:[#allocation7 + $0x6f8] sm:$0xff]
    %v586 = vld [vmem:[#allocation7 + $0x700] sm:$0xff]
    %v587 = vld [vmem:[#allocation7 + $0x708] sm:$0xff]
    %v588 = vld [vmem:[#allocation7 + $0x710] sm:$0xff]
    %v589 = vld [vmem:[#allocation7 + $0x718] sm:$0xff]
    %v590 = vld [vmem:[#allocation7 + $0x720] sm:$0xff]
    %v591 = vld [vmem:[#allocation7 + $0x728] sm:$0xff]
    %v592 = vld [vmem:[#allocation7 + $0x730] sm:$0xff]
    %v593 = vld [vmem:[#allocation7 + $0x738] sm:$0xff]
    %v594 = vld [vmem:[#allocation7 + $0x740] sm:$0xff]
    %v595 = vld [vmem:[#allocation7 + $0x748] sm:$0xff]
    %v596 = vld [vmem:[#allocation7 + $0x750] sm:$0xff]
    %v597 = vld [vmem:[#allocation7 + $0x758] sm:$0xff]
    %v598 = vld [vmem:[#allocation7 + $0x760] sm:$0xff]
    %v599 = vld [vmem:[#allocation7 + $0x768] sm:$0xff]
    %v600 = vld [vmem:[#allocation7 + $0x770] sm:$0xff]
    %v601 = vld [vmem:[#allocation7 + $0x778] sm:$0xff]
    %v602 = vld [vmem:[#allocation7 + $0x780] sm:$0xff]
    %v603 = vld [vmem:[#allocation7 + $0x788] sm:$0xff]
    %v604 = vld [vmem:[#allocation7 + $0x790] sm:$0xff]
    %v605 = vld [vmem:[#allocation7 + $0x798] sm:$0xff]
    %v606 = vld [vmem:[#allocation7 + $0x7a0] sm:$0xff]
    %v607 = vld [vmem:[#allocation7 + $0x7a8] sm:$0xff]
    %v608 = vld [vmem:[#allocation7 + $0x7b0] sm:$0xff]
    %v609 = vld [vmem:[#allocation7 + $0x7b8] sm:$0xff]
    %v610 = vld [vmem:[#allocation7 + $0x7c0] sm:$0xff]
    %v611 = vld [vmem:[#allocation7 + $0x7c8] sm:$0xff]
    %v612 = vld [vmem:[#allocation7 + $0x7d0] sm:$0xff]
    %v613 = vld [vmem:[#allocation7 + $0x7d8] sm:$0xff]
    %v614 = vld [vmem:[#allocation7 + $0x7e0] sm:$0xff]
    %v615 = vld [vmem:[#allocation7 + $0x7e8] sm:$0xff]
    %v616 = vld [vmem:[#allocation7 + $0x7f0] sm:$0xff]
    %v617 = vld [vmem:[#allocation7 + $0x7f8] sm:$0xff]
    %v618 = vld [vmem:[#allocation7 + $0x800] sm:$0xff]
    %v619 = vld [vmem:[#allocation7 + $0x808] sm:$0xff]
    %v620 = vld [vmem:[#allocation7 + $0x810] sm:$0xff]
    %v621 = vld [vmem:[#allocation7 + $0x818] sm:$0xff]
    %v622 = vld [vmem:[#allocation7 + $0x820] sm:$0xff]
    %v623 = vld [vmem:[#allocation7 + $0x828] sm:$0xff]
    %v624 = vld [vmem:[#allocation7 + $0x830] sm:$0xff]
    %v625 = vld [vmem:[#allocation7 + $0x838] sm:$0xff]
    %v626 = vld [vmem:[#allocation7 + $0x840] sm:$0xff]
    %v627 = vld [vmem:[#allocation7 + $0x848] sm:$0xff]
    %v628 = vld [vmem:[#allocation7 + $0x850] sm:$0xff]
    %v629 = vld [vmem:[#allocation7 + $0x858] sm:$0xff]
    %v630 = vld [vmem:[#allocation7 + $0x860] sm:$0xff]
    %v631 = vld [vmem:[#allocation7 + $0x868] sm:$0xff]
    %v632 = vld [vmem:[#allocation7 + $0x870] sm:$0xff]
    %v633 = vld [vmem:[#allocation7 + $0x878] sm:$0xff]
    %v634 = vld [vmem:[#allocation7 + $0x880] sm:$0xff]
    %v635 = vld [vmem:[#allocation7 + $0x888] sm:$0xff]
    %v636 = vld [vmem:[#allocation7 + $0x890] sm:$0xff]
    %v637 = vld [vmem:[#allocation7 + $0x898] sm:$0xff]
    %v638 = vld [vmem:[#allocation7 + $0x8a0] sm:$0xff]
    %v639 = vld [vmem:[#allocation7 + $0x8a8] sm:$0xff]
    %v640 = vld [vmem:[#allocation7 + $0x8b0] sm:$0xff]
    %v641 = vld [vmem:[#allocation7 + $0x8b8] sm:$0xff]
    %v642 = vld [vmem:[#allocation7 + $0x8c0] sm:$0xff]
    %v643 = vld [vmem:[#allocation7 + $0x8c8] sm:$0xff]
    %v644 = vld [vmem:[#allocation7 + $0x8d0] sm:$0xff]
    %v645 = vld [vmem:[#allocation7 + $0x8d8] sm:$0xff]
    %v646 = vld [vmem:[#allocation7 + $0x8e0] sm:$0xff]
    %v647 = vld [vmem:[#allocation7 + $0x8e8] sm:$0xff]
    %v648 = vld [vmem:[#allocation7 + $0x8f0] sm:$0xff]
    %v649 = vld [vmem:[#allocation7 + $0x8f8] sm:$0xff]
    %v938 = vunpack.c.l.b16 %v362
    %v939 = vunpack.c.h.b16 %v362
    %v940 = vunpack.c.l.b16 %v363
    %v941 = vunpack.c.h.b16 %v363
    %v942 = vunpack.c.l.b16 %v364
    %v943 = vunpack.c.h.b16 %v364
    %v944 = vunpack.c.l.b16 %v365
    %v945 = vunpack.c.h.b16 %v365
    %v946 = vunpack.c.l.b16 %v366
    %v947 = vunpack.c.h.b16 %v366
    %v948 = vunpack.c.l.b16 %v367
    %v949 = vunpack.c.h.b16 %v367
    %v950 = vunpack.c.l.b16 %v368
    %v951 = vunpack.c.h.b16 %v368
    %v952 = vunpack.c.l.b16 %v369
    %v953 = vunpack.c.h.b16 %v369
    %v954 = vunpack.c.l.b16 %v370
    %v955 = vunpack.c.h.b16 %v370
    %v956 = vunpack.c.l.b16 %v371
    %v957 = vunpack.c.h.b16 %v371
    %v958 = vunpack.c.l.b16 %v372
    %v959 = vunpack.c.h.b16 %v372
    %v960 = vunpack.c.l.b16 %v373
    %v961 = vunpack.c.h.b16 %v373
    %v962 = vunpack.c.l.b16 %v374
    %v963 = vunpack.c.h.b16 %v374
    %v964 = vunpack.c.l.b16 %v375
    %v965 = vunpack.c.h.b16 %v375
    %v966 = vunpack.c.l.b16 %v376
    %v967 = vunpack.c.h.b16 %v376
    %v968 = vunpack.c.l.b16 %v377
    %v969 = vunpack.c.h.b16 %v377
    %v970 = vunpack.c.l.b16 %v378
    %v971 = vunpack.c.h.b16 %v378
    %v972 = vunpack.c.l.b16 %v379
    %v973 = vunpack.c.h.b16 %v379
    %v974 = vunpack.c.l.b16 %v380
    %v975 = vunpack.c.h.b16 %v380
    %v976 = vunpack.c.l.b16 %v381
    %v977 = vunpack.c.h.b16 %v381
    %v978 = vunpack.c.l.b16 %v382
    %v979 = vunpack.c.h.b16 %v382
    %v980 = vunpack.c.l.b16 %v383
    %v981 = vunpack.c.h.b16 %v383
    %v982 = vunpack.c.l.b16 %v384
    %v983 = vunpack.c.h.b16 %v384
    %v984 = vunpack.c.l.b16 %v385
    %v985 = vunpack.c.h.b16 %v385
    %v986 = vunpack.c.l.b16 %v386
    %v987 = vunpack.c.h.b16 %v386
    %v988 = vunpack.c.l.b16 %v387
    %v989 = vunpack.c.h.b16 %v387
    %v990 = vunpack.c.l.b16 %v388
    %v991 = vunpack.c.h.b16 %v388
    %v992 = vunpack.c.l.b16 %v389
    %v993 = vunpack.c.h.b16 %v389
    %v994 = vunpack.c.l.b16 %v390
    %v995 = vunpack.c.h.b16 %v390
    %v996 = vunpack.c.l.b16 %v391
    %v997 = vunpack.c.h.b16 %v391
    %v998 = vunpack.c.l.b16 %v392
    %v999 = vunpack.c.h.b16 %v392
    %v1000 = vunpack.c.l.b16 %v393
    %v1001 = vunpack.c.h.b16 %v393
    %v1002 = vunpack.c.l.b16 %v394
    %v1003 = vunpack.c.h.b16 %v394
    %v1004 = vunpack.c.l.b16 %v395
    %v1005 = vunpack.c.h.b16 %v395
    %v1006 = vunpack.c.l.b16 %v396
    %v1007 = vunpack.c.h.b16 %v396
    %v1008 = vunpack.c.l.b16 %v397
    %v1009 = vunpack.c.h.b16 %v397
    %v1010 = vunpack.c.l.b16 %v398
    %v1011 = vunpack.c.h.b16 %v398
    %v1012 = vunpack.c.l.b16 %v399
    %v1013 = vunpack.c.h.b16 %v399
    %v1014 = vunpack.c.l.b16 %v400
    %v1015 = vunpack.c.h.b16 %v400
    %v1016 = vunpack.c.l.b16 %v401
    %v1017 = vunpack.c.h.b16 %v401
    %v1018 = vunpack.c.l.b16 %v402
    %v1019 = vunpack.c.h.b16 %v402
    %v1020 = vunpack.c.l.b16 %v403
    %v1021 = vunpack.c.h.b16 %v403
    %v1022 = vunpack.c.l.b16 %v404
    %v1023 = vunpack.c.h.b16 %v404
    %v1024 = vunpack.c.l.b16 %v405
    %v1025 = vunpack.c.h.b16 %v405
    %v1026 = vunpack.c.l.b16 %v406
    %v1027 = vunpack.c.h.b16 %v406
    %v1028 = vunpack.c.l.b16 %v407
    %v1029 = vunpack.c.h.b16 %v407
    %v1030 = vunpack.c.l.b16 %v408
    %v1031 = vunpack.c.h.b16 %v408
    %v1032 = vunpack.c.l.b16 %v409
    %v1033 = vunpack.c.h.b16 %v409
    %v1034 = vunpack.c.l.b16 %v410
    %v1035 = vunpack.c.h.b16 %v410
    %v1036 = vunpack.c.l.b16 %v411
    %v1037 = vunpack.c.h.b16 %v411
    %v1038 = vunpack.c.l.b16 %v412
    %v1039 = vunpack.c.h.b16 %v412
    %v1040 = vunpack.c.l.b16 %v413
    %v1041 = vunpack.c.h.b16 %v413
    %v1042 = vunpack.c.l.b16 %v414
    %v1043 = vunpack.c.h.b16 %v414
    %v1044 = vunpack.c.l.b16 %v415
    %v1045 = vunpack.c.h.b16 %v415
    %v1046 = vunpack.c.l.b16 %v416
    %v1047 = vunpack.c.h.b16 %v416
    %v1048 = vunpack.c.l.b16 %v417
    %v1049 = vunpack.c.h.b16 %v417
    %v1050 = vunpack.c.l.b16 %v418
    %v1051 = vunpack.c.h.b16 %v418
    %v1052 = vunpack.c.l.b16 %v419
    %v1053 = vunpack.c.h.b16 %v419
    %v1054 = vunpack.c.l.b16 %v420
    %v1055 = vunpack.c.h.b16 %v420
    %v1056 = vunpack.c.l.b16 %v421
    %v1057 = vunpack.c.h.b16 %v421
    %v1058 = vunpack.c.l.b16 %v422
    %v1059 = vunpack.c.h.b16 %v422
    %v1060 = vunpack.c.l.b16 %v423
    %v1061 = vunpack.c.h.b16 %v423
    %v1062 = vunpack.c.l.b16 %v424
    %v1063 = vunpack.c.h.b16 %v424
    %v1064 = vunpack.c.l.b16 %v425
    %v1065 = vunpack.c.h.b16 %v425
    %v1066 = vunpack.c.l.b16 %v426
    %v1067 = vunpack.c.h.b16 %v426
    %v1068 = vunpack.c.l.b16 %v427
    %v1069 = vunpack.c.h.b16 %v427
    %v1070 = vunpack.c.l.b16 %v428
    %v1071 = vunpack.c.h.b16 %v428
    %v1072 = vunpack.c.l.b16 %v429
    %v1073 = vunpack.c.h.b16 %v429
    %v1074 = vunpack.c.l.b16 %v430
    %v1075 = vunpack.c.h.b16 %v430
    %v1076 = vunpack.c.l.b16 %v431
    %v1077 = vunpack.c.h.b16 %v431
    %v1078 = vunpack.c.l.b16 %v432
    %v1079 = vunpack.c.h.b16 %v432
    %v1080 = vunpack.c.l.b16 %v433
    %v1081 = vunpack.c.h.b16 %v433
    %v1082 = vunpack.c.l.b16 %v434
    %v1083 = vunpack.c.h.b16 %v434
    %v1084 = vunpack.c.l.b16 %v435
    %v1085 = vunpack.c.h.b16 %v435
    %v1086 = vunpack.c.l.b16 %v436
    %v1087 = vunpack.c.h.b16 %v436
    %v1088 = vunpack.c.l.b16 %v437
    %v1089 = vunpack.c.h.b16 %v437
    %v1090 = vunpack.c.l.b16 %v438
    %v1091 = vunpack.c.h.b16 %v438
    %v1092 = vunpack.c.l.b16 %v439
    %v1093 = vunpack.c.h.b16 %v439
    %v1094 = vunpack.c.l.b16 %v440
    %v1095 = vunpack.c.h.b16 %v440
    %v1096 = vunpack.c.l.b16 %v441
    %v1097 = vunpack.c.h.b16 %v441
    %v1098 = vunpack.c.l.b16 %v442
    %v1099 = vunpack.c.h.b16 %v442
    %v1100 = vunpack.c.l.b16 %v443
    %v1101 = vunpack.c.h.b16 %v443
    %v1102 = vunpack.c.l.b16 %v444
    %v1103 = vunpack.c.h.b16 %v444
    %v1104 = vunpack.c.l.b16 %v445
    %v1105 = vunpack.c.h.b16 %v445
    %v1106 = vunpack.c.l.b16 %v446
    %v1107 = vunpack.c.h.b16 %v446
    %v1108 = vunpack.c.l.b16 %v447
    %v1109 = vunpack.c.h.b16 %v447
    %v1110 = vunpack.c.l.b16 %v448
    %v1111 = vunpack.c.h.b16 %v448
    %v1112 = vunpack.c.l.b16 %v449
    %v1113 = vunpack.c.h.b16 %v449
    %v1114 = vunpack.c.l.b16 %v450
    %v1115 = vunpack.c.h.b16 %v450
    %v1116 = vunpack.c.l.b16 %v451
    %v1117 = vunpack.c.h.b16 %v451
    %v1118 = vunpack.c.l.b16 %v452
    %v1119 = vunpack.c.h.b16 %v452
    %v1120 = vunpack.c.l.b16 %v453
    %v1121 = vunpack.c.h.b16 %v453
    %v1122 = vunpack.c.l.b16 %v454
    %v1123 = vunpack.c.h.b16 %v454
    %v1124 = vunpack.c.l.b16 %v455
    %v1125 = vunpack.c.h.b16 %v455
    %v1126 = vunpack.c.l.b16 %v456
    %v1127 = vunpack.c.h.b16 %v456
    %v1128 = vunpack.c.l.b16 %v457
    %v1129 = vunpack.c.h.b16 %v457
    %v1130 = vunpack.c.l.b16 %v458
    %v1131 = vunpack.c.h.b16 %v458
    %v1132 = vunpack.c.l.b16 %v459
    %v1133 = vunpack.c.h.b16 %v459
    %v1134 = vunpack.c.l.b16 %v460
    %v1135 = vunpack.c.h.b16 %v460
    %v1136 = vunpack.c.l.b16 %v461
    %v1137 = vunpack.c.h.b16 %v461
    %v1138 = vunpack.c.l.b16 %v462
    %v1139 = vunpack.c.h.b16 %v462
    %v1140 = vunpack.c.l.b16 %v463
    %v1141 = vunpack.c.h.b16 %v463
    %v1142 = vunpack.c.l.b16 %v464
    %v1143 = vunpack.c.h.b16 %v464
    %v1144 = vunpack.c.l.b16 %v465
    %v1145 = vunpack.c.h.b16 %v465
    %v1146 = vunpack.c.l.b16 %v466
    %v1147 = vunpack.c.h.b16 %v466
    %v1148 = vunpack.c.l.b16 %v467
    %v1149 = vunpack.c.h.b16 %v467
    %v1150 = vunpack.c.l.b16 %v468
    %v1151 = vunpack.c.h.b16 %v468
    %v1152 = vunpack.c.l.b16 %v469
    %v1153 = vunpack.c.h.b16 %v469
    %v1154 = vunpack.c.l.b16 %v470
    %v1155 = vunpack.c.h.b16 %v470
    %v1156 = vunpack.c.l.b16 %v471
    %v1157 = vunpack.c.h.b16 %v471
    %v1158 = vunpack.c.l.b16 %v472
    %v1159 = vunpack.c.h.b16 %v472
    %v1160 = vunpack.c.l.b16 %v473
    %v1161 = vunpack.c.h.b16 %v473
    %v1162 = vunpack.c.l.b16 %v474
    %v1163 = vunpack.c.h.b16 %v474
    %v1164 = vunpack.c.l.b16 %v475
    %v1165 = vunpack.c.h.b16 %v475
    %v1166 = vunpack.c.l.b16 %v476
    %v1167 = vunpack.c.h.b16 %v476
    %v1168 = vunpack.c.l.b16 %v477
    %v1169 = vunpack.c.h.b16 %v477
    %v1170 = vunpack.c.l.b16 %v478
    %v1171 = vunpack.c.h.b16 %v478
    %v1172 = vunpack.c.l.b16 %v479
    %v1173 = vunpack.c.h.b16 %v479
    %v1174 = vunpack.c.l.b16 %v480
    %v1175 = vunpack.c.h.b16 %v480
    %v1176 = vunpack.c.l.b16 %v481
    %v1177 = vunpack.c.h.b16 %v481
    %v1178 = vunpack.c.l.b16 %v482
    %v1179 = vunpack.c.h.b16 %v482
    %v1180 = vunpack.c.l.b16 %v483
    %v1181 = vunpack.c.h.b16 %v483
    %v1182 = vunpack.c.l.b16 %v484
    %v1183 = vunpack.c.h.b16 %v484
    %v1184 = vunpack.c.l.b16 %v485
    %v1185 = vunpack.c.h.b16 %v485
    %v1186 = vunpack.c.l.b16 %v486
    %v1187 = vunpack.c.h.b16 %v486
    %v1188 = vunpack.c.l.b16 %v487
    %v1189 = vunpack.c.h.b16 %v487
    %v1190 = vunpack.c.l.b16 %v488
    %v1191 = vunpack.c.h.b16 %v488
    %v1192 = vunpack.c.l.b16 %v489
    %v1193 = vunpack.c.h.b16 %v489
    %v1194 = vunpack.c.l.b16 %v490
    %v1195 = vunpack.c.h.b16 %v490
    %v1196 = vunpack.c.l.b16 %v491
    %v1197 = vunpack.c.h.b16 %v491
    %v1198 = vunpack.c.l.b16 %v492
    %v1199 = vunpack.c.h.b16 %v492
    %v1200 = vunpack.c.l.b16 %v493
    %v1201 = vunpack.c.h.b16 %v493
    %v1202 = vunpack.c.l.b16 %v494
    %v1203 = vunpack.c.h.b16 %v494
    %v1204 = vunpack.c.l.b16 %v495
    %v1205 = vunpack.c.h.b16 %v495
    %v1206 = vunpack.c.l.b16 %v496
    %v1207 = vunpack.c.h.b16 %v496
    %v1208 = vunpack.c.l.b16 %v497
    %v1209 = vunpack.c.h.b16 %v497
    %v1210 = vunpack.c.l.b16 %v498
    %v1211 = vunpack.c.h.b16 %v498
    %v1212 = vunpack.c.l.b16 %v499
    %v1213 = vunpack.c.h.b16 %v499
    %v1214 = vunpack.c.l.b16 %v500
    %v1215 = vunpack.c.h.b16 %v500
    %v1216 = vunpack.c.l.b16 %v501
    %v1217 = vunpack.c.h.b16 %v501
    %v1218 = vunpack.c.l.b16 %v502
    %v1219 = vunpack.c.h.b16 %v502
    %v1220 = vunpack.c.l.b16 %v503
    %v1221 = vunpack.c.h.b16 %v503
    %v1222 = vunpack.c.l.b16 %v504
    %v1223 = vunpack.c.h.b16 %v504
    %v1224 = vunpack.c.l.b16 %v505
    %v1225 = vunpack.c.h.b16 %v505
    %v1226 = vunpack.c.l.b16 %v506
    %v1227 = vunpack.c.h.b16 %v506
    %v1228 = vunpack.c.l.b16 %v507
    %v1229 = vunpack.c.h.b16 %v507
    %v1230 = vunpack.c.l.b16 %v508
    %v1231 = vunpack.c.h.b16 %v508
    %v1232 = vunpack.c.l.b16 %v509
    %v1233 = vunpack.c.h.b16 %v509
    %v1234 = vunpack.c.l.b16 %v510
    %v1235 = vunpack.c.h.b16 %v510
    %v1236 = vunpack.c.l.b16 %v511
    %v1237 = vunpack.c.h.b16 %v511
    %v1238 = vunpack.c.l.b16 %v512
    %v1239 = vunpack.c.h.b16 %v512
    %v1240 = vunpack.c.l.b16 %v513
    %v1241 = vunpack.c.h.b16 %v513
    %v1242 = vunpack.c.l.b16 %v514
    %v1243 = vunpack.c.h.b16 %v514
    %v1244 = vunpack.c.l.b16 %v515
    %v1245 = vunpack.c.h.b16 %v515
    %v1246 = vunpack.c.l.b16 %v516
    %v1247 = vunpack.c.h.b16 %v516
    %v1248 = vunpack.c.l.b16 %v517
    %v1249 = vunpack.c.h.b16 %v517
    %v1250 = vunpack.c.l.b16 %v518
    %v1251 = vunpack.c.h.b16 %v518
    %v1252 = vunpack.c.l.b16 %v519
    %v1253 = vunpack.c.h.b16 %v519
    %v1254 = vunpack.c.l.b16 %v520
    %v1255 = vunpack.c.h.b16 %v520
    %v1256 = vunpack.c.l.b16 %v521
    %v1257 = vunpack.c.h.b16 %v521
    %v1258 = vunpack.c.l.b16 %v522
    %v1259 = vunpack.c.h.b16 %v522
    %v1260 = vunpack.c.l.b16 %v523
    %v1261 = vunpack.c.h.b16 %v523
    %v1262 = vunpack.c.l.b16 %v524
    %v1263 = vunpack.c.h.b16 %v524
    %v1264 = vunpack.c.l.b16 %v525
    %v1265 = vunpack.c.h.b16 %v525
    %v1266 = vunpack.c.l.b16 %v526
    %v1267 = vunpack.c.h.b16 %v526
    %v1268 = vunpack.c.l.b16 %v527
    %v1269 = vunpack.c.h.b16 %v527
    %v1270 = vunpack.c.l.b16 %v528
    %v1271 = vunpack.c.h.b16 %v528
    %v1272 = vunpack.c.l.b16 %v529
    %v1273 = vunpack.c.h.b16 %v529
    %v1274 = vunpack.c.l.b16 %v530
    %v1275 = vunpack.c.h.b16 %v530
    %v1276 = vunpack.c.l.b16 %v531
    %v1277 = vunpack.c.h.b16 %v531
    %v1278 = vunpack.c.l.b16 %v532
    %v1279 = vunpack.c.h.b16 %v532
    %v1280 = vunpack.c.l.b16 %v533
    %v1281 = vunpack.c.h.b16 %v533
    %v1282 = vunpack.c.l.b16 %v534
    %v1283 = vunpack.c.h.b16 %v534
    %v1284 = vunpack.c.l.b16 %v535
    %v1285 = vunpack.c.h.b16 %v535
    %v1286 = vunpack.c.l.b16 %v536
    %v1287 = vunpack.c.h.b16 %v536
    %v1288 = vunpack.c.l.b16 %v537
    %v1289 = vunpack.c.h.b16 %v537
    %v1290 = vunpack.c.l.b16 %v538
    %v1291 = vunpack.c.h.b16 %v538
    %v1292 = vunpack.c.l.b16 %v539
    %v1293 = vunpack.c.h.b16 %v539
    %v1294 = vunpack.c.l.b16 %v540
    %v1295 = vunpack.c.h.b16 %v540
    %v1296 = vunpack.c.l.b16 %v541
    %v1297 = vunpack.c.h.b16 %v541
    %v1298 = vunpack.c.l.b16 %v542
    %v1299 = vunpack.c.h.b16 %v542
    %v1300 = vunpack.c.l.b16 %v543
    %v1301 = vunpack.c.h.b16 %v543
    %v1302 = vunpack.c.l.b16 %v544
    %v1303 = vunpack.c.h.b16 %v544
    %v1304 = vunpack.c.l.b16 %v545
    %v1305 = vunpack.c.h.b16 %v545
    %v1306 = vunpack.c.l.b16 %v546
    %v1307 = vunpack.c.h.b16 %v546
    %v1308 = vunpack.c.l.b16 %v547
    %v1309 = vunpack.c.h.b16 %v547
    %v1310 = vunpack.c.l.b16 %v548
    %v1311 = vunpack.c.h.b16 %v548
    %v1312 = vunpack.c.l.b16 %v549
    %v1313 = vunpack.c.h.b16 %v549
    %v1314 = vunpack.c.l.b16 %v550
    %v1315 = vunpack.c.h.b16 %v550
    %v1316 = vunpack.c.l.b16 %v551
    %v1317 = vunpack.c.h.b16 %v551
    %v1318 = vunpack.c.l.b16 %v552
    %v1319 = vunpack.c.h.b16 %v552
    %v1320 = vunpack.c.l.b16 %v553
    %v1321 = vunpack.c.h.b16 %v553
    %v1322 = vunpack.c.l.b16 %v554
    %v1323 = vunpack.c.h.b16 %v554
    %v1324 = vunpack.c.l.b16 %v555
    %v1325 = vunpack.c.h.b16 %v555
    %v1326 = vunpack.c.l.b16 %v556
    %v1327 = vunpack.c.h.b16 %v556
    %v1328 = vunpack.c.l.b16 %v557
    %v1329 = vunpack.c.h.b16 %v557
    %v1330 = vunpack.c.l.b16 %v558
    %v1331 = vunpack.c.h.b16 %v558
    %v1332 = vunpack.c.l.b16 %v559
    %v1333 = vunpack.c.h.b16 %v559
    %v1334 = vunpack.c.l.b16 %v560
    %v1335 = vunpack.c.h.b16 %v560
    %v1336 = vunpack.c.l.b16 %v561
    %v1337 = vunpack.c.h.b16 %v561
    %v1338 = vunpack.c.l.b16 %v562
    %v1339 = vunpack.c.h.b16 %v562
    %v1340 = vunpack.c.l.b16 %v563
    %v1341 = vunpack.c.h.b16 %v563
    %v1342 = vunpack.c.l.b16 %v564
    %v1343 = vunpack.c.h.b16 %v564
    %v1344 = vunpack.c.l.b16 %v565
    %v1345 = vunpack.c.h.b16 %v565
    %v1346 = vunpack.c.l.b16 %v566
    %v1347 = vunpack.c.h.b16 %v566
    %v1348 = vunpack.c.l.b16 %v567
    %v1349 = vunpack.c.h.b16 %v567
    %v1350 = vunpack.c.l.b16 %v568
    %v1351 = vunpack.c.h.b16 %v568
    %v1352 = vunpack.c.l.b16 %v569
    %v1353 = vunpack.c.h.b16 %v569
    %v1354 = vunpack.c.l.b16 %v570
    %v1355 = vunpack.c.h.b16 %v570
    %v1356 = vunpack.c.l.b16 %v571
    %v1357 = vunpack.c.h.b16 %v571
    %v1358 = vunpack.c.l.b16 %v572
    %v1359 = vunpack.c.h.b16 %v572
    %v1360 = vunpack.c.l.b16 %v573
    %v1361 = vunpack.c.h.b16 %v573
    %v1362 = vunpack.c.l.b16 %v574
    %v1363 = vunpack.c.h.b16 %v574
    %v1364 = vunpack.c.l.b16 %v575
    %v1365 = vunpack.c.h.b16 %v575
    %v1366 = vunpack.c.l.b16 %v576
    %v1367 = vunpack.c.h.b16 %v576
    %v1368 = vunpack.c.l.b16 %v577
    %v1369 = vunpack.c.h.b16 %v577
    %v1370 = vunpack.c.l.b16 %v578
    %v1371 = vunpack.c.h.b16 %v578
    %v1372 = vunpack.c.l.b16 %v579
    %v1373 = vunpack.c.h.b16 %v579
    %v1374 = vunpack.c.l.b16 %v580
    %v1375 = vunpack.c.h.b16 %v580
    %v1376 = vunpack.c.l.b16 %v581
    %v1377 = vunpack.c.h.b16 %v581
    %v1378 = vunpack.c.l.b16 %v582
    %v1379 = vunpack.c.h.b16 %v582
    %v1380 = vunpack.c.l.b16 %v583
    %v1381 = vunpack.c.h.b16 %v583
    %v1382 = vunpack.c.l.b16 %v584
    %v1383 = vunpack.c.h.b16 %v584
    %v1384 = vunpack.c.l.b16 %v585
    %v1385 = vunpack.c.h.b16 %v585
    %v1386 = vunpack.c.l.b16 %v586
    %v1387 = vunpack.c.h.b16 %v586
    %v1388 = vunpack.c.l.b16 %v587
    %v1389 = vunpack.c.h.b16 %v587
    %v1390 = vunpack.c.l.b16 %v588
    %v1391 = vunpack.c.h.b16 %v588
    %v1392 = vunpack.c.l.b16 %v589
    %v1393 = vunpack.c.h.b16 %v589
    %v1394 = vunpack.c.l.b16 %v590
    %v1395 = vunpack.c.h.b16 %v590
    %v1396 = vunpack.c.l.b16 %v591
    %v1397 = vunpack.c.h.b16 %v591
    %v1398 = vunpack.c.l.b16 %v592
    %v1399 = vunpack.c.h.b16 %v592
    %v1400 = vunpack.c.l.b16 %v593
    %v1401 = vunpack.c.h.b16 %v593
    %v1402 = vunpack.c.l.b16 %v594
    %v1403 = vunpack.c.h.b16 %v594
    %v1404 = vunpack.c.l.b16 %v595
    %v1405 = vunpack.c.h.b16 %v595
    %v1406 = vunpack.c.l.b16 %v596
    %v1407 = vunpack.c.h.b16 %v596
    %v1408 = vunpack.c.l.b16 %v597
    %v1409 = vunpack.c.h.b16 %v597
    %v1410 = vunpack.c.l.b16 %v598
    %v1411 = vunpack.c.h.b16 %v598
    %v1412 = vunpack.c.l.b16 %v599
    %v1413 = vunpack.c.h.b16 %v599
    %v1414 = vunpack.c.l.b16 %v600
    %v1415 = vunpack.c.h.b16 %v600
    %v1416 = vunpack.c.l.b16 %v601
    %v1417 = vunpack.c.h.b16 %v601
    %v1418 = vunpack.c.l.b16 %v602
    %v1419 = vunpack.c.h.b16 %v602
    %v1420 = vunpack.c.l.b16 %v603
    %v1421 = vunpack.c.h.b16 %v603
    %v1422 = vunpack.c.l.b16 %v604
    %v1423 = vunpack.c.h.b16 %v604
    %v1424 = vunpack.c.l.b16 %v605
    %v1425 = vunpack.c.h.b16 %v605
    %v1426 = vunpack.c.l.b16 %v606
    %v1427 = vunpack.c.h.b16 %v606
    %v1428 = vunpack.c.l.b16 %v607
    %v1429 = vunpack.c.h.b16 %v607
    %v1430 = vunpack.c.l.b16 %v608
    %v1431 = vunpack.c.h.b16 %v608
    %v1432 = vunpack.c.l.b16 %v609
    %v1433 = vunpack.c.h.b16 %v609
    %v1434 = vunpack.c.l.b16 %v610
    %v1435 = vunpack.c.h.b16 %v610
    %v1436 = vunpack.c.l.b16 %v611
    %v1437 = vunpack.c.h.b16 %v611
    %v1438 = vunpack.c.l.b16 %v612
    %v1439 = vunpack.c.h.b16 %v612
    %v1440 = vunpack.c.l.b16 %v613
    %v1441 = vunpack.c.h.b16 %v613
    %v1442 = vunpack.c.l.b16 %v614
    %v1443 = vunpack.c.h.b16 %v614
    %v1444 = vunpack.c.l.b16 %v615
    %v1445 = vunpack.c.h.b16 %v615
    %v1446 = vunpack.c.l.b16 %v616
    %v1447 = vunpack.c.h.b16 %v616
    %v1448 = vunpack.c.l.b16 %v617
    %v1449 = vunpack.c.h.b16 %v617
    %v1450 = vunpack.c.l.b16 %v618
    %v1451 = vunpack.c.h.b16 %v618
    %v1452 = vunpack.c.l.b16 %v619
    %v1453 = vunpack.c.h.b16 %v619
    %v1454 = vunpack.c.l.b16 %v620
    %v1455 = vunpack.c.h.b16 %v620
    %v1456 = vunpack.c.l.b16 %v621
    %v1457 = vunpack.c.h.b16 %v621
    %v1458 = vunpack.c.l.b16 %v622
    %v1459 = vunpack.c.h.b16 %v622
    %v1460 = vunpack.c.l.b16 %v623
    %v1461 = vunpack.c.h.b16 %v623
    %v1462 = vunpack.c.l.b16 %v624
    %v1463 = vunpack.c.h.b16 %v624
    %v1464 = vunpack.c.l.b16 %v625
    %v1465 = vunpack.c.h.b16 %v625
    %v1466 = vunpack.c.l.b16 %v626
    %v1467 = vunpack.c.h.b16 %v626
    %v1468 = vunpack.c.l.b16 %v627
    %v1469 = vunpack.c.h.b16 %v627
    %v1470 = vunpack.c.l.b16 %v628
    %v1471 = vunpack.c.h.b16 %v628
    %v1472 = vunpack.c.l.b16 %v629
    %v1473 = vunpack.c.h.b16 %v629
    %v1474 = vunpack.c.l.b16 %v630
    %v1475 = vunpack.c.h.b16 %v630
    %v1476 = vunpack.c.l.b16 %v631
    %v1477 = vunpack.c.h.b16 %v631
    %v1478 = vunpack.c.l.b16 %v632
    %v1479 = vunpack.c.h.b16 %v632
    %v1480 = vunpack.c.l.b16 %v633
    %v1481 = vunpack.c.h.b16 %v633
    %v1482 = vunpack.c.l.b16 %v634
    %v1483 = vunpack.c.h.b16 %v634
    %v1484 = vunpack.c.l.b16 %v635
    %v1485 = vunpack.c.h.b16 %v635
    %v1486 = vunpack.c.l.b16 %v636
    %v1487 = vunpack.c.h.b16 %v636
    %v1488 = vunpack.c.l.b16 %v637
    %v1489 = vunpack.c.h.b16 %v637
    %v1490 = vunpack.c.l.b16 %v638
    %v1491 = vunpack.c.h.b16 %v638
    %v1492 = vunpack.c.l.b16 %v639
    %v1493 = vunpack.c.h.b16 %v639
    %v1494 = vunpack.c.l.b16 %v640
    %v1495 = vunpack.c.h.b16 %v640
    %v1496 = vunpack.c.l.b16 %v641
    %v1497 = vunpack.c.h.b16 %v641
    %v1498 = vunpack.c.l.b16 %v642
    %v1499 = vunpack.c.h.b16 %v642
    %v1500 = vunpack.c.l.b16 %v643
    %v1501 = vunpack.c.h.b16 %v643
    %v1502 = vunpack.c.l.b16 %v644
    %v1503 = vunpack.c.h.b16 %v644
    %v1504 = vunpack.c.l.b16 %v645
    %v1505 = vunpack.c.h.b16 %v645
    %v1506 = vunpack.c.l.b16 %v646
    %v1507 = vunpack.c.h.b16 %v646
    %v1508 = vunpack.c.l.b16 %v647
    %v1509 = vunpack.c.h.b16 %v647
    %v1510 = vunpack.c.l.b16 %v648
    %v1511 = vunpack.c.h.b16 %v648
    %v1512 = vunpack.c.l.b16 %v649
    %v1513 = vunpack.c.h.b16 %v649
    %v1514 = vpack.c.b16 %v956, %v938
    %v1515 = vpack.c.b16 %v957, %v939
    %v1516 = vpack.c.b16 %v958, %v940
    %v1517 = vpack.c.b16 %v959, %v941
    %v1518 = vpack.c.b16 %v960, %v942
    %v1519 = vpack.c.b16 %v961, %v943
    %v1520 = vpack.c.b16 %v962, %v944
    %v1521 = vpack.c.b16 %v963, %v945
    %v1522 = vpack.c.b16 %v964, %v946
    %v1523 = vpack.c.b16 %v965, %v947
    %v1524 = vpack.c.b16 %v966, %v948
    %v1525 = vpack.c.b16 %v967, %v949
    %v1526 = vpack.c.b16 %v968, %v950
    %v1527 = vpack.c.b16 %v969, %v951
    %v1528 = vpack.c.b16 %v970, %v952
    %v1529 = vpack.c.b16 %v971, %v953
    %v1530 = vpack.c.b16 %v972, %v954
    %v1531 = vpack.c.b16 %v973, %v955
    %v1532 = vpack.c.b16 %v992, %v974
    %v1533 = vpack.c.b16 %v993, %v975
    %v1534 = vpack.c.b16 %v994, %v976
    %v1535 = vpack.c.b16 %v995, %v977
    %v1536 = vpack.c.b16 %v996, %v978
    %v1537 = vpack.c.b16 %v997, %v979
    %v1538 = vpack.c.b16 %v998, %v980
    %v1539 = vpack.c.b16 %v999, %v981
    %v1540 = vpack.c.b16 %v1000, %v982
    %v1541 = vpack.c.b16 %v1001, %v983
    %v1542 = vpack.c.b16 %v1002, %v984
    %v1543 = vpack.c.b16 %v1003, %v985
    %v1544 = vpack.c.b16 %v1004, %v986
    %v1545 = vpack.c.b16 %v1005, %v987
    %v1546 = vpack.c.b16 %v1006, %v988
    %v1547 = vpack.c.b16 %v1007, %v989
    %v1548 = vpack.c.b16 %v1008, %v990
    %v1549 = vpack.c.b16 %v1009, %v991
    %v1550 = vpack.c.b16 %v1028, %v1010
    %v1551 = vpack.c.b16 %v1029, %v1011
    %v1552 = vpack.c.b16 %v1030, %v1012
    %v1553 = vpack.c.b16 %v1031, %v1013
    %v1554 = vpack.c.b16 %v1032, %v1014
    %v1555 = vpack.c.b16 %v1033, %v1015
    %v1556 = vpack.c.b16 %v1034, %v1016
    %v1557 = vpack.c.b16 %v1035, %v1017
    %v1558 = vpack.c.b16 %v1036, %v1018
    %v1559 = vpack.c.b16 %v1037, %v1019
    %v1560 = vpack.c.b16 %v1038, %v1020
    %v1561 = vpack.c.b16 %v1039, %v1021
    %v1562 = vpack.c.b16 %v1040, %v1022
    %v1563 = vpack.c.b16 %v1041, %v1023
    %v1564 = vpack.c.b16 %v1042, %v1024
    %v1565 = vpack.c.b16 %v1043, %v1025
    %v1566 = vpack.c.b16 %v1044, %v1026
    %v1567 = vpack.c.b16 %v1045, %v1027
    %v1568 = vpack.c.b16 %v1064, %v1046
    %v1569 = vpack.c.b16 %v1065, %v1047
    %v1570 = vpack.c.b16 %v1066, %v1048
    %v1571 = vpack.c.b16 %v1067, %v1049
    %v1572 = vpack.c.b16 %v1068, %v1050
    %v1573 = vpack.c.b16 %v1069, %v1051
    %v1574 = vpack.c.b16 %v1070, %v1052
    %v1575 = vpack.c.b16 %v1071, %v1053
    %v1576 = vpack.c.b16 %v1072, %v1054
    %v1577 = vpack.c.b16 %v1073, %v1055
    %v1578 = vpack.c.b16 %v1074, %v1056
    %v1579 = vpack.c.b16 %v1075, %v1057
    %v1580 = vpack.c.b16 %v1076, %v1058
    %v1581 = vpack.c.b16 %v1077, %v1059
    %v1582 = vpack.c.b16 %v1078, %v1060
    %v1583 = vpack.c.b16 %v1079, %v1061
    %v1584 = vpack.c.b16 %v1080, %v1062
    %v1585 = vpack.c.b16 %v1081, %v1063
    %v1586 = vpack.c.b16 %v1100, %v1082
    %v1587 = vpack.c.b16 %v1101, %v1083
    %v1588 = vpack.c.b16 %v1102, %v1084
    %v1589 = vpack.c.b16 %v1103, %v1085
    %v1590 = vpack.c.b16 %v1104, %v1086
    %v1591 = vpack.c.b16 %v1105, %v1087
    %v1592 = vpack.c.b16 %v1106, %v1088
    %v1593 = vpack.c.b16 %v1107, %v1089
    %v1594 = vpack.c.b16 %v1108, %v1090
    %v1595 = vpack.c.b16 %v1109, %v1091
    %v1596 = vpack.c.b16 %v1110, %v1092
    %v1597 = vpack.c.b16 %v1111, %v1093
    %v1598 = vpack.c.b16 %v1112, %v1094
    %v1599 = vpack.c.b16 %v1113, %v1095
    %v1600 = vpack.c.b16 %v1114, %v1096
    %v1601 = vpack.c.b16 %v1115, %v1097
    %v1602 = vpack.c.b16 %v1116, %v1098
    %v1603 = vpack.c.b16 %v1117, %v1099
    %v1604 = vpack.c.b16 %v1136, %v1118
    %v1605 = vpack.c.b16 %v1137, %v1119
    %v1606 = vpack.c.b16 %v1138, %v1120
    %v1607 = vpack.c.b16 %v1139, %v1121
    %v1608 = vpack.c.b16 %v1140, %v1122
    %v1609 = vpack.c.b16 %v1141, %v1123
    %v1610 = vpack.c.b16 %v1142, %v1124
    %v1611 = vpack.c.b16 %v1143, %v1125
    %v1612 = vpack.c.b16 %v1144, %v1126
    %v1613 = vpack.c.b16 %v1145, %v1127
    %v1614 = vpack.c.b16 %v1146, %v1128
    %v1615 = vpack.c.b16 %v1147, %v1129
    %v1616 = vpack.c.b16 %v1148, %v1130
    %v1617 = vpack.c.b16 %v1149, %v1131
    %v1618 = vpack.c.b16 %v1150, %v1132
    %v1619 = vpack.c.b16 %v1151, %v1133
    %v1620 = vpack.c.b16 %v1152, %v1134
    %v1621 = vpack.c.b16 %v1153, %v1135
    %v1622 = vpack.c.b16 %v1172, %v1154
    %v1623 = vpack.c.b16 %v1173, %v1155
    %v1624 = vpack.c.b16 %v1174, %v1156
    %v1625 = vpack.c.b16 %v1175, %v1157
    %v1626 = vpack.c.b16 %v1176, %v1158
    %v1627 = vpack.c.b16 %v1177, %v1159
    %v1628 = vpack.c.b16 %v1178, %v1160
    %v1629 = vpack.c.b16 %v1179, %v1161
    %v1630 = vpack.c.b16 %v1180, %v1162
    %v1631 = vpack.c.b16 %v1181, %v1163
    %v1632 = vpack.c.b16 %v1182, %v1164
    %v1633 = vpack.c.b16 %v1183, %v1165
    %v1634 = vpack.c.b16 %v1184, %v1166
    %v1635 = vpack.c.b16 %v1185, %v1167
    %v1636 = vpack.c.b16 %v1186, %v1168
    %v1637 = vpack.c.b16 %v1187, %v1169
    %v1638 = vpack.c.b16 %v1188, %v1170
    %v1639 = vpack.c.b16 %v1189, %v1171
    %v1640 = vpack.c.b16 %v1208, %v1190
    %v1641 = vpack.c.b16 %v1209, %v1191
    %v1642 = vpack.c.b16 %v1210, %v1192
    %v1643 = vpack.c.b16 %v1211, %v1193
    %v1644 = vpack.c.b16 %v1212, %v1194
    %v1645 = vpack.c.b16 %v1213, %v1195
    %v1646 = vpack.c.b16 %v1214, %v1196
    %v1647 = vpack.c.b16 %v1215, %v1197
    %v1648 = vpack.c.b16 %v1216, %v1198
    %v1649 = vpack.c.b16 %v1217, %v1199
    %v1650 = vpack.c.b16 %v1218, %v1200
    %v1651 = vpack.c.b16 %v1219, %v1201
    %v1652 = vpack.c.b16 %v1220, %v1202
    %v1653 = vpack.c.b16 %v1221, %v1203
    %v1654 = vpack.c.b16 %v1222, %v1204
    %v1655 = vpack.c.b16 %v1223, %v1205
    %v1656 = vpack.c.b16 %v1224, %v1206
    %v1657 = vpack.c.b16 %v1225, %v1207
    %v1658 = vpack.c.b16 %v1244, %v1226
    %v1659 = vpack.c.b16 %v1245, %v1227
    %v1660 = vpack.c.b16 %v1246, %v1228
    %v1661 = vpack.c.b16 %v1247, %v1229
    %v1662 = vpack.c.b16 %v1248, %v1230
    %v1663 = vpack.c.b16 %v1249, %v1231
    %v1664 = vpack.c.b16 %v1250, %v1232
    %v1665 = vpack.c.b16 %v1251, %v1233
    %v1666 = vpack.c.b16 %v1252, %v1234
    %v1667 = vpack.c.b16 %v1253, %v1235
    %v1668 = vpack.c.b16 %v1254, %v1236
    %v1669 = vpack.c.b16 %v1255, %v1237
    %v1670 = vpack.c.b16 %v1256, %v1238
    %v1671 = vpack.c.b16 %v1257, %v1239
    %v1672 = vpack.c.b16 %v1258, %v1240
    %v1673 = vpack.c.b16 %v1259, %v1241
    %v1674 = vpack.c.b16 %v1260, %v1242
    %v1675 = vpack.c.b16 %v1261, %v1243
    %v1676 = vpack.c.b16 %v1280, %v1262
    %v1677 = vpack.c.b16 %v1281, %v1263
    %v1678 = vpack.c.b16 %v1282, %v1264
    %v1679 = vpack.c.b16 %v1283, %v1265
    %v1680 = vpack.c.b16 %v1284, %v1266
    %v1681 = vpack.c.b16 %v1285, %v1267
    %v1682 = vpack.c.b16 %v1286, %v1268
    %v1683 = vpack.c.b16 %v1287, %v1269
    %v1684 = vpack.c.b16 %v1288, %v1270
    %v1685 = vpack.c.b16 %v1289, %v1271
    %v1686 = vpack.c.b16 %v1290, %v1272
    %v1687 = vpack.c.b16 %v1291, %v1273
    %v1688 = vpack.c.b16 %v1292, %v1274
    %v1689 = vpack.c.b16 %v1293, %v1275
    %v1690 = vpack.c.b16 %v1294, %v1276
    %v1691 = vpack.c.b16 %v1295, %v1277
    %v1692 = vpack.c.b16 %v1296, %v1278
    %v1693 = vpack.c.b16 %v1297, %v1279
    %v1694 = vpack.c.b16 %v1316, %v1298
    %v1695 = vpack.c.b16 %v1317, %v1299
    %v1696 = vpack.c.b16 %v1318, %v1300
    %v1697 = vpack.c.b16 %v1319, %v1301
    %v1698 = vpack.c.b16 %v1320, %v1302
    %v1699 = vpack.c.b16 %v1321, %v1303
    %v1700 = vpack.c.b16 %v1322, %v1304
    %v1701 = vpack.c.b16 %v1323, %v1305
    %v1702 = vpack.c.b16 %v1324, %v1306
    %v1703 = vpack.c.b16 %v1325, %v1307
    %v1704 = vpack.c.b16 %v1326, %v1308
    %v1705 = vpack.c.b16 %v1327, %v1309
    %v1706 = vpack.c.b16 %v1328, %v1310
    %v1707 = vpack.c.b16 %v1329, %v1311
    %v1708 = vpack.c.b16 %v1330, %v1312
    %v1709 = vpack.c.b16 %v1331, %v1313
    %v1710 = vpack.c.b16 %v1332, %v1314
    %v1711 = vpack.c.b16 %v1333, %v1315
    %v1712 = vpack.c.b16 %v1352, %v1334
    %v1713 = vpack.c.b16 %v1353, %v1335
    %v1714 = vpack.c.b16 %v1354, %v1336
    %v1715 = vpack.c.b16 %v1355, %v1337
    %v1716 = vpack.c.b16 %v1356, %v1338
    %v1717 = vpack.c.b16 %v1357, %v1339
    %v1718 = vpack.c.b16 %v1358, %v1340
    %v1719 = vpack.c.b16 %v1359, %v1341
    %v1720 = vpack.c.b16 %v1360, %v1342
    %v1721 = vpack.c.b16 %v1361, %v1343
    %v1722 = vpack.c.b16 %v1362, %v1344
    %v1723 = vpack.c.b16 %v1363, %v1345
    %v1724 = vpack.c.b16 %v1364, %v1346
    %v1725 = vpack.c.b16 %v1365, %v1347
    %v1726 = vpack.c.b16 %v1366, %v1348
    %v1727 = vpack.c.b16 %v1367, %v1349
    %v1728 = vpack.c.b16 %v1368, %v1350
    %v1729 = vpack.c.b16 %v1369, %v1351
    %v1730 = vpack.c.b16 %v1388, %v1370
    %v1731 = vpack.c.b16 %v1389, %v1371
    %v1732 = vpack.c.b16 %v1390, %v1372
    %v1733 = vpack.c.b16 %v1391, %v1373
    %v1734 = vpack.c.b16 %v1392, %v1374
    %v1735 = vpack.c.b16 %v1393, %v1375
    %v1736 = vpack.c.b16 %v1394, %v1376
    %v1737 = vpack.c.b16 %v1395, %v1377
    %v1738 = vpack.c.b16 %v1396, %v1378
    %v1739 = vpack.c.b16 %v1397, %v1379
    %v1740 = vpack.c.b16 %v1398, %v1380
    %v1741 = vpack.c.b16 %v1399, %v1381
    %v1742 = vpack.c.b16 %v1400, %v1382
    %v1743 = vpack.c.b16 %v1401, %v1383
    %v1744 = vpack.c.b16 %v1402, %v1384
    %v1745 = vpack.c.b16 %v1403, %v1385
    %v1746 = vpack.c.b16 %v1404, %v1386
    %v1747 = vpack.c.b16 %v1405, %v1387
    %v1748 = vpack.c.b16 %v1424, %v1406
    %v1749 = vpack.c.b16 %v1425, %v1407
    %v1750 = vpack.c.b16 %v1426, %v1408
    %v1751 = vpack.c.b16 %v1427, %v1409
    %v1752 = vpack.c.b16 %v1428, %v1410
    %v1753 = vpack.c.b16 %v1429, %v1411
    %v1754 = vpack.c.b16 %v1430, %v1412
    %v1755 = vpack.c.b16 %v1431, %v1413
    %v1756 = vpack.c.b16 %v1432, %v1414
    %v1757 = vpack.c.b16 %v1433, %v1415
    %v1758 = vpack.c.b16 %v1434, %v1416
    %v1759 = vpack.c.b16 %v1435, %v1417
    %v1760 = vpack.c.b16 %v1436, %v1418
    %v1761 = vpack.c.b16 %v1437, %v1419
    %v1762 = vpack.c.b16 %v1438, %v1420
    %v1763 = vpack.c.b16 %v1439, %v1421
    %v1764 = vpack.c.b16 %v1440, %v1422
    %v1765 = vpack.c.b16 %v1441, %v1423
    %v1766 = vpack.c.b16 %v1460, %v1442
    %v1767 = vpack.c.b16 %v1461, %v1443
    %v1768 = vpack.c.b16 %v1462, %v1444
    %v1769 = vpack.c.b16 %v1463, %v1445
    %v1770 = vpack.c.b16 %v1464, %v1446
    %v1771 = vpack.c.b16 %v1465, %v1447
    %v1772 = vpack.c.b16 %v1466, %v1448
    %v1773 = vpack.c.b16 %v1467, %v1449
    %v1774 = vpack.c.b16 %v1468, %v1450
    %v1775 = vpack.c.b16 %v1469, %v1451
    %v1776 = vpack.c.b16 %v1470, %v1452
    %v1777 = vpack.c.b16 %v1471, %v1453
    %v1778 = vpack.c.b16 %v1472, %v1454
    %v1779 = vpack.c.b16 %v1473, %v1455
    %v1780 = vpack.c.b16 %v1474, %v1456
    %v1781 = vpack.c.b16 %v1475, %v1457
    %v1782 = vpack.c.b16 %v1476, %v1458
    %v1783 = vpack.c.b16 %v1477, %v1459
    %v1784 = vpack.c.b16 %v1496, %v1478
    %v1785 = vpack.c.b16 %v1497, %v1479
    %v1786 = vpack.c.b16 %v1498, %v1480
    %v1787 = vpack.c.b16 %v1499, %v1481
    %v1788 = vpack.c.b16 %v1500, %v1482
    %v1789 = vpack.c.b16 %v1501, %v1483
    %v1790 = vpack.c.b16 %v1502, %v1484
    %v1791 = vpack.c.b16 %v1503, %v1485
    %v1792 = vpack.c.b16 %v1504, %v1486
    %v1793 = vpack.c.b16 %v1505, %v1487
    %v1794 = vpack.c.b16 %v1506, %v1488
    %v1795 = vpack.c.b16 %v1507, %v1489
    %v1796 = vpack.c.b16 %v1508, %v1490
    %v1797 = vpack.c.b16 %v1509, %v1491
    %v1798 = vpack.c.b16 %v1510, %v1492
    %v1799 = vpack.c.b16 %v1511, %v1493
    %v1800 = vpack.c.b16 %v1512, %v1494
    %v1801 = vpack.c.b16 %v1513, %v1495
    %2090 = vmatpush.bf16.msra.mxu0 %v1640
    %2091 = vmatpush.bf16.msra.mxu0 %v1622
    %2092 = vmatpush.bf16.msra.mxu0 %v1604
    %2093 = vmatpush.bf16.msra.mxu0 %v1586
    %2094 = vmatpush.bf16.msra.mxu0 %v1568
    %2095 = vmatpush.bf16.msra.mxu0 %v1550
    %2096 = vmatpush.bf16.msra.mxu0 %v1532
    %2097 = vmatpush.bf16.msra.mxu0 %v1514
    %2098 = vmatmul.bf16.gmra.mxu0 %v360
    %v2099 = vpop.f32.mrf.mxu0
    %v2100 = vadd.f32 0.0, %v2099
    %v2101 = vpop.f32.mrf.mxu0
    %v2102 = vadd.f32 0.0, %v2101
    %2103 = vdwg.mxu0
    %2104 = vmatpush.bf16.msra.mxu0 %v1784
    %2105 = vmatpush.bf16.msra.mxu0 %v1766
    %2106 = vmatpush.bf16.msra.mxu0 %v1748
    %2107 = vmatpush.bf16.msra.mxu0 %v1730
    %2108 = vmatpush.bf16.msra.mxu0 %v1712
    %2109 = vmatpush.bf16.msra.mxu0 %v1694
    %2110 = vmatpush.bf16.msra.mxu0 %v1676
    %2111 = vmatpush.bf16.msra.mxu0 %v1658
    %2112 = vmatmul.bf16.gmra.mxu0 %v361
    %v2113 = vpop.f32.mrf.mxu0
    %v2114 = vadd.f32 %v2100, %v2113
    %v2115 = vpop.f32.mrf.mxu0
    %v2116 = vadd.f32 %v2102, %v2115
    %2117 = vdwg.mxu0
    %2118 = vmatpush.bf16.msra.mxu0 %v1641
    %2119 = vmatpush.bf16.msra.mxu0 %v1623
    %2120 = vmatpush.bf16.msra.mxu0 %v1605
    %2121 = vmatpush.bf16.msra.mxu0 %v1587
    %2122 = vmatpush.bf16.msra.mxu0 %v1569
    %2123 = vmatpush.bf16.msra.mxu0 %v1551
    %2124 = vmatpush.bf16.msra.mxu0 %v1533
    %2125 = vmatpush.bf16.msra.mxu0 %v1515
    %2126 = vmatmul.bf16.gmra.mxu0 %v360
    %v2127 = vpop.f32.mrf.mxu0
    %v2128 = vadd.f32 0.0, %v2127
    %v2129 = vpop.f32.mrf.mxu0
    %v2130 = vadd.f32 0.0, %v2129
    %2131 = vdwg.mxu0
    %2132 = vmatpush.bf16.msra.mxu0 %v1785
    %2133 = vmatpush.bf16.msra.mxu0 %v1767
    %2134 = vmatpush.bf16.msra.mxu0 %v1749
    %2135 = vmatpush.bf16.msra.mxu0 %v1731
    %2136 = vmatpush.bf16.msra.mxu0 %v1713
    %2137 = vmatpush.bf16.msra.mxu0 %v1695
    %2138 = vmatpush.bf16.msra.mxu0 %v1677
    %2139 = vmatpush.bf16.msra.mxu0 %v1659
    %2140 = vmatmul.bf16.gmra.mxu0 %v361
    %v2141 = vpop.f32.mrf.mxu0
    %v2142 = vadd.f32 %v2128, %v2141
    %v2143 = vpop.f32.mrf.mxu0
    %v2144 = vadd.f32 %v2130, %v2143
    %2145 = vdwg.mxu0
    %2146 = vmatpush.bf16.msra.mxu0 %v1642
    %2147 = vmatpush.bf16.msra.mxu0 %v1624
    %2148 = vmatpush.bf16.msra.mxu0 %v1606
    %2149 = vmatpush.bf16.msra.mxu0 %v1588
    %2150 = vmatpush.bf16.msra.mxu0 %v1570
    %2151 = vmatpush.bf16.msra.mxu0 %v1552
    %2152 = vmatpush.bf16.msra.mxu0 %v1534
    %2153 = vmatpush.bf16.msra.mxu0 %v1516
    %2154 = vmatmul.bf16.gmra.mxu0 %v360
    %v2155 = vpop.f32.mrf.mxu0
    %v2156 = vadd.f32 0.0, %v2155
    %v2157 = vpop.f32.mrf.mxu0
    %v2158 = vadd.f32 0.0, %v2157
    %2159 = vdwg.mxu0
    %2160 = vmatpush.bf16.msra.mxu0 %v1786
    %2161 = vmatpush.bf16.msra.mxu0 %v1768
    %2162 = vmatpush.bf16.msra.mxu0 %v1750
    %2163 = vmatpush.bf16.msra.mxu0 %v1732
    %2164 = vmatpush.bf16.msra.mxu0 %v1714
    %2165 = vmatpush.bf16.msra.mxu0 %v1696
    %2166 = vmatpush.bf16.msra.mxu0 %v1678
    %2167 = vmatpush.bf16.msra.mxu0 %v1660
    %2168 = vmatmul.bf16.gmra.mxu0 %v361
    %v2169 = vpop.f32.mrf.mxu0
    %v2170 = vadd.f32 %v2156, %v2169
    %v2171 = vpop.f32.mrf.mxu0
    %v2172 = vadd.f32 %v2158, %v2171
    %2173 = vdwg.mxu0
    %2174 = vmatpush.bf16.msra.mxu0 %v1643
    %2175 = vmatpush.bf16.msra.mxu0 %v1625
    %2176 = vmatpush.bf16.msra.mxu0 %v1607
    %2177 = vmatpush.bf16.msra.mxu0 %v1589
    %2178 = vmatpush.bf16.msra.mxu0 %v1571
    %2179 = vmatpush.bf16.msra.mxu0 %v1553
    %2180 = vmatpush.bf16.msra.mxu0 %v1535
    %2181 = vmatpush.bf16.msra.mxu0 %v1517
    %2182 = vmatmul.bf16.gmra.mxu0 %v360
    %v2183 = vpop.f32.mrf.mxu0
    %v2184 = vadd.f32 0.0, %v2183
    %v2185 = vpop.f32.mrf.mxu0
    %v2186 = vadd.f32 0.0, %v2185
    %2187 = vdwg.mxu0
    %2188 = vmatpush.bf16.msra.mxu0 %v1787
    %2189 = vmatpush.bf16.msra.mxu0 %v1769
    %2190 = vmatpush.bf16.msra.mxu0 %v1751
    %2191 = vmatpush.bf16.msra.mxu0 %v1733
    %2192 = vmatpush.bf16.msra.mxu0 %v1715
    %2193 = vmatpush.bf16.msra.mxu0 %v1697
    %2194 = vmatpush.bf16.msra.mxu0 %v1679
    %2195 = vmatpush.bf16.msra.mxu0 %v1661
    %2196 = vmatmul.bf16.gmra.mxu0 %v361
    %v2197 = vpop.f32.mrf.mxu0
    %v2198 = vadd.f32 %v2184, %v2197
    %v2199 = vpop.f32.mrf.mxu0
    %v2200 = vadd.f32 %v2186, %v2199
    %2201 = vdwg.mxu0
    %2202 = vmatpush.bf16.msra.mxu0 %v1644
    %2203 = vmatpush.bf16.msra.mxu0 %v1626
    %2204 = vmatpush.bf16.msra.mxu0 %v1608
    %2205 = vmatpush.bf16.msra.mxu0 %v1590
    %2206 = vmatpush.bf16.msra.mxu0 %v1572
    %2207 = vmatpush.bf16.msra.mxu0 %v1554
    %2208 = vmatpush.bf16.msra.mxu0 %v1536
    %2209 = vmatpush.bf16.msra.mxu0 %v1518
    %2210 = vmatmul.bf16.gmra.mxu0 %v360
    %v2211 = vpop.f32.mrf.mxu0
    %v2212 = vadd.f32 0.0, %v2211
    %v2213 = vpop.f32.mrf.mxu0
    %v2214 = vadd.f32 0.0, %v2213
    %2215 = vdwg.mxu0
    %2216 = vmatpush.bf16.msra.mxu0 %v1788
    %2217 = vmatpush.bf16.msra.mxu0 %v1770
    %2218 = vmatpush.bf16.msra.mxu0 %v1752
    %2219 = vmatpush.bf16.msra.mxu0 %v1734
    %2220 = vmatpush.bf16.msra.mxu0 %v1716
    %2221 = vmatpush.bf16.msra.mxu0 %v1698
    %2222 = vmatpush.bf16.msra.mxu0 %v1680
    %2223 = vmatpush.bf16.msra.mxu0 %v1662
    %2224 = vmatmul.bf16.gmra.mxu0 %v361
    %v2225 = vpop.f32.mrf.mxu0
    %v2226 = vadd.f32 %v2212, %v2225
    %v2227 = vpop.f32.mrf.mxu0
    %v2228 = vadd.f32 %v2214, %v2227
    %2229 = vdwg.mxu0
    %2230 = vmatpush.bf16.msra.mxu0 %v1645
    %2231 = vmatpush.bf16.msra.mxu0 %v1627
    %2232 = vmatpush.bf16.msra.mxu0 %v1609
    %2233 = vmatpush.bf16.msra.mxu0 %v1591
    %2234 = vmatpush.bf16.msra.mxu0 %v1573
    %2235 = vmatpush.bf16.msra.mxu0 %v1555
    %2236 = vmatpush.bf16.msra.mxu0 %v1537
    %2237 = vmatpush.bf16.msra.mxu0 %v1519
    %2238 = vmatmul.bf16.gmra.mxu0 %v360
    %v2239 = vpop.f32.mrf.mxu0
    %v2240 = vadd.f32 0.0, %v2239
    %v2241 = vpop.f32.mrf.mxu0
    %v2242 = vadd.f32 0.0, %v2241
    %2243 = vdwg.mxu0
    %2244 = vmatpush.bf16.msra.mxu0 %v1789
    %2245 = vmatpush.bf16.msra.mxu0 %v1771
    %2246 = vmatpush.bf16.msra.mxu0 %v1753
    %2247 = vmatpush.bf16.msra.mxu0 %v1735
    %2248 = vmatpush.bf16.msra.mxu0 %v1717
    %2249 = vmatpush.bf16.msra.mxu0 %v1699
    %2250 = vmatpush.bf16.msra.mxu0 %v1681
    %2251 = vmatpush.bf16.msra.mxu0 %v1663
    %2252 = vmatmul.bf16.gmra.mxu0 %v361
    %v2253 = vpop.f32.mrf.mxu0
    %v2254 = vadd.f32 %v2240, %v2253
    %v2255 = vpop.f32.mrf.mxu0
    %v2256 = vadd.f32 %v2242, %v2255
    %2257 = vdwg.mxu0
    %2258 = vmatpush.bf16.msra.mxu0 %v1646
    %2259 = vmatpush.bf16.msra.mxu0 %v1628
    %2260 = vmatpush.bf16.msra.mxu0 %v1610
    %2261 = vmatpush.bf16.msra.mxu0 %v1592
    %2262 = vmatpush.bf16.msra.mxu0 %v1574
    %2263 = vmatpush.bf16.msra.mxu0 %v1556
    %2264 = vmatpush.bf16.msra.mxu0 %v1538
    %2265 = vmatpush.bf16.msra.mxu0 %v1520
    %2266 = vmatmul.bf16.gmra.mxu0 %v360
    %v2267 = vpop.f32.mrf.mxu0
    %v2268 = vadd.f32 0.0, %v2267
    %v2269 = vpop.f32.mrf.mxu0
    %v2270 = vadd.f32 0.0, %v2269
    %2271 = vdwg.mxu0
    %2272 = vmatpush.bf16.msra.mxu0 %v1790
    %2273 = vmatpush.bf16.msra.mxu0 %v1772
    %2274 = vmatpush.bf16.msra.mxu0 %v1754
    %2275 = vmatpush.bf16.msra.mxu0 %v1736
    %2276 = vmatpush.bf16.msra.mxu0 %v1718
    %2277 = vmatpush.bf16.msra.mxu0 %v1700
    %2278 = vmatpush.bf16.msra.mxu0 %v1682
    %2279 = vmatpush.bf16.msra.mxu0 %v1664
    %2280 = vmatmul.bf16.gmra.mxu0 %v361
    %v2281 = vpop.f32.mrf.mxu0
    %v2282 = vadd.f32 %v2268, %v2281
    %v2283 = vpop.f32.mrf.mxu0
    %v2284 = vadd.f32 %v2270, %v2283
    %2285 = vdwg.mxu0
    %2286 = vmatpush.bf16.msra.mxu0 %v1647
    %2287 = vmatpush.bf16.msra.mxu0 %v1629
    %2288 = vmatpush.bf16.msra.mxu0 %v1611
    %2289 = vmatpush.bf16.msra.mxu0 %v1593
    %2290 = vmatpush.bf16.msra.mxu0 %v1575
    %2291 = vmatpush.bf16.msra.mxu0 %v1557
    %2292 = vmatpush.bf16.msra.mxu0 %v1539
    %2293 = vmatpush.bf16.msra.mxu0 %v1521
    %2294 = vmatmul.bf16.gmra.mxu0 %v360
    %v2295 = vpop.f32.mrf.mxu0
    %v2296 = vadd.f32 0.0, %v2295
    %v2297 = vpop.f32.mrf.mxu0
    %v2298 = vadd.f32 0.0, %v2297
    %2299 = vdwg.mxu0
    %2300 = vmatpush.bf16.msra.mxu0 %v1791
    %2301 = vmatpush.bf16.msra.mxu0 %v1773
    %2302 = vmatpush.bf16.msra.mxu0 %v1755
    %2303 = vmatpush.bf16.msra.mxu0 %v1737
    %2304 = vmatpush.bf16.msra.mxu0 %v1719
    %2305 = vmatpush.bf16.msra.mxu0 %v1701
    %2306 = vmatpush.bf16.msra.mxu0 %v1683
    %2307 = vmatpush.bf16.msra.mxu0 %v1665
    %2308 = vmatmul.bf16.gmra.mxu0 %v361
    %v2309 = vpop.f32.mrf.mxu0
    %v2310 = vadd.f32 %v2296, %v2309
    %v2311 = vpop.f32.mrf.mxu0
    %v2312 = vadd.f32 %v2298, %v2311
    %2313 = vdwg.mxu0
    %2314 = vmatpush.bf16.msra.mxu0 %v1648
    %2315 = vmatpush.bf16.msra.mxu0 %v1630
    %2316 = vmatpush.bf16.msra.mxu0 %v1612
    %2317 = vmatpush.bf16.msra.mxu0 %v1594
    %2318 = vmatpush.bf16.msra.mxu0 %v1576
    %2319 = vmatpush.bf16.msra.mxu0 %v1558
    %2320 = vmatpush.bf16.msra.mxu0 %v1540
    %2321 = vmatpush.bf16.msra.mxu0 %v1522
    %2322 = vmatmul.bf16.gmra.mxu0 %v360
    %v2323 = vpop.f32.mrf.mxu0
    %v2324 = vadd.f32 0.0, %v2323
    %v2325 = vpop.f32.mrf.mxu0
    %v2326 = vadd.f32 0.0, %v2325
    %2327 = vdwg.mxu0
    %2328 = vmatpush.bf16.msra.mxu0 %v1792
    %2329 = vmatpush.bf16.msra.mxu0 %v1774
    %2330 = vmatpush.bf16.msra.mxu0 %v1756
    %2331 = vmatpush.bf16.msra.mxu0 %v1738
    %2332 = vmatpush.bf16.msra.mxu0 %v1720
    %2333 = vmatpush.bf16.msra.mxu0 %v1702
    %2334 = vmatpush.bf16.msra.mxu0 %v1684
    %2335 = vmatpush.bf16.msra.mxu0 %v1666
    %2336 = vmatmul.bf16.gmra.mxu0 %v361
    %v2337 = vpop.f32.mrf.mxu0
    %v2338 = vadd.f32 %v2324, %v2337
    %v2339 = vpop.f32.mrf.mxu0
    %v2340 = vadd.f32 %v2326, %v2339
    %2341 = vdwg.mxu0
    %2342 = vmatpush.bf16.msra.mxu0 %v1649
    %2343 = vmatpush.bf16.msra.mxu0 %v1631
    %2344 = vmatpush.bf16.msra.mxu0 %v1613
    %2345 = vmatpush.bf16.msra.mxu0 %v1595
    %2346 = vmatpush.bf16.msra.mxu0 %v1577
    %2347 = vmatpush.bf16.msra.mxu0 %v1559
    %2348 = vmatpush.bf16.msra.mxu0 %v1541
    %2349 = vmatpush.bf16.msra.mxu0 %v1523
    %2350 = vmatmul.bf16.gmra.mxu0 %v360
    %v2351 = vpop.f32.mrf.mxu0
    %v2352 = vadd.f32 0.0, %v2351
    %v2353 = vpop.f32.mrf.mxu0
    %v2354 = vadd.f32 0.0, %v2353
    %2355 = vdwg.mxu0
    %2356 = vmatpush.bf16.msra.mxu0 %v1793
    %2357 = vmatpush.bf16.msra.mxu0 %v1775
    %2358 = vmatpush.bf16.msra.mxu0 %v1757
    %2359 = vmatpush.bf16.msra.mxu0 %v1739
    %2360 = vmatpush.bf16.msra.mxu0 %v1721
    %2361 = vmatpush.bf16.msra.mxu0 %v1703
    %2362 = vmatpush.bf16.msra.mxu0 %v1685
    %2363 = vmatpush.bf16.msra.mxu0 %v1667
    %2364 = vmatmul.bf16.gmra.mxu0 %v361
    %v2365 = vpop.f32.mrf.mxu0
    %v2366 = vadd.f32 %v2352, %v2365
    %v2367 = vpop.f32.mrf.mxu0
    %v2368 = vadd.f32 %v2354, %v2367
    %2369 = vdwg.mxu0
    %2370 = vmatpush.bf16.msra.mxu0 %v1650
    %2371 = vmatpush.bf16.msra.mxu0 %v1632
    %2372 = vmatpush.bf16.msra.mxu0 %v1614
    %2373 = vmatpush.bf16.msra.mxu0 %v1596
    %2374 = vmatpush.bf16.msra.mxu0 %v1578
    %2375 = vmatpush.bf16.msra.mxu0 %v1560
    %2376 = vmatpush.bf16.msra.mxu0 %v1542
    %2377 = vmatpush.bf16.msra.mxu0 %v1524
    %2378 = vmatmul.bf16.gmra.mxu0 %v360
    %v2379 = vpop.f32.mrf.mxu0
    %v2380 = vadd.f32 0.0, %v2379
    %v2381 = vpop.f32.mrf.mxu0
    %v2382 = vadd.f32 0.0, %v2381
    %2383 = vdwg.mxu0
    %2384 = vmatpush.bf16.msra.mxu0 %v1794
    %2385 = vmatpush.bf16.msra.mxu0 %v1776
    %2386 = vmatpush.bf16.msra.mxu0 %v1758
    %2387 = vmatpush.bf16.msra.mxu0 %v1740
    %2388 = vmatpush.bf16.msra.mxu0 %v1722
    %2389 = vmatpush.bf16.msra.mxu0 %v1704
    %2390 = vmatpush.bf16.msra.mxu0 %v1686
    %2391 = vmatpush.bf16.msra.mxu0 %v1668
    %2392 = vmatmul.bf16.gmra.mxu0 %v361
    %v2393 = vpop.f32.mrf.mxu0
    %v2394 = vadd.f32 %v2380, %v2393
    %v2395 = vpop.f32.mrf.mxu0
    %v2396 = vadd.f32 %v2382, %v2395
    %2397 = vdwg.mxu0
    %2398 = vmatpush.bf16.msra.mxu0 %v1651
    %2399 = vmatpush.bf16.msra.mxu0 %v1633
    %2400 = vmatpush.bf16.msra.mxu0 %v1615
    %2401 = vmatpush.bf16.msra.mxu0 %v1597
    %2402 = vmatpush.bf16.msra.mxu0 %v1579
    %2403 = vmatpush.bf16.msra.mxu0 %v1561
    %2404 = vmatpush.bf16.msra.mxu0 %v1543
    %2405 = vmatpush.bf16.msra.mxu0 %v1525
    %2406 = vmatmul.bf16.gmra.mxu0 %v360
    %v2407 = vpop.f32.mrf.mxu0
    %v2408 = vadd.f32 0.0, %v2407
    %v2409 = vpop.f32.mrf.mxu0
    %v2410 = vadd.f32 0.0, %v2409
    %2411 = vdwg.mxu0
    %2412 = vmatpush.bf16.msra.mxu0 %v1795
    %2413 = vmatpush.bf16.msra.mxu0 %v1777
    %2414 = vmatpush.bf16.msra.mxu0 %v1759
    %2415 = vmatpush.bf16.msra.mxu0 %v1741
    %2416 = vmatpush.bf16.msra.mxu0 %v1723
    %2417 = vmatpush.bf16.msra.mxu0 %v1705
    %2418 = vmatpush.bf16.msra.mxu0 %v1687
    %2419 = vmatpush.bf16.msra.mxu0 %v1669
    %2420 = vmatmul.bf16.gmra.mxu0 %v361
    %v2421 = vpop.f32.mrf.mxu0
    %v2422 = vadd.f32 %v2408, %v2421
    %v2423 = vpop.f32.mrf.mxu0
    %v2424 = vadd.f32 %v2410, %v2423
    %2425 = vdwg.mxu0
    %2426 = vmatpush.bf16.msra.mxu0 %v1652
    %2427 = vmatpush.bf16.msra.mxu0 %v1634
    %2428 = vmatpush.bf16.msra.mxu0 %v1616
    %2429 = vmatpush.bf16.msra.mxu0 %v1598
    %2430 = vmatpush.bf16.msra.mxu0 %v1580
    %2431 = vmatpush.bf16.msra.mxu0 %v1562
    %2432 = vmatpush.bf16.msra.mxu0 %v1544
    %2433 = vmatpush.bf16.msra.mxu0 %v1526
    %2434 = vmatmul.bf16.gmra.mxu0 %v360
    %v2435 = vpop.f32.mrf.mxu0
    %v2436 = vadd.f32 0.0, %v2435
    %v2437 = vpop.f32.mrf.mxu0
    %v2438 = vadd.f32 0.0, %v2437
    %2439 = vdwg.mxu0
    %2440 = vmatpush.bf16.msra.mxu0 %v1796
    %2441 = vmatpush.bf16.msra.mxu0 %v1778
    %2442 = vmatpush.bf16.msra.mxu0 %v1760
    %2443 = vmatpush.bf16.msra.mxu0 %v1742
    %2444 = vmatpush.bf16.msra.mxu0 %v1724
    %2445 = vmatpush.bf16.msra.mxu0 %v1706
    %2446 = vmatpush.bf16.msra.mxu0 %v1688
    %2447 = vmatpush.bf16.msra.mxu0 %v1670
    %2448 = vmatmul.bf16.gmra.mxu0 %v361
    %v2449 = vpop.f32.mrf.mxu0
    %v2450 = vadd.f32 %v2436, %v2449
    %v2451 = vpop.f32.mrf.mxu0
    %v2452 = vadd.f32 %v2438, %v2451
    %2453 = vdwg.mxu0
    %2454 = vmatpush.bf16.msra.mxu0 %v1653
    %2455 = vmatpush.bf16.msra.mxu0 %v1635
    %2456 = vmatpush.bf16.msra.mxu0 %v1617
    %2457 = vmatpush.bf16.msra.mxu0 %v1599
    %2458 = vmatpush.bf16.msra.mxu0 %v1581
    %2459 = vmatpush.bf16.msra.mxu0 %v1563
    %2460 = vmatpush.bf16.msra.mxu0 %v1545
    %2461 = vmatpush.bf16.msra.mxu0 %v1527
    %2462 = vmatmul.bf16.gmra.mxu0 %v360
    %v2463 = vpop.f32.mrf.mxu0
    %v2464 = vadd.f32 0.0, %v2463
    %v2465 = vpop.f32.mrf.mxu0
    %v2466 = vadd.f32 0.0, %v2465
    %2467 = vdwg.mxu0
    %2468 = vmatpush.bf16.msra.mxu0 %v1797
    %2469 = vmatpush.bf16.msra.mxu0 %v1779
    %2470 = vmatpush.bf16.msra.mxu0 %v1761
    %2471 = vmatpush.bf16.msra.mxu0 %v1743
    %2472 = vmatpush.bf16.msra.mxu0 %v1725
    %2473 = vmatpush.bf16.msra.mxu0 %v1707
    %2474 = vmatpush.bf16.msra.mxu0 %v1689
    %2475 = vmatpush.bf16.msra.mxu0 %v1671
    %2476 = vmatmul.bf16.gmra.mxu0 %v361
    %v2477 = vpop.f32.mrf.mxu0
    %v2478 = vadd.f32 %v2464, %v2477
    %v2479 = vpop.f32.mrf.mxu0
    %v2480 = vadd.f32 %v2466, %v2479
    %2481 = vdwg.mxu0
    %2482 = vmatpush.bf16.msra.mxu0 %v1654
    %2483 = vmatpush.bf16.msra.mxu0 %v1636
    %2484 = vmatpush.bf16.msra.mxu0 %v1618
    %2485 = vmatpush.bf16.msra.mxu0 %v1600
    %2486 = vmatpush.bf16.msra.mxu0 %v1582
    %2487 = vmatpush.bf16.msra.mxu0 %v1564
    %2488 = vmatpush.bf16.msra.mxu0 %v1546
    %2489 = vmatpush.bf16.msra.mxu0 %v1528
    %2490 = vmatmul.bf16.gmra.mxu0 %v360
    %v2491 = vpop.f32.mrf.mxu0
    %v2492 = vadd.f32 0.0, %v2491
    %v2493 = vpop.f32.mrf.mxu0
    %v2494 = vadd.f32 0.0, %v2493
    %2495 = vdwg.mxu0
    %2496 = vmatpush.bf16.msra.mxu0 %v1798
    %2497 = vmatpush.bf16.msra.mxu0 %v1780
    %2498 = vmatpush.bf16.msra.mxu0 %v1762
    %2499 = vmatpush.bf16.msra.mxu0 %v1744
    %2500 = vmatpush.bf16.msra.mxu0 %v1726
    %2501 = vmatpush.bf16.msra.mxu0 %v1708
    %2502 = vmatpush.bf16.msra.mxu0 %v1690
    %2503 = vmatpush.bf16.msra.mxu0 %v1672
    %2504 = vmatmul.bf16.gmra.mxu0 %v361
    %v2505 = vpop.f32.mrf.mxu0
    %v2506 = vadd.f32 %v2492, %v2505
    %v2507 = vpop.f32.mrf.mxu0
    %v2508 = vadd.f32 %v2494, %v2507
    %2509 = vdwg.mxu0
    %2510 = vmatpush.bf16.msra.mxu0 %v1655
    %2511 = vmatpush.bf16.msra.mxu0 %v1637
    %2512 = vmatpush.bf16.msra.mxu0 %v1619
    %2513 = vmatpush.bf16.msra.mxu0 %v1601
    %2514 = vmatpush.bf16.msra.mxu0 %v1583
    %2515 = vmatpush.bf16.msra.mxu0 %v1565
    %2516 = vmatpush.bf16.msra.mxu0 %v1547
    %2517 = vmatpush.bf16.msra.mxu0 %v1529
    %2518 = vmatmul.bf16.gmra.mxu0 %v360
    %v2519 = vpop.f32.mrf.mxu0
    %v2520 = vadd.f32 0.0, %v2519
    %v2521 = vpop.f32.mrf.mxu0
    %v2522 = vadd.f32 0.0, %v2521
    %2523 = vdwg.mxu0
    %2524 = vmatpush.bf16.msra.mxu0 %v1799
    %2525 = vmatpush.bf16.msra.mxu0 %v1781
    %2526 = vmatpush.bf16.msra.mxu0 %v1763
    %2527 = vmatpush.bf16.msra.mxu0 %v1745
    %2528 = vmatpush.bf16.msra.mxu0 %v1727
    %2529 = vmatpush.bf16.msra.mxu0 %v1709
    %2530 = vmatpush.bf16.msra.mxu0 %v1691
    %2531 = vmatpush.bf16.msra.mxu0 %v1673
    %2532 = vmatmul.bf16.gmra.mxu0 %v361
    %v2533 = vpop.f32.mrf.mxu0
    %v2534 = vadd.f32 %v2520, %v2533
    %v2535 = vpop.f32.mrf.mxu0
    %v2536 = vadd.f32 %v2522, %v2535
    %2537 = vdwg.mxu0
    %2538 = vmatpush.bf16.msra.mxu0 %v1656
    %2539 = vmatpush.bf16.msra.mxu0 %v1638
    %2540 = vmatpush.bf16.msra.mxu0 %v1620
    %2541 = vmatpush.bf16.msra.mxu0 %v1602
    %2542 = vmatpush.bf16.msra.mxu0 %v1584
    %2543 = vmatpush.bf16.msra.mxu0 %v1566
    %2544 = vmatpush.bf16.msra.mxu0 %v1548
    %2545 = vmatpush.bf16.msra.mxu0 %v1530
    %2546 = vmatmul.bf16.gmra.mxu0 %v360
    %v2547 = vpop.f32.mrf.mxu0
    %v2548 = vadd.f32 0.0, %v2547
    %v2549 = vpop.f32.mrf.mxu0
    %v2550 = vadd.f32 0.0, %v2549
    %2551 = vdwg.mxu0
    %2552 = vmatpush.bf16.msra.mxu0 %v1800
    %2553 = vmatpush.bf16.msra.mxu0 %v1782
    %2554 = vmatpush.bf16.msra.mxu0 %v1764
    %2555 = vmatpush.bf16.msra.mxu0 %v1746
    %2556 = vmatpush.bf16.msra.mxu0 %v1728
    %2557 = vmatpush.bf16.msra.mxu0 %v1710
    %2558 = vmatpush.bf16.msra.mxu0 %v1692
    %2559 = vmatpush.bf16.msra.mxu0 %v1674
    %2560 = vmatmul.bf16.gmra.mxu0 %v361
    %v2561 = vpop.f32.mrf.mxu0
    %v2562 = vadd.f32 %v2548, %v2561
    %v2563 = vpop.f32.mrf.mxu0
    %v2564 = vadd.f32 %v2550, %v2563
    %2565 = vdwg.mxu0
    %2566 = vmatpush.bf16.msra.mxu0 %v1657
    %2567 = vmatpush.bf16.msra.mxu0 %v1639
    %2568 = vmatpush.bf16.msra.mxu0 %v1621
    %2569 = vmatpush.bf16.msra.mxu0 %v1603
    %2570 = vmatpush.bf16.msra.mxu0 %v1585
    %2571 = vmatpush.bf16.msra.mxu0 %v1567
    %2572 = vmatpush.bf16.msra.mxu0 %v1549
    %2573 = vmatpush.bf16.msra.mxu0 %v1531
    %2574 = vmatmul.bf16.gmra.mxu0 %v360
    %v2575 = vpop.f32.mrf.mxu0
    %v2576 = vadd.f32 0.0, %v2575
    %v2577 = vpop.f32.mrf.mxu0
    %v2578 = vadd.f32 0.0, %v2577
    %2579 = vdwg.mxu0
    %2580 = vmatpush.bf16.msra.mxu0 %v1801
    %2581 = vmatpush.bf16.msra.mxu0 %v1783
    %2582 = vmatpush.bf16.msra.mxu0 %v1765
    %2583 = vmatpush.bf16.msra.mxu0 %v1747
    %2584 = vmatpush.bf16.msra.mxu0 %v1729
    %2585 = vmatpush.bf16.msra.mxu0 %v1711
    %2586 = vmatpush.bf16.msra.mxu0 %v1693
    %2587 = vmatpush.bf16.msra.mxu0 %v1675
    %2588 = vmatmul.bf16.gmra.mxu0 %v361
    %v2589 = vpop.f32.mrf.mxu0
    %v2590 = vadd.f32 %v2576, %v2589
    %v2591 = vpop.f32.mrf.mxu0
    %v2592 = vadd.f32 %v2578, %v2591
    %2593 = vdwg.mxu0
    %v2594 = vld [vmem:[%s4] sm:$0xff]
    %v2595 = vld [vmem:[%s4 + $0x8] sm:$0xff]
    %v2596 = vld [vmem:[%s4 + $0x10] sm:$0xff]
    %v2597 = vld [vmem:[%s4 + $0x18] sm:$0xff]
    %v2598 = vld [vmem:[%s4 + $0x20] sm:$0xff]
    %v2599 = vld [vmem:[%s4 + $0x28] sm:$0xff]
    %v2600 = vld [vmem:[%s4 + $0x30] sm:$0xff]
    %v2601 = vld [vmem:[%s4 + $0x38] sm:$0xff]
    %v2602 = vld [vmem:[%s4 + $0x40] sm:$0xff]
    %vm2603 = vcmask 64512
    %v2605 = vsel %vm2603, %v2595, 0
    %2607 = vmatpush.msra.mxu0 0.0
    %2608 = vmatpush.msra.mxu0 0.0
    %2609 = vmatpush.msra.mxu0 0.0
    %2610 = vmatpush.msra.mxu0 0.0
    %2611 = vmatpush.msra.mxu0 0.0
    %2612 = vmatpush.msra.mxu0 0.0
    %2613 = vmatpush.msra.mxu0 0.0
    %2614 = vmatpush.msra.mxu0 0.0
    %2615 = vmatpush.msra.mxu0 0.0
    %2616 = vmatpush.msra.mxu0 0.0
    %2617 = vmatpush.msra.mxu0 0.0
    %2618 = vmatpush.msra.mxu0 0.0
    %2619 = vmatpush.msra.mxu0 0.0
    %2620 = vmatpush.msra.mxu0 0.0
    %2621 = vmatpush.msra.mxu0 0.0
    %2622 = vmatpush.msra.mxu0 %v2170
    %2623 = vmatmul.f32.gmra.mxu0 %v2605
    %v2624 = vpop.f32.mrf.mxu0
    %v2625 = vadd.f32 0.0, %v2624
    %2626 = vdwg.mxu0
    %2627 = vmatpush.msra.mxu0 0.0
    %2628 = vmatpush.msra.mxu0 0.0
    %2629 = vmatpush.msra.mxu0 0.0
    %2630 = vmatpush.msra.mxu0 0.0
    %2631 = vmatpush.msra.mxu0 0.0
    %2632 = vmatpush.msra.mxu0 0.0
    %2633 = vmatpush.msra.mxu0 0.0
    %2634 = vmatpush.msra.mxu0 0.0
    %2635 = vmatpush.msra.mxu0 0.0
    %2636 = vmatpush.msra.mxu0 0.0
    %2637 = vmatpush.msra.mxu0 0.0
    %2638 = vmatpush.msra.mxu0 0.0
    %2639 = vmatpush.msra.mxu0 0.0
    %2640 = vmatpush.msra.mxu0 0.0
    %2641 = vmatpush.msra.mxu0 0.0
    %2642 = vmatpush.msra.mxu0 %v2198
    %2643 = vmatmul.f32.gmra.mxu0 %v2605
    %v2644 = vpop.f32.mrf.mxu0
    %v2645 = vadd.f32 0.0, %v2644
    %2646 = vdwg.mxu0
    %v2648 = vsel %vm2603, %v2597, 0
    %2650 = vmatpush.msra.mxu0 0.0
    %2651 = vmatpush.msra.mxu0 0.0
    %2652 = vmatpush.msra.mxu0 0.0
    %2653 = vmatpush.msra.mxu0 0.0
    %2654 = vmatpush.msra.mxu0 0.0
    %2655 = vmatpush.msra.mxu0 0.0
    %2656 = vmatpush.msra.mxu0 0.0
    %2657 = vmatpush.msra.mxu0 0.0
    %2658 = vmatpush.msra.mxu0 0.0
    %2659 = vmatpush.msra.mxu0 0.0
    %2660 = vmatpush.msra.mxu0 0.0
    %2661 = vmatpush.msra.mxu0 0.0
    %2662 = vmatpush.msra.mxu0 0.0
    %2663 = vmatpush.msra.mxu0 0.0
    %2664 = vmatpush.msra.mxu0 0.0
    %2665 = vmatpush.msra.mxu0 %v2282
    %2666 = vmatmul.f32.gmra.mxu0 %v2648
    %v2667 = vpop.f32.mrf.mxu0
    %v2668 = vadd.f32 0.0, %v2667
    %2669 = vdwg.mxu0
    %2670 = vmatpush.msra.mxu0 0.0
    %2671 = vmatpush.msra.mxu0 0.0
    %2672 = vmatpush.msra.mxu0 0.0
    %2673 = vmatpush.msra.mxu0 0.0
    %2674 = vmatpush.msra.mxu0 0.0
    %2675 = vmatpush.msra.mxu0 0.0
    %2676 = vmatpush.msra.mxu0 0.0
    %2677 = vmatpush.msra.mxu0 0.0
    %2678 = vmatpush.msra.mxu0 0.0
    %2679 = vmatpush.msra.mxu0 0.0
    %2680 = vmatpush.msra.mxu0 0.0
    %2681 = vmatpush.msra.mxu0 0.0
    %2682 = vmatpush.msra.mxu0 0.0
    %2683 = vmatpush.msra.mxu0 0.0
    %2684 = vmatpush.msra.mxu0 0.0
    %2685 = vmatpush.msra.mxu0 %v2310
    %2686 = vmatmul.f32.gmra.mxu0 %v2648
    %v2687 = vpop.f32.mrf.mxu0
    %v2688 = vadd.f32 0.0, %v2687
    %2689 = vdwg.mxu0
    %v2691 = vsel %vm2603, %v2599, 0
    %2693 = vmatpush.msra.mxu0 0.0
    %2694 = vmatpush.msra.mxu0 0.0
    %2695 = vmatpush.msra.mxu0 0.0
    %2696 = vmatpush.msra.mxu0 0.0
    %2697 = vmatpush.msra.mxu0 0.0
    %2698 = vmatpush.msra.mxu0 0.0
    %2699 = vmatpush.msra.mxu0 0.0
    %2700 = vmatpush.msra.mxu0 0.0
    %2701 = vmatpush.msra.mxu0 0.0
    %2702 = vmatpush.msra.mxu0 0.0
    %2703 = vmatpush.msra.mxu0 0.0
    %2704 = vmatpush.msra.mxu0 0.0
    %2705 = vmatpush.msra.mxu0 0.0
    %2706 = vmatpush.msra.mxu0 0.0
    %2707 = vmatpush.msra.mxu0 0.0
    %2708 = vmatpush.msra.mxu0 %v2394
    %2709 = vmatmul.f32.gmra.mxu0 %v2691
    %v2710 = vpop.f32.mrf.mxu0
    %v2711 = vadd.f32 0.0, %v2710
    %2712 = vdwg.mxu0
    %2713 = vmatpush.msra.mxu0 0.0
    %2714 = vmatpush.msra.mxu0 0.0
    %2715 = vmatpush.msra.mxu0 0.0
    %2716 = vmatpush.msra.mxu0 0.0
    %2717 = vmatpush.msra.mxu0 0.0
    %2718 = vmatpush.msra.mxu0 0.0
    %2719 = vmatpush.msra.mxu0 0.0
    %2720 = vmatpush.msra.mxu0 0.0
    %2721 = vmatpush.msra.mxu0 0.0
    %2722 = vmatpush.msra.mxu0 0.0
    %2723 = vmatpush.msra.mxu0 0.0
    %2724 = vmatpush.msra.mxu0 0.0
    %2725 = vmatpush.msra.mxu0 0.0
    %2726 = vmatpush.msra.mxu0 0.0
    %2727 = vmatpush.msra.mxu0 0.0
    %2728 = vmatpush.msra.mxu0 %v2422
    %2729 = vmatmul.f32.gmra.mxu0 %v2691
    %v2730 = vpop.f32.mrf.mxu0
    %v2731 = vadd.f32 0.0, %v2730
    %2732 = vdwg.mxu0
    %v2734 = vsel %vm2603, %v2601, 0
    %2736 = vmatpush.msra.mxu0 0.0
    %2737 = vmatpush.msra.mxu0 0.0
    %2738 = vmatpush.msra.mxu0 0.0
    %2739 = vmatpush.msra.mxu0 0.0
    %2740 = vmatpush.msra.mxu0 0.0
    %2741 = vmatpush.msra.mxu0 0.0
    %2742 = vmatpush.msra.mxu0 0.0
    %2743 = vmatpush.msra.mxu0 0.0
    %2744 = vmatpush.msra.mxu0 0.0
    %2745 = vmatpush.msra.mxu0 0.0
    %2746 = vmatpush.msra.mxu0 0.0
    %2747 = vmatpush.msra.mxu0 0.0
    %2748 = vmatpush.msra.mxu0 0.0
    %2749 = vmatpush.msra.mxu0 0.0
    %2750 = vmatpush.msra.mxu0 0.0
    %2751 = vmatpush.msra.mxu0 %v2506
    %2752 = vmatmul.f32.gmra.mxu0 %v2734
    %v2753 = vpop.f32.mrf.mxu0
    %v2754 = vadd.f32 0.0, %v2753
    %2755 = vdwg.mxu0
    %2756 = vmatpush.msra.mxu0 0.0
    %2757 = vmatpush.msra.mxu0 0.0
    %2758 = vmatpush.msra.mxu0 0.0
    %2759 = vmatpush.msra.mxu0 0.0
    %2760 = vmatpush.msra.mxu0 0.0
    %2761 = vmatpush.msra.mxu0 0.0
    %2762 = vmatpush.msra.mxu0 0.0
    %2763 = vmatpush.msra.mxu0 0.0
    %2764 = vmatpush.msra.mxu0 0.0
    %2765 = vmatpush.msra.mxu0 0.0
    %2766 = vmatpush.msra.mxu0 0.0
    %2767 = vmatpush.msra.mxu0 0.0
    %2768 = vmatpush.msra.mxu0 0.0
    %2769 = vmatpush.msra.mxu0 0.0
    %2770 = vmatpush.msra.mxu0 0.0
    %2771 = vmatpush.msra.mxu0 %v2534
    %2772 = vmatmul.f32.gmra.mxu0 %v2734
    %v2773 = vpop.f32.mrf.mxu0
    %v2774 = vadd.f32 0.0, %v2773
    %2775 = vdwg.mxu0
    %v2777 = vsel %vm2603, %v2602, 0
    %2779 = vmatpush.msra.mxu0 0.0
    %2780 = vmatpush.msra.mxu0 0.0
    %2781 = vmatpush.msra.mxu0 0.0
    %2782 = vmatpush.msra.mxu0 0.0
    %2783 = vmatpush.msra.mxu0 0.0
    %2784 = vmatpush.msra.mxu0 0.0
    %2785 = vmatpush.msra.mxu0 0.0
    %2786 = vmatpush.msra.mxu0 0.0
    %2787 = vmatpush.msra.mxu0 0.0
    %2788 = vmatpush.msra.mxu0 0.0
    %2789 = vmatpush.msra.mxu0 0.0
    %2790 = vmatpush.msra.mxu0 0.0
    %2791 = vmatpush.msra.mxu0 0.0
    %2792 = vmatpush.msra.mxu0 0.0
    %2793 = vmatpush.msra.mxu0 0.0
    %2794 = vmatpush.msra.mxu0 %v2562
    %2795 = vmatmul.f32.gmra.mxu0 %v2777
    %v2796 = vpop.f32.mrf.mxu0
    %v2797 = vadd.f32 0.0, %v2796
    %2798 = vdwg.mxu0
    %2799 = vmatpush.msra.mxu0 0.0
    %2800 = vmatpush.msra.mxu0 0.0
    %2801 = vmatpush.msra.mxu0 0.0
    %2802 = vmatpush.msra.mxu0 0.0
    %2803 = vmatpush.msra.mxu0 0.0
    %2804 = vmatpush.msra.mxu0 0.0
    %2805 = vmatpush.msra.mxu0 0.0
    %2806 = vmatpush.msra.mxu0 0.0
    %2807 = vmatpush.msra.mxu0 0.0
    %2808 = vmatpush.msra.mxu0 0.0
    %2809 = vmatpush.msra.mxu0 0.0
    %2810 = vmatpush.msra.mxu0 0.0
    %2811 = vmatpush.msra.mxu0 0.0
    %2812 = vmatpush.msra.mxu0 0.0
    %2813 = vmatpush.msra.mxu0 0.0
    %2814 = vmatpush.msra.mxu0 %v2590
    %2815 = vmatmul.f32.gmra.mxu0 %v2777
    %v2816 = vpop.f32.mrf.mxu0
    %v2817 = vadd.f32 0.0, %v2816
    %2818 = vdwg.mxu0
    %v2820 = vsel %vm2603, %v2594, 0
    %2822 = vmatpush.msra.mxu0 0.0
    %2823 = vmatpush.msra.mxu0 0.0
    %2824 = vmatpush.msra.mxu0 0.0
    %2825 = vmatpush.msra.mxu0 0.0
    %2826 = vmatpush.msra.mxu0 0.0
    %2827 = vmatpush.msra.mxu0 0.0
    %2828 = vmatpush.msra.mxu0 0.0
    %2829 = vmatpush.msra.mxu0 0.0
    %2830 = vmatpush.msra.mxu0 0.0
    %2831 = vmatpush.msra.mxu0 0.0
    %2832 = vmatpush.msra.mxu0 0.0
    %2833 = vmatpush.msra.mxu0 0.0
    %2834 = vmatpush.msra.mxu0 0.0
    %2835 = vmatpush.msra.mxu0 0.0
    %2836 = vmatpush.msra.mxu0 0.0
    %2837 = vmatpush.msra.mxu0 %v2114
    %2838 = vmatmul.f32.gmra.mxu0 %v2820
    %v2839 = vpop.f32.mrf.mxu0
    %v2840 = vadd.f32 %v2625, %v2839
    %2841 = vdwg.mxu0
    %2842 = vmatpush.msra.mxu0 0.0
    %2843 = vmatpush.msra.mxu0 0.0
    %2844 = vmatpush.msra.mxu0 0.0
    %2845 = vmatpush.msra.mxu0 0.0
    %2846 = vmatpush.msra.mxu0 0.0
    %2847 = vmatpush.msra.mxu0 0.0
    %2848 = vmatpush.msra.mxu0 0.0
    %2849 = vmatpush.msra.mxu0 0.0
    %2850 = vmatpush.msra.mxu0 0.0
    %2851 = vmatpush.msra.mxu0 0.0
    %2852 = vmatpush.msra.mxu0 0.0
    %2853 = vmatpush.msra.mxu0 0.0
    %2854 = vmatpush.msra.mxu0 0.0
    %2855 = vmatpush.msra.mxu0 0.0
    %2856 = vmatpush.msra.mxu0 0.0
    %2857 = vmatpush.msra.mxu0 %v2142
    %2858 = vmatmul.f32.gmra.mxu0 %v2820
    %v2859 = vpop.f32.mrf.mxu0
    %v2860 = vadd.f32 %v2645, %v2859
    %2861 = vdwg.mxu0
    %v2863 = vsel %vm2603, %v2596, 0
    %2865 = vmatpush.msra.mxu0 0.0
    %2866 = vmatpush.msra.mxu0 0.0
    %2867 = vmatpush.msra.mxu0 0.0
    %2868 = vmatpush.msra.mxu0 0.0
    %2869 = vmatpush.msra.mxu0 0.0
    %2870 = vmatpush.msra.mxu0 0.0
    %2871 = vmatpush.msra.mxu0 0.0
    %2872 = vmatpush.msra.mxu0 0.0
    %2873 = vmatpush.msra.mxu0 0.0
    %2874 = vmatpush.msra.mxu0 0.0
    %2875 = vmatpush.msra.mxu0 0.0
    %2876 = vmatpush.msra.mxu0 0.0
    %2877 = vmatpush.msra.mxu0 0.0
    %2878 = vmatpush.msra.mxu0 0.0
    %2879 = vmatpush.msra.mxu0 0.0
    %2880 = vmatpush.msra.mxu0 %v2226
    %2881 = vmatmul.f32.gmra.mxu0 %v2863
    %v2882 = vpop.f32.mrf.mxu0
    %v2883 = vadd.f32 %v2668, %v2882
    %2884 = vdwg.mxu0
    %2885 = vmatpush.msra.mxu0 0.0
    %2886 = vmatpush.msra.mxu0 0.0
    %2887 = vmatpush.msra.mxu0 0.0
    %2888 = vmatpush.msra.mxu0 0.0
    %2889 = vmatpush.msra.mxu0 0.0
    %2890 = vmatpush.msra.mxu0 0.0
    %2891 = vmatpush.msra.mxu0 0.0
    %2892 = vmatpush.msra.mxu0 0.0
    %2893 = vmatpush.msra.mxu0 0.0
    %2894 = vmatpush.msra.mxu0 0.0
    %2895 = vmatpush.msra.mxu0 0.0
    %2896 = vmatpush.msra.mxu0 0.0
    %2897 = vmatpush.msra.mxu0 0.0
    %2898 = vmatpush.msra.mxu0 0.0
    %2899 = vmatpush.msra.mxu0 0.0
    %2900 = vmatpush.msra.mxu0 %v2254
    %2901 = vmatmul.f32.gmra.mxu0 %v2863
    %v2902 = vpop.f32.mrf.mxu0
    %v2903 = vadd.f32 %v2688, %v2902
    %2904 = vdwg.mxu0
    %v2906 = vsel %vm2603, %v2598, 0
    %2908 = vmatpush.msra.mxu0 0.0
    %2909 = vmatpush.msra.mxu0 0.0
    %2910 = vmatpush.msra.mxu0 0.0
    %2911 = vmatpush.msra.mxu0 0.0
    %2912 = vmatpush.msra.mxu0 0.0
    %2913 = vmatpush.msra.mxu0 0.0
    %2914 = vmatpush.msra.mxu0 0.0
    %2915 = vmatpush.msra.mxu0 0.0
    %2916 = vmatpush.msra.mxu0 0.0
    %2917 = vmatpush.msra.mxu0 0.0
    %2918 = vmatpush.msra.mxu0 0.0
    %2919 = vmatpush.msra.mxu0 0.0
    %2920 = vmatpush.msra.mxu0 0.0
    %2921 = vmatpush.msra.mxu0 0.0
    %2922 = vmatpush.msra.mxu0 0.0
    %2923 = vmatpush.msra.mxu0 %v2338
    %2924 = vmatmul.f32.gmra.mxu0 %v2906
    %v2925 = vpop.f32.mrf.mxu0
    %v2926 = vadd.f32 %v2711, %v2925
    %2927 = vdwg.mxu0
    %2928 = vmatpush.msra.mxu0 0.0
    %2929 = vmatpush.msra.mxu0 0.0
    %2930 = vmatpush.msra.mxu0 0.0
    %2931 = vmatpush.msra.mxu0 0.0
    %2932 = vmatpush.msra.mxu0 0.0
    %2933 = vmatpush.msra.mxu0 0.0
    %2934 = vmatpush.msra.mxu0 0.0
    %2935 = vmatpush.msra.mxu0 0.0
    %2936 = vmatpush.msra.mxu0 0.0
    %2937 = vmatpush.msra.mxu0 0.0
    %2938 = vmatpush.msra.mxu0 0.0
    %2939 = vmatpush.msra.mxu0 0.0
    %2940 = vmatpush.msra.mxu0 0.0
    %2941 = vmatpush.msra.mxu0 0.0
    %2942 = vmatpush.msra.mxu0 0.0
    %2943 = vmatpush.msra.mxu0 %v2366
    %2944 = vmatmul.f32.gmra.mxu0 %v2906
    %v2945 = vpop.f32.mrf.mxu0
    %v2946 = vadd.f32 %v2731, %v2945
    %2947 = vdwg.mxu0
    %v2949 = vsel %vm2603, %v2600, 0
    %2951 = vmatpush.msra.mxu0 0.0
    %2952 = vmatpush.msra.mxu0 0.0
    %2953 = vmatpush.msra.mxu0 0.0
    %2954 = vmatpush.msra.mxu0 0.0
    %2955 = vmatpush.msra.mxu0 0.0
    %2956 = vmatpush.msra.mxu0 0.0
    %2957 = vmatpush.msra.mxu0 0.0
    %2958 = vmatpush.msra.mxu0 0.0
    %2959 = vmatpush.msra.mxu0 0.0
    %2960 = vmatpush.msra.mxu0 0.0
    %2961 = vmatpush.msra.mxu0 0.0
    %2962 = vmatpush.msra.mxu0 0.0
    %2963 = vmatpush.msra.mxu0 0.0
    %2964 = vmatpush.msra.mxu0 0.0
    %2965 = vmatpush.msra.mxu0 0.0
    %2966 = vmatpush.msra.mxu0 %v2450
    %2967 = vmatmul.f32.gmra.mxu0 %v2949
    %v2968 = vpop.f32.mrf.mxu0
    %v2969 = vadd.f32 %v2754, %v2968
    %2970 = vdwg.mxu0
    %2971 = vmatpush.msra.mxu0 0.0
    %2972 = vmatpush.msra.mxu0 0.0
    %2973 = vmatpush.msra.mxu0 0.0
    %2974 = vmatpush.msra.mxu0 0.0
    %2975 = vmatpush.msra.mxu0 0.0
    %2976 = vmatpush.msra.mxu0 0.0
    %2977 = vmatpush.msra.mxu0 0.0
    %2978 = vmatpush.msra.mxu0 0.0
    %2979 = vmatpush.msra.mxu0 0.0
    %2980 = vmatpush.msra.mxu0 0.0
    %2981 = vmatpush.msra.mxu0 0.0
    %2982 = vmatpush.msra.mxu0 0.0
    %2983 = vmatpush.msra.mxu0 0.0
    %2984 = vmatpush.msra.mxu0 0.0
    %2985 = vmatpush.msra.mxu0 0.0
    %2986 = vmatpush.msra.mxu0 %v2478
    %2987 = vmatmul.f32.gmra.mxu0 %v2949
    %v2988 = vpop.f32.mrf.mxu0
    %v2989 = vadd.f32 %v2774, %v2988
    %2990 = vdwg.mxu0
    %v2991 = vadd.f32 %v2840, %v2883
    %v2992 = vadd.f32 %v2860, %v2903
    %v2993 = vadd.f32 %v2926, %v2969
    %v2994 = vadd.f32 %v2946, %v2989
    %v2995 = vadd.f32 %v2991, %v2993
    %v2996 = vadd.f32 %v2992, %v2994
    %v2997 = vadd.f32 %v2995, %v2797
    %v2998 = vadd.f32 %v2996, %v2817
    %v2999 = vld [vmem:[%s5] sm:$0xff]
    %3001 = vset.pattern.permute.xlu0 0
    %3002 = vperm.xlu0 %3001, %v2999
    %v3003 = vpop.permute.xlu0 %3002
    %v3005 = vadd.f32 %v2997, %v3003
    %v3006 = vadd.f32 %v2998, %v3003
    %vm3007 = vcmp.gt.f32.partialorder %v3005, 0.0
    %vm3008 = vcmp.gt.f32.partialorder %v3006, 0.0
    %v3009 = vmin.f32 %v3005, 0.0
    %v3010 = vmin.f32 %v3006, 0.0
    %v3011 = vmul.f32 %v3009, 1.442695
    %v3012 = vpow.pop %v3011
    %v3013 = vmul.f32 %v3010, 1.442695
    %v3014 = vpow.pop %v3013
    %v3015 = vsub.f32 %v3012, 1.0
    %v3016 = vsub.f32 %v3014, 1.0
    %v3017 = vsel %vm3007, %v3005, %v3015
    %v3018 = vsel %vm3008, %v3006, %v3016
    %v3019 = vld [vmem:[%s6] sm:$0xff]
    %v3020 = vld [vmem:[%s6 + $0x8] sm:$0xff]
    %v3021 = vld [vmem:[%s6 + $0x10] sm:$0xff]
    %v3022 = vld [vmem:[%s6 + $0x18] sm:$0xff]
    %v3023 = vld [vmem:[%s7] sm:$0xff]
    %v3024 = vld [vmem:[%s7 + $0x8] sm:$0xff]
    %v3025 = vld [vmem:[%s7 + $0x10] sm:$0xff]
    %v3026 = vld [vmem:[%s7 + $0x18] sm:$0xff]
    %3028 = vset.pattern.permute.xlu0 0
    %3029 = vperm.xlu0 %3028, %v3023
    %v3030 = vpop.permute.xlu0 %3029
    %3033 = vset.pattern.permute.xlu0 0
    %3034 = vperm.xlu0 %3033, %v3024
    %v3035 = vpop.permute.xlu0 %3034
    %3038 = vset.pattern.permute.xlu0 0
    %3039 = vperm.xlu0 %3038, %v3025
    %v3040 = vpop.permute.xlu0 %3039
    %3043 = vset.pattern.permute.xlu0 0
    %3044 = vperm.xlu0 %3043, %v3026
    %v3045 = vpop.permute.xlu0 %3044
    %v3048 = vsel %vm2603, %v3019, 0
    %v3051 = vsel %vm2603, %v3020, 0
    %v3054 = vsel %vm2603, %v3021, 0
    %v3057 = vsel %vm2603, %v3022, 0
    %3059 = vmatpush.msra.mxu0 0.0
    %3060 = vmatpush.msra.mxu0 0.0
    %3061 = vmatpush.msra.mxu0 0.0
    %3062 = vmatpush.msra.mxu0 0.0
    %3063 = vmatpush.msra.mxu0 0.0
    %3064 = vmatpush.msra.mxu0 0.0
    %3065 = vmatpush.msra.mxu0 0.0
    %3066 = vmatpush.msra.mxu0 0.0
    %3067 = vmatpush.msra.mxu0 0.0
    %3068 = vmatpush.msra.mxu0 0.0
    %3069 = vmatpush.msra.mxu0 0.0
    %3070 = vmatpush.msra.mxu0 0.0
    %3071 = vmatpush.msra.mxu0 0.0
    %3072 = vmatpush.msra.mxu0 0.0
    %3073 = vmatpush.msra.mxu0 0.0
    %3074 = vmatpush.msra.mxu0 %v3017
    %3075 = vmatmul.f32.gmra.mxu0 %v3048
    %v3076 = vpop.f32.mrf.mxu0
    %v3077 = vadd.f32 %v3030, %v3076
    %3078 = vmatmul.f32.gmra.mxu0 %v3051
    %v3079 = vpop.f32.mrf.mxu0
    %v3080 = vadd.f32 %v3035, %v3079
    %3081 = vmatmul.f32.gmra.mxu0 %v3054
    %v3082 = vpop.f32.mrf.mxu0
    %v3083 = vadd.f32 %v3040, %v3082
    %3084 = vmatmul.f32.gmra.mxu0 %v3057
    %v3085 = vpop.f32.mrf.mxu0
    %v3086 = vadd.f32 %v3045, %v3085
    %3087 = vdwg.mxu0
    %3088 = vmatpush.msra.mxu0 0.0
    %3089 = vmatpush.msra.mxu0 0.0
    %3090 = vmatpush.msra.mxu0 0.0
    %3091 = vmatpush.msra.mxu0 0.0
    %3092 = vmatpush.msra.mxu0 0.0
    %3093 = vmatpush.msra.mxu0 0.0
    %3094 = vmatpush.msra.mxu0 0.0
    %3095 = vmatpush.msra.mxu0 0.0
    %3096 = vmatpush.msra.mxu0 0.0
    %3097 = vmatpush.msra.mxu0 0.0
    %3098 = vmatpush.msra.mxu0 0.0
    %3099 = vmatpush.msra.mxu0 0.0
    %3100 = vmatpush.msra.mxu0 0.0
    %3101 = vmatpush.msra.mxu0 0.0
    %3102 = vmatpush.msra.mxu0 0.0
    %3103 = vmatpush.msra.mxu0 %v3018
    %3104 = vmatmul.f32.gmra.mxu0 %v3048
    %v3105 = vpop.f32.mrf.mxu0
    %v3106 = vadd.f32 %v3030, %v3105
    %3107 = vmatmul.f32.gmra.mxu0 %v3051
    %v3108 = vpop.f32.mrf.mxu0
    %v3109 = vadd.f32 %v3035, %v3108
    %3110 = vmatmul.f32.gmra.mxu0 %v3054
    %v3111 = vpop.f32.mrf.mxu0
    %v3112 = vadd.f32 %v3040, %v3111
    %3113 = vmatmul.f32.gmra.mxu0 %v3057
    %v3114 = vpop.f32.mrf.mxu0
    %v3115 = vadd.f32 %v3045, %v3114
    %3116 = vdwg.mxu0
    %v3117 = vld [vmem:[#allocation3] sm:$0xff]
    %v3118 = vld [vmem:[#allocation3 + $0x8] sm:$0xff]
    %v3119 = vld [vmem:[#allocation3 + $0x10] sm:$0xff]
    %v3120 = vld [vmem:[#allocation3 + $0x18] sm:$0xff]
    %v3121 = vld [vmem:[#allocation3 + $0x20] sm:$0xff]
    %v3122 = vld [vmem:[#allocation3 + $0x28] sm:$0xff]
    %v3123 = vld [vmem:[#allocation3 + $0x30] sm:$0xff]
    %v3124 = vld [vmem:[#allocation3 + $0x38] sm:$0xff]
    %v3125 = vadd.f32 %v3077, %v3117
    %v3126 = vadd.f32 %v3106, %v3118
    %v3127 = vadd.f32 %v3080, %v3119
    %v3128 = vadd.f32 %v3109, %v3120
    %v3129 = vadd.f32 %v3083, %v3121
    %v3130 = vadd.f32 %v3112, %v3122
    %v3131 = vadd.f32 %v3086, %v3123
    %v3132 = vadd.f32 %v3115, %v3124
    %vm3133 = vcmp.gt.f32.partialorder %v3125, 0.0
    %vm3134 = vcmp.gt.f32.partialorder %v3126, 0.0
    %vm3135 = vcmp.gt.f32.partialorder %v3127, 0.0
    %vm3136 = vcmp.gt.f32.partialorder %v3128, 0.0
    %vm3137 = vcmp.gt.f32.partialorder %v3129, 0.0
    %vm3138 = vcmp.gt.f32.partialorder %v3130, 0.0
    %vm3139 = vcmp.gt.f32.partialorder %v3131, 0.0
    %vm3140 = vcmp.gt.f32.partialorder %v3132, 0.0
    %v3141 = vmin.f32 %v3125, 0.0
    %v3142 = vmin.f32 %v3126, 0.0
    %v3143 = vmin.f32 %v3127, 0.0
    %v3144 = vmin.f32 %v3128, 0.0
    %v3145 = vmin.f32 %v3129, 0.0
    %v3146 = vmin.f32 %v3130, 0.0
    %v3147 = vmin.f32 %v3131, 0.0
    %v3148 = vmin.f32 %v3132, 0.0
    %v3149 = vmul.f32 %v3141, 1.442695
    %v3150 = vpow.pop %v3149
    %v3151 = vmul.f32 %v3142, 1.442695
    %v3152 = vpow.pop %v3151
    %v3153 = vmul.f32 %v3143, 1.442695
    %v3154 = vpow.pop %v3153
    %v3155 = vmul.f32 %v3144, 1.442695
    %v3156 = vpow.pop %v3155
    %v3157 = vmul.f32 %v3145, 1.442695
    %v3158 = vpow.pop %v3157
    %v3159 = vmul.f32 %v3146, 1.442695
    %v3160 = vpow.pop %v3159
    %v3161 = vmul.f32 %v3147, 1.442695
    %v3162 = vpow.pop %v3161
    %v3163 = vmul.f32 %v3148, 1.442695
    %v3164 = vpow.pop %v3163
    %v3165 = vsub.f32 %v3150, 1.0
    %v3166 = vsub.f32 %v3152, 1.0
    %v3167 = vsub.f32 %v3154, 1.0
    %v3168 = vsub.f32 %v3156, 1.0
    %v3169 = vsub.f32 %v3158, 1.0
    %v3170 = vsub.f32 %v3160, 1.0
    %v3171 = vsub.f32 %v3162, 1.0
    %v3172 = vsub.f32 %v3164, 1.0
    %v3173 = vsel %vm3133, %v3125, %v3165
    %v3174 = vsel %vm3134, %v3126, %v3166
    %v3175 = vsel %vm3135, %v3127, %v3167
    %v3176 = vsel %vm3136, %v3128, %v3168
    %v3177 = vsel %vm3137, %v3129, %v3169
    %v3178 = vsel %vm3138, %v3130, %v3170
    %v3179 = vsel %vm3139, %v3131, %v3171
    %v3180 = vsel %vm3140, %v3132, %v3172
    %3181 = vst [vmem:[#allocation9] sm:$0xff] %v3173
    %3182 = vst [vmem:[#allocation9 + $0x8] sm:$0xff] %v3174
    %3183 = vst [vmem:[#allocation9 + $0x10] sm:$0xff] %v3175
    %3184 = vst [vmem:[#allocation9 + $0x18] sm:$0xff] %v3176
    %3185 = vst [vmem:[#allocation9 + $0x20] sm:$0xff] %v3177
    %3186 = vst [vmem:[#allocation9 + $0x28] sm:$0xff] %v3178
    %3187 = vst [vmem:[#allocation9 + $0x30] sm:$0xff] %v3179
    %3188 = vst [vmem:[#allocation9 + $0x38] sm:$0xff] %v3180
    %3189 = vmatpush.msra.mxu0 0.0
    %3190 = vmatpush.msra.mxu0 0.0
    %3191 = vmatpush.msra.mxu0 0.0
    %3192 = vmatpush.msra.mxu0 0.0
    %3193 = vmatpush.msra.mxu0 0.0
    %3194 = vmatpush.msra.mxu0 0.0
    %3195 = vmatpush.msra.mxu0 0.0
    %3196 = vmatpush.msra.mxu0 0.0
    %3197 = vmatpush.msra.mxu0 0.0
    %3198 = vmatpush.msra.mxu0 0.0
    %3199 = vmatpush.msra.mxu0 0.0
    %3200 = vmatpush.msra.mxu0 0.0
    %3201 = vmatpush.msra.mxu0 0.0
    %3202 = vmatpush.msra.mxu0 0.0
    %3203 = vmatpush.msra.mxu0 0.0
    %3204 = vmatpush.msra.mxu0 %v2172
    %3205 = vmatmul.f32.gmra.mxu0 %v2605
    %v3206 = vpop.f32.mrf.mxu0
    %v3207 = vadd.f32 0.0, %v3206
    %3208 = vdwg.mxu0
    %3209 = vmatpush.msra.mxu0 0.0
    %3210 = vmatpush.msra.mxu0 0.0
    %3211 = vmatpush.msra.mxu0 0.0
    %3212 = vmatpush.msra.mxu0 0.0
    %3213 = vmatpush.msra.mxu0 0.0
    %3214 = vmatpush.msra.mxu0 0.0
    %3215 = vmatpush.msra.mxu0 0.0
    %3216 = vmatpush.msra.mxu0 0.0
    %3217 = vmatpush.msra.mxu0 0.0
    %3218 = vmatpush.msra.mxu0 0.0
    %3219 = vmatpush.msra.mxu0 0.0
    %3220 = vmatpush.msra.mxu0 0.0
    %3221 = vmatpush.msra.mxu0 0.0
    %3222 = vmatpush.msra.mxu0 0.0
    %3223 = vmatpush.msra.mxu0 0.0
    %3224 = vmatpush.msra.mxu0 %v2200
    %3225 = vmatmul.f32.gmra.mxu0 %v2605
    %v3226 = vpop.f32.mrf.mxu0
    %v3227 = vadd.f32 0.0, %v3226
    %3228 = vdwg.mxu0
    %3229 = vmatpush.msra.mxu0 0.0
    %3230 = vmatpush.msra.mxu0 0.0
    %3231 = vmatpush.msra.mxu0 0.0
    %3232 = vmatpush.msra.mxu0 0.0
    %3233 = vmatpush.msra.mxu0 0.0
    %3234 = vmatpush.msra.mxu0 0.0
    %3235 = vmatpush.msra.mxu0 0.0
    %3236 = vmatpush.msra.mxu0 0.0
    %3237 = vmatpush.msra.mxu0 0.0
    %3238 = vmatpush.msra.mxu0 0.0
    %3239 = vmatpush.msra.mxu0 0.0
    %3240 = vmatpush.msra.mxu0 0.0
    %3241 = vmatpush.msra.mxu0 0.0
    %3242 = vmatpush.msra.mxu0 0.0
    %3243 = vmatpush.msra.mxu0 0.0
    %3244 = vmatpush.msra.mxu0 %v2284
    %3245 = vmatmul.f32.gmra.mxu0 %v2648
    %v3246 = vpop.f32.mrf.mxu0
    %v3247 = vadd.f32 0.0, %v3246
    %3248 = vdwg.mxu0
    %3249 = vmatpush.msra.mxu0 0.0
    %3250 = vmatpush.msra.mxu0 0.0
    %3251 = vmatpush.msra.mxu0 0.0
    %3252 = vmatpush.msra.mxu0 0.0
    %3253 = vmatpush.msra.mxu0 0.0
    %3254 = vmatpush.msra.mxu0 0.0
    %3255 = vmatpush.msra.mxu0 0.0
    %3256 = vmatpush.msra.mxu0 0.0
    %3257 = vmatpush.msra.mxu0 0.0
    %3258 = vmatpush.msra.mxu0 0.0
    %3259 = vmatpush.msra.mxu0 0.0
    %3260 = vmatpush.msra.mxu0 0.0
    %3261 = vmatpush.msra.mxu0 0.0
    %3262 = vmatpush.msra.mxu0 0.0
    %3263 = vmatpush.msra.mxu0 0.0
    %3264 = vmatpush.msra.mxu0 %v2312
    %3265 = vmatmul.f32.gmra.mxu0 %v2648
    %v3266 = vpop.f32.mrf.mxu0
    %v3267 = vadd.f32 0.0, %v3266
    %3268 = vdwg.mxu0
    %3269 = vmatpush.msra.mxu0 0.0
    %3270 = vmatpush.msra.mxu0 0.0
    %3271 = vmatpush.msra.mxu0 0.0
    %3272 = vmatpush.msra.mxu0 0.0
    %3273 = vmatpush.msra.mxu0 0.0
    %3274 = vmatpush.msra.mxu0 0.0
    %3275 = vmatpush.msra.mxu0 0.0
    %3276 = vmatpush.msra.mxu0 0.0
    %3277 = vmatpush.msra.mxu0 0.0
    %3278 = vmatpush.msra.mxu0 0.0
    %3279 = vmatpush.msra.mxu0 0.0
    %3280 = vmatpush.msra.mxu0 0.0
    %3281 = vmatpush.msra.mxu0 0.0
    %3282 = vmatpush.msra.mxu0 0.0
    %3283 = vmatpush.msra.mxu0 0.0
    %3284 = vmatpush.msra.mxu0 %v2396
    %3285 = vmatmul.f32.gmra.mxu0 %v2691
    %v3286 = vpop.f32.mrf.mxu0
    %v3287 = vadd.f32 0.0, %v3286
    %3288 = vdwg.mxu0
    %3289 = vmatpush.msra.mxu0 0.0
    %3290 = vmatpush.msra.mxu0 0.0
    %3291 = vmatpush.msra.mxu0 0.0
    %3292 = vmatpush.msra.mxu0 0.0
    %3293 = vmatpush.msra.mxu0 0.0
    %3294 = vmatpush.msra.mxu0 0.0
    %3295 = vmatpush.msra.mxu0 0.0
    %3296 = vmatpush.msra.mxu0 0.0
    %3297 = vmatpush.msra.mxu0 0.0
    %3298 = vmatpush.msra.mxu0 0.0
    %3299 = vmatpush.msra.mxu0 0.0
    %3300 = vmatpush.msra.mxu0 0.0
    %3301 = vmatpush.msra.mxu0 0.0
    %3302 = vmatpush.msra.mxu0 0.0
    %3303 = vmatpush.msra.mxu0 0.0
    %3304 = vmatpush.msra.mxu0 %v2424
    %3305 = vmatmul.f32.gmra.mxu0 %v2691
    %v3306 = vpop.f32.mrf.mxu0
    %v3307 = vadd.f32 0.0, %v3306
    %3308 = vdwg.mxu0
    %3309 = vmatpush.msra.mxu0 0.0
    %3310 = vmatpush.msra.mxu0 0.0
    %3311 = vmatpush.msra.mxu0 0.0
    %3312 = vmatpush.msra.mxu0 0.0
    %3313 = vmatpush.msra.mxu0 0.0
    %3314 = vmatpush.msra.mxu0 0.0
    %3315 = vmatpush.msra.mxu0 0.0
    %3316 = vmatpush.msra.mxu0 0.0
    %3317 = vmatpush.msra.mxu0 0.0
    %3318 = vmatpush.msra.mxu0 0.0
    %3319 = vmatpush.msra.mxu0 0.0
    %3320 = vmatpush.msra.mxu0 0.0
    %3321 = vmatpush.msra.mxu0 0.0
    %3322 = vmatpush.msra.mxu0 0.0
    %3323 = vmatpush.msra.mxu0 0.0
    %3324 = vmatpush.msra.mxu0 %v2508
    %3325 = vmatmul.f32.gmra.mxu0 %v2734
    %v3326 = vpop.f32.mrf.mxu0
    %v3327 = vadd.f32 0.0, %v3326
    %3328 = vdwg.mxu0
    %3329 = vmatpush.msra.mxu0 0.0
    %3330 = vmatpush.msra.mxu0 0.0
    %3331 = vmatpush.msra.mxu0 0.0
    %3332 = vmatpush.msra.mxu0 0.0
    %3333 = vmatpush.msra.mxu0 0.0
    %3334 = vmatpush.msra.mxu0 0.0
    %3335 = vmatpush.msra.mxu0 0.0
    %3336 = vmatpush.msra.mxu0 0.0
    %3337 = vmatpush.msra.mxu0 0.0
    %3338 = vmatpush.msra.mxu0 0.0
    %3339 = vmatpush.msra.mxu0 0.0
    %3340 = vmatpush.msra.mxu0 0.0
    %3341 = vmatpush.msra.mxu0 0.0
    %3342 = vmatpush.msra.mxu0 0.0
    %3343 = vmatpush.msra.mxu0 0.0
    %3344 = vmatpush.msra.mxu0 %v2536
    %3345 = vmatmul.f32.gmra.mxu0 %v2734
    %v3346 = vpop.f32.mrf.mxu0
    %v3347 = vadd.f32 0.0, %v3346
    %3348 = vdwg.mxu0
    %3349 = vmatpush.msra.mxu0 0.0
    %3350 = vmatpush.msra.mxu0 0.0
    %3351 = vmatpush.msra.mxu0 0.0
    %3352 = vmatpush.msra.mxu0 0.0
    %3353 = vmatpush.msra.mxu0 0.0
    %3354 = vmatpush.msra.mxu0 0.0
    %3355 = vmatpush.msra.mxu0 0.0
    %3356 = vmatpush.msra.mxu0 0.0
    %3357 = vmatpush.msra.mxu0 0.0
    %3358 = vmatpush.msra.mxu0 0.0
    %3359 = vmatpush.msra.mxu0 0.0
    %3360 = vmatpush.msra.mxu0 0.0
    %3361 = vmatpush.msra.mxu0 0.0
    %3362 = vmatpush.msra.mxu0 0.0
    %3363 = vmatpush.msra.mxu0 0.0
    %3364 = vmatpush.msra.mxu0 %v2564
    %3365 = vmatmul.f32.gmra.mxu0 %v2777
    %v3366 = vpop.f32.mrf.mxu0
    %v3367 = vadd.f32 0.0, %v3366
    %3368 = vdwg.mxu0
    %3369 = vmatpush.msra.mxu0 0.0
    %3370 = vmatpush.msra.mxu0 0.0
    %3371 = vmatpush.msra.mxu0 0.0
    %3372 = vmatpush.msra.mxu0 0.0
    %3373 = vmatpush.msra.mxu0 0.0
    %3374 = vmatpush.msra.mxu0 0.0
    %3375 = vmatpush.msra.mxu0 0.0
    %3376 = vmatpush.msra.mxu0 0.0
    %3377 = vmatpush.msra.mxu0 0.0
    %3378 = vmatpush.msra.mxu0 0.0
    %3379 = vmatpush.msra.mxu0 0.0
    %3380 = vmatpush.msra.mxu0 0.0
    %3381 = vmatpush.msra.mxu0 0.0
    %3382 = vmatpush.msra.mxu0 0.0
    %3383 = vmatpush.msra.mxu0 0.0
    %3384 = vmatpush.msra.mxu0 %v2592
    %3385 = vmatmul.f32.gmra.mxu0 %v2777
    %v3386 = vpop.f32.mrf.mxu0
    %v3387 = vadd.f32 0.0, %v3386
    %3388 = vdwg.mxu0
    %3389 = vmatpush.msra.mxu0 0.0
    %3390 = vmatpush.msra.mxu0 0.0
    %3391 = vmatpush.msra.mxu0 0.0
    %3392 = vmatpush.msra.mxu0 0.0
    %3393 = vmatpush.msra.mxu0 0.0
    %3394 = vmatpush.msra.mxu0 0.0
    %3395 = vmatpush.msra.mxu0 0.0
    %3396 = vmatpush.msra.mxu0 0.0
    %3397 = vmatpush.msra.mxu0 0.0
    %3398 = vmatpush.msra.mxu0 0.0
    %3399 = vmatpush.msra.mxu0 0.0
    %3400 = vmatpush.msra.mxu0 0.0
    %3401 = vmatpush.msra.mxu0 0.0
    %3402 = vmatpush.msra.mxu0 0.0
    %3403 = vmatpush.msra.mxu0 0.0
    %3404 = vmatpush.msra.mxu0 %v2116
    %3405 = vmatmul.f32.gmra.mxu0 %v2820
    %v3406 = vpop.f32.mrf.mxu0
    %v3407 = vadd.f32 %v3207, %v3406
    %3408 = vdwg.mxu0
    %3409 = vmatpush.msra.mxu0 0.0
    %3410 = vmatpush.msra.mxu0 0.0
    %3411 = vmatpush.msra.mxu0 0.0
    %3412 = vmatpush.msra.mxu0 0.0
    %3413 = vmatpush.msra.mxu0 0.0
    %3414 = vmatpush.msra.mxu0 0.0
    %3415 = vmatpush.msra.mxu0 0.0
    %3416 = vmatpush.msra.mxu0 0.0
    %3417 = vmatpush.msra.mxu0 0.0
    %3418 = vmatpush.msra.mxu0 0.0
    %3419 = vmatpush.msra.mxu0 0.0
    %3420 = vmatpush.msra.mxu0 0.0
    %3421 = vmatpush.msra.mxu0 0.0
    %3422 = vmatpush.msra.mxu0 0.0
    %3423 = vmatpush.msra.mxu0 0.0
    %3424 = vmatpush.msra.mxu0 %v2144
    %3425 = vmatmul.f32.gmra.mxu0 %v2820
    %v3426 = vpop.f32.mrf.mxu0
    %v3427 = vadd.f32 %v3227, %v3426
    %3428 = vdwg.mxu0
    %3429 = vmatpush.msra.mxu0 0.0
    %3430 = vmatpush.msra.mxu0 0.0
    %3431 = vmatpush.msra.mxu0 0.0
    %3432 = vmatpush.msra.mxu0 0.0
    %3433 = vmatpush.msra.mxu0 0.0
    %3434 = vmatpush.msra.mxu0 0.0
    %3435 = vmatpush.msra.mxu0 0.0
    %3436 = vmatpush.msra.mxu0 0.0
    %3437 = vmatpush.msra.mxu0 0.0
    %3438 = vmatpush.msra.mxu0 0.0
    %3439 = vmatpush.msra.mxu0 0.0
    %3440 = vmatpush.msra.mxu0 0.0
    %3441 = vmatpush.msra.mxu0 0.0
    %3442 = vmatpush.msra.mxu0 0.0
    %3443 = vmatpush.msra.mxu0 0.0
    %3444 = vmatpush.msra.mxu0 %v2228
    %3445 = vmatmul.f32.gmra.mxu0 %v2863
    %v3446 = vpop.f32.mrf.mxu0
    %v3447 = vadd.f32 %v3247, %v3446
    %3448 = vdwg.mxu0
    %3449 = vmatpush.msra.mxu0 0.0
    %3450 = vmatpush.msra.mxu0 0.0
    %3451 = vmatpush.msra.mxu0 0.0
    %3452 = vmatpush.msra.mxu0 0.0
    %3453 = vmatpush.msra.mxu0 0.0
    %3454 = vmatpush.msra.mxu0 0.0
    %3455 = vmatpush.msra.mxu0 0.0
    %3456 = vmatpush.msra.mxu0 0.0
    %3457 = vmatpush.msra.mxu0 0.0
    %3458 = vmatpush.msra.mxu0 0.0
    %3459 = vmatpush.msra.mxu0 0.0
    %3460 = vmatpush.msra.mxu0 0.0
    %3461 = vmatpush.msra.mxu0 0.0
    %3462 = vmatpush.msra.mxu0 0.0
    %3463 = vmatpush.msra.mxu0 0.0
    %3464 = vmatpush.msra.mxu0 %v2256
    %3465 = vmatmul.f32.gmra.mxu0 %v2863
    %v3466 = vpop.f32.mrf.mxu0
    %v3467 = vadd.f32 %v3267, %v3466
    %3468 = vdwg.mxu0
    %3469 = vmatpush.msra.mxu0 0.0
    %3470 = vmatpush.msra.mxu0 0.0
    %3471 = vmatpush.msra.mxu0 0.0
    %3472 = vmatpush.msra.mxu0 0.0
    %3473 = vmatpush.msra.mxu0 0.0
    %3474 = vmatpush.msra.mxu0 0.0
    %3475 = vmatpush.msra.mxu0 0.0
    %3476 = vmatpush.msra.mxu0 0.0
    %3477 = vmatpush.msra.mxu0 0.0
    %3478 = vmatpush.msra.mxu0 0.0
    %3479 = vmatpush.msra.mxu0 0.0
    %3480 = vmatpush.msra.mxu0 0.0
    %3481 = vmatpush.msra.mxu0 0.0
    %3482 = vmatpush.msra.mxu0 0.0
    %3483 = vmatpush.msra.mxu0 0.0
    %3484 = vmatpush.msra.mxu0 %v2340
    %3485 = vmatmul.f32.gmra.mxu0 %v2906
    %v3486 = vpop.f32.mrf.mxu0
    %v3487 = vadd.f32 %v3287, %v3486
    %3488 = vdwg.mxu0
    %3489 = vmatpush.msra.mxu0 0.0
    %3490 = vmatpush.msra.mxu0 0.0
    %3491 = vmatpush.msra.mxu0 0.0
    %3492 = vmatpush.msra.mxu0 0.0
    %3493 = vmatpush.msra.mxu0 0.0
    %3494 = vmatpush.msra.mxu0 0.0
    %3495 = vmatpush.msra.mxu0 0.0
    %3496 = vmatpush.msra.mxu0 0.0
    %3497 = vmatpush.msra.mxu0 0.0
    %3498 = vmatpush.msra.mxu0 0.0
    %3499 = vmatpush.msra.mxu0 0.0
    %3500 = vmatpush.msra.mxu0 0.0
    %3501 = vmatpush.msra.mxu0 0.0
    %3502 = vmatpush.msra.mxu0 0.0
    %3503 = vmatpush.msra.mxu0 0.0
    %3504 = vmatpush.msra.mxu0 %v2368
    %3505 = vmatmul.f32.gmra.mxu0 %v2906
    %v3506 = vpop.f32.mrf.mxu0
    %v3507 = vadd.f32 %v3307, %v3506
    %3508 = vdwg.mxu0
    %3509 = vmatpush.msra.mxu0 0.0
    %3510 = vmatpush.msra.mxu0 0.0
    %3511 = vmatpush.msra.mxu0 0.0
    %3512 = vmatpush.msra.mxu0 0.0
    %3513 = vmatpush.msra.mxu0 0.0
    %3514 = vmatpush.msra.mxu0 0.0
    %3515 = vmatpush.msra.mxu0 0.0
    %3516 = vmatpush.msra.mxu0 0.0
    %3517 = vmatpush.msra.mxu0 0.0
    %3518 = vmatpush.msra.mxu0 0.0
    %3519 = vmatpush.msra.mxu0 0.0
    %3520 = vmatpush.msra.mxu0 0.0
    %3521 = vmatpush.msra.mxu0 0.0
    %3522 = vmatpush.msra.mxu0 0.0
    %3523 = vmatpush.msra.mxu0 0.0
    %3524 = vmatpush.msra.mxu0 %v2452
    %3525 = vmatmul.f32.gmra.mxu0 %v2949
    %v3526 = vpop.f32.mrf.mxu0
    %v3527 = vadd.f32 %v3327, %v3526
    %3528 = vdwg.mxu0
    %3529 = vmatpush.msra.mxu0 0.0
    %3530 = vmatpush.msra.mxu0 0.0
    %3531 = vmatpush.msra.mxu0 0.0
    %3532 = vmatpush.msra.mxu0 0.0
    %3533 = vmatpush.msra.mxu0 0.0
    %3534 = vmatpush.msra.mxu0 0.0
    %3535 = vmatpush.msra.mxu0 0.0
    %3536 = vmatpush.msra.mxu0 0.0
    %3537 = vmatpush.msra.mxu0 0.0
    %3538 = vmatpush.msra.mxu0 0.0
    %3539 = vmatpush.msra.mxu0 0.0
    %3540 = vmatpush.msra.mxu0 0.0
    %3541 = vmatpush.msra.mxu0 0.0
    %3542 = vmatpush.msra.mxu0 0.0
    %3543 = vmatpush.msra.mxu0 0.0
    %3544 = vmatpush.msra.mxu0 %v2480
    %3545 = vmatmul.f32.gmra.mxu0 %v2949
    %v3546 = vpop.f32.mrf.mxu0
    %v3547 = vadd.f32 %v3347, %v3546
    %3548 = vdwg.mxu0
    %v3549 = vadd.f32 %v3407, %v3447
    %v3550 = vadd.f32 %v3427, %v3467
    %v3551 = vadd.f32 %v3487, %v3527
    %v3552 = vadd.f32 %v3507, %v3547
    %v3553 = vadd.f32 %v3549, %v3551
    %v3554 = vadd.f32 %v3550, %v3552
    %v3555 = vadd.f32 %v3553, %v3367
    %v3556 = vadd.f32 %v3554, %v3387
    %v3557 = vld [vmem:[%s5] sm:$0xff]
    %3559 = vset.pattern.permute.xlu0 0
    %3560 = vperm.xlu0 %3559, %v3557
    %v3561 = vpop.permute.xlu0 %3560
    %v3563 = vadd.f32 %v3555, %v3561
    %v3564 = vadd.f32 %v3556, %v3561
    %vm3565 = vcmp.gt.f32.partialorder %v3563, 0.0
    %vm3566 = vcmp.gt.f32.partialorder %v3564, 0.0
    %v3567 = vmin.f32 %v3563, 0.0
    %v3568 = vmin.f32 %v3564, 0.0
    %v3569 = vmul.f32 %v3567, 1.442695
    %v3570 = vpow.pop %v3569
    %v3571 = vmul.f32 %v3568, 1.442695
    %v3572 = vpow.pop %v3571
    %v3573 = vsub.f32 %v3570, 1.0
    %v3574 = vsub.f32 %v3572, 1.0
    %v3575 = vsel %vm3565, %v3563, %v3573
    %v3576 = vsel %vm3566, %v3564, %v3574
    %v3577 = vld [vmem:[%s6] sm:$0xff]
    %v3578 = vld [vmem:[%s6 + $0x8] sm:$0xff]
    %v3579 = vld [vmem:[%s6 + $0x10] sm:$0xff]
    %v3580 = vld [vmem:[%s6 + $0x18] sm:$0xff]
    %v3581 = vld [vmem:[%s7] sm:$0xff]
    %v3582 = vld [vmem:[%s7 + $0x8] sm:$0xff]
    %v3583 = vld [vmem:[%s7 + $0x10] sm:$0xff]
    %v3584 = vld [vmem:[%s7 + $0x18] sm:$0xff]
    %3586 = vset.pattern.permute.xlu0 0
    %3587 = vperm.xlu0 %3586, %v3581
    %v3588 = vpop.permute.xlu0 %3587
    %3591 = vset.pattern.permute.xlu0 0
    %3592 = vperm.xlu0 %3591, %v3582
    %v3593 = vpop.permute.xlu0 %3592
    %3596 = vset.pattern.permute.xlu0 0
    %3597 = vperm.xlu0 %3596, %v3583
    %v3598 = vpop.permute.xlu0 %3597
    %3601 = vset.pattern.permute.xlu0 0
    %3602 = vperm.xlu0 %3601, %v3584
    %v3603 = vpop.permute.xlu0 %3602
    %v3606 = vsel %vm2603, %v3577, 0
    %v3609 = vsel %vm2603, %v3578, 0
    %v3612 = vsel %vm2603, %v3579, 0
    %v3615 = vsel %vm2603, %v3580, 0
    %3617 = vmatpush.msra.mxu0 0.0
    %3618 = vmatpush.msra.mxu0 0.0
    %3619 = vmatpush.msra.mxu0 0.0
    %3620 = vmatpush.msra.mxu0 0.0
    %3621 = vmatpush.msra.mxu0 0.0
    %3622 = vmatpush.msra.mxu0 0.0
    %3623 = vmatpush.msra.mxu0 0.0
    %3624 = vmatpush.msra.mxu0 0.0
    %3625 = vmatpush.msra.mxu0 0.0
    %3626 = vmatpush.msra.mxu0 0.0
    %3627 = vmatpush.msra.mxu0 0.0
    %3628 = vmatpush.msra.mxu0 0.0
    %3629 = vmatpush.msra.mxu0 0.0
    %3630 = vmatpush.msra.mxu0 0.0
    %3631 = vmatpush.msra.mxu0 0.0
    %3632 = vmatpush.msra.mxu0 %v3575
    %3633 = vmatmul.f32.gmra.mxu0 %v3606
    %v3634 = vpop.f32.mrf.mxu0
    %v3635 = vadd.f32 %v3588, %v3634
    %3636 = vmatmul.f32.gmra.mxu0 %v3609
    %v3637 = vpop.f32.mrf.mxu0
    %v3638 = vadd.f32 %v3593, %v3637
    %3639 = vmatmul.f32.gmra.mxu0 %v3612
    %v3640 = vpop.f32.mrf.mxu0
    %v3641 = vadd.f32 %v3598, %v3640
    %3642 = vmatmul.f32.gmra.mxu0 %v3615
    %v3643 = vpop.f32.mrf.mxu0
    %v3644 = vadd.f32 %v3603, %v3643
    %3645 = vdwg.mxu0
    %3646 = vmatpush.msra.mxu0 0.0
    %3647 = vmatpush.msra.mxu0 0.0
    %3648 = vmatpush.msra.mxu0 0.0
    %3649 = vmatpush.msra.mxu0 0.0
    %3650 = vmatpush.msra.mxu0 0.0
    %3651 = vmatpush.msra.mxu0 0.0
    %3652 = vmatpush.msra.mxu0 0.0
    %3653 = vmatpush.msra.mxu0 0.0
    %3654 = vmatpush.msra.mxu0 0.0
    %3655 = vmatpush.msra.mxu0 0.0
    %3656 = vmatpush.msra.mxu0 0.0
    %3657 = vmatpush.msra.mxu0 0.0
    %3658 = vmatpush.msra.mxu0 0.0
    %3659 = vmatpush.msra.mxu0 0.0
    %3660 = vmatpush.msra.mxu0 0.0
    %3661 = vmatpush.msra.mxu0 %v3576
    %3662 = vmatmul.f32.gmra.mxu0 %v3606
    %v3663 = vpop.f32.mrf.mxu0
    %v3664 = vadd.f32 %v3588, %v3663
    %3665 = vmatmul.f32.gmra.mxu0 %v3609
    %v3666 = vpop.f32.mrf.mxu0
    %v3667 = vadd.f32 %v3593, %v3666
    %3668 = vmatmul.f32.gmra.mxu0 %v3612
    %v3669 = vpop.f32.mrf.mxu0
    %v3670 = vadd.f32 %v3598, %v3669
    %3671 = vmatmul.f32.gmra.mxu0 %v3615
    %v3672 = vpop.f32.mrf.mxu0
    %v3673 = vadd.f32 %v3603, %v3672
    %3674 = vdwg.mxu0
    %v3675 = vld [vmem:[%s347] sm:$0xff]
    %v3676 = vld [vmem:[%s347 + $0x8] sm:$0xff]
    %v3677 = vld [vmem:[%s347 + $0x10] sm:$0xff]
    %v3678 = vld [vmem:[%s347 + $0x18] sm:$0xff]
    %v3679 = vld [vmem:[%s347 + $0x20] sm:$0xff]
    %v3680 = vld [vmem:[%s347 + $0x28] sm:$0xff]
    %v3681 = vld [vmem:[%s347 + $0x30] sm:$0xff]
    %v3682 = vld [vmem:[%s347 + $0x38] sm:$0xff]
    %v3683 = vadd.f32 %v3635, %v3675
    %v3684 = vadd.f32 %v3664, %v3676
    %v3685 = vadd.f32 %v3638, %v3677
    %v3686 = vadd.f32 %v3667, %v3678
    %v3687 = vadd.f32 %v3641, %v3679
    %v3688 = vadd.f32 %v3670, %v3680
    %v3689 = vadd.f32 %v3644, %v3681
    %v3690 = vadd.f32 %v3673, %v3682
    %vm3691 = vcmp.gt.f32.partialorder %v3683, 0.0
    %vm3692 = vcmp.gt.f32.partialorder %v3684, 0.0
    %vm3693 = vcmp.gt.f32.partialorder %v3685, 0.0
    %vm3694 = vcmp.gt.f32.partialorder %v3686, 0.0
    %vm3695 = vcmp.gt.f32.partialorder %v3687, 0.0
    %vm3696 = vcmp.gt.f32.partialorder %v3688, 0.0
    %vm3697 = vcmp.gt.f32.partialorder %v3689, 0.0
    %vm3698 = vcmp.gt.f32.partialorder %v3690, 0.0
    %v3699 = vmin.f32 %v3683, 0.0
    %v3700 = vmin.f32 %v3684, 0.0
    %v3701 = vmin.f32 %v3685, 0.0
    %v3702 = vmin.f32 %v3686, 0.0
    %v3703 = vmin.f32 %v3687, 0.0
    %v3704 = vmin.f32 %v3688, 0.0
    %v3705 = vmin.f32 %v3689, 0.0
    %v3706 = vmin.f32 %v3690, 0.0
    %v3707 = vmul.f32 %v3699, 1.442695
    %v3708 = vpow.pop %v3707
    %v3709 = vmul.f32 %v3700, 1.442695
    %v3710 = vpow.pop %v3709
    %v3711 = vmul.f32 %v3701, 1.442695
    %v3712 = vpow.pop %v3711
    %v3713 = vmul.f32 %v3702, 1.442695
    %v3714 = vpow.pop %v3713
    %v3715 = vmul.f32 %v3703, 1.442695
    %v3716 = vpow.pop %v3715
    %v3717 = vmul.f32 %v3704, 1.442695
    %v3718 = vpow.pop %v3717
    %v3719 = vmul.f32 %v3705, 1.442695
    %v3720 = vpow.pop %v3719
    %v3721 = vmul.f32 %v3706, 1.442695
    %v3722 = vpow.pop %v3721
    %v3723 = vsub.f32 %v3708, 1.0
    %v3724 = vsub.f32 %v3710, 1.0
    %v3725 = vsub.f32 %v3712, 1.0
    %v3726 = vsub.f32 %v3714, 1.0
    %v3727 = vsub.f32 %v3716, 1.0
    %v3728 = vsub.f32 %v3718, 1.0
    %v3729 = vsub.f32 %v3720, 1.0
    %v3730 = vsub.f32 %v3722, 1.0
    %v3731 = vsel %vm3691, %v3683, %v3723
    %v3732 = vsel %vm3692, %v3684, %v3724
    %v3733 = vsel %vm3693, %v3685, %v3725
    %v3734 = vsel %vm3694, %v3686, %v3726
    %v3735 = vsel %vm3695, %v3687, %v3727
    %v3736 = vsel %vm3696, %v3688, %v3728
    %v3737 = vsel %vm3697, %v3689, %v3729
    %v3738 = vsel %vm3698, %v3690, %v3730
    %s3739 = scalar_lea.vmem [#allocation9], 64
    %3740 = vst [vmem:[%s3739] sm:$0xff] %v3731
    %3741 = vst [vmem:[%s3739 + $0x8] sm:$0xff] %v3732
    %3742 = vst [vmem:[%s3739 + $0x10] sm:$0xff] %v3733
    %3743 = vst [vmem:[%s3739 + $0x18] sm:$0xff] %v3734
    %3744 = vst [vmem:[%s3739 + $0x20] sm:$0xff] %v3735
    %3745 = vst [vmem:[%s3739 + $0x28] sm:$0xff] %v3736
    %3746 = vst [vmem:[%s3739 + $0x30] sm:$0xff] %v3737
    %3747 = vst [vmem:[%s3739 + $0x38] sm:$0xff] %v3738
    // Predicated region
    $region42: #{tpu_custom_call.1} parent=1 // pred_check
      _
    $region43: #{tpu_custom_call.1} parent=1 // pred_check_branch
      %3749 = sbr.rel (0) target = $region45
    $region44: #{tpu_custom_call.1} parent=1 // pred_region
      %3751 = vsyncadd [#allocation6], 0
      %s3752 = sshll.u32 [#allocation9], 4
      %s3753 = int_to_ptr.vmem [resolvable:$true] %s3752
      %s3754 = sshll.u32 %s8, 4
      %s3755 = int_to_ptr.hbm [resolvable:$true] %s3754
      %3760 = dma.vmem_to_hbm [thread:$0]  %s3753, 2048, %s3755, [#allocation6], 256, 256, 16
    $region45: #{tpu_custom_call.1} parent=1 // pred_fallthru
      _
    // Predicated region
    $region46: #{tpu_custom_call.1} parent=1 // pred_check
      _
    $region47: #{tpu_custom_call.1} parent=1 // pred_check_branch
      %3762 = sbr.rel (0) target = $region49
    $region48: #{tpu_custom_call.1} parent=1 // pred_region
      %3764 = dma.done [#allocation6], 2048
    $region49: #{tpu_custom_call.1} parent=1 // pred_fallthru
      _
    %3765 = vsyncpa [#allocation5], 1
    %3766 = vsyncpa [#allocation8], 1
    %3767 = vsyncpa [#allocation6], 1

</llo_original>
